<compile_context>
chip_gen: v7x
topology: tpu7x:2x2x1
jax: 0.10.0
libtpu: 0.0.40
codegen_flags: <defaults>
</compile_context>

<pallas_src>
import functools

import jax
import jax.numpy as jnp
from jax import lax
from jax.experimental import pallas as pl
from jax.experimental.pallas import tpu as pltpu

# Constants implied by the module (undefined globals in the torch snippet):
INV_SCALE_FACTOR = 8.0   # TODO(synk): inv_scale_factor is undefined in the source; use sqrt(D)=8
DROPOUT_P = 0.0          # TODO(synk): dropout_p undefined; eval-mode dropout == identity

LK = 512                 # key/seq length forced by value.shape[0]
N_OUT = 4096             # output feature dim forced by value.shape[1]


def _attn_kernel(in1_ref, in2_ref, val_ref, out_ref, *, inv_scale):
    # Grid = (N_tiles, Lq_tiles), both "parallel"; q axis innermost so the
    # value tile only changes on the outer axis (streamed exactly once).
    # Softmax is recomputed per N tile (cheap) so there is no cross-iteration
    # state and either axis may be sharded across TensorCores.
    B, tq, _ = in1_ref.shape
    Lk = in2_ref.shape[1]

    # Fold the 1/inv_scale into q: scales B*tq*D elements instead of B*tq*Lk.
    q = in1_ref[...] * (1.0 / inv_scale)               # (B, tq, D)
    k = in2_ref[...]                                    # (B, Lk, D)

    # Batched QK^T contracting on D (no transpose materialized): (B, tq, Lk).
    # HIGHEST precision keeps the softmax logits accurate; this matmul is only
    # ~6% of the kernel FLOPs so the extra MXU passes are negligible.
    qk = lax.dot_general(
        q, k,
        dimension_numbers=(((2,), (2,)), ((0,), (0,))),
        precision=lax.Precision.HIGHEST,
        preferred_element_type=jnp.float32,
    )

    m = jnp.max(qk, axis=-1, keepdims=True)
    e = jnp.exp(qk - m)
    denom = jnp.sum(e, axis=-1, keepdims=True)
    p = e * pl.reciprocal(denom, approx=True)           # softmax over Lk

    # Fold batch into M: (B*tq, Lk) @ (Lk, tn) -> (B*tq, tn) on the MXU.
    # bf16 operands (p in [0,1], value pre-cast in wrapper), f32 accumulation.
    p2 = p.reshape(B * tq, Lk).astype(jnp.bfloat16)
    o = jnp.dot(p2, val_ref[...], preferred_element_type=jnp.float32)
    out_ref[...] = o.reshape(B, tq, -1).astype(out_ref.dtype)


def model_forward(in1, in2, value, *, tq=128, tn=1024,
                  inv_scale=INV_SCALE_FACTOR):
    """Fused qk -> scale -> softmax -> (dropout id) -> @value."""
    B, Lq, D = in1.shape
    Bk, Lk, Dk = in2.shape
    assert (B, D) == (Bk, Dk) and Lk == value.shape[0]
    N = value.shape[1]

    tq = min(tq, Lq)
    tn = min(tn, N)
    assert Lq % tq == 0 and N % tn == 0

    # bf16 value: halves the dominant HBM stream and its VMEM double buffer.
    value_bf16 = value.astype(jnp.bfloat16)

    # q axis innermost -> value block index only changes on the outer axis,
    # so the full value matrix is DMA'd exactly once regardless of Lq.
    grid = (N // tn, Lq // tq)

    kernel = functools.partial(_attn_kernel, inv_scale=inv_scale)

    return pl.pallas_call(
        kernel,
        out_shape=jax.ShapeDtypeStruct((B, Lq, N), jnp.float32),
        grid_spec=pltpu.PrefetchScalarGridSpec(
            num_scalar_prefetch=0,
            grid=grid,
            in_specs=[
                pl.BlockSpec((B, tq, D), lambda n, i: (0, i, 0)),   # in1 q-tile, all batches
                pl.BlockSpec((B, Lk, D), lambda n, i: (0, 0, 0)),   # full in2 (resident)
                pl.BlockSpec((Lk, tn),   lambda n, i: (0, n)),      # value N tile (read once)
            ],
            out_specs=pl.BlockSpec((B, tq, tn), lambda n, i: (0, i, n)),
        ),
        compiler_params=pltpu.CompilerParams(
            dimension_semantics=("parallel", "parallel"),
            vmem_limit_bytes=32 << 20,   # plenty of headroom; footprint ~7 MiB
        ),
    )(in1, in2, value_bf16)


def model_forward_ref(in1, in2, value, inv_scale=INV_SCALE_FACTOR):
    qk = jnp.einsum("bqd,bkd->bqk", in1, in2,
                    precision=lax.Precision.HIGHEST) / inv_scale
    p = jax.nn.softmax(qk, axis=-1)
    return jnp.einsum("bqk,kn->bqn", p, value,
                      precision=lax.Precision.HIGHEST)


if __name__ == "__main__":
    key = jax.random.PRNGKey(0)
    k1, k2, k3, k4, k5 = jax.random.split(key, 5)

    B, Lq, D = 2, 128, 64          # small query side; Lk/N fixed by the module

    # Module parameters (deterministic init). query/key are unused in forward.
    query_param = jax.random.normal(k1, (4096, 512), dtype=jnp.float32)
    key_param = jax.random.normal(k2, (4096, 512), dtype=jnp.float32)
    value_param = jax.random.normal(k3, (LK, N_OUT), dtype=jnp.float32)

    in1 = jax.random.normal(k4, (B, Lq, D), dtype=jnp.float32)
    in2 = jax.random.normal(k5, (B, LK, D), dtype=jnp.float32)

    out = model_forward(in1, in2, value_param)
    out = jax.block_until_ready(out)

    ref = model_forward_ref(in1, in2, value_param)
    assert out.shape == (B, Lq, N_OUT)
    # bf16 operands in the PV matmul (f32 accumulation) -> ~1e-3 abs error on
    # O(0.1)-magnitude outputs; 5e-3 tolerance validates semantics comfortably.
    assert jnp.allclose(out, ref, atol=5e-3, rtol=5e-3), "mismatch vs reference"

    print("KERNEL_OK")
</pallas_src>

<mosaic_0001>
module attributes {stable_mosaic.version = 11 : i64} {
  func.func @_attn_kernel(%arg0: i32, %arg1: i32, %arg2: memref<2x128x64xf32, #tpu.memory_space<vmem>>, %arg3: memref<2x512x64xf32, #tpu.memory_space<vmem>>, %arg4: memref<512x1024xbf16, #tpu.memory_space<vmem>>, %arg5: memref<2x128x1024xf32, #tpu.memory_space<vmem>>) attributes {dimension_semantics = [#tpu.dimension_semantics<parallel>, #tpu.dimension_semantics<parallel>], iteration_bounds = array<i64: 4, 1>, scalar_prefetch = 0 : i64, scratch_operands = 0 : i64, tpu.core_type = #tpu.core_type<tc>, window_params = [{transform_indices = @transform_0, window_bounds = array<i64: 2, 128, 64>}, {pipeline_mode = #tpu.pipeline_mode<synchronous>, transform_indices = @transform_1, window_bounds = array<i64: 2, 512, 64>}, {transform_indices = @transform_2, window_bounds = array<i64: 512, 1024>}, {transform_indices = @transform_3, window_bounds = array<i64: 2, 128, 1024>}]} {
    %c0 = arith.constant 0 : index
    %c0_0 = arith.constant 0 : index
    %c0_1 = arith.constant 0 : index
    %0 = vector.load %arg2[%c0, %c0_0, %c0_1] : memref<2x128x64xf32, #tpu.memory_space<vmem>>, vector<2x128x64xf32>
    %cst = arith.constant 1.250000e-01 : f32
    %1 = vector.broadcast %cst : f32 to vector<2x128x64xf32>
    %2 = arith.mulf %0, %1 : vector<2x128x64xf32>
    %c0_2 = arith.constant 0 : index
    %c0_3 = arith.constant 0 : index
    %c0_4 = arith.constant 0 : index
    %3 = vector.load %arg3[%c0_2, %c0_3, %c0_4] : memref<2x512x64xf32, #tpu.memory_space<vmem>>, vector<2x512x64xf32>
    %cst_5 = arith.constant dense<0.000000e+00> : vector<2x128x512xf32>
    %4 = tpu.matmul %2, %3, %cst_5 {dimension_numbers = #tpu.dot_dimension_numbers<[2], [2], [1], [1], [0, 0, 0, 1, 1, 1], [0], [0]>, precision = #tpu.contract_precision<fp32>} : vector<2x128x64xf32>, vector<2x512x64xf32>, vector<2x128x512xf32> -> vector<2x128x512xf32>
    %cst_6 = arith.constant dense<0xFF800000> : vector<2x128xf32>
    %5 = vector.multi_reduction <maximumf>, %4, %cst_6 [2] : vector<2x128x512xf32> to vector<2x128xf32>
    %6 = vector.shape_cast %5 : vector<2x128xf32> to vector<2x128x1xf32>
    %7 = vector.broadcast %6 : vector<2x128x1xf32> to vector<2x128x512xf32>
    %8 = arith.subf %4, %7 : vector<2x128x512xf32>
    %9 = math.exp %8 : vector<2x128x512xf32>
    %cst_7 = arith.constant dense<0.000000e+00> : vector<2x128xf32>
    %10 = vector.multi_reduction <add>, %9, %cst_7 [2] : vector<2x128x512xf32> to vector<2x128xf32>
    %11 = vector.shape_cast %10 : vector<2x128xf32> to vector<2x128x1xf32>
    %12 = tpu.reciprocal %11 {approx = true} : vector<2x128x1xf32> -> vector<2x128x1xf32>
    %13 = vector.broadcast %12 : vector<2x128x1xf32> to vector<2x128x512xf32>
    %14 = arith.mulf %9, %13 : vector<2x128x512xf32>
    %15 = vector.shape_cast %14 : vector<2x128x512xf32> to vector<256x512xf32>
    %16 = arith.truncf %15 : vector<256x512xf32> to vector<256x512xbf16>
    %c0_8 = arith.constant 0 : index
    %c0_9 = arith.constant 0 : index
    %17 = vector.load %arg4[%c0_8, %c0_9] : memref<512x1024xbf16, #tpu.memory_space<vmem>>, vector<512x1024xbf16>
    %cst_10 = arith.constant dense<0.000000e+00> : vector<256x1024xf32>
    %18 = tpu.matmul %16, %17, %cst_10 {dimension_numbers = #tpu.dot_dimension_numbers<[1], [0], [0], [1], [0, 0, 1, 1], [], []>} : vector<256x512xbf16>, vector<512x1024xbf16>, vector<256x1024xf32> -> vector<256x1024xf32>
    %19 = vector.shape_cast %18 : vector<256x1024xf32> to vector<2x128x1024xf32>
    %c0_11 = arith.constant 0 : index
    %c0_12 = arith.constant 0 : index
    %c0_13 = arith.constant 0 : index
    %20 = vector.load %arg5[%c0_11, %c0_12, %c0_13] : memref<2x128x1024xf32, #tpu.memory_space<vmem>>, vector<2x128x1024xf32>
    tpu.vector_store %arg5[%c0_11, %c0_12, %c0_13], %19 {strides = array<i32>} : memref<2x128x1024xf32, #tpu.memory_space<vmem>>, vector<2x128x1024xf32>,
    return
  }
  func.func @transform_0(%arg0: i32, %arg1: i32) -> (i32, i32, i32) {
    %c0_i32 = arith.constant 0 : i32
    %c0_i32_0 = arith.constant 0 : i32
    %c0_i32_1 = arith.constant 0 : i32
    return %c0_i32, %arg1, %c0_i32_0 : i32, i32, i32
  }
  func.func @transform_1(%arg0: i32, %arg1: i32) -> (i32, i32, i32) {
    %c0_i32 = arith.constant 0 : i32
    %c0_i32_0 = arith.constant 0 : i32
    %c0_i32_1 = arith.constant 0 : i32
    %c0_i32_2 = arith.constant 0 : i32
    return %c0_i32, %c0_i32_0, %c0_i32_1 : i32, i32, i32
  }
  func.func @transform_2(%arg0: i32, %arg1: i32) -> (i32, i32) {
    %c0_i32 = arith.constant 0 : i32
    %c0_i32_0 = arith.constant 0 : i32
    return %c0_i32, %arg0 : i32, i32
  }
  func.func @transform_3(%arg0: i32, %arg1: i32) -> (i32, i32, i32) {
    %c0_i32 = arith.constant 0 : i32
    %c0_i32_0 = arith.constant 0 : i32
    return %c0_i32, %arg1, %arg0 : i32, i32, i32
  }
}

</mosaic_0001>

<llo_original>
// kernel: tpu_custom_call.1
$region0: #{tpu_custom_call.1}
  #allocation0 [shape = 'u32[]', space=smem, size = 0x4, offset = 0x4, fixed_abs, tag = 'smem constant byte address 0x4 - core index']
  #allocation1 [shape = 'u32[144,128]{1,0:T(1,128)}', space=vmem, size = 0x12000, scoped, tag = 'internal scratch']
  %s0 = inlined_call_operand.vmem [shape: f32[2,128,64], index: 0, kind: input, shape index: {}]
  %s1 = inlined_call_operand.vmem [shape: f32[2,512,64], index: 1, kind: input, shape index: {}]
  %s2 = inlined_call_operand.hbm [shape: bf16[512,4096], index: 2, kind: input, shape index: {}]
  %s3 = inlined_call_operand.hbm [shape: f32[2,128,4096], index: 3, kind: output, shape index: {}]
  %s4 = sld [smem:[#allocation0]]
  $region49: #{tpu_custom_call.1} parent=0
    _
  %s6 = ssub.s32 1, %s4
  %s7 = scalar_select 0, %s6, %s4
  $region1: #{tpu_custom_call.1} parent=0
    #allocation2 [shape = 'u8[2097152]{0}', space=vmem, size = 0x200000, scoped, tag = 'input window, operand 2']
    #allocation3 [shape = 's32[2]{0}', space=sflag, size = 0x8, scoped, tag = 'scoped memory for tpu_custom_call.1']
    #allocation4 [shape = 's32[2]{0}', space=sflag, size = 0x8, scoped, tag = 'scoped memory for tpu_custom_call.1']
    #allocation5 [shape = 'u8[2097152]{0}', space=vmem, size = 0x200000, scoped, tag = 'output window, operand 0']
    %8 = vsyncpa [#allocation3], 0
    %s9 = scalar_lea.sflag [#allocation3], 1
    %10 = vsyncpa %s9, 0
    %11 = vsyncpa [#allocation4], 0
    %s12 = scalar_lea.sflag [#allocation4], 1
    %13 = vsyncpa %s12, 0
    loop: start=0, step=1, limit=6
    $region2: #{tpu_custom_call.1} parent=1 // loop_pre_header
      _
    $region3: #{tpu_custom_call.1} parent=1 // loop_header
      %s15 = sphi 0, %s19
      %p16 = scmp.ge.s32.totalorder %s15, 6
      %s22 = sphi 0, %s34
      %s23 = sphi 0, %s30
      %s24 = sphi 0, %s22
      %s25 = sphi 0, %s23
      %s26 = sphi 0, %s24
      %s27 = sphi 0, %s25
      %s37 = sphi 0, %s39
      %s40 = sphi 0, %s37
      %s41 = sphi 0, %s40
      %s57 = sphi 0, %s41
      %s61 = sphi 0, %s61
      %s63 = sphi 0, %s61
      %s64 = sphi 0, %s63
      %s78 = sphi 0, %s64
      %s84 = sphi 0, %s86
      %s87 = sphi 0, %s84
      %s88 = sphi 0, %s87
      %s104 = sphi 0, %s88
      %s112 = sphi 0, %s114
      %s115 = sphi 0, %s112
      %s116 = sphi 0, %s115
      %s132 = sphi 0, %s116
    $region4: #{tpu_custom_call.1} parent=1 // loop_header_branch
      %18 = sbr.rel (%p16) target = $region8
    $region5: #{tpu_custom_call.1} parent=1 // loop_body
      %s20 = ssub.s32 %s15, 1
      %s21 = ssub.s32 %s15, 2
      %s28 = sadd.s32 1, %s23
      %p29 = scmp.ge.s32.totalorder %s28, 1
      %s30 = scalar_select %p29, 0, %s28
      %s31 = sadd.s32 1, %s22
      %s32 = scalar_select %p29, %s31, %s22
      %p33 = scmp.ge.s32.totalorder %s32, 4
      %s34 = scalar_select %p33, 0, %s32
      %s35 = ssub.s32 %s23, %s30
      %p36 = scmp.eq.s32.totalorder %s35, 0
      %s38 = sadd.s32 %s37, 1
      %s39 = scalar_select %p36, %s37, %s38
      %p42 = pneg %p36
      %p43 = scmp.eq.s32.totalorder %s15, 3
      %p44 = por %p42, %p43
      %p45 = scmp.ne.s32.totalorder %s37, %s40
      %p46 = scmp.eq.s32.totalorder %s15, 0
      %p47 = por %p45, %p46
      %p48 = scmp.ne.s32.totalorder %s37, %s40
      %p49 = scmp.eq.s32.totalorder %s20, 3
      %p50 = por %p48, %p49
      %p51 = scmp.ne.s32.totalorder %s40, %s41
      %p52 = scmp.eq.s32.totalorder %s20, 0
      %p53 = por %p51, %p52
      %p54 = scmp.ne.s32.totalorder %s40, %s41
      %p55 = scmp.eq.s32.totalorder %s21, 3
      %p56 = por %p54, %p55
      %p58 = scmp.ne.s32.totalorder %s41, %s57
      %p59 = scmp.eq.s32.totalorder %s21, 0
      %p60 = por %p58, %p59
      %s62 = sadd.s32 %s61, 1
      %p65 = scmp.eq.s32.totalorder %s15, 3
      %p66 = scmp.ne.s32.totalorder %s61, %s63
      %p67 = scmp.eq.s32.totalorder %s15, 0
      %p68 = por %p66, %p67
      %p69 = scmp.ne.s32.totalorder %s61, %s63
      %p70 = scmp.eq.s32.totalorder %s20, 3
      %p71 = por %p69, %p70
      %p72 = scmp.ne.s32.totalorder %s63, %s64
      %p73 = scmp.eq.s32.totalorder %s20, 0
      %p74 = por %p72, %p73
      %p75 = scmp.ne.s32.totalorder %s63, %s64
      %p76 = scmp.eq.s32.totalorder %s21, 3
      %p77 = por %p75, %p76
      %p79 = scmp.ne.s32.totalorder %s64, %s78
      %p80 = scmp.eq.s32.totalorder %s21, 0
      %p81 = por %p79, %p80
      %s82 = ssub.s32 %s22, %s34
      %p83 = scmp.eq.s32.totalorder %s82, 0
      %s85 = sadd.s32 %s84, 1
      %s86 = scalar_select %p83, %s84, %s85
      %p89 = pneg %p83
      %p90 = scmp.eq.s32.totalorder %s15, 3
      %p91 = por %p89, %p90
      %p92 = scmp.ne.s32.totalorder %s84, %s87
      %p93 = scmp.eq.s32.totalorder %s15, 0
      %p94 = por %p92, %p93
      %p95 = scmp.ne.s32.totalorder %s84, %s87
      %p96 = scmp.eq.s32.totalorder %s20, 3
      %p97 = por %p95, %p96
      %p98 = scmp.ne.s32.totalorder %s87, %s88
      %p99 = scmp.eq.s32.totalorder %s20, 0
      %p100 = por %p98, %p99
      %p101 = scmp.ne.s32.totalorder %s87, %s88
      %p102 = scmp.eq.s32.totalorder %s21, 3
      %p103 = por %p101, %p102
      %p105 = scmp.ne.s32.totalorder %s88, %s104
      %p106 = scmp.eq.s32.totalorder %s21, 0
      %p107 = por %p105, %p106
      %s108 = ssub.s32 %s23, %s30
      %s109 = ssub.s32 %s22, %s34
      %s110 = sor.u32 %s108, %s109
      %p111 = scmp.eq.s32.totalorder %s110, 0
      %s113 = sadd.s32 %s112, 1
      %s114 = scalar_select %p111, %s112, %s113
      %p117 = pneg %p111
      %p118 = scmp.eq.s32.totalorder %s15, 3
      %p119 = por %p117, %p118
      %p120 = scmp.ne.s32.totalorder %s112, %s115
      %p121 = scmp.eq.s32.totalorder %s15, 0
      %p122 = por %p120, %p121
      %p123 = scmp.ne.s32.totalorder %s112, %s115
      %p124 = scmp.eq.s32.totalorder %s20, 3
      %p125 = por %p123, %p124
      %p126 = scmp.ne.s32.totalorder %s115, %s116
      %p127 = scmp.eq.s32.totalorder %s20, 0
      %p128 = por %p126, %p127
      %p129 = scmp.ne.s32.totalorder %s115, %s116
      %p130 = scmp.eq.s32.totalorder %s21, 3
      %p131 = por %p129, %p130
      %p133 = scmp.ne.s32.totalorder %s116, %s132
      %p134 = scmp.eq.s32.totalorder %s21, 0
      %p135 = por %p133, %p134
      %p136 = scmp.le.s32.totalorder 1, %s15
      %p137 = scmp.lt.s32.totalorder %s15, 5
      %p138 = pnand %p136, %p137
      %p139 = pneg %p138
      // Predicated region
      $region9: #{tpu_custom_call.1} parent=5 // pred_check
        _
      $region10: #{tpu_custom_call.1} parent=5 // pred_check_branch
        %141 = sbr.rel (%p138) target = $region12
      $region11: #{tpu_custom_call.1} parent=5 // pred_region
        %s142 = ssub.s32 %s15, 1
        // Predicated region
        $region13: #{tpu_custom_call.1} parent=11 // pred_check
          %p143 = pneg %p53
        $region14: #{tpu_custom_call.1} parent=11 // pred_check_branch
          %145 = sbr.rel (%p143) target = $region16
        $region15: #{tpu_custom_call.1} parent=11 // pred_region
          %s146 = smul.u32 16, %s25
          %p147 = scmp.lt.s32.totalorder %s146, 15
          %s148 = scalar_select %p147, %s146, 15
          %s149 = smul.addr %s148, 8
          %s150 = scalar_lea.vmem %s0, %s149
          %s151 = smul.u32 16, %s25
        $region16: #{tpu_custom_call.1} parent=11 // pred_fallthru
          _
        // Predicated region
        $region17: #{tpu_custom_call.1} parent=11 // pred_check
          %p152 = pneg %p74
        $region18: #{tpu_custom_call.1} parent=11 // pred_check_branch
          %154 = sbr.rel (%p152) target = $region20
        $region19: #{tpu_custom_call.1} parent=11 // pred_region
          _
        $region20: #{tpu_custom_call.1} parent=11 // pred_fallthru
          _
      $region12: #{tpu_custom_call.1} parent=5 // pred_fallthru
        _
      %p155 = scmp.lt.s32.totalorder %s15, 4
      // Predicated region
      $region21: #{tpu_custom_call.1} parent=5 // pred_check
        %p156 = pneg %p155
      $region22: #{tpu_custom_call.1} parent=5 // pred_check_branch
        %158 = sbr.rel (%p156) target = $region24
      $region23: #{tpu_custom_call.1} parent=5 // pred_region
        // Predicated region
        $region25: #{tpu_custom_call.1} parent=23 // pred_check
          %p159 = pneg %p94
        $region26: #{tpu_custom_call.1} parent=23 // pred_check_branch
          %161 = sbr.rel (%p159) target = $region28
        $region27: #{tpu_custom_call.1} parent=23 // pred_region
          %s162 = sand.u32 %s84, 1
          %s163 = scalar_lea.sflag [#allocation3], %s162
          %s164 = sand.u32 %s84, 1
          %s165 = smul.addr %s164, 2048
          %s166 = scalar_lea.vmem [#allocation2], %s165
          %s167 = smul.u32 8, %s22
          %s169 = ssub.s32 32768, 32768
          %170 = vsyncadd %s163, %s169
          %s171 = smul.addr %s167, 64
          %s172 = scalar_lea.hbm %s2, %s171
          %s173 = sshll.u32 %s166, 4
          %s174 = int_to_ptr.vmem [resolvable:$true] %s173
          %179 = dma.hbm_to_vmem [thread:$0]  %s172, 32768, %s174, %s163, 2048, 512, 32
        $region28: #{tpu_custom_call.1} parent=23 // pred_fallthru
          _
      $region24: #{tpu_custom_call.1} parent=5 // pred_fallthru
        _
      %p180 = scmp.le.s32.totalorder 1, %s15
      %p181 = scmp.lt.s32.totalorder %s15, 5
      %p182 = pnand %p180, %p181
      %p183 = pneg %p182
      // Predicated region
      $region29: #{tpu_custom_call.1} parent=5 // pred_check
        _
      $region30: #{tpu_custom_call.1} parent=5 // pred_check_branch
        %185 = sbr.rel (%p182) target = $region32
      $region31: #{tpu_custom_call.1} parent=5 // pred_region
        %s186 = ssub.s32 %s15, 1
        %s187 = sand.u32 %s87, 1
        %s188 = scalar_lea.sflag [#allocation3], %s187
        %s189 = sand.u32 %s87, 1
        %s190 = smul.addr %s189, 2048
        %s191 = scalar_lea.vmem [#allocation2], %s190
        // Predicated region
        $region33: #{tpu_custom_call.1} parent=31 // pred_check
          %p192 = pneg %p100
        $region34: #{tpu_custom_call.1} parent=31 // pred_check_branch
          %194 = sbr.rel (%p192) target = $region36
        $region35: #{tpu_custom_call.1} parent=31 // pred_region
          %195 = dma.done %s188, 32768
        $region36: #{tpu_custom_call.1} parent=31 // pred_fallthru
          _
        %s196 = smul.u32 16, %s25
        %p197 = scmp.lt.s32.totalorder %s196, 15
        %s198 = scalar_select %p197, %s196, 15
        %s199 = smul.addr %s198, 8
        %s200 = scalar_lea.vmem %s0, %s199
        %p201 = pneg %p53
        %p202 = pneg %p50
        %p203 = pneg %p74
        %p204 = pneg %p71
        %s205 = sand.u32 %s87, 1
        %s206 = scalar_lea.sflag [#allocation3], %s205
        %s207 = sand.u32 %s87, 1
        %s208 = smul.addr %s207, 2048
        %s209 = scalar_lea.vmem [#allocation2], %s208
        %p210 = pneg %p100
        %p211 = pneg %p97
        %p212 = pneg %p128
        %p213 = pneg %p125
        %s214 = sand.u32 %s115, 1
        %s215 = scalar_lea.sflag [#allocation4], %s214
        %s216 = sand.u32 %s115, 1
        %s217 = smul.addr %s216, 2048
        %s218 = scalar_lea.vmem [#allocation5], %s217
        %s219 = smul.u32 16, %s25
        %p220 = scmp.lt.s32.totalorder %s219, 15
        %s221 = scalar_select %p220, %s219, 15
        %s222 = smul.addr %s221, 8
        %s223 = scalar_lea.vmem %s0, %s222
        %s224 = smul.u32 16, %s25
        %s225 = smul.u32 8, %s24
        %s226 = smul.u32 16, %s25
        %s227 = smul.u32 8, %s24
        %v228 = vld [vmem:[%s223] sm:$0xff]
        %v229 = vld [vmem:[%s223 + $0x8] sm:$0xff]
        %v230 = vld [vmem:[%s223 + $0x10] sm:$0xff]
        %v231 = vld [vmem:[%s223 + $0x18] sm:$0xff]
        %v232 = vld [vmem:[%s223 + $0x20] sm:$0xff]
        %v233 = vld [vmem:[%s223 + $0x28] sm:$0xff]
        %v234 = vld [vmem:[%s223 + $0x30] sm:$0xff]
        %v235 = vld [vmem:[%s223 + $0x38] sm:$0xff]
        %v236 = vld [vmem:[%s223 + $0x40] sm:$0xff]
        %v237 = vld [vmem:[%s223 + $0x48] sm:$0xff]
        %v238 = vld [vmem:[%s223 + $0x50] sm:$0xff]
        %v239 = vld [vmem:[%s223 + $0x58] sm:$0xff]
        %v240 = vld [vmem:[%s223 + $0x60] sm:$0xff]
        %v241 = vld [vmem:[%s223 + $0x68] sm:$0xff]
        %v242 = vld [vmem:[%s223 + $0x70] sm:$0xff]
        %v243 = vld [vmem:[%s223 + $0x78] sm:$0xff]
        %v244 = vld [vmem:[%s223 + $0x80] sm:$0xff]
        %v245 = vld [vmem:[%s223 + $0x88] sm:$0xff]
        %v246 = vld [vmem:[%s223 + $0x90] sm:$0xff]
        %v247 = vld [vmem:[%s223 + $0x98] sm:$0xff]
        %v248 = vld [vmem:[%s223 + $0xa0] sm:$0xff]
        %v249 = vld [vmem:[%s223 + $0xa8] sm:$0xff]
        %v250 = vld [vmem:[%s223 + $0xb0] sm:$0xff]
        %v251 = vld [vmem:[%s223 + $0xb8] sm:$0xff]
        %v252 = vld [vmem:[%s223 + $0xc0] sm:$0xff]
        %v253 = vld [vmem:[%s223 + $0xc8] sm:$0xff]
        %v254 = vld [vmem:[%s223 + $0xd0] sm:$0xff]
        %v255 = vld [vmem:[%s223 + $0xd8] sm:$0xff]
        %v256 = vld [vmem:[%s223 + $0xe0] sm:$0xff]
        %v257 = vld [vmem:[%s223 + $0xe8] sm:$0xff]
        %v258 = vld [vmem:[%s223 + $0xf0] sm:$0xff]
        %v259 = vld [vmem:[%s223 + $0xf8] sm:$0xff]
        %v260 = vmul.f32 %v228, 0.125
        %v261 = vmul.f32 %v229, 0.125
        %v262 = vmul.f32 %v230, 0.125
        %v263 = vmul.f32 %v231, 0.125
        %v264 = vmul.f32 %v232, 0.125
        %v265 = vmul.f32 %v233, 0.125
        %v266 = vmul.f32 %v234, 0.125
        %v267 = vmul.f32 %v235, 0.125
        %v268 = vmul.f32 %v236, 0.125
        %v269 = vmul.f32 %v237, 0.125
        %v270 = vmul.f32 %v238, 0.125
        %v271 = vmul.f32 %v239, 0.125
        %v272 = vmul.f32 %v240, 0.125
        %v273 = vmul.f32 %v241, 0.125
        %v274 = vmul.f32 %v242, 0.125
        %v275 = vmul.f32 %v243, 0.125
        %v276 = vmul.f32 %v244, 0.125
        %v277 = vmul.f32 %v245, 0.125
        %v278 = vmul.f32 %v246, 0.125
        %v279 = vmul.f32 %v247, 0.125
        %v280 = vmul.f32 %v248, 0.125
        %v281 = vmul.f32 %v249, 0.125
        %v282 = vmul.f32 %v250, 0.125
        %v283 = vmul.f32 %v251, 0.125
        %v284 = vmul.f32 %v252, 0.125
        %v285 = vmul.f32 %v253, 0.125
        %v286 = vmul.f32 %v254, 0.125
        %v287 = vmul.f32 %v255, 0.125
        %v288 = vmul.f32 %v256, 0.125
        %v289 = vmul.f32 %v257, 0.125
        %v290 = vmul.f32 %v258, 0.125
        %v291 = vmul.f32 %v259, 0.125
        %v292 = vld [vmem:[%s1] sm:$0xff]
        %v293 = vld [vmem:[%s1 + $0x8] sm:$0xff]
        %v294 = vld [vmem:[%s1 + $0x10] sm:$0xff]
        %v295 = vld [vmem:[%s1 + $0x18] sm:$0xff]
        %v296 = vld [vmem:[%s1 + $0x20] sm:$0xff]
        %v297 = vld [vmem:[%s1 + $0x28] sm:$0xff]
        %v298 = vld [vmem:[%s1 + $0x30] sm:$0xff]
        %v299 = vld [vmem:[%s1 + $0x38] sm:$0xff]
        %v300 = vld [vmem:[%s1 + $0x40] sm:$0xff]
        %v301 = vld [vmem:[%s1 + $0x48] sm:$0xff]
        %v302 = vld [vmem:[%s1 + $0x50] sm:$0xff]
        %v303 = vld [vmem:[%s1 + $0x58] sm:$0xff]
        %v304 = vld [vmem:[%s1 + $0x60] sm:$0xff]
        %v305 = vld [vmem:[%s1 + $0x68] sm:$0xff]
        %v306 = vld [vmem:[%s1 + $0x70] sm:$0xff]
        %v307 = vld [vmem:[%s1 + $0x78] sm:$0xff]
        %v308 = vld [vmem:[%s1 + $0x80] sm:$0xff]
        %v309 = vld [vmem:[%s1 + $0x88] sm:$0xff]
        %v310 = vld [vmem:[%s1 + $0x90] sm:$0xff]
        %v311 = vld [vmem:[%s1 + $0x98] sm:$0xff]
        %v312 = vld [vmem:[%s1 + $0xa0] sm:$0xff]
        %v313 = vld [vmem:[%s1 + $0xa8] sm:$0xff]
        %v314 = vld [vmem:[%s1 + $0xb0] sm:$0xff]
        %v315 = vld [vmem:[%s1 + $0xb8] sm:$0xff]
        %v316 = vld [vmem:[%s1 + $0xc0] sm:$0xff]
        %v317 = vld [vmem:[%s1 + $0xc8] sm:$0xff]
        %v318 = vld [vmem:[%s1 + $0xd0] sm:$0xff]
        %v319 = vld [vmem:[%s1 + $0xd8] sm:$0xff]
        %v320 = vld [vmem:[%s1 + $0xe0] sm:$0xff]
        %v321 = vld [vmem:[%s1 + $0xe8] sm:$0xff]
        %v322 = vld [vmem:[%s1 + $0xf0] sm:$0xff]
        %v323 = vld [vmem:[%s1 + $0xf8] sm:$0xff]
        %v324 = vld [vmem:[%s1 + $0x100] sm:$0xff]
        %v325 = vld [vmem:[%s1 + $0x108] sm:$0xff]
        %v326 = vld [vmem:[%s1 + $0x110] sm:$0xff]
        %v327 = vld [vmem:[%s1 + $0x118] sm:$0xff]
        %v328 = vld [vmem:[%s1 + $0x120] sm:$0xff]
        %v329 = vld [vmem:[%s1 + $0x128] sm:$0xff]
        %v330 = vld [vmem:[%s1 + $0x130] sm:$0xff]
        %v331 = vld [vmem:[%s1 + $0x138] sm:$0xff]
        %v332 = vld [vmem:[%s1 + $0x140] sm:$0xff]
        %v333 = vld [vmem:[%s1 + $0x148] sm:$0xff]
        %v334 = vld [vmem:[%s1 + $0x150] sm:$0xff]
        %v335 = vld [vmem:[%s1 + $0x158] sm:$0xff]
        %v336 = vld [vmem:[%s1 + $0x160] sm:$0xff]
        %v337 = vld [vmem:[%s1 + $0x168] sm:$0xff]
        %v338 = vld [vmem:[%s1 + $0x170] sm:$0xff]
        %v339 = vld [vmem:[%s1 + $0x178] sm:$0xff]
        %v340 = vld [vmem:[%s1 + $0x180] sm:$0xff]
        %v341 = vld [vmem:[%s1 + $0x188] sm:$0xff]
        %v342 = vld [vmem:[%s1 + $0x190] sm:$0xff]
        %v343 = vld [vmem:[%s1 + $0x198] sm:$0xff]
        %v344 = vld [vmem:[%s1 + $0x1a0] sm:$0xff]
        %v345 = vld [vmem:[%s1 + $0x1a8] sm:$0xff]
        %v346 = vld [vmem:[%s1 + $0x1b0] sm:$0xff]
        %v347 = vld [vmem:[%s1 + $0x1b8] sm:$0xff]
        %v348 = vld [vmem:[%s1 + $0x1c0] sm:$0xff]
        %v349 = vld [vmem:[%s1 + $0x1c8] sm:$0xff]
        %v350 = vld [vmem:[%s1 + $0x1d0] sm:$0xff]
        %v351 = vld [vmem:[%s1 + $0x1d8] sm:$0xff]
        %v352 = vld [vmem:[%s1 + $0x1e0] sm:$0xff]
        %v353 = vld [vmem:[%s1 + $0x1e8] sm:$0xff]
        %v354 = vld [vmem:[%s1 + $0x1f0] sm:$0xff]
        %v355 = vld [vmem:[%s1 + $0x1f8] sm:$0xff]
        %v356 = vld [vmem:[%s1 + $0x200] sm:$0xff]
        %v357 = vld [vmem:[%s1 + $0x208] sm:$0xff]
        %v358 = vld [vmem:[%s1 + $0x210] sm:$0xff]
        %v359 = vld [vmem:[%s1 + $0x218] sm:$0xff]
        %v360 = vld [vmem:[%s1 + $0x220] sm:$0xff]
        %v361 = vld [vmem:[%s1 + $0x228] sm:$0xff]
        %v362 = vld [vmem:[%s1 + $0x230] sm:$0xff]
        %v363 = vld [vmem:[%s1 + $0x238] sm:$0xff]
        %v364 = vld [vmem:[%s1 + $0x240] sm:$0xff]
        %v365 = vld [vmem:[%s1 + $0x248] sm:$0xff]
        %v366 = vld [vmem:[%s1 + $0x250] sm:$0xff]
        %v367 = vld [vmem:[%s1 + $0x258] sm:$0xff]
        %v368 = vld [vmem:[%s1 + $0x260] sm:$0xff]
        %v369 = vld [vmem:[%s1 + $0x268] sm:$0xff]
        %v370 = vld [vmem:[%s1 + $0x270] sm:$0xff]
        %v371 = vld [vmem:[%s1 + $0x278] sm:$0xff]
        %v372 = vld [vmem:[%s1 + $0x280] sm:$0xff]
        %v373 = vld [vmem:[%s1 + $0x288] sm:$0xff]
        %v374 = vld [vmem:[%s1 + $0x290] sm:$0xff]
        %v375 = vld [vmem:[%s1 + $0x298] sm:$0xff]
        %v376 = vld [vmem:[%s1 + $0x2a0] sm:$0xff]
        %v377 = vld [vmem:[%s1 + $0x2a8] sm:$0xff]
        %v378 = vld [vmem:[%s1 + $0x2b0] sm:$0xff]
        %v379 = vld [vmem:[%s1 + $0x2b8] sm:$0xff]
        %v380 = vld [vmem:[%s1 + $0x2c0] sm:$0xff]
        %v381 = vld [vmem:[%s1 + $0x2c8] sm:$0xff]
        %v382 = vld [vmem:[%s1 + $0x2d0] sm:$0xff]
        %v383 = vld [vmem:[%s1 + $0x2d8] sm:$0xff]
        %v384 = vld [vmem:[%s1 + $0x2e0] sm:$0xff]
        %v385 = vld [vmem:[%s1 + $0x2e8] sm:$0xff]
        %v386 = vld [vmem:[%s1 + $0x2f0] sm:$0xff]
        %v387 = vld [vmem:[%s1 + $0x2f8] sm:$0xff]
        %v388 = vld [vmem:[%s1 + $0x300] sm:$0xff]
        %v389 = vld [vmem:[%s1 + $0x308] sm:$0xff]
        %v390 = vld [vmem:[%s1 + $0x310] sm:$0xff]
        %v391 = vld [vmem:[%s1 + $0x318] sm:$0xff]
        %v392 = vld [vmem:[%s1 + $0x320] sm:$0xff]
        %v393 = vld [vmem:[%s1 + $0x328] sm:$0xff]
        %v394 = vld [vmem:[%s1 + $0x330] sm:$0xff]
        %v395 = vld [vmem:[%s1 + $0x338] sm:$0xff]
        %v396 = vld [vmem:[%s1 + $0x340] sm:$0xff]
        %v397 = vld [vmem:[%s1 + $0x348] sm:$0xff]
        %v398 = vld [vmem:[%s1 + $0x350] sm:$0xff]
        %v399 = vld [vmem:[%s1 + $0x358] sm:$0xff]
        %v400 = vld [vmem:[%s1 + $0x360] sm:$0xff]
        %v401 = vld [vmem:[%s1 + $0x368] sm:$0xff]
        %v402 = vld [vmem:[%s1 + $0x370] sm:$0xff]
        %v403 = vld [vmem:[%s1 + $0x378] sm:$0xff]
        %v404 = vld [vmem:[%s1 + $0x380] sm:$0xff]
        %v405 = vld [vmem:[%s1 + $0x388] sm:$0xff]
        %v406 = vld [vmem:[%s1 + $0x390] sm:$0xff]
        %v407 = vld [vmem:[%s1 + $0x398] sm:$0xff]
        %v408 = vld [vmem:[%s1 + $0x3a0] sm:$0xff]
        %v409 = vld [vmem:[%s1 + $0x3a8] sm:$0xff]
        %v410 = vld [vmem:[%s1 + $0x3b0] sm:$0xff]
        %v411 = vld [vmem:[%s1 + $0x3b8] sm:$0xff]
        %v412 = vld [vmem:[%s1 + $0x3c0] sm:$0xff]
        %v413 = vld [vmem:[%s1 + $0x3c8] sm:$0xff]
        %v414 = vld [vmem:[%s1 + $0x3d0] sm:$0xff]
        %v415 = vld [vmem:[%s1 + $0x3d8] sm:$0xff]
        %v416 = vld [vmem:[%s1 + $0x3e0] sm:$0xff]
        %v417 = vld [vmem:[%s1 + $0x3e8] sm:$0xff]
        %v418 = vld [vmem:[%s1 + $0x3f0] sm:$0xff]
        %v419 = vld [vmem:[%s1 + $0x3f8] sm:$0xff]
        %vm420 = vcmask 523264
        %v422 = vsel %vm420, %v260, 0
        %v425 = vsel %vm420, %v261, 0
        %v428 = vsel %vm420, %v262, 0
        %v431 = vsel %vm420, %v263, 0
        %v434 = vsel %vm420, %v264, 0
        %v437 = vsel %vm420, %v265, 0
        %v440 = vsel %vm420, %v266, 0
        %v443 = vsel %vm420, %v267, 0
        %v446 = vsel %vm420, %v268, 0
        %v449 = vsel %vm420, %v269, 0
        %v452 = vsel %vm420, %v270, 0
        %v455 = vsel %vm420, %v271, 0
        %v458 = vsel %vm420, %v272, 0
        %v461 = vsel %vm420, %v273, 0
        %v464 = vsel %vm420, %v274, 0
        %v467 = vsel %vm420, %v275, 0
        %v470 = vsel %vm420, %v292, 0
        %v473 = vsel %vm420, %v293, 0
        %v476 = vsel %vm420, %v294, 0
        %v479 = vsel %vm420, %v295, 0
        %v482 = vsel %vm420, %v296, 0
        %v485 = vsel %vm420, %v297, 0
        %v488 = vsel %vm420, %v298, 0
        %v491 = vsel %vm420, %v299, 0
        %v494 = vsel %vm420, %v300, 0
        %v497 = vsel %vm420, %v301, 0
        %v500 = vsel %vm420, %v302, 0
        %v503 = vsel %vm420, %v303, 0
        %v506 = vsel %vm420, %v304, 0
        %v509 = vsel %vm420, %v305, 0
        %v512 = vsel %vm420, %v306, 0
        %v515 = vsel %vm420, %v307, 0
        %v518 = vsel %vm420, %v308, 0
        %v521 = vsel %vm420, %v309, 0
        %v524 = vsel %vm420, %v310, 0
        %v527 = vsel %vm420, %v311, 0
        %v530 = vsel %vm420, %v312, 0
        %v533 = vsel %vm420, %v313, 0
        %v536 = vsel %vm420, %v314, 0
        %v539 = vsel %vm420, %v315, 0
        %v542 = vsel %vm420, %v316, 0
        %v545 = vsel %vm420, %v317, 0
        %v548 = vsel %vm420, %v318, 0
        %v551 = vsel %vm420, %v319, 0
        %v554 = vsel %vm420, %v320, 0
        %v557 = vsel %vm420, %v321, 0
        %v560 = vsel %vm420, %v322, 0
        %v563 = vsel %vm420, %v323, 0
        %v566 = vsel %vm420, %v324, 0
        %v569 = vsel %vm420, %v325, 0
        %v572 = vsel %vm420, %v326, 0
        %v575 = vsel %vm420, %v327, 0
        %v578 = vsel %vm420, %v328, 0
        %v581 = vsel %vm420, %v329, 0
        %v584 = vsel %vm420, %v330, 0
        %v587 = vsel %vm420, %v331, 0
        %v590 = vsel %vm420, %v332, 0
        %v593 = vsel %vm420, %v333, 0
        %v596 = vsel %vm420, %v334, 0
        %v599 = vsel %vm420, %v335, 0
        %v602 = vsel %vm420, %v336, 0
        %v605 = vsel %vm420, %v337, 0
        %v608 = vsel %vm420, %v338, 0
        %v611 = vsel %vm420, %v339, 0
        %v614 = vsel %vm420, %v340, 0
        %v617 = vsel %vm420, %v341, 0
        %v620 = vsel %vm420, %v342, 0
        %v623 = vsel %vm420, %v343, 0
        %v626 = vsel %vm420, %v344, 0
        %v629 = vsel %vm420, %v345, 0
        %v632 = vsel %vm420, %v346, 0
        %v635 = vsel %vm420, %v347, 0
        %v638 = vsel %vm420, %v348, 0
        %v641 = vsel %vm420, %v349, 0
        %v644 = vsel %vm420, %v350, 0
        %v647 = vsel %vm420, %v351, 0
        %v650 = vsel %vm420, %v352, 0
        %v653 = vsel %vm420, %v353, 0
        %v656 = vsel %vm420, %v354, 0
        %v659 = vsel %vm420, %v355, 0
        %661 = vmatprep.subr.mxu0 0.0
        %v662 = vand.u32 %v470, 4294901760
        %663 = vmatpush1.xpose.msra.mxu0 %v662
        %664 = vmatprep.subr.mxu0 0.0
        %v665 = vand.u32 %v473, 4294901760
        %666 = vmatpush1.xpose.msra.mxu0 %v665
        %667 = vmatprep.subr.mxu0 0.0
        %v668 = vand.u32 %v476, 4294901760
        %669 = vmatpush1.xpose.msra.mxu0 %v668
        %670 = vmatprep.subr.mxu0 0.0
        %v671 = vand.u32 %v479, 4294901760
        %672 = vmatpush1.xpose.msra.mxu0 %v671
        %673 = vmatprep.subr.mxu0 0.0
        %v674 = vand.u32 %v482, 4294901760
        %675 = vmatpush1.xpose.msra.mxu0 %v674
        %676 = vmatprep.subr.mxu0 0.0
        %v677 = vand.u32 %v485, 4294901760
        %678 = vmatpush1.xpose.msra.mxu0 %v677
        %679 = vmatprep.subr.mxu0 0.0
        %v680 = vand.u32 %v488, 4294901760
        %681 = vmatpush1.xpose.msra.mxu0 %v680
        %682 = vmatprep.subr.mxu0 0.0
        %v683 = vand.u32 %v491, 4294901760
        %684 = vmatpush1.xpose.msra.mxu0 %v683
        %685 = vmatprep.subr.mxu0 0.0
        %v686 = vand.u32 %v494, 4294901760
        %687 = vmatpush1.xpose.msra.mxu0 %v686
        %688 = vmatprep.subr.mxu0 0.0
        %v689 = vand.u32 %v497, 4294901760
        %690 = vmatpush1.xpose.msra.mxu0 %v689
        %691 = vmatprep.subr.mxu0 0.0
        %v692 = vand.u32 %v500, 4294901760
        %693 = vmatpush1.xpose.msra.mxu0 %v692
        %694 = vmatprep.subr.mxu0 0.0
        %v695 = vand.u32 %v503, 4294901760
        %696 = vmatpush1.xpose.msra.mxu0 %v695
        %697 = vmatprep.subr.mxu0 0.0
        %v698 = vand.u32 %v506, 4294901760
        %699 = vmatpush1.xpose.msra.mxu0 %v698
        %700 = vmatprep.subr.mxu0 0.0
        %v701 = vand.u32 %v509, 4294901760
        %702 = vmatpush1.xpose.msra.mxu0 %v701
        %703 = vmatprep.subr.mxu0 0.0
        %v704 = vand.u32 %v512, 4294901760
        %705 = vmatpush1.xpose.msra.mxu0 %v704
        %706 = vmatprep.subr.mxu0 0.0
        %v707 = vand.u32 %v515, 4294901760
        %708 = vmatpush1.xpose.msra.mxu0 %v707
        %709 = vmatprep.subr.mxu0 0.0
        %v710 = vand.u32 %v518, 4294901760
        %711 = vmatpush1.xpose.msra.mxu0 %v710
        %712 = vmatprep.subr.mxu0 0.0
        %v713 = vand.u32 %v521, 4294901760
        %714 = vmatpush1.xpose.msra.mxu0 %v713
        %715 = vmatprep.subr.mxu0 0.0
        %v716 = vand.u32 %v524, 4294901760
        %717 = vmatpush1.xpose.msra.mxu0 %v716
        %718 = vmatprep.subr.mxu0 0.0
        %v719 = vand.u32 %v527, 4294901760
        %720 = vmatpush1.xpose.msra.mxu0 %v719
        %721 = vmatprep.subr.mxu0 0.0
        %v722 = vand.u32 %v530, 4294901760
        %723 = vmatpush1.xpose.msra.mxu0 %v722
        %724 = vmatprep.subr.mxu0 0.0
        %v725 = vand.u32 %v533, 4294901760
        %726 = vmatpush1.xpose.msra.mxu0 %v725
        %727 = vmatprep.subr.mxu0 0.0
        %v728 = vand.u32 %v536, 4294901760
        %729 = vmatpush1.xpose.msra.mxu0 %v728
        %730 = vmatprep.subr.mxu0 0.0
        %v731 = vand.u32 %v539, 4294901760
        %732 = vmatpush1.xpose.msra.mxu0 %v731
        %733 = vmatprep.subr.mxu0 0.0
        %v734 = vand.u32 %v542, 4294901760
        %735 = vmatpush1.xpose.msra.mxu0 %v734
        %736 = vmatprep.subr.mxu0 0.0
        %v737 = vand.u32 %v545, 4294901760
        %738 = vmatpush1.xpose.msra.mxu0 %v737
        %739 = vmatprep.subr.mxu0 0.0
        %v740 = vand.u32 %v548, 4294901760
        %741 = vmatpush1.xpose.msra.mxu0 %v740
        %742 = vmatprep.subr.mxu0 0.0
        %v743 = vand.u32 %v551, 4294901760
        %744 = vmatpush1.xpose.msra.mxu0 %v743
        %745 = vmatprep.subr.mxu0 0.0
        %v746 = vand.u32 %v554, 4294901760
        %747 = vmatpush1.xpose.msra.mxu0 %v746
        %748 = vmatprep.subr.mxu0 0.0
        %v749 = vand.u32 %v557, 4294901760
        %750 = vmatpush1.xpose.msra.mxu0 %v749
        %751 = vmatprep.subr.mxu0 0.0
        %v752 = vand.u32 %v560, 4294901760
        %753 = vmatpush1.xpose.msra.mxu0 %v752
        %754 = vmatprep.subr.mxu0 0.0
        %v755 = vand.u32 %v563, 4294901760
        %756 = vmatpush1.xpose.msra.mxu0 %v755
        %757 = vmatprep.mubr.f32.mxu0 0.0
        %v758 = vand.u32 %v422, 4294901760
        %v759 = vsub.f32 %v422, %v758
        %v760 = vand.u32 %v759, 4294901760
        %v761 = vsub.f32 %v759, %v760
        %v762 = vand.u32 %v761, 4294901760
        %763 = vmatmul.mubr.f32.gmra.mrb[0].mxu0 %v762
        %v764 = vpop.f32.mrb[0].mxu0
        %v765 = vadd.f32 0.0, %v764
        %v766 = vpop.f32.mrb[0].mxu0
        %v767 = vadd.f32 0.0, %v766
        %768 = vmatprep.mubr.f32.mxu0 0.0
        %v769 = vand.u32 %v425, 4294901760
        %v770 = vsub.f32 %v425, %v769
        %v771 = vand.u32 %v770, 4294901760
        %v772 = vsub.f32 %v770, %v771
        %v773 = vand.u32 %v772, 4294901760
        %774 = vmatmul.mubr.f32.gmra.mrb[0].mxu0 %v773
        %v775 = vpop.f32.mrb[0].mxu0
        %v776 = vadd.f32 0.0, %v775
        %v777 = vpop.f32.mrb[0].mxu0
        %v778 = vadd.f32 0.0, %v777
        %779 = vmatprep.mubr.f32.mxu0 0.0
        %v780 = vand.u32 %v428, 4294901760
        %v781 = vsub.f32 %v428, %v780
        %v782 = vand.u32 %v781, 4294901760
        %v783 = vsub.f32 %v781, %v782
        %v784 = vand.u32 %v783, 4294901760
        %785 = vmatmul.mubr.f32.gmra.mrb[0].mxu0 %v784
        %v786 = vpop.f32.mrb[0].mxu0
        %v787 = vadd.f32 0.0, %v786
        %v788 = vpop.f32.mrb[0].mxu0
        %v789 = vadd.f32 0.0, %v788
        %790 = vmatprep.mubr.f32.mxu0 0.0
        %v791 = vand.u32 %v431, 4294901760
        %v792 = vsub.f32 %v431, %v791
        %v793 = vand.u32 %v792, 4294901760
        %v794 = vsub.f32 %v792, %v793
        %v795 = vand.u32 %v794, 4294901760
        %796 = vmatmul.mubr.f32.gmra.mrb[0].mxu0 %v795
        %v797 = vpop.f32.mrb[0].mxu0
        %v798 = vadd.f32 0.0, %v797
        %v799 = vpop.f32.mrb[0].mxu0
        %v800 = vadd.f32 0.0, %v799
        %801 = vmatprep.mubr.f32.mxu0 0.0
        %v802 = vand.u32 %v434, 4294901760
        %v803 = vsub.f32 %v434, %v802
        %v804 = vand.u32 %v803, 4294901760
        %v805 = vsub.f32 %v803, %v804
        %v806 = vand.u32 %v805, 4294901760
        %807 = vmatmul.mubr.f32.gmra.mrb[0].mxu0 %v806
        %v808 = vpop.f32.mrb[0].mxu0
        %v809 = vadd.f32 0.0, %v808
        %v810 = vpop.f32.mrb[0].mxu0
        %v811 = vadd.f32 0.0, %v810
        %812 = vmatprep.mubr.f32.mxu0 0.0
        %v813 = vand.u32 %v437, 4294901760
        %v814 = vsub.f32 %v437, %v813
        %v815 = vand.u32 %v814, 4294901760
        %v816 = vsub.f32 %v814, %v815
        %v817 = vand.u32 %v816, 4294901760
        %818 = vmatmul.mubr.f32.gmra.mrb[0].mxu0 %v817
        %v819 = vpop.f32.mrb[0].mxu0
        %v820 = vadd.f32 0.0, %v819
        %v821 = vpop.f32.mrb[0].mxu0
        %v822 = vadd.f32 0.0, %v821
        %823 = vmatprep.mubr.f32.mxu0 0.0
        %v824 = vand.u32 %v440, 4294901760
        %v825 = vsub.f32 %v440, %v824
        %v826 = vand.u32 %v825, 4294901760
        %v827 = vsub.f32 %v825, %v826
        %v828 = vand.u32 %v827, 4294901760
        %829 = vmatmul.mubr.f32.gmra.mrb[0].mxu0 %v828
        %v830 = vpop.f32.mrb[0].mxu0
        %v831 = vadd.f32 0.0, %v830
        %v832 = vpop.f32.mrb[0].mxu0
        %v833 = vadd.f32 0.0, %v832
        %834 = vmatprep.mubr.f32.mxu0 0.0
        %v835 = vand.u32 %v443, 4294901760
        %v836 = vsub.f32 %v443, %v835
        %v837 = vand.u32 %v836, 4294901760
        %v838 = vsub.f32 %v836, %v837
        %v839 = vand.u32 %v838, 4294901760
        %840 = vmatmul.mubr.f32.gmra.mrb[0].mxu0 %v839
        %v841 = vpop.f32.mrb[0].mxu0
        %v842 = vadd.f32 0.0, %v841
        %v843 = vpop.f32.mrb[0].mxu0
        %v844 = vadd.f32 0.0, %v843
        %845 = vmatprep.mubr.f32.mxu0 0.0
        %v846 = vand.u32 %v446, 4294901760
        %v847 = vsub.f32 %v446, %v846
        %v848 = vand.u32 %v847, 4294901760
        %v849 = vsub.f32 %v847, %v848
        %v850 = vand.u32 %v849, 4294901760
        %851 = vmatmul.mubr.f32.gmra.mrb[0].mxu0 %v850
        %v852 = vpop.f32.mrb[0].mxu0
        %v853 = vadd.f32 0.0, %v852
        %v854 = vpop.f32.mrb[0].mxu0
        %v855 = vadd.f32 0.0, %v854
        %856 = vmatprep.mubr.f32.mxu0 0.0
        %v857 = vand.u32 %v449, 4294901760
        %v858 = vsub.f32 %v449, %v857
        %v859 = vand.u32 %v858, 4294901760
        %v860 = vsub.f32 %v858, %v859
        %v861 = vand.u32 %v860, 4294901760
        %862 = vmatmul.mubr.f32.gmra.mrb[0].mxu0 %v861
        %v863 = vpop.f32.mrb[0].mxu0
        %v864 = vadd.f32 0.0, %v863
        %v865 = vpop.f32.mrb[0].mxu0
        %v866 = vadd.f32 0.0, %v865
        %867 = vmatprep.mubr.f32.mxu0 0.0
        %v868 = vand.u32 %v452, 4294901760
        %v869 = vsub.f32 %v452, %v868
        %v870 = vand.u32 %v869, 4294901760
        %v871 = vsub.f32 %v869, %v870
        %v872 = vand.u32 %v871, 4294901760
        %873 = vmatmul.mubr.f32.gmra.mrb[0].mxu0 %v872
        %v874 = vpop.f32.mrb[0].mxu0
        %v875 = vadd.f32 0.0, %v874
        %v876 = vpop.f32.mrb[0].mxu0
        %v877 = vadd.f32 0.0, %v876
        %878 = vmatprep.mubr.f32.mxu0 0.0
        %v879 = vand.u32 %v455, 4294901760
        %v880 = vsub.f32 %v455, %v879
        %v881 = vand.u32 %v880, 4294901760
        %v882 = vsub.f32 %v880, %v881
        %v883 = vand.u32 %v882, 4294901760
        %884 = vmatmul.mubr.f32.gmra.mrb[0].mxu0 %v883
        %v885 = vpop.f32.mrb[0].mxu0
        %v886 = vadd.f32 0.0, %v885
        %v887 = vpop.f32.mrb[0].mxu0
        %v888 = vadd.f32 0.0, %v887
        %889 = vmatprep.mubr.f32.mxu0 0.0
        %v890 = vand.u32 %v458, 4294901760
        %v891 = vsub.f32 %v458, %v890
        %v892 = vand.u32 %v891, 4294901760
        %v893 = vsub.f32 %v891, %v892
        %v894 = vand.u32 %v893, 4294901760
        %895 = vmatmul.mubr.f32.gmra.mrb[0].mxu0 %v894
        %v896 = vpop.f32.mrb[0].mxu0
        %v897 = vadd.f32 0.0, %v896
        %v898 = vpop.f32.mrb[0].mxu0
        %v899 = vadd.f32 0.0, %v898
        %900 = vmatprep.mubr.f32.mxu0 0.0
        %v901 = vand.u32 %v461, 4294901760
        %v902 = vsub.f32 %v461, %v901
        %v903 = vand.u32 %v902, 4294901760
        %v904 = vsub.f32 %v902, %v903
        %v905 = vand.u32 %v904, 4294901760
        %906 = vmatmul.mubr.f32.gmra.mrb[0].mxu0 %v905
        %v907 = vpop.f32.mrb[0].mxu0
        %v908 = vadd.f32 0.0, %v907
        %v909 = vpop.f32.mrb[0].mxu0
        %v910 = vadd.f32 0.0, %v909
        %911 = vmatprep.mubr.f32.mxu0 0.0
        %v912 = vand.u32 %v464, 4294901760
        %v913 = vsub.f32 %v464, %v912
        %v914 = vand.u32 %v913, 4294901760
        %v915 = vsub.f32 %v913, %v914
        %v916 = vand.u32 %v915, 4294901760
        %917 = vmatmul.mubr.f32.gmra.mrb[0].mxu0 %v916
        %v918 = vpop.f32.mrb[0].mxu0
        %v919 = vadd.f32 0.0, %v918
        %v920 = vpop.f32.mrb[0].mxu0
        %v921 = vadd.f32 0.0, %v920
        %922 = vmatprep.mubr.f32.mxu0 0.0
        %v923 = vand.u32 %v467, 4294901760
        %v924 = vsub.f32 %v467, %v923
        %v925 = vand.u32 %v924, 4294901760
        %v926 = vsub.f32 %v924, %v925
        %v927 = vand.u32 %v926, 4294901760
        %928 = vmatmul.mubr.f32.gmra.mrb[0].mxu0 %v927
        %v929 = vpop.f32.mrb[0].mxu0
        %v930 = vadd.f32 0.0, %v929
        %v931 = vpop.f32.mrb[0].mxu0
        %v932 = vadd.f32 0.0, %v931
        %933 = vdwg.mxu0
        %934 = vmatprep.subr.mxu0 0.0
        %v935 = vand.u32 %v470, 4294901760
        %v936 = vsub.f32 %v470, %v935
        %v937 = vand.u32 %v936, 4294901760
        %v938 = vsub.f32 %v936, %v937
        %v939 = vand.u32 %v938, 4294901760
        %940 = vmatpush1.xpose.msra.mxu0 %v939
        %941 = vmatprep.subr.mxu0 0.0
        %v942 = vand.u32 %v473, 4294901760
        %v943 = vsub.f32 %v473, %v942
        %v944 = vand.u32 %v943, 4294901760
        %v945 = vsub.f32 %v943, %v944
        %v946 = vand.u32 %v945, 4294901760
        %947 = vmatpush1.xpose.msra.mxu0 %v946
        %948 = vmatprep.subr.mxu0 0.0
        %v949 = vand.u32 %v476, 4294901760
        %v950 = vsub.f32 %v476, %v949
        %v951 = vand.u32 %v950, 4294901760
        %v952 = vsub.f32 %v950, %v951
        %v953 = vand.u32 %v952, 4294901760
        %954 = vmatpush1.xpose.msra.mxu0 %v953
        %955 = vmatprep.subr.mxu0 0.0
        %v956 = vand.u32 %v479, 4294901760
        %v957 = vsub.f32 %v479, %v956
        %v958 = vand.u32 %v957, 4294901760
        %v959 = vsub.f32 %v957, %v958
        %v960 = vand.u32 %v959, 4294901760
        %961 = vmatpush1.xpose.msra.mxu0 %v960
        %962 = vmatprep.subr.mxu0 0.0
        %v963 = vand.u32 %v482, 4294901760
        %v964 = vsub.f32 %v482, %v963
        %v965 = vand.u32 %v964, 4294901760
        %v966 = vsub.f32 %v964, %v965
        %v967 = vand.u32 %v966, 4294901760
        %968 = vmatpush1.xpose.msra.mxu0 %v967
        %969 = vmatprep.subr.mxu0 0.0
        %v970 = vand.u32 %v485, 4294901760
        %v971 = vsub.f32 %v485, %v970
        %v972 = vand.u32 %v971, 4294901760
        %v973 = vsub.f32 %v971, %v972
        %v974 = vand.u32 %v973, 4294901760
        %975 = vmatpush1.xpose.msra.mxu0 %v974
        %976 = vmatprep.subr.mxu0 0.0
        %v977 = vand.u32 %v488, 4294901760
        %v978 = vsub.f32 %v488, %v977
        %v979 = vand.u32 %v978, 4294901760
        %v980 = vsub.f32 %v978, %v979
        %v981 = vand.u32 %v980, 4294901760
        %982 = vmatpush1.xpose.msra.mxu0 %v981
        %983 = vmatprep.subr.mxu0 0.0
        %v984 = vand.u32 %v491, 4294901760
        %v985 = vsub.f32 %v491, %v984
        %v986 = vand.u32 %v985, 4294901760
        %v987 = vsub.f32 %v985, %v986
        %v988 = vand.u32 %v987, 4294901760
        %989 = vmatpush1.xpose.msra.mxu0 %v988
        %990 = vmatprep.subr.mxu0 0.0
        %v991 = vand.u32 %v494, 4294901760
        %v992 = vsub.f32 %v494, %v991
        %v993 = vand.u32 %v992, 4294901760
        %v994 = vsub.f32 %v992, %v993
        %v995 = vand.u32 %v994, 4294901760
        %996 = vmatpush1.xpose.msra.mxu0 %v995
        %997 = vmatprep.subr.mxu0 0.0
        %v998 = vand.u32 %v497, 4294901760
        %v999 = vsub.f32 %v497, %v998
        %v1000 = vand.u32 %v999, 4294901760
        %v1001 = vsub.f32 %v999, %v1000
        %v1002 = vand.u32 %v1001, 4294901760
        %1003 = vmatpush1.xpose.msra.mxu0 %v1002
        %1004 = vmatprep.subr.mxu0 0.0
        %v1005 = vand.u32 %v500, 4294901760
        %v1006 = vsub.f32 %v500, %v1005
        %v1007 = vand.u32 %v1006, 4294901760
        %v1008 = vsub.f32 %v1006, %v1007
        %v1009 = vand.u32 %v1008, 4294901760
        %1010 = vmatpush1.xpose.msra.mxu0 %v1009
        %1011 = vmatprep.subr.mxu0 0.0
        %v1012 = vand.u32 %v503, 4294901760
        %v1013 = vsub.f32 %v503, %v1012
        %v1014 = vand.u32 %v1013, 4294901760
        %v1015 = vsub.f32 %v1013, %v1014
        %v1016 = vand.u32 %v1015, 4294901760
        %1017 = vmatpush1.xpose.msra.mxu0 %v1016
        %1018 = vmatprep.subr.mxu0 0.0
        %v1019 = vand.u32 %v506, 4294901760
        %v1020 = vsub.f32 %v506, %v1019
        %v1021 = vand.u32 %v1020, 4294901760
        %v1022 = vsub.f32 %v1020, %v1021
        %v1023 = vand.u32 %v1022, 4294901760
        %1024 = vmatpush1.xpose.msra.mxu0 %v1023
        %1025 = vmatprep.subr.mxu0 0.0
        %v1026 = vand.u32 %v509, 4294901760
        %v1027 = vsub.f32 %v509, %v1026
        %v1028 = vand.u32 %v1027, 4294901760
        %v1029 = vsub.f32 %v1027, %v1028
        %v1030 = vand.u32 %v1029, 4294901760
        %1031 = vmatpush1.xpose.msra.mxu0 %v1030
        %1032 = vmatprep.subr.mxu0 0.0
        %v1033 = vand.u32 %v512, 4294901760
        %v1034 = vsub.f32 %v512, %v1033
        %v1035 = vand.u32 %v1034, 4294901760
        %v1036 = vsub.f32 %v1034, %v1035
        %v1037 = vand.u32 %v1036, 4294901760
        %1038 = vmatpush1.xpose.msra.mxu0 %v1037
        %1039 = vmatprep.subr.mxu0 0.0
        %v1040 = vand.u32 %v515, 4294901760
        %v1041 = vsub.f32 %v515, %v1040
        %v1042 = vand.u32 %v1041, 4294901760
        %v1043 = vsub.f32 %v1041, %v1042
        %v1044 = vand.u32 %v1043, 4294901760
        %1045 = vmatpush1.xpose.msra.mxu0 %v1044
        %1046 = vmatprep.subr.mxu0 0.0
        %v1047 = vand.u32 %v518, 4294901760
        %v1048 = vsub.f32 %v518, %v1047
        %v1049 = vand.u32 %v1048, 4294901760
        %v1050 = vsub.f32 %v1048, %v1049
        %v1051 = vand.u32 %v1050, 4294901760
        %1052 = vmatpush1.xpose.msra.mxu0 %v1051
        %1053 = vmatprep.subr.mxu0 0.0
        %v1054 = vand.u32 %v521, 4294901760
        %v1055 = vsub.f32 %v521, %v1054
        %v1056 = vand.u32 %v1055, 4294901760
        %v1057 = vsub.f32 %v1055, %v1056
        %v1058 = vand.u32 %v1057, 4294901760
        %1059 = vmatpush1.xpose.msra.mxu0 %v1058
        %1060 = vmatprep.subr.mxu0 0.0
        %v1061 = vand.u32 %v524, 4294901760
        %v1062 = vsub.f32 %v524, %v1061
        %v1063 = vand.u32 %v1062, 4294901760
        %v1064 = vsub.f32 %v1062, %v1063
        %v1065 = vand.u32 %v1064, 4294901760
        %1066 = vmatpush1.xpose.msra.mxu0 %v1065
        %1067 = vmatprep.subr.mxu0 0.0
        %v1068 = vand.u32 %v527, 4294901760
        %v1069 = vsub.f32 %v527, %v1068
        %v1070 = vand.u32 %v1069, 4294901760
        %v1071 = vsub.f32 %v1069, %v1070
        %v1072 = vand.u32 %v1071, 4294901760
        %1073 = vmatpush1.xpose.msra.mxu0 %v1072
        %1074 = vmatprep.subr.mxu0 0.0
        %v1075 = vand.u32 %v530, 4294901760
        %v1076 = vsub.f32 %v530, %v1075
        %v1077 = vand.u32 %v1076, 4294901760
        %v1078 = vsub.f32 %v1076, %v1077
        %v1079 = vand.u32 %v1078, 4294901760
        %1080 = vmatpush1.xpose.msra.mxu0 %v1079
        %1081 = vmatprep.subr.mxu0 0.0
        %v1082 = vand.u32 %v533, 4294901760
        %v1083 = vsub.f32 %v533, %v1082
        %v1084 = vand.u32 %v1083, 4294901760
        %v1085 = vsub.f32 %v1083, %v1084
        %v1086 = vand.u32 %v1085, 4294901760
        %1087 = vmatpush1.xpose.msra.mxu0 %v1086
        %1088 = vmatprep.subr.mxu0 0.0
        %v1089 = vand.u32 %v536, 4294901760
        %v1090 = vsub.f32 %v536, %v1089
        %v1091 = vand.u32 %v1090, 4294901760
        %v1092 = vsub.f32 %v1090, %v1091
        %v1093 = vand.u32 %v1092, 4294901760
        %1094 = vmatpush1.xpose.msra.mxu0 %v1093
        %1095 = vmatprep.subr.mxu0 0.0
        %v1096 = vand.u32 %v539, 4294901760
        %v1097 = vsub.f32 %v539, %v1096
        %v1098 = vand.u32 %v1097, 4294901760
        %v1099 = vsub.f32 %v1097, %v1098
        %v1100 = vand.u32 %v1099, 4294901760
        %1101 = vmatpush1.xpose.msra.mxu0 %v1100
        %1102 = vmatprep.subr.mxu0 0.0
        %v1103 = vand.u32 %v542, 4294901760
        %v1104 = vsub.f32 %v542, %v1103
        %v1105 = vand.u32 %v1104, 4294901760
        %v1106 = vsub.f32 %v1104, %v1105
        %v1107 = vand.u32 %v1106, 4294901760
        %1108 = vmatpush1.xpose.msra.mxu0 %v1107
        %1109 = vmatprep.subr.mxu0 0.0
        %v1110 = vand.u32 %v545, 4294901760
        %v1111 = vsub.f32 %v545, %v1110
        %v1112 = vand.u32 %v1111, 4294901760
        %v1113 = vsub.f32 %v1111, %v1112
        %v1114 = vand.u32 %v1113, 4294901760
        %1115 = vmatpush1.xpose.msra.mxu0 %v1114
        %1116 = vmatprep.subr.mxu0 0.0
        %v1117 = vand.u32 %v548, 4294901760
        %v1118 = vsub.f32 %v548, %v1117
        %v1119 = vand.u32 %v1118, 4294901760
        %v1120 = vsub.f32 %v1118, %v1119
        %v1121 = vand.u32 %v1120, 4294901760
        %1122 = vmatpush1.xpose.msra.mxu0 %v1121
        %1123 = vmatprep.subr.mxu0 0.0
        %v1124 = vand.u32 %v551, 4294901760
        %v1125 = vsub.f32 %v551, %v1124
        %v1126 = vand.u32 %v1125, 4294901760
        %v1127 = vsub.f32 %v1125, %v1126
        %v1128 = vand.u32 %v1127, 4294901760
        %1129 = vmatpush1.xpose.msra.mxu0 %v1128
        %1130 = vmatprep.subr.mxu0 0.0
        %v1131 = vand.u32 %v554, 4294901760
        %v1132 = vsub.f32 %v554, %v1131
        %v1133 = vand.u32 %v1132, 4294901760
        %v1134 = vsub.f32 %v1132, %v1133
        %v1135 = vand.u32 %v1134, 4294901760
        %1136 = vmatpush1.xpose.msra.mxu0 %v1135
        %1137 = vmatprep.subr.mxu0 0.0
        %v1138 = vand.u32 %v557, 4294901760
        %v1139 = vsub.f32 %v557, %v1138
        %v1140 = vand.u32 %v1139, 4294901760
        %v1141 = vsub.f32 %v1139, %v1140
        %v1142 = vand.u32 %v1141, 4294901760
        %1143 = vmatpush1.xpose.msra.mxu0 %v1142
        %1144 = vmatprep.subr.mxu0 0.0
        %v1145 = vand.u32 %v560, 4294901760
        %v1146 = vsub.f32 %v560, %v1145
        %v1147 = vand.u32 %v1146, 4294901760
        %v1148 = vsub.f32 %v1146, %v1147
        %v1149 = vand.u32 %v1148, 4294901760
        %1150 = vmatpush1.xpose.msra.mxu0 %v1149
        %1151 = vmatprep.subr.mxu0 0.0
        %v1152 = vand.u32 %v563, 4294901760
        %v1153 = vsub.f32 %v563, %v1152
        %v1154 = vand.u32 %v1153, 4294901760
        %v1155 = vsub.f32 %v1153, %v1154
        %v1156 = vand.u32 %v1155, 4294901760
        %1157 = vmatpush1.xpose.msra.mxu0 %v1156
        %1158 = vmatprep.mubr.f32.mxu0 0.0
        %v1159 = vand.u32 %v422, 4294901760
        %1160 = vmatmul.mubr.f32.gmra.mrb[0].mxu0 %v1159
        %v1161 = vpop.f32.mrb[0].mxu0
        %v1162 = vadd.f32 %v765, %v1161
        %v1163 = vpop.f32.mrb[0].mxu0
        %v1164 = vadd.f32 %v767, %v1163
        %1165 = vmatprep.mubr.f32.mxu0 0.0
        %v1166 = vand.u32 %v425, 4294901760
        %1167 = vmatmul.mubr.f32.gmra.mrb[0].mxu0 %v1166
        %v1168 = vpop.f32.mrb[0].mxu0
        %v1169 = vadd.f32 %v776, %v1168
        %v1170 = vpop.f32.mrb[0].mxu0
        %v1171 = vadd.f32 %v778, %v1170
        %1172 = vmatprep.mubr.f32.mxu0 0.0
        %v1173 = vand.u32 %v428, 4294901760
        %1174 = vmatmul.mubr.f32.gmra.mrb[0].mxu0 %v1173
        %v1175 = vpop.f32.mrb[0].mxu0
        %v1176 = vadd.f32 %v787, %v1175
        %v1177 = vpop.f32.mrb[0].mxu0
        %v1178 = vadd.f32 %v789, %v1177
        %1179 = vmatprep.mubr.f32.mxu0 0.0
        %v1180 = vand.u32 %v431, 4294901760
        %1181 = vmatmul.mubr.f32.gmra.mrb[0].mxu0 %v1180
        %v1182 = vpop.f32.mrb[0].mxu0
        %v1183 = vadd.f32 %v798, %v1182
        %v1184 = vpop.f32.mrb[0].mxu0
        %v1185 = vadd.f32 %v800, %v1184
        %1186 = vmatprep.mubr.f32.mxu0 0.0
        %v1187 = vand.u32 %v434, 4294901760
        %1188 = vmatmul.mubr.f32.gmra.mrb[0].mxu0 %v1187
        %v1189 = vpop.f32.mrb[0].mxu0
        %v1190 = vadd.f32 %v809, %v1189
        %v1191 = vpop.f32.mrb[0].mxu0
        %v1192 = vadd.f32 %v811, %v1191
        %1193 = vmatprep.mubr.f32.mxu0 0.0
        %v1194 = vand.u32 %v437, 4294901760
        %1195 = vmatmul.mubr.f32.gmra.mrb[0].mxu0 %v1194
        %v1196 = vpop.f32.mrb[0].mxu0
        %v1197 = vadd.f32 %v820, %v1196
        %v1198 = vpop.f32.mrb[0].mxu0
        %v1199 = vadd.f32 %v822, %v1198
        %1200 = vmatprep.mubr.f32.mxu0 0.0
        %v1201 = vand.u32 %v440, 4294901760
        %1202 = vmatmul.mubr.f32.gmra.mrb[0].mxu0 %v1201
        %v1203 = vpop.f32.mrb[0].mxu0
        %v1204 = vadd.f32 %v831, %v1203
        %v1205 = vpop.f32.mrb[0].mxu0
        %v1206 = vadd.f32 %v833, %v1205
        %1207 = vmatprep.mubr.f32.mxu0 0.0
        %v1208 = vand.u32 %v443, 4294901760
        %1209 = vmatmul.mubr.f32.gmra.mrb[0].mxu0 %v1208
        %v1210 = vpop.f32.mrb[0].mxu0
        %v1211 = vadd.f32 %v842, %v1210
        %v1212 = vpop.f32.mrb[0].mxu0
        %v1213 = vadd.f32 %v844, %v1212
        %1214 = vmatprep.mubr.f32.mxu0 0.0
        %v1215 = vand.u32 %v446, 4294901760
        %1216 = vmatmul.mubr.f32.gmra.mrb[0].mxu0 %v1215
        %v1217 = vpop.f32.mrb[0].mxu0
        %v1218 = vadd.f32 %v853, %v1217
        %v1219 = vpop.f32.mrb[0].mxu0
        %v1220 = vadd.f32 %v855, %v1219
        %1221 = vmatprep.mubr.f32.mxu0 0.0
        %v1222 = vand.u32 %v449, 4294901760
        %1223 = vmatmul.mubr.f32.gmra.mrb[0].mxu0 %v1222
        %v1224 = vpop.f32.mrb[0].mxu0
        %v1225 = vadd.f32 %v864, %v1224
        %v1226 = vpop.f32.mrb[0].mxu0
        %v1227 = vadd.f32 %v866, %v1226
        %1228 = vmatprep.mubr.f32.mxu0 0.0
        %v1229 = vand.u32 %v452, 4294901760
        %1230 = vmatmul.mubr.f32.gmra.mrb[0].mxu0 %v1229
        %v1231 = vpop.f32.mrb[0].mxu0
        %v1232 = vadd.f32 %v875, %v1231
        %v1233 = vpop.f32.mrb[0].mxu0
        %v1234 = vadd.f32 %v877, %v1233
        %1235 = vmatprep.mubr.f32.mxu0 0.0
        %v1236 = vand.u32 %v455, 4294901760
        %1237 = vmatmul.mubr.f32.gmra.mrb[0].mxu0 %v1236
        %v1238 = vpop.f32.mrb[0].mxu0
        %v1239 = vadd.f32 %v886, %v1238
        %v1240 = vpop.f32.mrb[0].mxu0
        %v1241 = vadd.f32 %v888, %v1240
        %1242 = vmatprep.mubr.f32.mxu0 0.0
        %v1243 = vand.u32 %v458, 4294901760
        %1244 = vmatmul.mubr.f32.gmra.mrb[0].mxu0 %v1243
        %v1245 = vpop.f32.mrb[0].mxu0
        %v1246 = vadd.f32 %v897, %v1245
        %v1247 = vpop.f32.mrb[0].mxu0
        %v1248 = vadd.f32 %v899, %v1247
        %1249 = vmatprep.mubr.f32.mxu0 0.0
        %v1250 = vand.u32 %v461, 4294901760
        %1251 = vmatmul.mubr.f32.gmra.mrb[0].mxu0 %v1250
        %v1252 = vpop.f32.mrb[0].mxu0
        %v1253 = vadd.f32 %v908, %v1252
        %v1254 = vpop.f32.mrb[0].mxu0
        %v1255 = vadd.f32 %v910, %v1254
        %1256 = vmatprep.mubr.f32.mxu0 0.0
        %v1257 = vand.u32 %v464, 4294901760
        %1258 = vmatmul.mubr.f32.gmra.mrb[0].mxu0 %v1257
        %v1259 = vpop.f32.mrb[0].mxu0
        %v1260 = vadd.f32 %v919, %v1259
        %v1261 = vpop.f32.mrb[0].mxu0
        %v1262 = vadd.f32 %v921, %v1261
        %1263 = vmatprep.mubr.f32.mxu0 0.0
        %v1264 = vand.u32 %v467, 4294901760
        %1265 = vmatmul.mubr.f32.gmra.mrb[0].mxu0 %v1264
        %v1266 = vpop.f32.mrb[0].mxu0
        %v1267 = vadd.f32 %v930, %v1266
        %v1268 = vpop.f32.mrb[0].mxu0
        %v1269 = vadd.f32 %v932, %v1268
        %1270 = vdwg.mxu0
        %1271 = vmatprep.subr.mxu0 0.0
        %v1272 = vand.u32 %v470, 4294901760
        %v1273 = vsub.f32 %v470, %v1272
        %1274 = vmatpush1.xpose.msra.mxu0 %v1273
        %1275 = vmatprep.subr.mxu0 0.0
        %v1276 = vand.u32 %v473, 4294901760
        %v1277 = vsub.f32 %v473, %v1276
        %1278 = vmatpush1.xpose.msra.mxu0 %v1277
        %1279 = vmatprep.subr.mxu0 0.0
        %v1280 = vand.u32 %v476, 4294901760
        %v1281 = vsub.f32 %v476, %v1280
        %1282 = vmatpush1.xpose.msra.mxu0 %v1281
        %1283 = vmatprep.subr.mxu0 0.0
        %v1284 = vand.u32 %v479, 4294901760
        %v1285 = vsub.f32 %v479, %v1284
        %1286 = vmatpush1.xpose.msra.mxu0 %v1285
        %1287 = vmatprep.subr.mxu0 0.0
        %v1288 = vand.u32 %v482, 4294901760
        %v1289 = vsub.f32 %v482, %v1288
        %1290 = vmatpush1.xpose.msra.mxu0 %v1289
        %1291 = vmatprep.subr.mxu0 0.0
        %v1292 = vand.u32 %v485, 4294901760
        %v1293 = vsub.f32 %v485, %v1292
        %1294 = vmatpush1.xpose.msra.mxu0 %v1293
        %1295 = vmatprep.subr.mxu0 0.0
        %v1296 = vand.u32 %v488, 4294901760
        %v1297 = vsub.f32 %v488, %v1296
        %1298 = vmatpush1.xpose.msra.mxu0 %v1297
        %1299 = vmatprep.subr.mxu0 0.0
        %v1300 = vand.u32 %v491, 4294901760
        %v1301 = vsub.f32 %v491, %v1300
        %1302 = vmatpush1.xpose.msra.mxu0 %v1301
        %1303 = vmatprep.subr.mxu0 0.0
        %v1304 = vand.u32 %v494, 4294901760
        %v1305 = vsub.f32 %v494, %v1304
        %1306 = vmatpush1.xpose.msra.mxu0 %v1305
        %1307 = vmatprep.subr.mxu0 0.0
        %v1308 = vand.u32 %v497, 4294901760
        %v1309 = vsub.f32 %v497, %v1308
        %1310 = vmatpush1.xpose.msra.mxu0 %v1309
        %1311 = vmatprep.subr.mxu0 0.0
        %v1312 = vand.u32 %v500, 4294901760
        %v1313 = vsub.f32 %v500, %v1312
        %1314 = vmatpush1.xpose.msra.mxu0 %v1313
        %1315 = vmatprep.subr.mxu0 0.0
        %v1316 = vand.u32 %v503, 4294901760
        %v1317 = vsub.f32 %v503, %v1316
        %1318 = vmatpush1.xpose.msra.mxu0 %v1317
        %1319 = vmatprep.subr.mxu0 0.0
        %v1320 = vand.u32 %v506, 4294901760
        %v1321 = vsub.f32 %v506, %v1320
        %1322 = vmatpush1.xpose.msra.mxu0 %v1321
        %1323 = vmatprep.subr.mxu0 0.0
        %v1324 = vand.u32 %v509, 4294901760
        %v1325 = vsub.f32 %v509, %v1324
        %1326 = vmatpush1.xpose.msra.mxu0 %v1325
        %1327 = vmatprep.subr.mxu0 0.0
        %v1328 = vand.u32 %v512, 4294901760
        %v1329 = vsub.f32 %v512, %v1328
        %1330 = vmatpush1.xpose.msra.mxu0 %v1329
        %1331 = vmatprep.subr.mxu0 0.0
        %v1332 = vand.u32 %v515, 4294901760
        %v1333 = vsub.f32 %v515, %v1332
        %1334 = vmatpush1.xpose.msra.mxu0 %v1333
        %1335 = vmatprep.subr.mxu0 0.0
        %v1336 = vand.u32 %v518, 4294901760
        %v1337 = vsub.f32 %v518, %v1336
        %1338 = vmatpush1.xpose.msra.mxu0 %v1337
        %1339 = vmatprep.subr.mxu0 0.0
        %v1340 = vand.u32 %v521, 4294901760
        %v1341 = vsub.f32 %v521, %v1340
        %1342 = vmatpush1.xpose.msra.mxu0 %v1341
        %1343 = vmatprep.subr.mxu0 0.0
        %v1344 = vand.u32 %v524, 4294901760
        %v1345 = vsub.f32 %v524, %v1344
        %1346 = vmatpush1.xpose.msra.mxu0 %v1345
        %1347 = vmatprep.subr.mxu0 0.0
        %v1348 = vand.u32 %v527, 4294901760
        %v1349 = vsub.f32 %v527, %v1348
        %1350 = vmatpush1.xpose.msra.mxu0 %v1349
        %1351 = vmatprep.subr.mxu0 0.0
        %v1352 = vand.u32 %v530, 4294901760
        %v1353 = vsub.f32 %v530, %v1352
        %1354 = vmatpush1.xpose.msra.mxu0 %v1353
        %1355 = vmatprep.subr.mxu0 0.0
        %v1356 = vand.u32 %v533, 4294901760
        %v1357 = vsub.f32 %v533, %v1356
        %1358 = vmatpush1.xpose.msra.mxu0 %v1357
        %1359 = vmatprep.subr.mxu0 0.0
        %v1360 = vand.u32 %v536, 4294901760
        %v1361 = vsub.f32 %v536, %v1360
        %1362 = vmatpush1.xpose.msra.mxu0 %v1361
        %1363 = vmatprep.subr.mxu0 0.0
        %v1364 = vand.u32 %v539, 4294901760
        %v1365 = vsub.f32 %v539, %v1364
        %1366 = vmatpush1.xpose.msra.mxu0 %v1365
        %1367 = vmatprep.subr.mxu0 0.0
        %v1368 = vand.u32 %v542, 4294901760
        %v1369 = vsub.f32 %v542, %v1368
        %1370 = vmatpush1.xpose.msra.mxu0 %v1369
        %1371 = vmatprep.subr.mxu0 0.0
        %v1372 = vand.u32 %v545, 4294901760
        %v1373 = vsub.f32 %v545, %v1372
        %1374 = vmatpush1.xpose.msra.mxu0 %v1373
        %1375 = vmatprep.subr.mxu0 0.0
        %v1376 = vand.u32 %v548, 4294901760
        %v1377 = vsub.f32 %v548, %v1376
        %1378 = vmatpush1.xpose.msra.mxu0 %v1377
        %1379 = vmatprep.subr.mxu0 0.0
        %v1380 = vand.u32 %v551, 4294901760
        %v1381 = vsub.f32 %v551, %v1380
        %1382 = vmatpush1.xpose.msra.mxu0 %v1381
        %1383 = vmatprep.subr.mxu0 0.0
        %v1384 = vand.u32 %v554, 4294901760
        %v1385 = vsub.f32 %v554, %v1384
        %1386 = vmatpush1.xpose.msra.mxu0 %v1385
        %1387 = vmatprep.subr.mxu0 0.0
        %v1388 = vand.u32 %v557, 4294901760
        %v1389 = vsub.f32 %v557, %v1388
        %1390 = vmatpush1.xpose.msra.mxu0 %v1389
        %1391 = vmatprep.subr.mxu0 0.0
        %v1392 = vand.u32 %v560, 4294901760
        %v1393 = vsub.f32 %v560, %v1392
        %1394 = vmatpush1.xpose.msra.mxu0 %v1393
        %1395 = vmatprep.subr.mxu0 0.0
        %v1396 = vand.u32 %v563, 4294901760
        %v1397 = vsub.f32 %v563, %v1396
        %1398 = vmatpush1.xpose.msra.mxu0 %v1397
        %1399 = vmatprep.mubr.f32.mxu0 0.0
        %v1400 = vand.u32 %v422, 4294901760
        %v1401 = vsub.f32 %v422, %v1400
        %1402 = vmatmul.mubr.f32.gmra.mrb[0].mxu0 %v1401
        %v1403 = vpop.f32.mrb[0].mxu0
        %v1404 = vadd.f32 %v1162, %v1403
        %v1405 = vpop.f32.mrb[0].mxu0
        %v1406 = vadd.f32 %v1164, %v1405
        %1407 = vmatprep.mubr.f32.mxu0 0.0
        %v1408 = vand.u32 %v425, 4294901760
        %v1409 = vsub.f32 %v425, %v1408
        %1410 = vmatmul.mubr.f32.gmra.mrb[0].mxu0 %v1409
        %v1411 = vpop.f32.mrb[0].mxu0
        %v1412 = vadd.f32 %v1169, %v1411
        %v1413 = vpop.f32.mrb[0].mxu0
        %v1414 = vadd.f32 %v1171, %v1413
        %1415 = vmatprep.mubr.f32.mxu0 0.0
        %v1416 = vand.u32 %v428, 4294901760
        %v1417 = vsub.f32 %v428, %v1416
        %1418 = vmatmul.mubr.f32.gmra.mrb[0].mxu0 %v1417
        %v1419 = vpop.f32.mrb[0].mxu0
        %v1420 = vadd.f32 %v1176, %v1419
        %v1421 = vpop.f32.mrb[0].mxu0
        %v1422 = vadd.f32 %v1178, %v1421
        %1423 = vmatprep.mubr.f32.mxu0 0.0
        %v1424 = vand.u32 %v431, 4294901760
        %v1425 = vsub.f32 %v431, %v1424
        %1426 = vmatmul.mubr.f32.gmra.mrb[0].mxu0 %v1425
        %v1427 = vpop.f32.mrb[0].mxu0
        %v1428 = vadd.f32 %v1183, %v1427
        %v1429 = vpop.f32.mrb[0].mxu0
        %v1430 = vadd.f32 %v1185, %v1429
        %1431 = vmatprep.mubr.f32.mxu0 0.0
        %v1432 = vand.u32 %v434, 4294901760
        %v1433 = vsub.f32 %v434, %v1432
        %1434 = vmatmul.mubr.f32.gmra.mrb[0].mxu0 %v1433
        %v1435 = vpop.f32.mrb[0].mxu0
        %v1436 = vadd.f32 %v1190, %v1435
        %v1437 = vpop.f32.mrb[0].mxu0
        %v1438 = vadd.f32 %v1192, %v1437
        %1439 = vmatprep.mubr.f32.mxu0 0.0
        %v1440 = vand.u32 %v437, 4294901760
        %v1441 = vsub.f32 %v437, %v1440
        %1442 = vmatmul.mubr.f32.gmra.mrb[0].mxu0 %v1441
        %v1443 = vpop.f32.mrb[0].mxu0
        %v1444 = vadd.f32 %v1197, %v1443
        %v1445 = vpop.f32.mrb[0].mxu0
        %v1446 = vadd.f32 %v1199, %v1445
        %1447 = vmatprep.mubr.f32.mxu0 0.0
        %v1448 = vand.u32 %v440, 4294901760
        %v1449 = vsub.f32 %v440, %v1448
        %1450 = vmatmul.mubr.f32.gmra.mrb[0].mxu0 %v1449
        %v1451 = vpop.f32.mrb[0].mxu0
        %v1452 = vadd.f32 %v1204, %v1451
        %v1453 = vpop.f32.mrb[0].mxu0
        %v1454 = vadd.f32 %v1206, %v1453
        %1455 = vmatprep.mubr.f32.mxu0 0.0
        %v1456 = vand.u32 %v443, 4294901760
        %v1457 = vsub.f32 %v443, %v1456
        %1458 = vmatmul.mubr.f32.gmra.mrb[0].mxu0 %v1457
        %v1459 = vpop.f32.mrb[0].mxu0
        %v1460 = vadd.f32 %v1211, %v1459
        %v1461 = vpop.f32.mrb[0].mxu0
        %v1462 = vadd.f32 %v1213, %v1461
        %1463 = vmatprep.mubr.f32.mxu0 0.0
        %v1464 = vand.u32 %v446, 4294901760
        %v1465 = vsub.f32 %v446, %v1464
        %1466 = vmatmul.mubr.f32.gmra.mrb[0].mxu0 %v1465
        %v1467 = vpop.f32.mrb[0].mxu0
        %v1468 = vadd.f32 %v1218, %v1467
        %v1469 = vpop.f32.mrb[0].mxu0
        %v1470 = vadd.f32 %v1220, %v1469
        %1471 = vmatprep.mubr.f32.mxu0 0.0
        %v1472 = vand.u32 %v449, 4294901760
        %v1473 = vsub.f32 %v449, %v1472
        %1474 = vmatmul.mubr.f32.gmra.mrb[0].mxu0 %v1473
        %v1475 = vpop.f32.mrb[0].mxu0
        %v1476 = vadd.f32 %v1225, %v1475
        %v1477 = vpop.f32.mrb[0].mxu0
        %v1478 = vadd.f32 %v1227, %v1477
        %1479 = vmatprep.mubr.f32.mxu0 0.0
        %v1480 = vand.u32 %v452, 4294901760
        %v1481 = vsub.f32 %v452, %v1480
        %1482 = vmatmul.mubr.f32.gmra.mrb[0].mxu0 %v1481
        %v1483 = vpop.f32.mrb[0].mxu0
        %v1484 = vadd.f32 %v1232, %v1483
        %v1485 = vpop.f32.mrb[0].mxu0
        %v1486 = vadd.f32 %v1234, %v1485
        %1487 = vmatprep.mubr.f32.mxu0 0.0
        %v1488 = vand.u32 %v455, 4294901760
        %v1489 = vsub.f32 %v455, %v1488
        %1490 = vmatmul.mubr.f32.gmra.mrb[0].mxu0 %v1489
        %v1491 = vpop.f32.mrb[0].mxu0
        %v1492 = vadd.f32 %v1239, %v1491
        %v1493 = vpop.f32.mrb[0].mxu0
        %v1494 = vadd.f32 %v1241, %v1493
        %1495 = vmatprep.mubr.f32.mxu0 0.0
        %v1496 = vand.u32 %v458, 4294901760
        %v1497 = vsub.f32 %v458, %v1496
        %1498 = vmatmul.mubr.f32.gmra.mrb[0].mxu0 %v1497
        %v1499 = vpop.f32.mrb[0].mxu0
        %v1500 = vadd.f32 %v1246, %v1499
        %v1501 = vpop.f32.mrb[0].mxu0
        %v1502 = vadd.f32 %v1248, %v1501
        %1503 = vmatprep.mubr.f32.mxu0 0.0
        %v1504 = vand.u32 %v461, 4294901760
        %v1505 = vsub.f32 %v461, %v1504
        %1506 = vmatmul.mubr.f32.gmra.mrb[0].mxu0 %v1505
        %v1507 = vpop.f32.mrb[0].mxu0
        %v1508 = vadd.f32 %v1253, %v1507
        %v1509 = vpop.f32.mrb[0].mxu0
        %v1510 = vadd.f32 %v1255, %v1509
        %1511 = vmatprep.mubr.f32.mxu0 0.0
        %v1512 = vand.u32 %v464, 4294901760
        %v1513 = vsub.f32 %v464, %v1512
        %1514 = vmatmul.mubr.f32.gmra.mrb[0].mxu0 %v1513
        %v1515 = vpop.f32.mrb[0].mxu0
        %v1516 = vadd.f32 %v1260, %v1515
        %v1517 = vpop.f32.mrb[0].mxu0
        %v1518 = vadd.f32 %v1262, %v1517
        %1519 = vmatprep.mubr.f32.mxu0 0.0
        %v1520 = vand.u32 %v467, 4294901760
        %v1521 = vsub.f32 %v467, %v1520
        %1522 = vmatmul.mubr.f32.gmra.mrb[0].mxu0 %v1521
        %v1523 = vpop.f32.mrb[0].mxu0
        %v1524 = vadd.f32 %v1267, %v1523
        %v1525 = vpop.f32.mrb[0].mxu0
        %v1526 = vadd.f32 %v1269, %v1525
        %1527 = vdwg.mxu0
        %1528 = vmatprep.subr.mxu0 0.0
        %v1529 = vand.u32 %v470, 4294901760
        %1530 = vmatpush1.xpose.msra.mxu0 %v1529
        %1531 = vmatprep.subr.mxu0 0.0
        %v1532 = vand.u32 %v473, 4294901760
        %1533 = vmatpush1.xpose.msra.mxu0 %v1532
        %1534 = vmatprep.subr.mxu0 0.0
        %v1535 = vand.u32 %v476, 4294901760
        %1536 = vmatpush1.xpose.msra.mxu0 %v1535
        %1537 = vmatprep.subr.mxu0 0.0
        %v1538 = vand.u32 %v479, 4294901760
        %1539 = vmatpush1.xpose.msra.mxu0 %v1538
        %1540 = vmatprep.subr.mxu0 0.0
        %v1541 = vand.u32 %v482, 4294901760
        %1542 = vmatpush1.xpose.msra.mxu0 %v1541
        %1543 = vmatprep.subr.mxu0 0.0
        %v1544 = vand.u32 %v485, 4294901760
        %1545 = vmatpush1.xpose.msra.mxu0 %v1544
        %1546 = vmatprep.subr.mxu0 0.0
        %v1547 = vand.u32 %v488, 4294901760
        %1548 = vmatpush1.xpose.msra.mxu0 %v1547
        %1549 = vmatprep.subr.mxu0 0.0
        %v1550 = vand.u32 %v491, 4294901760
        %1551 = vmatpush1.xpose.msra.mxu0 %v1550
        %1552 = vmatprep.subr.mxu0 0.0
        %v1553 = vand.u32 %v494, 4294901760
        %1554 = vmatpush1.xpose.msra.mxu0 %v1553
        %1555 = vmatprep.subr.mxu0 0.0
        %v1556 = vand.u32 %v497, 4294901760
        %1557 = vmatpush1.xpose.msra.mxu0 %v1556
        %1558 = vmatprep.subr.mxu0 0.0
        %v1559 = vand.u32 %v500, 4294901760
        %1560 = vmatpush1.xpose.msra.mxu0 %v1559
        %1561 = vmatprep.subr.mxu0 0.0
        %v1562 = vand.u32 %v503, 4294901760
        %1563 = vmatpush1.xpose.msra.mxu0 %v1562
        %1564 = vmatprep.subr.mxu0 0.0
        %v1565 = vand.u32 %v506, 4294901760
        %1566 = vmatpush1.xpose.msra.mxu0 %v1565
        %1567 = vmatprep.subr.mxu0 0.0
        %v1568 = vand.u32 %v509, 4294901760
        %1569 = vmatpush1.xpose.msra.mxu0 %v1568
        %1570 = vmatprep.subr.mxu0 0.0
        %v1571 = vand.u32 %v512, 4294901760
        %1572 = vmatpush1.xpose.msra.mxu0 %v1571
        %1573 = vmatprep.subr.mxu0 0.0
        %v1574 = vand.u32 %v515, 4294901760
        %1575 = vmatpush1.xpose.msra.mxu0 %v1574
        %1576 = vmatprep.subr.mxu0 0.0
        %v1577 = vand.u32 %v518, 4294901760
        %1578 = vmatpush1.xpose.msra.mxu0 %v1577
        %1579 = vmatprep.subr.mxu0 0.0
        %v1580 = vand.u32 %v521, 4294901760
        %1581 = vmatpush1.xpose.msra.mxu0 %v1580
        %1582 = vmatprep.subr.mxu0 0.0
        %v1583 = vand.u32 %v524, 4294901760
        %1584 = vmatpush1.xpose.msra.mxu0 %v1583
        %1585 = vmatprep.subr.mxu0 0.0
        %v1586 = vand.u32 %v527, 4294901760
        %1587 = vmatpush1.xpose.msra.mxu0 %v1586
        %1588 = vmatprep.subr.mxu0 0.0
        %v1589 = vand.u32 %v530, 4294901760
        %1590 = vmatpush1.xpose.msra.mxu0 %v1589
        %1591 = vmatprep.subr.mxu0 0.0
        %v1592 = vand.u32 %v533, 4294901760
        %1593 = vmatpush1.xpose.msra.mxu0 %v1592
        %1594 = vmatprep.subr.mxu0 0.0
        %v1595 = vand.u32 %v536, 4294901760
        %1596 = vmatpush1.xpose.msra.mxu0 %v1595
        %1597 = vmatprep.subr.mxu0 0.0
        %v1598 = vand.u32 %v539, 4294901760
        %1599 = vmatpush1.xpose.msra.mxu0 %v1598
        %1600 = vmatprep.subr.mxu0 0.0
        %v1601 = vand.u32 %v542, 4294901760
        %1602 = vmatpush1.xpose.msra.mxu0 %v1601
        %1603 = vmatprep.subr.mxu0 0.0
        %v1604 = vand.u32 %v545, 4294901760
        %1605 = vmatpush1.xpose.msra.mxu0 %v1604
        %1606 = vmatprep.subr.mxu0 0.0
        %v1607 = vand.u32 %v548, 4294901760
        %1608 = vmatpush1.xpose.msra.mxu0 %v1607
        %1609 = vmatprep.subr.mxu0 0.0
        %v1610 = vand.u32 %v551, 4294901760
        %1611 = vmatpush1.xpose.msra.mxu0 %v1610
        %1612 = vmatprep.subr.mxu0 0.0
        %v1613 = vand.u32 %v554, 4294901760
        %1614 = vmatpush1.xpose.msra.mxu0 %v1613
        %1615 = vmatprep.subr.mxu0 0.0
        %v1616 = vand.u32 %v557, 4294901760
        %1617 = vmatpush1.xpose.msra.mxu0 %v1616
        %1618 = vmatprep.subr.mxu0 0.0
        %v1619 = vand.u32 %v560, 4294901760
        %1620 = vmatpush1.xpose.msra.mxu0 %v1619
        %1621 = vmatprep.subr.mxu0 0.0
        %v1622 = vand.u32 %v563, 4294901760
        %1623 = vmatpush1.xpose.msra.mxu0 %v1622
        %1624 = vmatprep.mubr.f32.mxu0 0.0
        %v1625 = vand.u32 %v422, 4294901760
        %v1626 = vsub.f32 %v422, %v1625
        %v1627 = vand.u32 %v1626, 4294901760
        %1628 = vmatmul.mubr.f32.gmra.mrb[0].mxu0 %v1627
        %v1629 = vpop.f32.mrb[0].mxu0
        %v1630 = vadd.f32 %v1404, %v1629
        %v1631 = vpop.f32.mrb[0].mxu0
        %v1632 = vadd.f32 %v1406, %v1631
        %1633 = vmatprep.mubr.f32.mxu0 0.0
        %v1634 = vand.u32 %v425, 4294901760
        %v1635 = vsub.f32 %v425, %v1634
        %v1636 = vand.u32 %v1635, 4294901760
        %1637 = vmatmul.mubr.f32.gmra.mrb[0].mxu0 %v1636
        %v1638 = vpop.f32.mrb[0].mxu0
        %v1639 = vadd.f32 %v1412, %v1638
        %v1640 = vpop.f32.mrb[0].mxu0
        %v1641 = vadd.f32 %v1414, %v1640
        %1642 = vmatprep.mubr.f32.mxu0 0.0
        %v1643 = vand.u32 %v428, 4294901760
        %v1644 = vsub.f32 %v428, %v1643
        %v1645 = vand.u32 %v1644, 4294901760
        %1646 = vmatmul.mubr.f32.gmra.mrb[0].mxu0 %v1645
        %v1647 = vpop.f32.mrb[0].mxu0
        %v1648 = vadd.f32 %v1420, %v1647
        %v1649 = vpop.f32.mrb[0].mxu0
        %v1650 = vadd.f32 %v1422, %v1649
        %1651 = vmatprep.mubr.f32.mxu0 0.0
        %v1652 = vand.u32 %v431, 4294901760
        %v1653 = vsub.f32 %v431, %v1652
        %v1654 = vand.u32 %v1653, 4294901760
        %1655 = vmatmul.mubr.f32.gmra.mrb[0].mxu0 %v1654
        %v1656 = vpop.f32.mrb[0].mxu0
        %v1657 = vadd.f32 %v1428, %v1656
        %v1658 = vpop.f32.mrb[0].mxu0
        %v1659 = vadd.f32 %v1430, %v1658
        %1660 = vmatprep.mubr.f32.mxu0 0.0
        %v1661 = vand.u32 %v434, 4294901760
        %v1662 = vsub.f32 %v434, %v1661
        %v1663 = vand.u32 %v1662, 4294901760
        %1664 = vmatmul.mubr.f32.gmra.mrb[0].mxu0 %v1663
        %v1665 = vpop.f32.mrb[0].mxu0
        %v1666 = vadd.f32 %v1436, %v1665
        %v1667 = vpop.f32.mrb[0].mxu0
        %v1668 = vadd.f32 %v1438, %v1667
        %1669 = vmatprep.mubr.f32.mxu0 0.0
        %v1670 = vand.u32 %v437, 4294901760
        %v1671 = vsub.f32 %v437, %v1670
        %v1672 = vand.u32 %v1671, 4294901760
        %1673 = vmatmul.mubr.f32.gmra.mrb[0].mxu0 %v1672
        %v1674 = vpop.f32.mrb[0].mxu0
        %v1675 = vadd.f32 %v1444, %v1674
        %v1676 = vpop.f32.mrb[0].mxu0
        %v1677 = vadd.f32 %v1446, %v1676
        %1678 = vmatprep.mubr.f32.mxu0 0.0
        %v1679 = vand.u32 %v440, 4294901760
        %v1680 = vsub.f32 %v440, %v1679
        %v1681 = vand.u32 %v1680, 4294901760
        %1682 = vmatmul.mubr.f32.gmra.mrb[0].mxu0 %v1681
        %v1683 = vpop.f32.mrb[0].mxu0
        %v1684 = vadd.f32 %v1452, %v1683
        %v1685 = vpop.f32.mrb[0].mxu0
        %v1686 = vadd.f32 %v1454, %v1685
        %1687 = vmatprep.mubr.f32.mxu0 0.0
        %v1688 = vand.u32 %v443, 4294901760
        %v1689 = vsub.f32 %v443, %v1688
        %v1690 = vand.u32 %v1689, 4294901760
        %1691 = vmatmul.mubr.f32.gmra.mrb[0].mxu0 %v1690
        %v1692 = vpop.f32.mrb[0].mxu0
        %v1693 = vadd.f32 %v1460, %v1692
        %v1694 = vpop.f32.mrb[0].mxu0
        %v1695 = vadd.f32 %v1462, %v1694
        %1696 = vmatprep.mubr.f32.mxu0 0.0
        %v1697 = vand.u32 %v446, 4294901760
        %v1698 = vsub.f32 %v446, %v1697
        %v1699 = vand.u32 %v1698, 4294901760
        %1700 = vmatmul.mubr.f32.gmra.mrb[0].mxu0 %v1699
        %v1701 = vpop.f32.mrb[0].mxu0
        %v1702 = vadd.f32 %v1468, %v1701
        %v1703 = vpop.f32.mrb[0].mxu0
        %v1704 = vadd.f32 %v1470, %v1703
        %1705 = vmatprep.mubr.f32.mxu0 0.0
        %v1706 = vand.u32 %v449, 4294901760
        %v1707 = vsub.f32 %v449, %v1706
        %v1708 = vand.u32 %v1707, 4294901760
        %1709 = vmatmul.mubr.f32.gmra.mrb[0].mxu0 %v1708
        %v1710 = vpop.f32.mrb[0].mxu0
        %v1711 = vadd.f32 %v1476, %v1710
        %v1712 = vpop.f32.mrb[0].mxu0
        %v1713 = vadd.f32 %v1478, %v1712
        %1714 = vmatprep.mubr.f32.mxu0 0.0
        %v1715 = vand.u32 %v452, 4294901760
        %v1716 = vsub.f32 %v452, %v1715
        %v1717 = vand.u32 %v1716, 4294901760
        %1718 = vmatmul.mubr.f32.gmra.mrb[0].mxu0 %v1717
        %v1719 = vpop.f32.mrb[0].mxu0
        %v1720 = vadd.f32 %v1484, %v1719
        %v1721 = vpop.f32.mrb[0].mxu0
        %v1722 = vadd.f32 %v1486, %v1721
        %1723 = vmatprep.mubr.f32.mxu0 0.0
        %v1724 = vand.u32 %v455, 4294901760
        %v1725 = vsub.f32 %v455, %v1724
        %v1726 = vand.u32 %v1725, 4294901760
        %1727 = vmatmul.mubr.f32.gmra.mrb[0].mxu0 %v1726
        %v1728 = vpop.f32.mrb[0].mxu0
        %v1729 = vadd.f32 %v1492, %v1728
        %v1730 = vpop.f32.mrb[0].mxu0
        %v1731 = vadd.f32 %v1494, %v1730
        %1732 = vmatprep.mubr.f32.mxu0 0.0
        %v1733 = vand.u32 %v458, 4294901760
        %v1734 = vsub.f32 %v458, %v1733
        %v1735 = vand.u32 %v1734, 4294901760
        %1736 = vmatmul.mubr.f32.gmra.mrb[0].mxu0 %v1735
        %v1737 = vpop.f32.mrb[0].mxu0
        %v1738 = vadd.f32 %v1500, %v1737
        %v1739 = vpop.f32.mrb[0].mxu0
        %v1740 = vadd.f32 %v1502, %v1739
        %1741 = vmatprep.mubr.f32.mxu0 0.0
        %v1742 = vand.u32 %v461, 4294901760
        %v1743 = vsub.f32 %v461, %v1742
        %v1744 = vand.u32 %v1743, 4294901760
        %1745 = vmatmul.mubr.f32.gmra.mrb[0].mxu0 %v1744
        %v1746 = vpop.f32.mrb[0].mxu0
        %v1747 = vadd.f32 %v1508, %v1746
        %v1748 = vpop.f32.mrb[0].mxu0
        %v1749 = vadd.f32 %v1510, %v1748
        %1750 = vmatprep.mubr.f32.mxu0 0.0
        %v1751 = vand.u32 %v464, 4294901760
        %v1752 = vsub.f32 %v464, %v1751
        %v1753 = vand.u32 %v1752, 4294901760
        %1754 = vmatmul.mubr.f32.gmra.mrb[0].mxu0 %v1753
        %v1755 = vpop.f32.mrb[0].mxu0
        %v1756 = vadd.f32 %v1516, %v1755
        %v1757 = vpop.f32.mrb[0].mxu0
        %v1758 = vadd.f32 %v1518, %v1757
        %1759 = vmatprep.mubr.f32.mxu0 0.0
        %v1760 = vand.u32 %v467, 4294901760
        %v1761 = vsub.f32 %v467, %v1760
        %v1762 = vand.u32 %v1761, 4294901760
        %1763 = vmatmul.mubr.f32.gmra.mrb[0].mxu0 %v1762
        %v1764 = vpop.f32.mrb[0].mxu0
        %v1765 = vadd.f32 %v1524, %v1764
        %v1766 = vpop.f32.mrb[0].mxu0
        %v1767 = vadd.f32 %v1526, %v1766
        %1768 = vdwg.mxu0
        %1769 = vmatprep.subr.mxu0 0.0
        %v1770 = vand.u32 %v470, 4294901760
        %v1771 = vsub.f32 %v470, %v1770
        %v1772 = vand.u32 %v1771, 4294901760
        %1773 = vmatpush1.xpose.msra.mxu0 %v1772
        %1774 = vmatprep.subr.mxu0 0.0
        %v1775 = vand.u32 %v473, 4294901760
        %v1776 = vsub.f32 %v473, %v1775
        %v1777 = vand.u32 %v1776, 4294901760
        %1778 = vmatpush1.xpose.msra.mxu0 %v1777
        %1779 = vmatprep.subr.mxu0 0.0
        %v1780 = vand.u32 %v476, 4294901760
        %v1781 = vsub.f32 %v476, %v1780
        %v1782 = vand.u32 %v1781, 4294901760
        %1783 = vmatpush1.xpose.msra.mxu0 %v1782
        %1784 = vmatprep.subr.mxu0 0.0
        %v1785 = vand.u32 %v479, 4294901760
        %v1786 = vsub.f32 %v479, %v1785
        %v1787 = vand.u32 %v1786, 4294901760
        %1788 = vmatpush1.xpose.msra.mxu0 %v1787
        %1789 = vmatprep.subr.mxu0 0.0
        %v1790 = vand.u32 %v482, 4294901760
        %v1791 = vsub.f32 %v482, %v1790
        %v1792 = vand.u32 %v1791, 4294901760
        %1793 = vmatpush1.xpose.msra.mxu0 %v1792
        %1794 = vmatprep.subr.mxu0 0.0
        %v1795 = vand.u32 %v485, 4294901760
        %v1796 = vsub.f32 %v485, %v1795
        %v1797 = vand.u32 %v1796, 4294901760
        %1798 = vmatpush1.xpose.msra.mxu0 %v1797
        %1799 = vmatprep.subr.mxu0 0.0
        %v1800 = vand.u32 %v488, 4294901760
        %v1801 = vsub.f32 %v488, %v1800
        %v1802 = vand.u32 %v1801, 4294901760
        %1803 = vmatpush1.xpose.msra.mxu0 %v1802
        %1804 = vmatprep.subr.mxu0 0.0
        %v1805 = vand.u32 %v491, 4294901760
        %v1806 = vsub.f32 %v491, %v1805
        %v1807 = vand.u32 %v1806, 4294901760
        %1808 = vmatpush1.xpose.msra.mxu0 %v1807
        %1809 = vmatprep.subr.mxu0 0.0
        %v1810 = vand.u32 %v494, 4294901760
        %v1811 = vsub.f32 %v494, %v1810
        %v1812 = vand.u32 %v1811, 4294901760
        %1813 = vmatpush1.xpose.msra.mxu0 %v1812
        %1814 = vmatprep.subr.mxu0 0.0
        %v1815 = vand.u32 %v497, 4294901760
        %v1816 = vsub.f32 %v497, %v1815
        %v1817 = vand.u32 %v1816, 4294901760
        %1818 = vmatpush1.xpose.msra.mxu0 %v1817
        %1819 = vmatprep.subr.mxu0 0.0
        %v1820 = vand.u32 %v500, 4294901760
        %v1821 = vsub.f32 %v500, %v1820
        %v1822 = vand.u32 %v1821, 4294901760
        %1823 = vmatpush1.xpose.msra.mxu0 %v1822
        %1824 = vmatprep.subr.mxu0 0.0
        %v1825 = vand.u32 %v503, 4294901760
        %v1826 = vsub.f32 %v503, %v1825
        %v1827 = vand.u32 %v1826, 4294901760
        %1828 = vmatpush1.xpose.msra.mxu0 %v1827
        %1829 = vmatprep.subr.mxu0 0.0
        %v1830 = vand.u32 %v506, 4294901760
        %v1831 = vsub.f32 %v506, %v1830
        %v1832 = vand.u32 %v1831, 4294901760
        %1833 = vmatpush1.xpose.msra.mxu0 %v1832
        %1834 = vmatprep.subr.mxu0 0.0
        %v1835 = vand.u32 %v509, 4294901760
        %v1836 = vsub.f32 %v509, %v1835
        %v1837 = vand.u32 %v1836, 4294901760
        %1838 = vmatpush1.xpose.msra.mxu0 %v1837
        %1839 = vmatprep.subr.mxu0 0.0
        %v1840 = vand.u32 %v512, 4294901760
        %v1841 = vsub.f32 %v512, %v1840
        %v1842 = vand.u32 %v1841, 4294901760
        %1843 = vmatpush1.xpose.msra.mxu0 %v1842
        %1844 = vmatprep.subr.mxu0 0.0
        %v1845 = vand.u32 %v515, 4294901760
        %v1846 = vsub.f32 %v515, %v1845
        %v1847 = vand.u32 %v1846, 4294901760
        %1848 = vmatpush1.xpose.msra.mxu0 %v1847
        %1849 = vmatprep.subr.mxu0 0.0
        %v1850 = vand.u32 %v518, 4294901760
        %v1851 = vsub.f32 %v518, %v1850
        %v1852 = vand.u32 %v1851, 4294901760
        %1853 = vmatpush1.xpose.msra.mxu0 %v1852
        %1854 = vmatprep.subr.mxu0 0.0
        %v1855 = vand.u32 %v521, 4294901760
        %v1856 = vsub.f32 %v521, %v1855
        %v1857 = vand.u32 %v1856, 4294901760
        %1858 = vmatpush1.xpose.msra.mxu0 %v1857
        %1859 = vmatprep.subr.mxu0 0.0
        %v1860 = vand.u32 %v524, 4294901760
        %v1861 = vsub.f32 %v524, %v1860
        %v1862 = vand.u32 %v1861, 4294901760
        %1863 = vmatpush1.xpose.msra.mxu0 %v1862
        %1864 = vmatprep.subr.mxu0 0.0
        %v1865 = vand.u32 %v527, 4294901760
        %v1866 = vsub.f32 %v527, %v1865
        %v1867 = vand.u32 %v1866, 4294901760
        %1868 = vmatpush1.xpose.msra.mxu0 %v1867
        %1869 = vmatprep.subr.mxu0 0.0
        %v1870 = vand.u32 %v530, 4294901760
        %v1871 = vsub.f32 %v530, %v1870
        %v1872 = vand.u32 %v1871, 4294901760
        %1873 = vmatpush1.xpose.msra.mxu0 %v1872
        %1874 = vmatprep.subr.mxu0 0.0
        %v1875 = vand.u32 %v533, 4294901760
        %v1876 = vsub.f32 %v533, %v1875
        %v1877 = vand.u32 %v1876, 4294901760
        %1878 = vmatpush1.xpose.msra.mxu0 %v1877
        %1879 = vmatprep.subr.mxu0 0.0
        %v1880 = vand.u32 %v536, 4294901760
        %v1881 = vsub.f32 %v536, %v1880
        %v1882 = vand.u32 %v1881, 4294901760
        %1883 = vmatpush1.xpose.msra.mxu0 %v1882
        %1884 = vmatprep.subr.mxu0 0.0
        %v1885 = vand.u32 %v539, 4294901760
        %v1886 = vsub.f32 %v539, %v1885
        %v1887 = vand.u32 %v1886, 4294901760
        %1888 = vmatpush1.xpose.msra.mxu0 %v1887
        %1889 = vmatprep.subr.mxu0 0.0
        %v1890 = vand.u32 %v542, 4294901760
        %v1891 = vsub.f32 %v542, %v1890
        %v1892 = vand.u32 %v1891, 4294901760
        %1893 = vmatpush1.xpose.msra.mxu0 %v1892
        %1894 = vmatprep.subr.mxu0 0.0
        %v1895 = vand.u32 %v545, 4294901760
        %v1896 = vsub.f32 %v545, %v1895
        %v1897 = vand.u32 %v1896, 4294901760
        %1898 = vmatpush1.xpose.msra.mxu0 %v1897
        %1899 = vmatprep.subr.mxu0 0.0
        %v1900 = vand.u32 %v548, 4294901760
        %v1901 = vsub.f32 %v548, %v1900
        %v1902 = vand.u32 %v1901, 4294901760
        %1903 = vmatpush1.xpose.msra.mxu0 %v1902
        %1904 = vmatprep.subr.mxu0 0.0
        %v1905 = vand.u32 %v551, 4294901760
        %v1906 = vsub.f32 %v551, %v1905
        %v1907 = vand.u32 %v1906, 4294901760
        %1908 = vmatpush1.xpose.msra.mxu0 %v1907
        %1909 = vmatprep.subr.mxu0 0.0
        %v1910 = vand.u32 %v554, 4294901760
        %v1911 = vsub.f32 %v554, %v1910
        %v1912 = vand.u32 %v1911, 4294901760
        %1913 = vmatpush1.xpose.msra.mxu0 %v1912
        %1914 = vmatprep.subr.mxu0 0.0
        %v1915 = vand.u32 %v557, 4294901760
        %v1916 = vsub.f32 %v557, %v1915
        %v1917 = vand.u32 %v1916, 4294901760
        %1918 = vmatpush1.xpose.msra.mxu0 %v1917
        %1919 = vmatprep.subr.mxu0 0.0
        %v1920 = vand.u32 %v560, 4294901760
        %v1921 = vsub.f32 %v560, %v1920
        %v1922 = vand.u32 %v1921, 4294901760
        %1923 = vmatpush1.xpose.msra.mxu0 %v1922
        %1924 = vmatprep.subr.mxu0 0.0
        %v1925 = vand.u32 %v563, 4294901760
        %v1926 = vsub.f32 %v563, %v1925
        %v1927 = vand.u32 %v1926, 4294901760
        %1928 = vmatpush1.xpose.msra.mxu0 %v1927
        %1929 = vmatprep.mubr.f32.mxu0 0.0
        %v1930 = vand.u32 %v422, 4294901760
        %1931 = vmatmul.mubr.f32.gmra.mrb[0].mxu0 %v1930
        %v1932 = vpop.f32.mrb[0].mxu0
        %v1933 = vadd.f32 %v1630, %v1932
        %v1934 = vpop.f32.mrb[0].mxu0
        %v1935 = vadd.f32 %v1632, %v1934
        %1936 = vmatprep.mubr.f32.mxu0 0.0
        %v1937 = vand.u32 %v425, 4294901760
        %1938 = vmatmul.mubr.f32.gmra.mrb[0].mxu0 %v1937
        %v1939 = vpop.f32.mrb[0].mxu0
        %v1940 = vadd.f32 %v1639, %v1939
        %v1941 = vpop.f32.mrb[0].mxu0
        %v1942 = vadd.f32 %v1641, %v1941
        %1943 = vmatprep.mubr.f32.mxu0 0.0
        %v1944 = vand.u32 %v428, 4294901760
        %1945 = vmatmul.mubr.f32.gmra.mrb[0].mxu0 %v1944
        %v1946 = vpop.f32.mrb[0].mxu0
        %v1947 = vadd.f32 %v1648, %v1946
        %v1948 = vpop.f32.mrb[0].mxu0
        %v1949 = vadd.f32 %v1650, %v1948
        %1950 = vmatprep.mubr.f32.mxu0 0.0
        %v1951 = vand.u32 %v431, 4294901760
        %1952 = vmatmul.mubr.f32.gmra.mrb[0].mxu0 %v1951
        %v1953 = vpop.f32.mrb[0].mxu0
        %v1954 = vadd.f32 %v1657, %v1953
        %v1955 = vpop.f32.mrb[0].mxu0
        %v1956 = vadd.f32 %v1659, %v1955
        %1957 = vmatprep.mubr.f32.mxu0 0.0
        %v1958 = vand.u32 %v434, 4294901760
        %1959 = vmatmul.mubr.f32.gmra.mrb[0].mxu0 %v1958
        %v1960 = vpop.f32.mrb[0].mxu0
        %v1961 = vadd.f32 %v1666, %v1960
        %v1962 = vpop.f32.mrb[0].mxu0
        %v1963 = vadd.f32 %v1668, %v1962
        %1964 = vmatprep.mubr.f32.mxu0 0.0
        %v1965 = vand.u32 %v437, 4294901760
        %1966 = vmatmul.mubr.f32.gmra.mrb[0].mxu0 %v1965
        %v1967 = vpop.f32.mrb[0].mxu0
        %v1968 = vadd.f32 %v1675, %v1967
        %v1969 = vpop.f32.mrb[0].mxu0
        %v1970 = vadd.f32 %v1677, %v1969
        %1971 = vmatprep.mubr.f32.mxu0 0.0
        %v1972 = vand.u32 %v440, 4294901760
        %1973 = vmatmul.mubr.f32.gmra.mrb[0].mxu0 %v1972
        %v1974 = vpop.f32.mrb[0].mxu0
        %v1975 = vadd.f32 %v1684, %v1974
        %v1976 = vpop.f32.mrb[0].mxu0
        %v1977 = vadd.f32 %v1686, %v1976
        %1978 = vmatprep.mubr.f32.mxu0 0.0
        %v1979 = vand.u32 %v443, 4294901760
        %1980 = vmatmul.mubr.f32.gmra.mrb[0].mxu0 %v1979
        %v1981 = vpop.f32.mrb[0].mxu0
        %v1982 = vadd.f32 %v1693, %v1981
        %v1983 = vpop.f32.mrb[0].mxu0
        %v1984 = vadd.f32 %v1695, %v1983
        %1985 = vmatprep.mubr.f32.mxu0 0.0
        %v1986 = vand.u32 %v446, 4294901760
        %1987 = vmatmul.mubr.f32.gmra.mrb[0].mxu0 %v1986
        %v1988 = vpop.f32.mrb[0].mxu0
        %v1989 = vadd.f32 %v1702, %v1988
        %v1990 = vpop.f32.mrb[0].mxu0
        %v1991 = vadd.f32 %v1704, %v1990
        %1992 = vmatprep.mubr.f32.mxu0 0.0
        %v1993 = vand.u32 %v449, 4294901760
        %1994 = vmatmul.mubr.f32.gmra.mrb[0].mxu0 %v1993
        %v1995 = vpop.f32.mrb[0].mxu0
        %v1996 = vadd.f32 %v1711, %v1995
        %v1997 = vpop.f32.mrb[0].mxu0
        %v1998 = vadd.f32 %v1713, %v1997
        %1999 = vmatprep.mubr.f32.mxu0 0.0
        %v2000 = vand.u32 %v452, 4294901760
        %2001 = vmatmul.mubr.f32.gmra.mrb[0].mxu0 %v2000
        %v2002 = vpop.f32.mrb[0].mxu0
        %v2003 = vadd.f32 %v1720, %v2002
        %v2004 = vpop.f32.mrb[0].mxu0
        %v2005 = vadd.f32 %v1722, %v2004
        %2006 = vmatprep.mubr.f32.mxu0 0.0
        %v2007 = vand.u32 %v455, 4294901760
        %2008 = vmatmul.mubr.f32.gmra.mrb[0].mxu0 %v2007
        %v2009 = vpop.f32.mrb[0].mxu0
        %v2010 = vadd.f32 %v1729, %v2009
        %v2011 = vpop.f32.mrb[0].mxu0
        %v2012 = vadd.f32 %v1731, %v2011
        %2013 = vmatprep.mubr.f32.mxu0 0.0
        %v2014 = vand.u32 %v458, 4294901760
        %2015 = vmatmul.mubr.f32.gmra.mrb[0].mxu0 %v2014
        %v2016 = vpop.f32.mrb[0].mxu0
        %v2017 = vadd.f32 %v1738, %v2016
        %v2018 = vpop.f32.mrb[0].mxu0
        %v2019 = vadd.f32 %v1740, %v2018
        %2020 = vmatprep.mubr.f32.mxu0 0.0
        %v2021 = vand.u32 %v461, 4294901760
        %2022 = vmatmul.mubr.f32.gmra.mrb[0].mxu0 %v2021
        %v2023 = vpop.f32.mrb[0].mxu0
        %v2024 = vadd.f32 %v1747, %v2023
        %v2025 = vpop.f32.mrb[0].mxu0
        %v2026 = vadd.f32 %v1749, %v2025
        %2027 = vmatprep.mubr.f32.mxu0 0.0
        %v2028 = vand.u32 %v464, 4294901760
        %2029 = vmatmul.mubr.f32.gmra.mrb[0].mxu0 %v2028
        %v2030 = vpop.f32.mrb[0].mxu0
        %v2031 = vadd.f32 %v1756, %v2030
        %v2032 = vpop.f32.mrb[0].mxu0
        %v2033 = vadd.f32 %v1758, %v2032
        %2034 = vmatprep.mubr.f32.mxu0 0.0
        %v2035 = vand.u32 %v467, 4294901760
        %2036 = vmatmul.mubr.f32.gmra.mrb[0].mxu0 %v2035
        %v2037 = vpop.f32.mrb[0].mxu0
        %v2038 = vadd.f32 %v1765, %v2037
        %v2039 = vpop.f32.mrb[0].mxu0
        %v2040 = vadd.f32 %v1767, %v2039
        %2041 = vdwg.mxu0
        %2042 = vmatprep.subr.mxu0 0.0
        %v2043 = vand.u32 %v470, 4294901760
        %2044 = vmatpush1.xpose.msra.mxu0 %v2043
        %2045 = vmatprep.subr.mxu0 0.0
        %v2046 = vand.u32 %v473, 4294901760
        %2047 = vmatpush1.xpose.msra.mxu0 %v2046
        %2048 = vmatprep.subr.mxu0 0.0
        %v2049 = vand.u32 %v476, 4294901760
        %2050 = vmatpush1.xpose.msra.mxu0 %v2049
        %2051 = vmatprep.subr.mxu0 0.0
        %v2052 = vand.u32 %v479, 4294901760
        %2053 = vmatpush1.xpose.msra.mxu0 %v2052
        %2054 = vmatprep.subr.mxu0 0.0
        %v2055 = vand.u32 %v482, 4294901760
        %2056 = vmatpush1.xpose.msra.mxu0 %v2055
        %2057 = vmatprep.subr.mxu0 0.0
        %v2058 = vand.u32 %v485, 4294901760
        %2059 = vmatpush1.xpose.msra.mxu0 %v2058
        %2060 = vmatprep.subr.mxu0 0.0
        %v2061 = vand.u32 %v488, 4294901760
        %2062 = vmatpush1.xpose.msra.mxu0 %v2061
        %2063 = vmatprep.subr.mxu0 0.0
        %v2064 = vand.u32 %v491, 4294901760
        %2065 = vmatpush1.xpose.msra.mxu0 %v2064
        %2066 = vmatprep.subr.mxu0 0.0
        %v2067 = vand.u32 %v494, 4294901760
        %2068 = vmatpush1.xpose.msra.mxu0 %v2067
        %2069 = vmatprep.subr.mxu0 0.0
        %v2070 = vand.u32 %v497, 4294901760
        %2071 = vmatpush1.xpose.msra.mxu0 %v2070
        %2072 = vmatprep.subr.mxu0 0.0
        %v2073 = vand.u32 %v500, 4294901760
        %2074 = vmatpush1.xpose.msra.mxu0 %v2073
        %2075 = vmatprep.subr.mxu0 0.0
        %v2076 = vand.u32 %v503, 4294901760
        %2077 = vmatpush1.xpose.msra.mxu0 %v2076
        %2078 = vmatprep.subr.mxu0 0.0
        %v2079 = vand.u32 %v506, 4294901760
        %2080 = vmatpush1.xpose.msra.mxu0 %v2079
        %2081 = vmatprep.subr.mxu0 0.0
        %v2082 = vand.u32 %v509, 4294901760
        %2083 = vmatpush1.xpose.msra.mxu0 %v2082
        %2084 = vmatprep.subr.mxu0 0.0
        %v2085 = vand.u32 %v512, 4294901760
        %2086 = vmatpush1.xpose.msra.mxu0 %v2085
        %2087 = vmatprep.subr.mxu0 0.0
        %v2088 = vand.u32 %v515, 4294901760
        %2089 = vmatpush1.xpose.msra.mxu0 %v2088
        %2090 = vmatprep.subr.mxu0 0.0
        %v2091 = vand.u32 %v518, 4294901760
        %2092 = vmatpush1.xpose.msra.mxu0 %v2091
        %2093 = vmatprep.subr.mxu0 0.0
        %v2094 = vand.u32 %v521, 4294901760
        %2095 = vmatpush1.xpose.msra.mxu0 %v2094
        %2096 = vmatprep.subr.mxu0 0.0
        %v2097 = vand.u32 %v524, 4294901760
        %2098 = vmatpush1.xpose.msra.mxu0 %v2097
        %2099 = vmatprep.subr.mxu0 0.0
        %v2100 = vand.u32 %v527, 4294901760
        %2101 = vmatpush1.xpose.msra.mxu0 %v2100
        %2102 = vmatprep.subr.mxu0 0.0
        %v2103 = vand.u32 %v530, 4294901760
        %2104 = vmatpush1.xpose.msra.mxu0 %v2103
        %2105 = vmatprep.subr.mxu0 0.0
        %v2106 = vand.u32 %v533, 4294901760
        %2107 = vmatpush1.xpose.msra.mxu0 %v2106
        %2108 = vmatprep.subr.mxu0 0.0
        %v2109 = vand.u32 %v536, 4294901760
        %2110 = vmatpush1.xpose.msra.mxu0 %v2109
        %2111 = vmatprep.subr.mxu0 0.0
        %v2112 = vand.u32 %v539, 4294901760
        %2113 = vmatpush1.xpose.msra.mxu0 %v2112
        %2114 = vmatprep.subr.mxu0 0.0
        %v2115 = vand.u32 %v542, 4294901760
        %2116 = vmatpush1.xpose.msra.mxu0 %v2115
        %2117 = vmatprep.subr.mxu0 0.0
        %v2118 = vand.u32 %v545, 4294901760
        %2119 = vmatpush1.xpose.msra.mxu0 %v2118
        %2120 = vmatprep.subr.mxu0 0.0
        %v2121 = vand.u32 %v548, 4294901760
        %2122 = vmatpush1.xpose.msra.mxu0 %v2121
        %2123 = vmatprep.subr.mxu0 0.0
        %v2124 = vand.u32 %v551, 4294901760
        %2125 = vmatpush1.xpose.msra.mxu0 %v2124
        %2126 = vmatprep.subr.mxu0 0.0
        %v2127 = vand.u32 %v554, 4294901760
        %2128 = vmatpush1.xpose.msra.mxu0 %v2127
        %2129 = vmatprep.subr.mxu0 0.0
        %v2130 = vand.u32 %v557, 4294901760
        %2131 = vmatpush1.xpose.msra.mxu0 %v2130
        %2132 = vmatprep.subr.mxu0 0.0
        %v2133 = vand.u32 %v560, 4294901760
        %2134 = vmatpush1.xpose.msra.mxu0 %v2133
        %2135 = vmatprep.subr.mxu0 0.0
        %v2136 = vand.u32 %v563, 4294901760
        %2137 = vmatpush1.xpose.msra.mxu0 %v2136
        %2138 = vmatprep.mubr.f32.mxu0 0.0
        %v2139 = vand.u32 %v422, 4294901760
        %2140 = vmatmul.mubr.f32.gmra.mrb[0].mxu0 %v2139
        %v2141 = vpop.f32.mrb[0].mxu0
        %v2142 = vadd.f32 %v1933, %v2141
        %v2143 = vpop.f32.mrb[0].mxu0
        %v2144 = vadd.f32 %v1935, %v2143
        %2145 = vmatprep.mubr.f32.mxu0 0.0
        %v2146 = vand.u32 %v425, 4294901760
        %2147 = vmatmul.mubr.f32.gmra.mrb[0].mxu0 %v2146
        %v2148 = vpop.f32.mrb[0].mxu0
        %v2149 = vadd.f32 %v1940, %v2148
        %v2150 = vpop.f32.mrb[0].mxu0
        %v2151 = vadd.f32 %v1942, %v2150
        %2152 = vmatprep.mubr.f32.mxu0 0.0
        %v2153 = vand.u32 %v428, 4294901760
        %2154 = vmatmul.mubr.f32.gmra.mrb[0].mxu0 %v2153
        %v2155 = vpop.f32.mrb[0].mxu0
        %v2156 = vadd.f32 %v1947, %v2155
        %v2157 = vpop.f32.mrb[0].mxu0
        %v2158 = vadd.f32 %v1949, %v2157
        %2159 = vmatprep.mubr.f32.mxu0 0.0
        %v2160 = vand.u32 %v431, 4294901760
        %2161 = vmatmul.mubr.f32.gmra.mrb[0].mxu0 %v2160
        %v2162 = vpop.f32.mrb[0].mxu0
        %v2163 = vadd.f32 %v1954, %v2162
        %v2164 = vpop.f32.mrb[0].mxu0
        %v2165 = vadd.f32 %v1956, %v2164
        %2166 = vmatprep.mubr.f32.mxu0 0.0
        %v2167 = vand.u32 %v434, 4294901760
        %2168 = vmatmul.mubr.f32.gmra.mrb[0].mxu0 %v2167
        %v2169 = vpop.f32.mrb[0].mxu0
        %v2170 = vadd.f32 %v1961, %v2169
        %v2171 = vpop.f32.mrb[0].mxu0
        %v2172 = vadd.f32 %v1963, %v2171
        %2173 = vmatprep.mubr.f32.mxu0 0.0
        %v2174 = vand.u32 %v437, 4294901760
        %2175 = vmatmul.mubr.f32.gmra.mrb[0].mxu0 %v2174
        %v2176 = vpop.f32.mrb[0].mxu0
        %v2177 = vadd.f32 %v1968, %v2176
        %v2178 = vpop.f32.mrb[0].mxu0
        %v2179 = vadd.f32 %v1970, %v2178
        %2180 = vmatprep.mubr.f32.mxu0 0.0
        %v2181 = vand.u32 %v440, 4294901760
        %2182 = vmatmul.mubr.f32.gmra.mrb[0].mxu0 %v2181
        %v2183 = vpop.f32.mrb[0].mxu0
        %v2184 = vadd.f32 %v1975, %v2183
        %v2185 = vpop.f32.mrb[0].mxu0
        %v2186 = vadd.f32 %v1977, %v2185
        %2187 = vmatprep.mubr.f32.mxu0 0.0
        %v2188 = vand.u32 %v443, 4294901760
        %2189 = vmatmul.mubr.f32.gmra.mrb[0].mxu0 %v2188
        %v2190 = vpop.f32.mrb[0].mxu0
        %v2191 = vadd.f32 %v1982, %v2190
        %v2192 = vpop.f32.mrb[0].mxu0
        %v2193 = vadd.f32 %v1984, %v2192
        %2194 = vmatprep.mubr.f32.mxu0 0.0
        %v2195 = vand.u32 %v446, 4294901760
        %2196 = vmatmul.mubr.f32.gmra.mrb[0].mxu0 %v2195
        %v2197 = vpop.f32.mrb[0].mxu0
        %v2198 = vadd.f32 %v1989, %v2197
        %v2199 = vpop.f32.mrb[0].mxu0
        %v2200 = vadd.f32 %v1991, %v2199
        %2201 = vmatprep.mubr.f32.mxu0 0.0
        %v2202 = vand.u32 %v449, 4294901760
        %2203 = vmatmul.mubr.f32.gmra.mrb[0].mxu0 %v2202
        %v2204 = vpop.f32.mrb[0].mxu0
        %v2205 = vadd.f32 %v1996, %v2204
        %v2206 = vpop.f32.mrb[0].mxu0
        %v2207 = vadd.f32 %v1998, %v2206
        %2208 = vmatprep.mubr.f32.mxu0 0.0
        %v2209 = vand.u32 %v452, 4294901760
        %2210 = vmatmul.mubr.f32.gmra.mrb[0].mxu0 %v2209
        %v2211 = vpop.f32.mrb[0].mxu0
        %v2212 = vadd.f32 %v2003, %v2211
        %v2213 = vpop.f32.mrb[0].mxu0
        %v2214 = vadd.f32 %v2005, %v2213
        %2215 = vmatprep.mubr.f32.mxu0 0.0
        %v2216 = vand.u32 %v455, 4294901760
        %2217 = vmatmul.mubr.f32.gmra.mrb[0].mxu0 %v2216
        %v2218 = vpop.f32.mrb[0].mxu0
        %v2219 = vadd.f32 %v2010, %v2218
        %v2220 = vpop.f32.mrb[0].mxu0
        %v2221 = vadd.f32 %v2012, %v2220
        %2222 = vmatprep.mubr.f32.mxu0 0.0
        %v2223 = vand.u32 %v458, 4294901760
        %2224 = vmatmul.mubr.f32.gmra.mrb[0].mxu0 %v2223
        %v2225 = vpop.f32.mrb[0].mxu0
        %v2226 = vadd.f32 %v2017, %v2225
        %v2227 = vpop.f32.mrb[0].mxu0
        %v2228 = vadd.f32 %v2019, %v2227
        %2229 = vmatprep.mubr.f32.mxu0 0.0
        %v2230 = vand.u32 %v461, 4294901760
        %2231 = vmatmul.mubr.f32.gmra.mrb[0].mxu0 %v2230
        %v2232 = vpop.f32.mrb[0].mxu0
        %v2233 = vadd.f32 %v2024, %v2232
        %v2234 = vpop.f32.mrb[0].mxu0
        %v2235 = vadd.f32 %v2026, %v2234
        %2236 = vmatprep.mubr.f32.mxu0 0.0
        %v2237 = vand.u32 %v464, 4294901760
        %2238 = vmatmul.mubr.f32.gmra.mrb[0].mxu0 %v2237
        %v2239 = vpop.f32.mrb[0].mxu0
        %v2240 = vadd.f32 %v2031, %v2239
        %v2241 = vpop.f32.mrb[0].mxu0
        %v2242 = vadd.f32 %v2033, %v2241
        %2243 = vmatprep.mubr.f32.mxu0 0.0
        %v2244 = vand.u32 %v467, 4294901760
        %2245 = vmatmul.mubr.f32.gmra.mrb[0].mxu0 %v2244
        %v2246 = vpop.f32.mrb[0].mxu0
        %v2247 = vadd.f32 %v2038, %v2246
        %v2248 = vpop.f32.mrb[0].mxu0
        %v2249 = vadd.f32 %v2040, %v2248
        %2250 = vdwg.mxu0
        %2251 = vmatprep.subr.mxu0 0.0
        %v2252 = vand.u32 %v566, 4294901760
        %2253 = vmatpush1.xpose.msra.mxu0 %v2252
        %2254 = vmatprep.subr.mxu0 0.0
        %v2255 = vand.u32 %v569, 4294901760
        %2256 = vmatpush1.xpose.msra.mxu0 %v2255
        %2257 = vmatprep.subr.mxu0 0.0
        %v2258 = vand.u32 %v572, 4294901760
        %2259 = vmatpush1.xpose.msra.mxu0 %v2258
        %2260 = vmatprep.subr.mxu0 0.0
        %v2261 = vand.u32 %v575, 4294901760
        %2262 = vmatpush1.xpose.msra.mxu0 %v2261
        %2263 = vmatprep.subr.mxu0 0.0
        %v2264 = vand.u32 %v578, 4294901760
        %2265 = vmatpush1.xpose.msra.mxu0 %v2264
        %2266 = vmatprep.subr.mxu0 0.0
        %v2267 = vand.u32 %v581, 4294901760
        %2268 = vmatpush1.xpose.msra.mxu0 %v2267
        %2269 = vmatprep.subr.mxu0 0.0
        %v2270 = vand.u32 %v584, 4294901760
        %2271 = vmatpush1.xpose.msra.mxu0 %v2270
        %2272 = vmatprep.subr.mxu0 0.0
        %v2273 = vand.u32 %v587, 4294901760
        %2274 = vmatpush1.xpose.msra.mxu0 %v2273
        %2275 = vmatprep.subr.mxu0 0.0
        %v2276 = vand.u32 %v590, 4294901760
        %2277 = vmatpush1.xpose.msra.mxu0 %v2276
        %2278 = vmatprep.subr.mxu0 0.0
        %v2279 = vand.u32 %v593, 4294901760
        %2280 = vmatpush1.xpose.msra.mxu0 %v2279
        %2281 = vmatprep.subr.mxu0 0.0
        %v2282 = vand.u32 %v596, 4294901760
        %2283 = vmatpush1.xpose.msra.mxu0 %v2282
        %2284 = vmatprep.subr.mxu0 0.0
        %v2285 = vand.u32 %v599, 4294901760
        %2286 = vmatpush1.xpose.msra.mxu0 %v2285
        %2287 = vmatprep.subr.mxu0 0.0
        %v2288 = vand.u32 %v602, 4294901760
        %2289 = vmatpush1.xpose.msra.mxu0 %v2288
        %2290 = vmatprep.subr.mxu0 0.0
        %v2291 = vand.u32 %v605, 4294901760
        %2292 = vmatpush1.xpose.msra.mxu0 %v2291
        %2293 = vmatprep.subr.mxu0 0.0
        %v2294 = vand.u32 %v608, 4294901760
        %2295 = vmatpush1.xpose.msra.mxu0 %v2294
        %2296 = vmatprep.subr.mxu0 0.0
        %v2297 = vand.u32 %v611, 4294901760
        %2298 = vmatpush1.xpose.msra.mxu0 %v2297
        %2299 = vmatprep.subr.mxu0 0.0
        %v2300 = vand.u32 %v614, 4294901760
        %2301 = vmatpush1.xpose.msra.mxu0 %v2300
        %2302 = vmatprep.subr.mxu0 0.0
        %v2303 = vand.u32 %v617, 4294901760
        %2304 = vmatpush1.xpose.msra.mxu0 %v2303
        %2305 = vmatprep.subr.mxu0 0.0
        %v2306 = vand.u32 %v620, 4294901760
        %2307 = vmatpush1.xpose.msra.mxu0 %v2306
        %2308 = vmatprep.subr.mxu0 0.0
        %v2309 = vand.u32 %v623, 4294901760
        %2310 = vmatpush1.xpose.msra.mxu0 %v2309
        %2311 = vmatprep.subr.mxu0 0.0
        %v2312 = vand.u32 %v626, 4294901760
        %2313 = vmatpush1.xpose.msra.mxu0 %v2312
        %2314 = vmatprep.subr.mxu0 0.0
        %v2315 = vand.u32 %v629, 4294901760
        %2316 = vmatpush1.xpose.msra.mxu0 %v2315
        %2317 = vmatprep.subr.mxu0 0.0
        %v2318 = vand.u32 %v632, 4294901760
        %2319 = vmatpush1.xpose.msra.mxu0 %v2318
        %2320 = vmatprep.subr.mxu0 0.0
        %v2321 = vand.u32 %v635, 4294901760
        %2322 = vmatpush1.xpose.msra.mxu0 %v2321
        %2323 = vmatprep.subr.mxu0 0.0
        %v2324 = vand.u32 %v638, 4294901760
        %2325 = vmatpush1.xpose.msra.mxu0 %v2324
        %2326 = vmatprep.subr.mxu0 0.0
        %v2327 = vand.u32 %v641, 4294901760
        %2328 = vmatpush1.xpose.msra.mxu0 %v2327
        %2329 = vmatprep.subr.mxu0 0.0
        %v2330 = vand.u32 %v644, 4294901760
        %2331 = vmatpush1.xpose.msra.mxu0 %v2330
        %2332 = vmatprep.subr.mxu0 0.0
        %v2333 = vand.u32 %v647, 4294901760
        %2334 = vmatpush1.xpose.msra.mxu0 %v2333
        %2335 = vmatprep.subr.mxu0 0.0
        %v2336 = vand.u32 %v650, 4294901760
        %2337 = vmatpush1.xpose.msra.mxu0 %v2336
        %2338 = vmatprep.subr.mxu0 0.0
        %v2339 = vand.u32 %v653, 4294901760
        %2340 = vmatpush1.xpose.msra.mxu0 %v2339
        %2341 = vmatprep.subr.mxu0 0.0
        %v2342 = vand.u32 %v656, 4294901760
        %2343 = vmatpush1.xpose.msra.mxu0 %v2342
        %2344 = vmatprep.subr.mxu0 0.0
        %v2345 = vand.u32 %v659, 4294901760
        %2346 = vmatpush1.xpose.msra.mxu0 %v2345
        %2347 = vmatprep.mubr.f32.mxu0 0.0
        %v2348 = vand.u32 %v422, 4294901760
        %v2349 = vsub.f32 %v422, %v2348
        %v2350 = vand.u32 %v2349, 4294901760
        %v2351 = vsub.f32 %v2349, %v2350
        %v2352 = vand.u32 %v2351, 4294901760
        %2353 = vmatmul.mubr.f32.gmra.mrb[0].mxu0 %v2352
        %v2354 = vpop.f32.mrb[0].mxu0
        %v2355 = vadd.f32 0.0, %v2354
        %v2356 = vpop.f32.mrb[0].mxu0
        %v2357 = vadd.f32 0.0, %v2356
        %2358 = vmatprep.mubr.f32.mxu0 0.0
        %v2359 = vand.u32 %v425, 4294901760
        %v2360 = vsub.f32 %v425, %v2359
        %v2361 = vand.u32 %v2360, 4294901760
        %v2362 = vsub.f32 %v2360, %v2361
        %v2363 = vand.u32 %v2362, 4294901760
        %2364 = vmatmul.mubr.f32.gmra.mrb[0].mxu0 %v2363
        %v2365 = vpop.f32.mrb[0].mxu0
        %v2366 = vadd.f32 0.0, %v2365
        %v2367 = vpop.f32.mrb[0].mxu0
        %v2368 = vadd.f32 0.0, %v2367
        %2369 = vmatprep.mubr.f32.mxu0 0.0
        %v2370 = vand.u32 %v428, 4294901760
        %v2371 = vsub.f32 %v428, %v2370
        %v2372 = vand.u32 %v2371, 4294901760
        %v2373 = vsub.f32 %v2371, %v2372
        %v2374 = vand.u32 %v2373, 4294901760
        %2375 = vmatmul.mubr.f32.gmra.mrb[0].mxu0 %v2374
        %v2376 = vpop.f32.mrb[0].mxu0
        %v2377 = vadd.f32 0.0, %v2376
        %v2378 = vpop.f32.mrb[0].mxu0
        %v2379 = vadd.f32 0.0, %v2378
        %2380 = vmatprep.mubr.f32.mxu0 0.0
        %v2381 = vand.u32 %v431, 4294901760
        %v2382 = vsub.f32 %v431, %v2381
        %v2383 = vand.u32 %v2382, 4294901760
        %v2384 = vsub.f32 %v2382, %v2383
        %v2385 = vand.u32 %v2384, 4294901760
        %2386 = vmatmul.mubr.f32.gmra.mrb[0].mxu0 %v2385
        %v2387 = vpop.f32.mrb[0].mxu0
        %v2388 = vadd.f32 0.0, %v2387
        %v2389 = vpop.f32.mrb[0].mxu0
        %v2390 = vadd.f32 0.0, %v2389
        %2391 = vmatprep.mubr.f32.mxu0 0.0
        %v2392 = vand.u32 %v434, 4294901760
        %v2393 = vsub.f32 %v434, %v2392
        %v2394 = vand.u32 %v2393, 4294901760
        %v2395 = vsub.f32 %v2393, %v2394
        %v2396 = vand.u32 %v2395, 4294901760
        %2397 = vmatmul.mubr.f32.gmra.mrb[0].mxu0 %v2396
        %v2398 = vpop.f32.mrb[0].mxu0
        %v2399 = vadd.f32 0.0, %v2398
        %v2400 = vpop.f32.mrb[0].mxu0
        %v2401 = vadd.f32 0.0, %v2400
        %2402 = vmatprep.mubr.f32.mxu0 0.0
        %v2403 = vand.u32 %v437, 4294901760
        %v2404 = vsub.f32 %v437, %v2403
        %v2405 = vand.u32 %v2404, 4294901760
        %v2406 = vsub.f32 %v2404, %v2405
        %v2407 = vand.u32 %v2406, 4294901760
        %2408 = vmatmul.mubr.f32.gmra.mrb[0].mxu0 %v2407
        %v2409 = vpop.f32.mrb[0].mxu0
        %v2410 = vadd.f32 0.0, %v2409
        %v2411 = vpop.f32.mrb[0].mxu0
        %v2412 = vadd.f32 0.0, %v2411
        %2413 = vmatprep.mubr.f32.mxu0 0.0
        %v2414 = vand.u32 %v440, 4294901760
        %v2415 = vsub.f32 %v440, %v2414
        %v2416 = vand.u32 %v2415, 4294901760
        %v2417 = vsub.f32 %v2415, %v2416
        %v2418 = vand.u32 %v2417, 4294901760
        %2419 = vmatmul.mubr.f32.gmra.mrb[0].mxu0 %v2418
        %v2420 = vpop.f32.mrb[0].mxu0
        %v2421 = vadd.f32 0.0, %v2420
        %v2422 = vpop.f32.mrb[0].mxu0
        %v2423 = vadd.f32 0.0, %v2422
        %2424 = vmatprep.mubr.f32.mxu0 0.0
        %v2425 = vand.u32 %v443, 4294901760
        %v2426 = vsub.f32 %v443, %v2425
        %v2427 = vand.u32 %v2426, 4294901760
        %v2428 = vsub.f32 %v2426, %v2427
        %v2429 = vand.u32 %v2428, 4294901760
        %2430 = vmatmul.mubr.f32.gmra.mrb[0].mxu0 %v2429
        %v2431 = vpop.f32.mrb[0].mxu0
        %v2432 = vadd.f32 0.0, %v2431
        %v2433 = vpop.f32.mrb[0].mxu0
        %v2434 = vadd.f32 0.0, %v2433
        %2435 = vmatprep.mubr.f32.mxu0 0.0
        %v2436 = vand.u32 %v446, 4294901760
        %v2437 = vsub.f32 %v446, %v2436
        %v2438 = vand.u32 %v2437, 4294901760
        %v2439 = vsub.f32 %v2437, %v2438
        %v2440 = vand.u32 %v2439, 4294901760
        %2441 = vmatmul.mubr.f32.gmra.mrb[0].mxu0 %v2440
        %v2442 = vpop.f32.mrb[0].mxu0
        %v2443 = vadd.f32 0.0, %v2442
        %v2444 = vpop.f32.mrb[0].mxu0
        %v2445 = vadd.f32 0.0, %v2444
        %2446 = vmatprep.mubr.f32.mxu0 0.0
        %v2447 = vand.u32 %v449, 4294901760
        %v2448 = vsub.f32 %v449, %v2447
        %v2449 = vand.u32 %v2448, 4294901760
        %v2450 = vsub.f32 %v2448, %v2449
        %v2451 = vand.u32 %v2450, 4294901760
        %2452 = vmatmul.mubr.f32.gmra.mrb[0].mxu0 %v2451
        %v2453 = vpop.f32.mrb[0].mxu0
        %v2454 = vadd.f32 0.0, %v2453
        %v2455 = vpop.f32.mrb[0].mxu0
        %v2456 = vadd.f32 0.0, %v2455
        %2457 = vmatprep.mubr.f32.mxu0 0.0
        %v2458 = vand.u32 %v452, 4294901760
        %v2459 = vsub.f32 %v452, %v2458
        %v2460 = vand.u32 %v2459, 4294901760
        %v2461 = vsub.f32 %v2459, %v2460
        %v2462 = vand.u32 %v2461, 4294901760
        %2463 = vmatmul.mubr.f32.gmra.mrb[0].mxu0 %v2462
        %v2464 = vpop.f32.mrb[0].mxu0
        %v2465 = vadd.f32 0.0, %v2464
        %v2466 = vpop.f32.mrb[0].mxu0
        %v2467 = vadd.f32 0.0, %v2466
        %2468 = vmatprep.mubr.f32.mxu0 0.0
        %v2469 = vand.u32 %v455, 4294901760
        %v2470 = vsub.f32 %v455, %v2469
        %v2471 = vand.u32 %v2470, 4294901760
        %v2472 = vsub.f32 %v2470, %v2471
        %v2473 = vand.u32 %v2472, 4294901760
        %2474 = vmatmul.mubr.f32.gmra.mrb[0].mxu0 %v2473
        %v2475 = vpop.f32.mrb[0].mxu0
        %v2476 = vadd.f32 0.0, %v2475
        %v2477 = vpop.f32.mrb[0].mxu0
        %v2478 = vadd.f32 0.0, %v2477
        %2479 = vmatprep.mubr.f32.mxu0 0.0
        %v2480 = vand.u32 %v458, 4294901760
        %v2481 = vsub.f32 %v458, %v2480
        %v2482 = vand.u32 %v2481, 4294901760
        %v2483 = vsub.f32 %v2481, %v2482
        %v2484 = vand.u32 %v2483, 4294901760
        %2485 = vmatmul.mubr.f32.gmra.mrb[0].mxu0 %v2484
        %v2486 = vpop.f32.mrb[0].mxu0
        %v2487 = vadd.f32 0.0, %v2486
        %v2488 = vpop.f32.mrb[0].mxu0
        %v2489 = vadd.f32 0.0, %v2488
        %2490 = vmatprep.mubr.f32.mxu0 0.0
        %v2491 = vand.u32 %v461, 4294901760
        %v2492 = vsub.f32 %v461, %v2491
        %v2493 = vand.u32 %v2492, 4294901760
        %v2494 = vsub.f32 %v2492, %v2493
        %v2495 = vand.u32 %v2494, 4294901760
        %2496 = vmatmul.mubr.f32.gmra.mrb[0].mxu0 %v2495
        %v2497 = vpop.f32.mrb[0].mxu0
        %v2498 = vadd.f32 0.0, %v2497
        %v2499 = vpop.f32.mrb[0].mxu0
        %v2500 = vadd.f32 0.0, %v2499
        %2501 = vmatprep.mubr.f32.mxu0 0.0
        %v2502 = vand.u32 %v464, 4294901760
        %v2503 = vsub.f32 %v464, %v2502
        %v2504 = vand.u32 %v2503, 4294901760
        %v2505 = vsub.f32 %v2503, %v2504
        %v2506 = vand.u32 %v2505, 4294901760
        %2507 = vmatmul.mubr.f32.gmra.mrb[0].mxu0 %v2506
        %v2508 = vpop.f32.mrb[0].mxu0
        %v2509 = vadd.f32 0.0, %v2508
        %v2510 = vpop.f32.mrb[0].mxu0
        %v2511 = vadd.f32 0.0, %v2510
        %2512 = vmatprep.mubr.f32.mxu0 0.0
        %v2513 = vand.u32 %v467, 4294901760
        %v2514 = vsub.f32 %v467, %v2513
        %v2515 = vand.u32 %v2514, 4294901760
        %v2516 = vsub.f32 %v2514, %v2515
        %v2517 = vand.u32 %v2516, 4294901760
        %2518 = vmatmul.mubr.f32.gmra.mrb[0].mxu0 %v2517
        %v2519 = vpop.f32.mrb[0].mxu0
        %v2520 = vadd.f32 0.0, %v2519
        %v2521 = vpop.f32.mrb[0].mxu0
        %v2522 = vadd.f32 0.0, %v2521
        %2523 = vdwg.mxu0
        %2524 = vmatprep.subr.mxu0 0.0
        %v2525 = vand.u32 %v566, 4294901760
        %v2526 = vsub.f32 %v566, %v2525
        %v2527 = vand.u32 %v2526, 4294901760
        %v2528 = vsub.f32 %v2526, %v2527
        %v2529 = vand.u32 %v2528, 4294901760
        %2530 = vmatpush1.xpose.msra.mxu0 %v2529
        %2531 = vmatprep.subr.mxu0 0.0
        %v2532 = vand.u32 %v569, 4294901760
        %v2533 = vsub.f32 %v569, %v2532
        %v2534 = vand.u32 %v2533, 4294901760
        %v2535 = vsub.f32 %v2533, %v2534
        %v2536 = vand.u32 %v2535, 4294901760
        %2537 = vmatpush1.xpose.msra.mxu0 %v2536
        %2538 = vmatprep.subr.mxu0 0.0
        %v2539 = vand.u32 %v572, 4294901760
        %v2540 = vsub.f32 %v572, %v2539
        %v2541 = vand.u32 %v2540, 4294901760
        %v2542 = vsub.f32 %v2540, %v2541
        %v2543 = vand.u32 %v2542, 4294901760
        %2544 = vmatpush1.xpose.msra.mxu0 %v2543
        %2545 = vmatprep.subr.mxu0 0.0
        %v2546 = vand.u32 %v575, 4294901760
        %v2547 = vsub.f32 %v575, %v2546
        %v2548 = vand.u32 %v2547, 4294901760
        %v2549 = vsub.f32 %v2547, %v2548
        %v2550 = vand.u32 %v2549, 4294901760
        %2551 = vmatpush1.xpose.msra.mxu0 %v2550
        %2552 = vmatprep.subr.mxu0 0.0
        %v2553 = vand.u32 %v578, 4294901760
        %v2554 = vsub.f32 %v578, %v2553
        %v2555 = vand.u32 %v2554, 4294901760
        %v2556 = vsub.f32 %v2554, %v2555
        %v2557 = vand.u32 %v2556, 4294901760
        %2558 = vmatpush1.xpose.msra.mxu0 %v2557
        %2559 = vmatprep.subr.mxu0 0.0
        %v2560 = vand.u32 %v581, 4294901760
        %v2561 = vsub.f32 %v581, %v2560
        %v2562 = vand.u32 %v2561, 4294901760
        %v2563 = vsub.f32 %v2561, %v2562
        %v2564 = vand.u32 %v2563, 4294901760
        %2565 = vmatpush1.xpose.msra.mxu0 %v2564
        %2566 = vmatprep.subr.mxu0 0.0
        %v2567 = vand.u32 %v584, 4294901760
        %v2568 = vsub.f32 %v584, %v2567
        %v2569 = vand.u32 %v2568, 4294901760
        %v2570 = vsub.f32 %v2568, %v2569
        %v2571 = vand.u32 %v2570, 4294901760
        %2572 = vmatpush1.xpose.msra.mxu0 %v2571
        %2573 = vmatprep.subr.mxu0 0.0
        %v2574 = vand.u32 %v587, 4294901760
        %v2575 = vsub.f32 %v587, %v2574
        %v2576 = vand.u32 %v2575, 4294901760
        %v2577 = vsub.f32 %v2575, %v2576
        %v2578 = vand.u32 %v2577, 4294901760
        %2579 = vmatpush1.xpose.msra.mxu0 %v2578
        %2580 = vmatprep.subr.mxu0 0.0
        %v2581 = vand.u32 %v590, 4294901760
        %v2582 = vsub.f32 %v590, %v2581
        %v2583 = vand.u32 %v2582, 4294901760
        %v2584 = vsub.f32 %v2582, %v2583
        %v2585 = vand.u32 %v2584, 4294901760
        %2586 = vmatpush1.xpose.msra.mxu0 %v2585
        %2587 = vmatprep.subr.mxu0 0.0
        %v2588 = vand.u32 %v593, 4294901760
        %v2589 = vsub.f32 %v593, %v2588
        %v2590 = vand.u32 %v2589, 4294901760
        %v2591 = vsub.f32 %v2589, %v2590
        %v2592 = vand.u32 %v2591, 4294901760
        %2593 = vmatpush1.xpose.msra.mxu0 %v2592
        %2594 = vmatprep.subr.mxu0 0.0
        %v2595 = vand.u32 %v596, 4294901760
        %v2596 = vsub.f32 %v596, %v2595
        %v2597 = vand.u32 %v2596, 4294901760
        %v2598 = vsub.f32 %v2596, %v2597
        %v2599 = vand.u32 %v2598, 4294901760
        %2600 = vmatpush1.xpose.msra.mxu0 %v2599
        %2601 = vmatprep.subr.mxu0 0.0
        %v2602 = vand.u32 %v599, 4294901760
        %v2603 = vsub.f32 %v599, %v2602
        %v2604 = vand.u32 %v2603, 4294901760
        %v2605 = vsub.f32 %v2603, %v2604
        %v2606 = vand.u32 %v2605, 4294901760
        %2607 = vmatpush1.xpose.msra.mxu0 %v2606
        %2608 = vmatprep.subr.mxu0 0.0
        %v2609 = vand.u32 %v602, 4294901760
        %v2610 = vsub.f32 %v602, %v2609
        %v2611 = vand.u32 %v2610, 4294901760
        %v2612 = vsub.f32 %v2610, %v2611
        %v2613 = vand.u32 %v2612, 4294901760
        %2614 = vmatpush1.xpose.msra.mxu0 %v2613
        %2615 = vmatprep.subr.mxu0 0.0
        %v2616 = vand.u32 %v605, 4294901760
        %v2617 = vsub.f32 %v605, %v2616
        %v2618 = vand.u32 %v2617, 4294901760
        %v2619 = vsub.f32 %v2617, %v2618
        %v2620 = vand.u32 %v2619, 4294901760
        %2621 = vmatpush1.xpose.msra.mxu0 %v2620
        %2622 = vmatprep.subr.mxu0 0.0
        %v2623 = vand.u32 %v608, 4294901760
        %v2624 = vsub.f32 %v608, %v2623
        %v2625 = vand.u32 %v2624, 4294901760
        %v2626 = vsub.f32 %v2624, %v2625
        %v2627 = vand.u32 %v2626, 4294901760
        %2628 = vmatpush1.xpose.msra.mxu0 %v2627
        %2629 = vmatprep.subr.mxu0 0.0
        %v2630 = vand.u32 %v611, 4294901760
        %v2631 = vsub.f32 %v611, %v2630
        %v2632 = vand.u32 %v2631, 4294901760
        %v2633 = vsub.f32 %v2631, %v2632
        %v2634 = vand.u32 %v2633, 4294901760
        %2635 = vmatpush1.xpose.msra.mxu0 %v2634
        %2636 = vmatprep.subr.mxu0 0.0
        %v2637 = vand.u32 %v614, 4294901760
        %v2638 = vsub.f32 %v614, %v2637
        %v2639 = vand.u32 %v2638, 4294901760
        %v2640 = vsub.f32 %v2638, %v2639
        %v2641 = vand.u32 %v2640, 4294901760
        %2642 = vmatpush1.xpose.msra.mxu0 %v2641
        %2643 = vmatprep.subr.mxu0 0.0
        %v2644 = vand.u32 %v617, 4294901760
        %v2645 = vsub.f32 %v617, %v2644
        %v2646 = vand.u32 %v2645, 4294901760
        %v2647 = vsub.f32 %v2645, %v2646
        %v2648 = vand.u32 %v2647, 4294901760
        %2649 = vmatpush1.xpose.msra.mxu0 %v2648
        %2650 = vmatprep.subr.mxu0 0.0
        %v2651 = vand.u32 %v620, 4294901760
        %v2652 = vsub.f32 %v620, %v2651
        %v2653 = vand.u32 %v2652, 4294901760
        %v2654 = vsub.f32 %v2652, %v2653
        %v2655 = vand.u32 %v2654, 4294901760
        %2656 = vmatpush1.xpose.msra.mxu0 %v2655
        %2657 = vmatprep.subr.mxu0 0.0
        %v2658 = vand.u32 %v623, 4294901760
        %v2659 = vsub.f32 %v623, %v2658
        %v2660 = vand.u32 %v2659, 4294901760
        %v2661 = vsub.f32 %v2659, %v2660
        %v2662 = vand.u32 %v2661, 4294901760
        %2663 = vmatpush1.xpose.msra.mxu0 %v2662
        %2664 = vmatprep.subr.mxu0 0.0
        %v2665 = vand.u32 %v626, 4294901760
        %v2666 = vsub.f32 %v626, %v2665
        %v2667 = vand.u32 %v2666, 4294901760
        %v2668 = vsub.f32 %v2666, %v2667
        %v2669 = vand.u32 %v2668, 4294901760
        %2670 = vmatpush1.xpose.msra.mxu0 %v2669
        %2671 = vmatprep.subr.mxu0 0.0
        %v2672 = vand.u32 %v629, 4294901760
        %v2673 = vsub.f32 %v629, %v2672
        %v2674 = vand.u32 %v2673, 4294901760
        %v2675 = vsub.f32 %v2673, %v2674
        %v2676 = vand.u32 %v2675, 4294901760
        %2677 = vmatpush1.xpose.msra.mxu0 %v2676
        %2678 = vmatprep.subr.mxu0 0.0
        %v2679 = vand.u32 %v632, 4294901760
        %v2680 = vsub.f32 %v632, %v2679
        %v2681 = vand.u32 %v2680, 4294901760
        %v2682 = vsub.f32 %v2680, %v2681
        %v2683 = vand.u32 %v2682, 4294901760
        %2684 = vmatpush1.xpose.msra.mxu0 %v2683
        %2685 = vmatprep.subr.mxu0 0.0
        %v2686 = vand.u32 %v635, 4294901760
        %v2687 = vsub.f32 %v635, %v2686
        %v2688 = vand.u32 %v2687, 4294901760
        %v2689 = vsub.f32 %v2687, %v2688
        %v2690 = vand.u32 %v2689, 4294901760
        %2691 = vmatpush1.xpose.msra.mxu0 %v2690
        %2692 = vmatprep.subr.mxu0 0.0
        %v2693 = vand.u32 %v638, 4294901760
        %v2694 = vsub.f32 %v638, %v2693
        %v2695 = vand.u32 %v2694, 4294901760
        %v2696 = vsub.f32 %v2694, %v2695
        %v2697 = vand.u32 %v2696, 4294901760
        %2698 = vmatpush1.xpose.msra.mxu0 %v2697
        %2699 = vmatprep.subr.mxu0 0.0
        %v2700 = vand.u32 %v641, 4294901760
        %v2701 = vsub.f32 %v641, %v2700
        %v2702 = vand.u32 %v2701, 4294901760
        %v2703 = vsub.f32 %v2701, %v2702
        %v2704 = vand.u32 %v2703, 4294901760
        %2705 = vmatpush1.xpose.msra.mxu0 %v2704
        %2706 = vmatprep.subr.mxu0 0.0
        %v2707 = vand.u32 %v644, 4294901760
        %v2708 = vsub.f32 %v644, %v2707
        %v2709 = vand.u32 %v2708, 4294901760
        %v2710 = vsub.f32 %v2708, %v2709
        %v2711 = vand.u32 %v2710, 4294901760
        %2712 = vmatpush1.xpose.msra.mxu0 %v2711
        %2713 = vmatprep.subr.mxu0 0.0
        %v2714 = vand.u32 %v647, 4294901760
        %v2715 = vsub.f32 %v647, %v2714
        %v2716 = vand.u32 %v2715, 4294901760
        %v2717 = vsub.f32 %v2715, %v2716
        %v2718 = vand.u32 %v2717, 4294901760
        %2719 = vmatpush1.xpose.msra.mxu0 %v2718
        %2720 = vmatprep.subr.mxu0 0.0
        %v2721 = vand.u32 %v650, 4294901760
        %v2722 = vsub.f32 %v650, %v2721
        %v2723 = vand.u32 %v2722, 4294901760
        %v2724 = vsub.f32 %v2722, %v2723
        %v2725 = vand.u32 %v2724, 4294901760
        %2726 = vmatpush1.xpose.msra.mxu0 %v2725
        %2727 = vmatprep.subr.mxu0 0.0
        %v2728 = vand.u32 %v653, 4294901760
        %v2729 = vsub.f32 %v653, %v2728
        %v2730 = vand.u32 %v2729, 4294901760
        %v2731 = vsub.f32 %v2729, %v2730
        %v2732 = vand.u32 %v2731, 4294901760
        %2733 = vmatpush1.xpose.msra.mxu0 %v2732
        %2734 = vmatprep.subr.mxu0 0.0
        %v2735 = vand.u32 %v656, 4294901760
        %v2736 = vsub.f32 %v656, %v2735
        %v2737 = vand.u32 %v2736, 4294901760
        %v2738 = vsub.f32 %v2736, %v2737
        %v2739 = vand.u32 %v2738, 4294901760
        %2740 = vmatpush1.xpose.msra.mxu0 %v2739
        %2741 = vmatprep.subr.mxu0 0.0
        %v2742 = vand.u32 %v659, 4294901760
        %v2743 = vsub.f32 %v659, %v2742
        %v2744 = vand.u32 %v2743, 4294901760
        %v2745 = vsub.f32 %v2743, %v2744
        %v2746 = vand.u32 %v2745, 4294901760
        %2747 = vmatpush1.xpose.msra.mxu0 %v2746
        %2748 = vmatprep.mubr.f32.mxu0 0.0
        %v2749 = vand.u32 %v422, 4294901760
        %2750 = vmatmul.mubr.f32.gmra.mrb[0].mxu0 %v2749
        %v2751 = vpop.f32.mrb[0].mxu0
        %v2752 = vadd.f32 %v2355, %v2751
        %v2753 = vpop.f32.mrb[0].mxu0
        %v2754 = vadd.f32 %v2357, %v2753
        %2755 = vmatprep.mubr.f32.mxu0 0.0
        %v2756 = vand.u32 %v425, 4294901760
        %2757 = vmatmul.mubr.f32.gmra.mrb[0].mxu0 %v2756
        %v2758 = vpop.f32.mrb[0].mxu0
        %v2759 = vadd.f32 %v2366, %v2758
        %v2760 = vpop.f32.mrb[0].mxu0
        %v2761 = vadd.f32 %v2368, %v2760
        %2762 = vmatprep.mubr.f32.mxu0 0.0
        %v2763 = vand.u32 %v428, 4294901760
        %2764 = vmatmul.mubr.f32.gmra.mrb[0].mxu0 %v2763
        %v2765 = vpop.f32.mrb[0].mxu0
        %v2766 = vadd.f32 %v2377, %v2765
        %v2767 = vpop.f32.mrb[0].mxu0
        %v2768 = vadd.f32 %v2379, %v2767
        %2769 = vmatprep.mubr.f32.mxu0 0.0
        %v2770 = vand.u32 %v431, 4294901760
        %2771 = vmatmul.mubr.f32.gmra.mrb[0].mxu0 %v2770
        %v2772 = vpop.f32.mrb[0].mxu0
        %v2773 = vadd.f32 %v2388, %v2772
        %v2774 = vpop.f32.mrb[0].mxu0
        %v2775 = vadd.f32 %v2390, %v2774
        %2776 = vmatprep.mubr.f32.mxu0 0.0
        %v2777 = vand.u32 %v434, 4294901760
        %2778 = vmatmul.mubr.f32.gmra.mrb[0].mxu0 %v2777
        %v2779 = vpop.f32.mrb[0].mxu0
        %v2780 = vadd.f32 %v2399, %v2779
        %v2781 = vpop.f32.mrb[0].mxu0
        %v2782 = vadd.f32 %v2401, %v2781
        %2783 = vmatprep.mubr.f32.mxu0 0.0
        %v2784 = vand.u32 %v437, 4294901760
        %2785 = vmatmul.mubr.f32.gmra.mrb[0].mxu0 %v2784
        %v2786 = vpop.f32.mrb[0].mxu0
        %v2787 = vadd.f32 %v2410, %v2786
        %v2788 = vpop.f32.mrb[0].mxu0
        %v2789 = vadd.f32 %v2412, %v2788
        %2790 = vmatprep.mubr.f32.mxu0 0.0
        %v2791 = vand.u32 %v440, 4294901760
        %2792 = vmatmul.mubr.f32.gmra.mrb[0].mxu0 %v2791
        %v2793 = vpop.f32.mrb[0].mxu0
        %v2794 = vadd.f32 %v2421, %v2793
        %v2795 = vpop.f32.mrb[0].mxu0
        %v2796 = vadd.f32 %v2423, %v2795
        %2797 = vmatprep.mubr.f32.mxu0 0.0
        %v2798 = vand.u32 %v443, 4294901760
        %2799 = vmatmul.mubr.f32.gmra.mrb[0].mxu0 %v2798
        %v2800 = vpop.f32.mrb[0].mxu0
        %v2801 = vadd.f32 %v2432, %v2800
        %v2802 = vpop.f32.mrb[0].mxu0
        %v2803 = vadd.f32 %v2434, %v2802
        %2804 = vmatprep.mubr.f32.mxu0 0.0
        %v2805 = vand.u32 %v446, 4294901760
        %2806 = vmatmul.mubr.f32.gmra.mrb[0].mxu0 %v2805
        %v2807 = vpop.f32.mrb[0].mxu0
        %v2808 = vadd.f32 %v2443, %v2807
        %v2809 = vpop.f32.mrb[0].mxu0
        %v2810 = vadd.f32 %v2445, %v2809
        %2811 = vmatprep.mubr.f32.mxu0 0.0
        %v2812 = vand.u32 %v449, 4294901760
        %2813 = vmatmul.mubr.f32.gmra.mrb[0].mxu0 %v2812
        %v2814 = vpop.f32.mrb[0].mxu0
        %v2815 = vadd.f32 %v2454, %v2814
        %v2816 = vpop.f32.mrb[0].mxu0
        %v2817 = vadd.f32 %v2456, %v2816
        %2818 = vmatprep.mubr.f32.mxu0 0.0
        %v2819 = vand.u32 %v452, 4294901760
        %2820 = vmatmul.mubr.f32.gmra.mrb[0].mxu0 %v2819
        %v2821 = vpop.f32.mrb[0].mxu0
        %v2822 = vadd.f32 %v2465, %v2821
        %v2823 = vpop.f32.mrb[0].mxu0
        %v2824 = vadd.f32 %v2467, %v2823
        %2825 = vmatprep.mubr.f32.mxu0 0.0
        %v2826 = vand.u32 %v455, 4294901760
        %2827 = vmatmul.mubr.f32.gmra.mrb[0].mxu0 %v2826
        %v2828 = vpop.f32.mrb[0].mxu0
        %v2829 = vadd.f32 %v2476, %v2828
        %v2830 = vpop.f32.mrb[0].mxu0
        %v2831 = vadd.f32 %v2478, %v2830
        %2832 = vmatprep.mubr.f32.mxu0 0.0
        %v2833 = vand.u32 %v458, 4294901760
        %2834 = vmatmul.mubr.f32.gmra.mrb[0].mxu0 %v2833
        %v2835 = vpop.f32.mrb[0].mxu0
        %v2836 = vadd.f32 %v2487, %v2835
        %v2837 = vpop.f32.mrb[0].mxu0
        %v2838 = vadd.f32 %v2489, %v2837
        %2839 = vmatprep.mubr.f32.mxu0 0.0
        %v2840 = vand.u32 %v461, 4294901760
        %2841 = vmatmul.mubr.f32.gmra.mrb[0].mxu0 %v2840
        %v2842 = vpop.f32.mrb[0].mxu0
        %v2843 = vadd.f32 %v2498, %v2842
        %v2844 = vpop.f32.mrb[0].mxu0
        %v2845 = vadd.f32 %v2500, %v2844
        %2846 = vmatprep.mubr.f32.mxu0 0.0
        %v2847 = vand.u32 %v464, 4294901760
        %2848 = vmatmul.mubr.f32.gmra.mrb[0].mxu0 %v2847
        %v2849 = vpop.f32.mrb[0].mxu0
        %v2850 = vadd.f32 %v2509, %v2849
        %v2851 = vpop.f32.mrb[0].mxu0
        %v2852 = vadd.f32 %v2511, %v2851
        %2853 = vmatprep.mubr.f32.mxu0 0.0
        %v2854 = vand.u32 %v467, 4294901760
        %2855 = vmatmul.mubr.f32.gmra.mrb[0].mxu0 %v2854
        %v2856 = vpop.f32.mrb[0].mxu0
        %v2857 = vadd.f32 %v2520, %v2856
        %v2858 = vpop.f32.mrb[0].mxu0
        %v2859 = vadd.f32 %v2522, %v2858
        %2860 = vdwg.mxu0
        %2861 = vmatprep.subr.mxu0 0.0
        %v2862 = vand.u32 %v566, 4294901760
        %v2863 = vsub.f32 %v566, %v2862
        %2864 = vmatpush1.xpose.msra.mxu0 %v2863
        %2865 = vmatprep.subr.mxu0 0.0
        %v2866 = vand.u32 %v569, 4294901760
        %v2867 = vsub.f32 %v569, %v2866
        %2868 = vmatpush1.xpose.msra.mxu0 %v2867
        %2869 = vmatprep.subr.mxu0 0.0
        %v2870 = vand.u32 %v572, 4294901760
        %v2871 = vsub.f32 %v572, %v2870
        %2872 = vmatpush1.xpose.msra.mxu0 %v2871
        %2873 = vmatprep.subr.mxu0 0.0
        %v2874 = vand.u32 %v575, 4294901760
        %v2875 = vsub.f32 %v575, %v2874
        %2876 = vmatpush1.xpose.msra.mxu0 %v2875
        %2877 = vmatprep.subr.mxu0 0.0
        %v2878 = vand.u32 %v578, 4294901760
        %v2879 = vsub.f32 %v578, %v2878
        %2880 = vmatpush1.xpose.msra.mxu0 %v2879
        %2881 = vmatprep.subr.mxu0 0.0
        %v2882 = vand.u32 %v581, 4294901760
        %v2883 = vsub.f32 %v581, %v2882
        %2884 = vmatpush1.xpose.msra.mxu0 %v2883
        %2885 = vmatprep.subr.mxu0 0.0
        %v2886 = vand.u32 %v584, 4294901760
        %v2887 = vsub.f32 %v584, %v2886
        %2888 = vmatpush1.xpose.msra.mxu0 %v2887
        %2889 = vmatprep.subr.mxu0 0.0
        %v2890 = vand.u32 %v587, 4294901760
        %v2891 = vsub.f32 %v587, %v2890
        %2892 = vmatpush1.xpose.msra.mxu0 %v2891
        %2893 = vmatprep.subr.mxu0 0.0
        %v2894 = vand.u32 %v590, 4294901760
        %v2895 = vsub.f32 %v590, %v2894
        %2896 = vmatpush1.xpose.msra.mxu0 %v2895
        %2897 = vmatprep.subr.mxu0 0.0
        %v2898 = vand.u32 %v593, 4294901760
        %v2899 = vsub.f32 %v593, %v2898
        %2900 = vmatpush1.xpose.msra.mxu0 %v2899
        %2901 = vmatprep.subr.mxu0 0.0
        %v2902 = vand.u32 %v596, 4294901760
        %v2903 = vsub.f32 %v596, %v2902
        %2904 = vmatpush1.xpose.msra.mxu0 %v2903
        %2905 = vmatprep.subr.mxu0 0.0
        %v2906 = vand.u32 %v599, 4294901760
        %v2907 = vsub.f32 %v599, %v2906
        %2908 = vmatpush1.xpose.msra.mxu0 %v2907
        %2909 = vmatprep.subr.mxu0 0.0
        %v2910 = vand.u32 %v602, 4294901760
        %v2911 = vsub.f32 %v602, %v2910
        %2912 = vmatpush1.xpose.msra.mxu0 %v2911
        %2913 = vmatprep.subr.mxu0 0.0
        %v2914 = vand.u32 %v605, 4294901760
        %v2915 = vsub.f32 %v605, %v2914
        %2916 = vmatpush1.xpose.msra.mxu0 %v2915
        %2917 = vmatprep.subr.mxu0 0.0
        %v2918 = vand.u32 %v608, 4294901760
        %v2919 = vsub.f32 %v608, %v2918
        %2920 = vmatpush1.xpose.msra.mxu0 %v2919
        %2921 = vmatprep.subr.mxu0 0.0
        %v2922 = vand.u32 %v611, 4294901760
        %v2923 = vsub.f32 %v611, %v2922
        %2924 = vmatpush1.xpose.msra.mxu0 %v2923
        %2925 = vmatprep.subr.mxu0 0.0
        %v2926 = vand.u32 %v614, 4294901760
        %v2927 = vsub.f32 %v614, %v2926
        %2928 = vmatpush1.xpose.msra.mxu0 %v2927
        %2929 = vmatprep.subr.mxu0 0.0
        %v2930 = vand.u32 %v617, 4294901760
        %v2931 = vsub.f32 %v617, %v2930
        %2932 = vmatpush1.xpose.msra.mxu0 %v2931
        %2933 = vmatprep.subr.mxu0 0.0
        %v2934 = vand.u32 %v620, 4294901760
        %v2935 = vsub.f32 %v620, %v2934
        %2936 = vmatpush1.xpose.msra.mxu0 %v2935
        %2937 = vmatprep.subr.mxu0 0.0
        %v2938 = vand.u32 %v623, 4294901760
        %v2939 = vsub.f32 %v623, %v2938
        %2940 = vmatpush1.xpose.msra.mxu0 %v2939
        %2941 = vmatprep.subr.mxu0 0.0
        %v2942 = vand.u32 %v626, 4294901760
        %v2943 = vsub.f32 %v626, %v2942
        %2944 = vmatpush1.xpose.msra.mxu0 %v2943
        %2945 = vmatprep.subr.mxu0 0.0
        %v2946 = vand.u32 %v629, 4294901760
        %v2947 = vsub.f32 %v629, %v2946
        %2948 = vmatpush1.xpose.msra.mxu0 %v2947
        %2949 = vmatprep.subr.mxu0 0.0
        %v2950 = vand.u32 %v632, 4294901760
        %v2951 = vsub.f32 %v632, %v2950
        %2952 = vmatpush1.xpose.msra.mxu0 %v2951
        %2953 = vmatprep.subr.mxu0 0.0
        %v2954 = vand.u32 %v635, 4294901760
        %v2955 = vsub.f32 %v635, %v2954
        %2956 = vmatpush1.xpose.msra.mxu0 %v2955
        %2957 = vmatprep.subr.mxu0 0.0
        %v2958 = vand.u32 %v638, 4294901760
        %v2959 = vsub.f32 %v638, %v2958
        %2960 = vmatpush1.xpose.msra.mxu0 %v2959
        %2961 = vmatprep.subr.mxu0 0.0
        %v2962 = vand.u32 %v641, 4294901760
        %v2963 = vsub.f32 %v641, %v2962
        %2964 = vmatpush1.xpose.msra.mxu0 %v2963
        %2965 = vmatprep.subr.mxu0 0.0
        %v2966 = vand.u32 %v644, 4294901760
        %v2967 = vsub.f32 %v644, %v2966
        %2968 = vmatpush1.xpose.msra.mxu0 %v2967
        %2969 = vmatprep.subr.mxu0 0.0
        %v2970 = vand.u32 %v647, 4294901760
        %v2971 = vsub.f32 %v647, %v2970
        %2972 = vmatpush1.xpose.msra.mxu0 %v2971
        %2973 = vmatprep.subr.mxu0 0.0
        %v2974 = vand.u32 %v650, 4294901760
        %v2975 = vsub.f32 %v650, %v2974
        %2976 = vmatpush1.xpose.msra.mxu0 %v2975
        %2977 = vmatprep.subr.mxu0 0.0
        %v2978 = vand.u32 %v653, 4294901760
        %v2979 = vsub.f32 %v653, %v2978
        %2980 = vmatpush1.xpose.msra.mxu0 %v2979
        %2981 = vmatprep.subr.mxu0 0.0
        %v2982 = vand.u32 %v656, 4294901760
        %v2983 = vsub.f32 %v656, %v2982
        %2984 = vmatpush1.xpose.msra.mxu0 %v2983
        %2985 = vmatprep.subr.mxu0 0.0
        %v2986 = vand.u32 %v659, 4294901760
        %v2987 = vsub.f32 %v659, %v2986
        %2988 = vmatpush1.xpose.msra.mxu0 %v2987
        %2989 = vmatprep.mubr.f32.mxu0 0.0
        %v2990 = vand.u32 %v422, 4294901760
        %v2991 = vsub.f32 %v422, %v2990
        %2992 = vmatmul.mubr.f32.gmra.mrb[0].mxu0 %v2991
        %v2993 = vpop.f32.mrb[0].mxu0
        %v2994 = vadd.f32 %v2752, %v2993
        %v2995 = vpop.f32.mrb[0].mxu0
        %v2996 = vadd.f32 %v2754, %v2995
        %2997 = vmatprep.mubr.f32.mxu0 0.0
        %v2998 = vand.u32 %v425, 4294901760
        %v2999 = vsub.f32 %v425, %v2998
        %3000 = vmatmul.mubr.f32.gmra.mrb[0].mxu0 %v2999
        %v3001 = vpop.f32.mrb[0].mxu0
        %v3002 = vadd.f32 %v2759, %v3001
        %v3003 = vpop.f32.mrb[0].mxu0
        %v3004 = vadd.f32 %v2761, %v3003
        %3005 = vmatprep.mubr.f32.mxu0 0.0
        %v3006 = vand.u32 %v428, 4294901760
        %v3007 = vsub.f32 %v428, %v3006
        %3008 = vmatmul.mubr.f32.gmra.mrb[0].mxu0 %v3007
        %v3009 = vpop.f32.mrb[0].mxu0
        %v3010 = vadd.f32 %v2766, %v3009
        %v3011 = vpop.f32.mrb[0].mxu0
        %v3012 = vadd.f32 %v2768, %v3011
        %3013 = vmatprep.mubr.f32.mxu0 0.0
        %v3014 = vand.u32 %v431, 4294901760
        %v3015 = vsub.f32 %v431, %v3014
        %3016 = vmatmul.mubr.f32.gmra.mrb[0].mxu0 %v3015
        %v3017 = vpop.f32.mrb[0].mxu0
        %v3018 = vadd.f32 %v2773, %v3017
        %v3019 = vpop.f32.mrb[0].mxu0
        %v3020 = vadd.f32 %v2775, %v3019
        %3021 = vmatprep.mubr.f32.mxu0 0.0
        %v3022 = vand.u32 %v434, 4294901760
        %v3023 = vsub.f32 %v434, %v3022
        %3024 = vmatmul.mubr.f32.gmra.mrb[0].mxu0 %v3023
        %v3025 = vpop.f32.mrb[0].mxu0
        %v3026 = vadd.f32 %v2780, %v3025
        %v3027 = vpop.f32.mrb[0].mxu0
        %v3028 = vadd.f32 %v2782, %v3027
        %3029 = vmatprep.mubr.f32.mxu0 0.0
        %v3030 = vand.u32 %v437, 4294901760
        %v3031 = vsub.f32 %v437, %v3030
        %3032 = vmatmul.mubr.f32.gmra.mrb[0].mxu0 %v3031
        %v3033 = vpop.f32.mrb[0].mxu0
        %v3034 = vadd.f32 %v2787, %v3033
        %v3035 = vpop.f32.mrb[0].mxu0
        %v3036 = vadd.f32 %v2789, %v3035
        %3037 = vmatprep.mubr.f32.mxu0 0.0
        %v3038 = vand.u32 %v440, 4294901760
        %v3039 = vsub.f32 %v440, %v3038
        %3040 = vmatmul.mubr.f32.gmra.mrb[0].mxu0 %v3039
        %v3041 = vpop.f32.mrb[0].mxu0
        %v3042 = vadd.f32 %v2794, %v3041
        %v3043 = vpop.f32.mrb[0].mxu0
        %v3044 = vadd.f32 %v2796, %v3043
        %3045 = vmatprep.mubr.f32.mxu0 0.0
        %v3046 = vand.u32 %v443, 4294901760
        %v3047 = vsub.f32 %v443, %v3046
        %3048 = vmatmul.mubr.f32.gmra.mrb[0].mxu0 %v3047
        %v3049 = vpop.f32.mrb[0].mxu0
        %v3050 = vadd.f32 %v2801, %v3049
        %v3051 = vpop.f32.mrb[0].mxu0
        %v3052 = vadd.f32 %v2803, %v3051
        %3053 = vmatprep.mubr.f32.mxu0 0.0
        %v3054 = vand.u32 %v446, 4294901760
        %v3055 = vsub.f32 %v446, %v3054
        %3056 = vmatmul.mubr.f32.gmra.mrb[0].mxu0 %v3055
        %v3057 = vpop.f32.mrb[0].mxu0
        %v3058 = vadd.f32 %v2808, %v3057
        %v3059 = vpop.f32.mrb[0].mxu0
        %v3060 = vadd.f32 %v2810, %v3059
        %3061 = vmatprep.mubr.f32.mxu0 0.0
        %v3062 = vand.u32 %v449, 4294901760
        %v3063 = vsub.f32 %v449, %v3062
        %3064 = vmatmul.mubr.f32.gmra.mrb[0].mxu0 %v3063
        %v3065 = vpop.f32.mrb[0].mxu0
        %v3066 = vadd.f32 %v2815, %v3065
        %v3067 = vpop.f32.mrb[0].mxu0
        %v3068 = vadd.f32 %v2817, %v3067
        %3069 = vmatprep.mubr.f32.mxu0 0.0
        %v3070 = vand.u32 %v452, 4294901760
        %v3071 = vsub.f32 %v452, %v3070
        %3072 = vmatmul.mubr.f32.gmra.mrb[0].mxu0 %v3071
        %v3073 = vpop.f32.mrb[0].mxu0
        %v3074 = vadd.f32 %v2822, %v3073
        %v3075 = vpop.f32.mrb[0].mxu0
        %v3076 = vadd.f32 %v2824, %v3075
        %3077 = vmatprep.mubr.f32.mxu0 0.0
        %v3078 = vand.u32 %v455, 4294901760
        %v3079 = vsub.f32 %v455, %v3078
        %3080 = vmatmul.mubr.f32.gmra.mrb[0].mxu0 %v3079
        %v3081 = vpop.f32.mrb[0].mxu0
        %v3082 = vadd.f32 %v2829, %v3081
        %v3083 = vpop.f32.mrb[0].mxu0
        %v3084 = vadd.f32 %v2831, %v3083
        %3085 = vmatprep.mubr.f32.mxu0 0.0
        %v3086 = vand.u32 %v458, 4294901760
        %v3087 = vsub.f32 %v458, %v3086
        %3088 = vmatmul.mubr.f32.gmra.mrb[0].mxu0 %v3087
        %v3089 = vpop.f32.mrb[0].mxu0
        %v3090 = vadd.f32 %v2836, %v3089
        %v3091 = vpop.f32.mrb[0].mxu0
        %v3092 = vadd.f32 %v2838, %v3091
        %3093 = vmatprep.mubr.f32.mxu0 0.0
        %v3094 = vand.u32 %v461, 4294901760
        %v3095 = vsub.f32 %v461, %v3094
        %3096 = vmatmul.mubr.f32.gmra.mrb[0].mxu0 %v3095
        %v3097 = vpop.f32.mrb[0].mxu0
        %v3098 = vadd.f32 %v2843, %v3097
        %v3099 = vpop.f32.mrb[0].mxu0
        %v3100 = vadd.f32 %v2845, %v3099
        %3101 = vmatprep.mubr.f32.mxu0 0.0
        %v3102 = vand.u32 %v464, 4294901760
        %v3103 = vsub.f32 %v464, %v3102
        %3104 = vmatmul.mubr.f32.gmra.mrb[0].mxu0 %v3103
        %v3105 = vpop.f32.mrb[0].mxu0
        %v3106 = vadd.f32 %v2850, %v3105
        %v3107 = vpop.f32.mrb[0].mxu0
        %v3108 = vadd.f32 %v2852, %v3107
        %3109 = vmatprep.mubr.f32.mxu0 0.0
        %v3110 = vand.u32 %v467, 4294901760
        %v3111 = vsub.f32 %v467, %v3110
        %3112 = vmatmul.mubr.f32.gmra.mrb[0].mxu0 %v3111
        %v3113 = vpop.f32.mrb[0].mxu0
        %v3114 = vadd.f32 %v2857, %v3113
        %v3115 = vpop.f32.mrb[0].mxu0
        %v3116 = vadd.f32 %v2859, %v3115
        %3117 = vdwg.mxu0
        %3118 = vmatprep.subr.mxu0 0.0
        %v3119 = vand.u32 %v566, 4294901760
        %3120 = vmatpush1.xpose.msra.mxu0 %v3119
        %3121 = vmatprep.subr.mxu0 0.0
        %v3122 = vand.u32 %v569, 4294901760
        %3123 = vmatpush1.xpose.msra.mxu0 %v3122
        %3124 = vmatprep.subr.mxu0 0.0
        %v3125 = vand.u32 %v572, 4294901760
        %3126 = vmatpush1.xpose.msra.mxu0 %v3125
        %3127 = vmatprep.subr.mxu0 0.0
        %v3128 = vand.u32 %v575, 4294901760
        %3129 = vmatpush1.xpose.msra.mxu0 %v3128
        %3130 = vmatprep.subr.mxu0 0.0
        %v3131 = vand.u32 %v578, 4294901760
        %3132 = vmatpush1.xpose.msra.mxu0 %v3131
        %3133 = vmatprep.subr.mxu0 0.0
        %v3134 = vand.u32 %v581, 4294901760
        %3135 = vmatpush1.xpose.msra.mxu0 %v3134
        %3136 = vmatprep.subr.mxu0 0.0
        %v3137 = vand.u32 %v584, 4294901760
        %3138 = vmatpush1.xpose.msra.mxu0 %v3137
        %3139 = vmatprep.subr.mxu0 0.0
        %v3140 = vand.u32 %v587, 4294901760
        %3141 = vmatpush1.xpose.msra.mxu0 %v3140
        %3142 = vmatprep.subr.mxu0 0.0
        %v3143 = vand.u32 %v590, 4294901760
        %3144 = vmatpush1.xpose.msra.mxu0 %v3143
        %3145 = vmatprep.subr.mxu0 0.0
        %v3146 = vand.u32 %v593, 4294901760
        %3147 = vmatpush1.xpose.msra.mxu0 %v3146
        %3148 = vmatprep.subr.mxu0 0.0
        %v3149 = vand.u32 %v596, 4294901760
        %3150 = vmatpush1.xpose.msra.mxu0 %v3149
        %3151 = vmatprep.subr.mxu0 0.0
        %v3152 = vand.u32 %v599, 4294901760
        %3153 = vmatpush1.xpose.msra.mxu0 %v3152
        %3154 = vmatprep.subr.mxu0 0.0
        %v3155 = vand.u32 %v602, 4294901760
        %3156 = vmatpush1.xpose.msra.mxu0 %v3155
        %3157 = vmatprep.subr.mxu0 0.0
        %v3158 = vand.u32 %v605, 4294901760
        %3159 = vmatpush1.xpose.msra.mxu0 %v3158
        %3160 = vmatprep.subr.mxu0 0.0
        %v3161 = vand.u32 %v608, 4294901760
        %3162 = vmatpush1.xpose.msra.mxu0 %v3161
        %3163 = vmatprep.subr.mxu0 0.0
        %v3164 = vand.u32 %v611, 4294901760
        %3165 = vmatpush1.xpose.msra.mxu0 %v3164
        %3166 = vmatprep.subr.mxu0 0.0
        %v3167 = vand.u32 %v614, 4294901760
        %3168 = vmatpush1.xpose.msra.mxu0 %v3167
        %3169 = vmatprep.subr.mxu0 0.0
        %v3170 = vand.u32 %v617, 4294901760
        %3171 = vmatpush1.xpose.msra.mxu0 %v3170
        %3172 = vmatprep.subr.mxu0 0.0
        %v3173 = vand.u32 %v620, 4294901760
        %3174 = vmatpush1.xpose.msra.mxu0 %v3173
        %3175 = vmatprep.subr.mxu0 0.0
        %v3176 = vand.u32 %v623, 4294901760
        %3177 = vmatpush1.xpose.msra.mxu0 %v3176
        %3178 = vmatprep.subr.mxu0 0.0
        %v3179 = vand.u32 %v626, 4294901760
        %3180 = vmatpush1.xpose.msra.mxu0 %v3179
        %3181 = vmatprep.subr.mxu0 0.0
        %v3182 = vand.u32 %v629, 4294901760
        %3183 = vmatpush1.xpose.msra.mxu0 %v3182
        %3184 = vmatprep.subr.mxu0 0.0
        %v3185 = vand.u32 %v632, 4294901760
        %3186 = vmatpush1.xpose.msra.mxu0 %v3185
        %3187 = vmatprep.subr.mxu0 0.0
        %v3188 = vand.u32 %v635, 4294901760
        %3189 = vmatpush1.xpose.msra.mxu0 %v3188
        %3190 = vmatprep.subr.mxu0 0.0
        %v3191 = vand.u32 %v638, 4294901760
        %3192 = vmatpush1.xpose.msra.mxu0 %v3191
        %3193 = vmatprep.subr.mxu0 0.0
        %v3194 = vand.u32 %v641, 4294901760
        %3195 = vmatpush1.xpose.msra.mxu0 %v3194
        %3196 = vmatprep.subr.mxu0 0.0
        %v3197 = vand.u32 %v644, 4294901760
        %3198 = vmatpush1.xpose.msra.mxu0 %v3197
        %3199 = vmatprep.subr.mxu0 0.0
        %v3200 = vand.u32 %v647, 4294901760
        %3201 = vmatpush1.xpose.msra.mxu0 %v3200
        %3202 = vmatprep.subr.mxu0 0.0
        %v3203 = vand.u32 %v650, 4294901760
        %3204 = vmatpush1.xpose.msra.mxu0 %v3203
        %3205 = vmatprep.subr.mxu0 0.0
        %v3206 = vand.u32 %v653, 4294901760
        %3207 = vmatpush1.xpose.msra.mxu0 %v3206
        %3208 = vmatprep.subr.mxu0 0.0
        %v3209 = vand.u32 %v656, 4294901760
        %3210 = vmatpush1.xpose.msra.mxu0 %v3209
        %3211 = vmatprep.subr.mxu0 0.0
        %v3212 = vand.u32 %v659, 4294901760
        %3213 = vmatpush1.xpose.msra.mxu0 %v3212
        %3214 = vmatprep.mubr.f32.mxu0 0.0
        %v3215 = vand.u32 %v422, 4294901760
        %v3216 = vsub.f32 %v422, %v3215
        %v3217 = vand.u32 %v3216, 4294901760
        %3218 = vmatmul.mubr.f32.gmra.mrb[0].mxu0 %v3217
        %v3219 = vpop.f32.mrb[0].mxu0
        %v3220 = vadd.f32 %v2994, %v3219
        %v3221 = vpop.f32.mrb[0].mxu0
        %v3222 = vadd.f32 %v2996, %v3221
        %3223 = vmatprep.mubr.f32.mxu0 0.0
        %v3224 = vand.u32 %v425, 4294901760
        %v3225 = vsub.f32 %v425, %v3224
        %v3226 = vand.u32 %v3225, 4294901760
        %3227 = vmatmul.mubr.f32.gmra.mrb[0].mxu0 %v3226
        %v3228 = vpop.f32.mrb[0].mxu0
        %v3229 = vadd.f32 %v3002, %v3228
        %v3230 = vpop.f32.mrb[0].mxu0
        %v3231 = vadd.f32 %v3004, %v3230
        %3232 = vmatprep.mubr.f32.mxu0 0.0
        %v3233 = vand.u32 %v428, 4294901760
        %v3234 = vsub.f32 %v428, %v3233
        %v3235 = vand.u32 %v3234, 4294901760
        %3236 = vmatmul.mubr.f32.gmra.mrb[0].mxu0 %v3235
        %v3237 = vpop.f32.mrb[0].mxu0
        %v3238 = vadd.f32 %v3010, %v3237
        %v3239 = vpop.f32.mrb[0].mxu0
        %v3240 = vadd.f32 %v3012, %v3239
        %3241 = vmatprep.mubr.f32.mxu0 0.0
        %v3242 = vand.u32 %v431, 4294901760
        %v3243 = vsub.f32 %v431, %v3242
        %v3244 = vand.u32 %v3243, 4294901760
        %3245 = vmatmul.mubr.f32.gmra.mrb[0].mxu0 %v3244
        %v3246 = vpop.f32.mrb[0].mxu0
        %v3247 = vadd.f32 %v3018, %v3246
        %v3248 = vpop.f32.mrb[0].mxu0
        %v3249 = vadd.f32 %v3020, %v3248
        %3250 = vmatprep.mubr.f32.mxu0 0.0
        %v3251 = vand.u32 %v434, 4294901760
        %v3252 = vsub.f32 %v434, %v3251
        %v3253 = vand.u32 %v3252, 4294901760
        %3254 = vmatmul.mubr.f32.gmra.mrb[0].mxu0 %v3253
        %v3255 = vpop.f32.mrb[0].mxu0
        %v3256 = vadd.f32 %v3026, %v3255
        %v3257 = vpop.f32.mrb[0].mxu0
        %v3258 = vadd.f32 %v3028, %v3257
        %3259 = vmatprep.mubr.f32.mxu0 0.0
        %v3260 = vand.u32 %v437, 4294901760
        %v3261 = vsub.f32 %v437, %v3260
        %v3262 = vand.u32 %v3261, 4294901760
        %3263 = vmatmul.mubr.f32.gmra.mrb[0].mxu0 %v3262
        %v3264 = vpop.f32.mrb[0].mxu0
        %v3265 = vadd.f32 %v3034, %v3264
        %v3266 = vpop.f32.mrb[0].mxu0
        %v3267 = vadd.f32 %v3036, %v3266
        %3268 = vmatprep.mubr.f32.mxu0 0.0
        %v3269 = vand.u32 %v440, 4294901760
        %v3270 = vsub.f32 %v440, %v3269
        %v3271 = vand.u32 %v3270, 4294901760
        %3272 = vmatmul.mubr.f32.gmra.mrb[0].mxu0 %v3271
        %v3273 = vpop.f32.mrb[0].mxu0
        %v3274 = vadd.f32 %v3042, %v3273
        %v3275 = vpop.f32.mrb[0].mxu0
        %v3276 = vadd.f32 %v3044, %v3275
        %3277 = vmatprep.mubr.f32.mxu0 0.0
        %v3278 = vand.u32 %v443, 4294901760
        %v3279 = vsub.f32 %v443, %v3278
        %v3280 = vand.u32 %v3279, 4294901760
        %3281 = vmatmul.mubr.f32.gmra.mrb[0].mxu0 %v3280
        %v3282 = vpop.f32.mrb[0].mxu0
        %v3283 = vadd.f32 %v3050, %v3282
        %v3284 = vpop.f32.mrb[0].mxu0
        %v3285 = vadd.f32 %v3052, %v3284
        %3286 = vmatprep.mubr.f32.mxu0 0.0
        %v3287 = vand.u32 %v446, 4294901760
        %v3288 = vsub.f32 %v446, %v3287
        %v3289 = vand.u32 %v3288, 4294901760
        %3290 = vmatmul.mubr.f32.gmra.mrb[0].mxu0 %v3289
        %v3291 = vpop.f32.mrb[0].mxu0
        %v3292 = vadd.f32 %v3058, %v3291
        %v3293 = vpop.f32.mrb[0].mxu0
        %v3294 = vadd.f32 %v3060, %v3293
        %3295 = vmatprep.mubr.f32.mxu0 0.0
        %v3296 = vand.u32 %v449, 4294901760
        %v3297 = vsub.f32 %v449, %v3296
        %v3298 = vand.u32 %v3297, 4294901760
        %3299 = vmatmul.mubr.f32.gmra.mrb[0].mxu0 %v3298
        %v3300 = vpop.f32.mrb[0].mxu0
        %v3301 = vadd.f32 %v3066, %v3300
        %v3302 = vpop.f32.mrb[0].mxu0
        %v3303 = vadd.f32 %v3068, %v3302
        %3304 = vmatprep.mubr.f32.mxu0 0.0
        %v3305 = vand.u32 %v452, 4294901760
        %v3306 = vsub.f32 %v452, %v3305
        %v3307 = vand.u32 %v3306, 4294901760
        %3308 = vmatmul.mubr.f32.gmra.mrb[0].mxu0 %v3307
        %v3309 = vpop.f32.mrb[0].mxu0
        %v3310 = vadd.f32 %v3074, %v3309
        %v3311 = vpop.f32.mrb[0].mxu0
        %v3312 = vadd.f32 %v3076, %v3311
        %3313 = vmatprep.mubr.f32.mxu0 0.0
        %v3314 = vand.u32 %v455, 4294901760
        %v3315 = vsub.f32 %v455, %v3314
        %v3316 = vand.u32 %v3315, 4294901760
        %3317 = vmatmul.mubr.f32.gmra.mrb[0].mxu0 %v3316
        %v3318 = vpop.f32.mrb[0].mxu0
        %v3319 = vadd.f32 %v3082, %v3318
        %v3320 = vpop.f32.mrb[0].mxu0
        %v3321 = vadd.f32 %v3084, %v3320
        %3322 = vmatprep.mubr.f32.mxu0 0.0
        %v3323 = vand.u32 %v458, 4294901760
        %v3324 = vsub.f32 %v458, %v3323
        %v3325 = vand.u32 %v3324, 4294901760
        %3326 = vmatmul.mubr.f32.gmra.mrb[0].mxu0 %v3325
        %v3327 = vpop.f32.mrb[0].mxu0
        %v3328 = vadd.f32 %v3090, %v3327
        %v3329 = vpop.f32.mrb[0].mxu0
        %v3330 = vadd.f32 %v3092, %v3329
        %3331 = vmatprep.mubr.f32.mxu0 0.0
        %v3332 = vand.u32 %v461, 4294901760
        %v3333 = vsub.f32 %v461, %v3332
        %v3334 = vand.u32 %v3333, 4294901760
        %3335 = vmatmul.mubr.f32.gmra.mrb[0].mxu0 %v3334
        %v3336 = vpop.f32.mrb[0].mxu0
        %v3337 = vadd.f32 %v3098, %v3336
        %v3338 = vpop.f32.mrb[0].mxu0
        %v3339 = vadd.f32 %v3100, %v3338
        %3340 = vmatprep.mubr.f32.mxu0 0.0
        %v3341 = vand.u32 %v464, 4294901760
        %v3342 = vsub.f32 %v464, %v3341
        %v3343 = vand.u32 %v3342, 4294901760
        %3344 = vmatmul.mubr.f32.gmra.mrb[0].mxu0 %v3343
        %v3345 = vpop.f32.mrb[0].mxu0
        %v3346 = vadd.f32 %v3106, %v3345
        %v3347 = vpop.f32.mrb[0].mxu0
        %v3348 = vadd.f32 %v3108, %v3347
        %3349 = vmatprep.mubr.f32.mxu0 0.0
        %v3350 = vand.u32 %v467, 4294901760
        %v3351 = vsub.f32 %v467, %v3350
        %v3352 = vand.u32 %v3351, 4294901760
        %3353 = vmatmul.mubr.f32.gmra.mrb[0].mxu0 %v3352
        %v3354 = vpop.f32.mrb[0].mxu0
        %v3355 = vadd.f32 %v3114, %v3354
        %v3356 = vpop.f32.mrb[0].mxu0
        %v3357 = vadd.f32 %v3116, %v3356
        %3358 = vdwg.mxu0
        %3359 = vmatprep.subr.mxu0 0.0
        %v3360 = vand.u32 %v566, 4294901760
        %v3361 = vsub.f32 %v566, %v3360
        %v3362 = vand.u32 %v3361, 4294901760
        %3363 = vmatpush1.xpose.msra.mxu0 %v3362
        %3364 = vmatprep.subr.mxu0 0.0
        %v3365 = vand.u32 %v569, 4294901760
        %v3366 = vsub.f32 %v569, %v3365
        %v3367 = vand.u32 %v3366, 4294901760
        %3368 = vmatpush1.xpose.msra.mxu0 %v3367
        %3369 = vmatprep.subr.mxu0 0.0
        %v3370 = vand.u32 %v572, 4294901760
        %v3371 = vsub.f32 %v572, %v3370
        %v3372 = vand.u32 %v3371, 4294901760
        %3373 = vmatpush1.xpose.msra.mxu0 %v3372
        %3374 = vmatprep.subr.mxu0 0.0
        %v3375 = vand.u32 %v575, 4294901760
        %v3376 = vsub.f32 %v575, %v3375
        %v3377 = vand.u32 %v3376, 4294901760
        %3378 = vmatpush1.xpose.msra.mxu0 %v3377
        %3379 = vmatprep.subr.mxu0 0.0
        %v3380 = vand.u32 %v578, 4294901760
        %v3381 = vsub.f32 %v578, %v3380
        %v3382 = vand.u32 %v3381, 4294901760
        %3383 = vmatpush1.xpose.msra.mxu0 %v3382
        %3384 = vmatprep.subr.mxu0 0.0
        %v3385 = vand.u32 %v581, 4294901760
        %v3386 = vsub.f32 %v581, %v3385
        %v3387 = vand.u32 %v3386, 4294901760
        %3388 = vmatpush1.xpose.msra.mxu0 %v3387
        %3389 = vmatprep.subr.mxu0 0.0
        %v3390 = vand.u32 %v584, 4294901760
        %v3391 = vsub.f32 %v584, %v3390
        %v3392 = vand.u32 %v3391, 4294901760
        %3393 = vmatpush1.xpose.msra.mxu0 %v3392
        %3394 = vmatprep.subr.mxu0 0.0
        %v3395 = vand.u32 %v587, 4294901760
        %v3396 = vsub.f32 %v587, %v3395
        %v3397 = vand.u32 %v3396, 4294901760
        %3398 = vmatpush1.xpose.msra.mxu0 %v3397
        %3399 = vmatprep.subr.mxu0 0.0
        %v3400 = vand.u32 %v590, 4294901760
        %v3401 = vsub.f32 %v590, %v3400
        %v3402 = vand.u32 %v3401, 4294901760
        %3403 = vmatpush1.xpose.msra.mxu0 %v3402
        %3404 = vmatprep.subr.mxu0 0.0
        %v3405 = vand.u32 %v593, 4294901760
        %v3406 = vsub.f32 %v593, %v3405
        %v3407 = vand.u32 %v3406, 4294901760
        %3408 = vmatpush1.xpose.msra.mxu0 %v3407
        %3409 = vmatprep.subr.mxu0 0.0
        %v3410 = vand.u32 %v596, 4294901760
        %v3411 = vsub.f32 %v596, %v3410
        %v3412 = vand.u32 %v3411, 4294901760
        %3413 = vmatpush1.xpose.msra.mxu0 %v3412
        %3414 = vmatprep.subr.mxu0 0.0
        %v3415 = vand.u32 %v599, 4294901760
        %v3416 = vsub.f32 %v599, %v3415
        %v3417 = vand.u32 %v3416, 4294901760
        %3418 = vmatpush1.xpose.msra.mxu0 %v3417
        %3419 = vmatprep.subr.mxu0 0.0
        %v3420 = vand.u32 %v602, 4294901760
        %v3421 = vsub.f32 %v602, %v3420
        %v3422 = vand.u32 %v3421, 4294901760
        %3423 = vmatpush1.xpose.msra.mxu0 %v3422
        %3424 = vmatprep.subr.mxu0 0.0
        %v3425 = vand.u32 %v605, 4294901760
        %v3426 = vsub.f32 %v605, %v3425
        %v3427 = vand.u32 %v3426, 4294901760
        %3428 = vmatpush1.xpose.msra.mxu0 %v3427
        %3429 = vmatprep.subr.mxu0 0.0
        %v3430 = vand.u32 %v608, 4294901760
        %v3431 = vsub.f32 %v608, %v3430
        %v3432 = vand.u32 %v3431, 4294901760
        %3433 = vmatpush1.xpose.msra.mxu0 %v3432
        %3434 = vmatprep.subr.mxu0 0.0
        %v3435 = vand.u32 %v611, 4294901760
        %v3436 = vsub.f32 %v611, %v3435
        %v3437 = vand.u32 %v3436, 4294901760
        %3438 = vmatpush1.xpose.msra.mxu0 %v3437
        %3439 = vmatprep.subr.mxu0 0.0
        %v3440 = vand.u32 %v614, 4294901760
        %v3441 = vsub.f32 %v614, %v3440
        %v3442 = vand.u32 %v3441, 4294901760
        %3443 = vmatpush1.xpose.msra.mxu0 %v3442
        %3444 = vmatprep.subr.mxu0 0.0
        %v3445 = vand.u32 %v617, 4294901760
        %v3446 = vsub.f32 %v617, %v3445
        %v3447 = vand.u32 %v3446, 4294901760
        %3448 = vmatpush1.xpose.msra.mxu0 %v3447
        %3449 = vmatprep.subr.mxu0 0.0
        %v3450 = vand.u32 %v620, 4294901760
        %v3451 = vsub.f32 %v620, %v3450
        %v3452 = vand.u32 %v3451, 4294901760
        %3453 = vmatpush1.xpose.msra.mxu0 %v3452
        %3454 = vmatprep.subr.mxu0 0.0
        %v3455 = vand.u32 %v623, 4294901760
        %v3456 = vsub.f32 %v623, %v3455
        %v3457 = vand.u32 %v3456, 4294901760
        %3458 = vmatpush1.xpose.msra.mxu0 %v3457
        %3459 = vmatprep.subr.mxu0 0.0
        %v3460 = vand.u32 %v626, 4294901760
        %v3461 = vsub.f32 %v626, %v3460
        %v3462 = vand.u32 %v3461, 4294901760
        %3463 = vmatpush1.xpose.msra.mxu0 %v3462
        %3464 = vmatprep.subr.mxu0 0.0
        %v3465 = vand.u32 %v629, 4294901760
        %v3466 = vsub.f32 %v629, %v3465
        %v3467 = vand.u32 %v3466, 4294901760
        %3468 = vmatpush1.xpose.msra.mxu0 %v3467
        %3469 = vmatprep.subr.mxu0 0.0
        %v3470 = vand.u32 %v632, 4294901760
        %v3471 = vsub.f32 %v632, %v3470
        %v3472 = vand.u32 %v3471, 4294901760
        %3473 = vmatpush1.xpose.msra.mxu0 %v3472
        %3474 = vmatprep.subr.mxu0 0.0
        %v3475 = vand.u32 %v635, 4294901760
        %v3476 = vsub.f32 %v635, %v3475
        %v3477 = vand.u32 %v3476, 4294901760
        %3478 = vmatpush1.xpose.msra.mxu0 %v3477
        %3479 = vmatprep.subr.mxu0 0.0
        %v3480 = vand.u32 %v638, 4294901760
        %v3481 = vsub.f32 %v638, %v3480
        %v3482 = vand.u32 %v3481, 4294901760
        %3483 = vmatpush1.xpose.msra.mxu0 %v3482
        %3484 = vmatprep.subr.mxu0 0.0
        %v3485 = vand.u32 %v641, 4294901760
        %v3486 = vsub.f32 %v641, %v3485
        %v3487 = vand.u32 %v3486, 4294901760
        %3488 = vmatpush1.xpose.msra.mxu0 %v3487
        %3489 = vmatprep.subr.mxu0 0.0
        %v3490 = vand.u32 %v644, 4294901760
        %v3491 = vsub.f32 %v644, %v3490
        %v3492 = vand.u32 %v3491, 4294901760
        %3493 = vmatpush1.xpose.msra.mxu0 %v3492
        %3494 = vmatprep.subr.mxu0 0.0
        %v3495 = vand.u32 %v647, 4294901760
        %v3496 = vsub.f32 %v647, %v3495
        %v3497 = vand.u32 %v3496, 4294901760
        %3498 = vmatpush1.xpose.msra.mxu0 %v3497
        %3499 = vmatprep.subr.mxu0 0.0
        %v3500 = vand.u32 %v650, 4294901760
        %v3501 = vsub.f32 %v650, %v3500
        %v3502 = vand.u32 %v3501, 4294901760
        %3503 = vmatpush1.xpose.msra.mxu0 %v3502
        %3504 = vmatprep.subr.mxu0 0.0
        %v3505 = vand.u32 %v653, 4294901760
        %v3506 = vsub.f32 %v653, %v3505
        %v3507 = vand.u32 %v3506, 4294901760
        %3508 = vmatpush1.xpose.msra.mxu0 %v3507
        %3509 = vmatprep.subr.mxu0 0.0
        %v3510 = vand.u32 %v656, 4294901760
        %v3511 = vsub.f32 %v656, %v3510
        %v3512 = vand.u32 %v3511, 4294901760
        %3513 = vmatpush1.xpose.msra.mxu0 %v3512
        %3514 = vmatprep.subr.mxu0 0.0
        %v3515 = vand.u32 %v659, 4294901760
        %v3516 = vsub.f32 %v659, %v3515
        %v3517 = vand.u32 %v3516, 4294901760
        %3518 = vmatpush1.xpose.msra.mxu0 %v3517
        %3519 = vmatprep.mubr.f32.mxu0 0.0
        %v3520 = vand.u32 %v422, 4294901760
        %3521 = vmatmul.mubr.f32.gmra.mrb[0].mxu0 %v3520
        %v3522 = vpop.f32.mrb[0].mxu0
        %v3523 = vadd.f32 %v3220, %v3522
        %v3524 = vpop.f32.mrb[0].mxu0
        %v3525 = vadd.f32 %v3222, %v3524
        %3526 = vmatprep.mubr.f32.mxu0 0.0
        %v3527 = vand.u32 %v425, 4294901760
        %3528 = vmatmul.mubr.f32.gmra.mrb[0].mxu0 %v3527
        %v3529 = vpop.f32.mrb[0].mxu0
        %v3530 = vadd.f32 %v3229, %v3529
        %v3531 = vpop.f32.mrb[0].mxu0
        %v3532 = vadd.f32 %v3231, %v3531
        %3533 = vmatprep.mubr.f32.mxu0 0.0
        %v3534 = vand.u32 %v428, 4294901760
        %3535 = vmatmul.mubr.f32.gmra.mrb[0].mxu0 %v3534
        %v3536 = vpop.f32.mrb[0].mxu0
        %v3537 = vadd.f32 %v3238, %v3536
        %v3538 = vpop.f32.mrb[0].mxu0
        %v3539 = vadd.f32 %v3240, %v3538
        %3540 = vmatprep.mubr.f32.mxu0 0.0
        %v3541 = vand.u32 %v431, 4294901760
        %3542 = vmatmul.mubr.f32.gmra.mrb[0].mxu0 %v3541
        %v3543 = vpop.f32.mrb[0].mxu0
        %v3544 = vadd.f32 %v3247, %v3543
        %v3545 = vpop.f32.mrb[0].mxu0
        %v3546 = vadd.f32 %v3249, %v3545
        %3547 = vmatprep.mubr.f32.mxu0 0.0
        %v3548 = vand.u32 %v434, 4294901760
        %3549 = vmatmul.mubr.f32.gmra.mrb[0].mxu0 %v3548
        %v3550 = vpop.f32.mrb[0].mxu0
        %v3551 = vadd.f32 %v3256, %v3550
        %v3552 = vpop.f32.mrb[0].mxu0
        %v3553 = vadd.f32 %v3258, %v3552
        %3554 = vmatprep.mubr.f32.mxu0 0.0
        %v3555 = vand.u32 %v437, 4294901760
        %3556 = vmatmul.mubr.f32.gmra.mrb[0].mxu0 %v3555
        %v3557 = vpop.f32.mrb[0].mxu0
        %v3558 = vadd.f32 %v3265, %v3557
        %v3559 = vpop.f32.mrb[0].mxu0
        %v3560 = vadd.f32 %v3267, %v3559
        %3561 = vmatprep.mubr.f32.mxu0 0.0
        %v3562 = vand.u32 %v440, 4294901760
        %3563 = vmatmul.mubr.f32.gmra.mrb[0].mxu0 %v3562
        %v3564 = vpop.f32.mrb[0].mxu0
        %v3565 = vadd.f32 %v3274, %v3564
        %v3566 = vpop.f32.mrb[0].mxu0
        %v3567 = vadd.f32 %v3276, %v3566
        %3568 = vmatprep.mubr.f32.mxu0 0.0
        %v3569 = vand.u32 %v443, 4294901760
        %3570 = vmatmul.mubr.f32.gmra.mrb[0].mxu0 %v3569
        %v3571 = vpop.f32.mrb[0].mxu0
        %v3572 = vadd.f32 %v3283, %v3571
        %v3573 = vpop.f32.mrb[0].mxu0
        %v3574 = vadd.f32 %v3285, %v3573
        %3575 = vmatprep.mubr.f32.mxu0 0.0
        %v3576 = vand.u32 %v446, 4294901760
        %3577 = vmatmul.mubr.f32.gmra.mrb[0].mxu0 %v3576
        %v3578 = vpop.f32.mrb[0].mxu0
        %v3579 = vadd.f32 %v3292, %v3578
        %v3580 = vpop.f32.mrb[0].mxu0
        %v3581 = vadd.f32 %v3294, %v3580
        %3582 = vmatprep.mubr.f32.mxu0 0.0
        %v3583 = vand.u32 %v449, 4294901760
        %3584 = vmatmul.mubr.f32.gmra.mrb[0].mxu0 %v3583
        %v3585 = vpop.f32.mrb[0].mxu0
        %v3586 = vadd.f32 %v3301, %v3585
        %v3587 = vpop.f32.mrb[0].mxu0
        %v3588 = vadd.f32 %v3303, %v3587
        %3589 = vmatprep.mubr.f32.mxu0 0.0
        %v3590 = vand.u32 %v452, 4294901760
        %3591 = vmatmul.mubr.f32.gmra.mrb[0].mxu0 %v3590
        %v3592 = vpop.f32.mrb[0].mxu0
        %v3593 = vadd.f32 %v3310, %v3592
        %v3594 = vpop.f32.mrb[0].mxu0
        %v3595 = vadd.f32 %v3312, %v3594
        %3596 = vmatprep.mubr.f32.mxu0 0.0
        %v3597 = vand.u32 %v455, 4294901760
        %3598 = vmatmul.mubr.f32.gmra.mrb[0].mxu0 %v3597
        %v3599 = vpop.f32.mrb[0].mxu0
        %v3600 = vadd.f32 %v3319, %v3599
        %v3601 = vpop.f32.mrb[0].mxu0
        %v3602 = vadd.f32 %v3321, %v3601
        %3603 = vmatprep.mubr.f32.mxu0 0.0
        %v3604 = vand.u32 %v458, 4294901760
        %3605 = vmatmul.mubr.f32.gmra.mrb[0].mxu0 %v3604
        %v3606 = vpop.f32.mrb[0].mxu0
        %v3607 = vadd.f32 %v3328, %v3606
        %v3608 = vpop.f32.mrb[0].mxu0
        %v3609 = vadd.f32 %v3330, %v3608
        %3610 = vmatprep.mubr.f32.mxu0 0.0
        %v3611 = vand.u32 %v461, 4294901760
        %3612 = vmatmul.mubr.f32.gmra.mrb[0].mxu0 %v3611
        %v3613 = vpop.f32.mrb[0].mxu0
        %v3614 = vadd.f32 %v3337, %v3613
        %v3615 = vpop.f32.mrb[0].mxu0
        %v3616 = vadd.f32 %v3339, %v3615
        %3617 = vmatprep.mubr.f32.mxu0 0.0
        %v3618 = vand.u32 %v464, 4294901760
        %3619 = vmatmul.mubr.f32.gmra.mrb[0].mxu0 %v3618
        %v3620 = vpop.f32.mrb[0].mxu0
        %v3621 = vadd.f32 %v3346, %v3620
        %v3622 = vpop.f32.mrb[0].mxu0
        %v3623 = vadd.f32 %v3348, %v3622
        %3624 = vmatprep.mubr.f32.mxu0 0.0
        %v3625 = vand.u32 %v467, 4294901760
        %3626 = vmatmul.mubr.f32.gmra.mrb[0].mxu0 %v3625
        %v3627 = vpop.f32.mrb[0].mxu0
        %v3628 = vadd.f32 %v3355, %v3627
        %v3629 = vpop.f32.mrb[0].mxu0
        %v3630 = vadd.f32 %v3357, %v3629
        %3631 = vdwg.mxu0
        %3632 = vmatprep.subr.mxu0 0.0
        %v3633 = vand.u32 %v566, 4294901760
        %3634 = vmatpush1.xpose.msra.mxu0 %v3633
        %3635 = vmatprep.subr.mxu0 0.0
        %v3636 = vand.u32 %v569, 4294901760
        %3637 = vmatpush1.xpose.msra.mxu0 %v3636
        %3638 = vmatprep.subr.mxu0 0.0
        %v3639 = vand.u32 %v572, 4294901760
        %3640 = vmatpush1.xpose.msra.mxu0 %v3639
        %3641 = vmatprep.subr.mxu0 0.0
        %v3642 = vand.u32 %v575, 4294901760
        %3643 = vmatpush1.xpose.msra.mxu0 %v3642
        %3644 = vmatprep.subr.mxu0 0.0
        %v3645 = vand.u32 %v578, 4294901760
        %3646 = vmatpush1.xpose.msra.mxu0 %v3645
        %3647 = vmatprep.subr.mxu0 0.0
        %v3648 = vand.u32 %v581, 4294901760
        %3649 = vmatpush1.xpose.msra.mxu0 %v3648
        %3650 = vmatprep.subr.mxu0 0.0
        %v3651 = vand.u32 %v584, 4294901760
        %3652 = vmatpush1.xpose.msra.mxu0 %v3651
        %3653 = vmatprep.subr.mxu0 0.0
        %v3654 = vand.u32 %v587, 4294901760
        %3655 = vmatpush1.xpose.msra.mxu0 %v3654
        %3656 = vmatprep.subr.mxu0 0.0
        %v3657 = vand.u32 %v590, 4294901760
        %3658 = vmatpush1.xpose.msra.mxu0 %v3657
        %3659 = vmatprep.subr.mxu0 0.0
        %v3660 = vand.u32 %v593, 4294901760
        %3661 = vmatpush1.xpose.msra.mxu0 %v3660
        %3662 = vmatprep.subr.mxu0 0.0
        %v3663 = vand.u32 %v596, 4294901760
        %3664 = vmatpush1.xpose.msra.mxu0 %v3663
        %3665 = vmatprep.subr.mxu0 0.0
        %v3666 = vand.u32 %v599, 4294901760
        %3667 = vmatpush1.xpose.msra.mxu0 %v3666
        %3668 = vmatprep.subr.mxu0 0.0
        %v3669 = vand.u32 %v602, 4294901760
        %3670 = vmatpush1.xpose.msra.mxu0 %v3669
        %3671 = vmatprep.subr.mxu0 0.0
        %v3672 = vand.u32 %v605, 4294901760
        %3673 = vmatpush1.xpose.msra.mxu0 %v3672
        %3674 = vmatprep.subr.mxu0 0.0
        %v3675 = vand.u32 %v608, 4294901760
        %3676 = vmatpush1.xpose.msra.mxu0 %v3675
        %3677 = vmatprep.subr.mxu0 0.0
        %v3678 = vand.u32 %v611, 4294901760
        %3679 = vmatpush1.xpose.msra.mxu0 %v3678
        %3680 = vmatprep.subr.mxu0 0.0
        %v3681 = vand.u32 %v614, 4294901760
        %3682 = vmatpush1.xpose.msra.mxu0 %v3681
        %3683 = vmatprep.subr.mxu0 0.0
        %v3684 = vand.u32 %v617, 4294901760
        %3685 = vmatpush1.xpose.msra.mxu0 %v3684
        %3686 = vmatprep.subr.mxu0 0.0
        %v3687 = vand.u32 %v620, 4294901760
        %3688 = vmatpush1.xpose.msra.mxu0 %v3687
        %3689 = vmatprep.subr.mxu0 0.0
        %v3690 = vand.u32 %v623, 4294901760
        %3691 = vmatpush1.xpose.msra.mxu0 %v3690
        %3692 = vmatprep.subr.mxu0 0.0
        %v3693 = vand.u32 %v626, 4294901760
        %3694 = vmatpush1.xpose.msra.mxu0 %v3693
        %3695 = vmatprep.subr.mxu0 0.0
        %v3696 = vand.u32 %v629, 4294901760
        %3697 = vmatpush1.xpose.msra.mxu0 %v3696
        %3698 = vmatprep.subr.mxu0 0.0
        %v3699 = vand.u32 %v632, 4294901760
        %3700 = vmatpush1.xpose.msra.mxu0 %v3699
        %3701 = vmatprep.subr.mxu0 0.0
        %v3702 = vand.u32 %v635, 4294901760
        %3703 = vmatpush1.xpose.msra.mxu0 %v3702
        %3704 = vmatprep.subr.mxu0 0.0
        %v3705 = vand.u32 %v638, 4294901760
        %3706 = vmatpush1.xpose.msra.mxu0 %v3705
        %3707 = vmatprep.subr.mxu0 0.0
        %v3708 = vand.u32 %v641, 4294901760
        %3709 = vmatpush1.xpose.msra.mxu0 %v3708
        %3710 = vmatprep.subr.mxu0 0.0
        %v3711 = vand.u32 %v644, 4294901760
        %3712 = vmatpush1.xpose.msra.mxu0 %v3711
        %3713 = vmatprep.subr.mxu0 0.0
        %v3714 = vand.u32 %v647, 4294901760
        %3715 = vmatpush1.xpose.msra.mxu0 %v3714
        %3716 = vmatprep.subr.mxu0 0.0
        %v3717 = vand.u32 %v650, 4294901760
        %3718 = vmatpush1.xpose.msra.mxu0 %v3717
        %3719 = vmatprep.subr.mxu0 0.0
        %v3720 = vand.u32 %v653, 4294901760
        %3721 = vmatpush1.xpose.msra.mxu0 %v3720
        %3722 = vmatprep.subr.mxu0 0.0
        %v3723 = vand.u32 %v656, 4294901760
        %3724 = vmatpush1.xpose.msra.mxu0 %v3723
        %3725 = vmatprep.subr.mxu0 0.0
        %v3726 = vand.u32 %v659, 4294901760
        %3727 = vmatpush1.xpose.msra.mxu0 %v3726
        %3728 = vmatprep.mubr.f32.mxu0 0.0
        %v3729 = vand.u32 %v422, 4294901760
        %3730 = vmatmul.mubr.f32.gmra.mrb[0].mxu0 %v3729
        %v3731 = vpop.f32.mrb[0].mxu0
        %v3732 = vadd.f32 %v3523, %v3731
        %v3733 = vpop.f32.mrb[0].mxu0
        %v3734 = vadd.f32 %v3525, %v3733
        %3735 = vmatprep.mubr.f32.mxu0 0.0
        %v3736 = vand.u32 %v425, 4294901760
        %3737 = vmatmul.mubr.f32.gmra.mrb[0].mxu0 %v3736
        %v3738 = vpop.f32.mrb[0].mxu0
        %v3739 = vadd.f32 %v3530, %v3738
        %v3740 = vpop.f32.mrb[0].mxu0
        %v3741 = vadd.f32 %v3532, %v3740
        %3742 = vmatprep.mubr.f32.mxu0 0.0
        %v3743 = vand.u32 %v428, 4294901760
        %3744 = vmatmul.mubr.f32.gmra.mrb[0].mxu0 %v3743
        %v3745 = vpop.f32.mrb[0].mxu0
        %v3746 = vadd.f32 %v3537, %v3745
        %v3747 = vpop.f32.mrb[0].mxu0
        %v3748 = vadd.f32 %v3539, %v3747
        %3749 = vmatprep.mubr.f32.mxu0 0.0
        %v3750 = vand.u32 %v431, 4294901760
        %3751 = vmatmul.mubr.f32.gmra.mrb[0].mxu0 %v3750
        %v3752 = vpop.f32.mrb[0].mxu0
        %v3753 = vadd.f32 %v3544, %v3752
        %v3754 = vpop.f32.mrb[0].mxu0
        %v3755 = vadd.f32 %v3546, %v3754
        %3756 = vmatprep.mubr.f32.mxu0 0.0
        %v3757 = vand.u32 %v434, 4294901760
        %3758 = vmatmul.mubr.f32.gmra.mrb[0].mxu0 %v3757
        %v3759 = vpop.f32.mrb[0].mxu0
        %v3760 = vadd.f32 %v3551, %v3759
        %v3761 = vpop.f32.mrb[0].mxu0
        %v3762 = vadd.f32 %v3553, %v3761
        %3763 = vmatprep.mubr.f32.mxu0 0.0
        %v3764 = vand.u32 %v437, 4294901760
        %3765 = vmatmul.mubr.f32.gmra.mrb[0].mxu0 %v3764
        %v3766 = vpop.f32.mrb[0].mxu0
        %v3767 = vadd.f32 %v3558, %v3766
        %v3768 = vpop.f32.mrb[0].mxu0
        %v3769 = vadd.f32 %v3560, %v3768
        %3770 = vmatprep.mubr.f32.mxu0 0.0
        %v3771 = vand.u32 %v440, 4294901760
        %3772 = vmatmul.mubr.f32.gmra.mrb[0].mxu0 %v3771
        %v3773 = vpop.f32.mrb[0].mxu0
        %v3774 = vadd.f32 %v3565, %v3773
        %v3775 = vpop.f32.mrb[0].mxu0
        %v3776 = vadd.f32 %v3567, %v3775
        %3777 = vmatprep.mubr.f32.mxu0 0.0
        %v3778 = vand.u32 %v443, 4294901760
        %3779 = vmatmul.mubr.f32.gmra.mrb[0].mxu0 %v3778
        %v3780 = vpop.f32.mrb[0].mxu0
        %v3781 = vadd.f32 %v3572, %v3780
        %v3782 = vpop.f32.mrb[0].mxu0
        %v3783 = vadd.f32 %v3574, %v3782
        %3784 = vmatprep.mubr.f32.mxu0 0.0
        %v3785 = vand.u32 %v446, 4294901760
        %3786 = vmatmul.mubr.f32.gmra.mrb[0].mxu0 %v3785
        %v3787 = vpop.f32.mrb[0].mxu0
        %v3788 = vadd.f32 %v3579, %v3787
        %v3789 = vpop.f32.mrb[0].mxu0
        %v3790 = vadd.f32 %v3581, %v3789
        %3791 = vmatprep.mubr.f32.mxu0 0.0
        %v3792 = vand.u32 %v449, 4294901760
        %3793 = vmatmul.mubr.f32.gmra.mrb[0].mxu0 %v3792
        %v3794 = vpop.f32.mrb[0].mxu0
        %v3795 = vadd.f32 %v3586, %v3794
        %v3796 = vpop.f32.mrb[0].mxu0
        %v3797 = vadd.f32 %v3588, %v3796
        %3798 = vmatprep.mubr.f32.mxu0 0.0
        %v3799 = vand.u32 %v452, 4294901760
        %3800 = vmatmul.mubr.f32.gmra.mrb[0].mxu0 %v3799
        %v3801 = vpop.f32.mrb[0].mxu0
        %v3802 = vadd.f32 %v3593, %v3801
        %v3803 = vpop.f32.mrb[0].mxu0
        %v3804 = vadd.f32 %v3595, %v3803
        %3805 = vmatprep.mubr.f32.mxu0 0.0
        %v3806 = vand.u32 %v455, 4294901760
        %3807 = vmatmul.mubr.f32.gmra.mrb[0].mxu0 %v3806
        %v3808 = vpop.f32.mrb[0].mxu0
        %v3809 = vadd.f32 %v3600, %v3808
        %v3810 = vpop.f32.mrb[0].mxu0
        %v3811 = vadd.f32 %v3602, %v3810
        %3812 = vmatprep.mubr.f32.mxu0 0.0
        %v3813 = vand.u32 %v458, 4294901760
        %3814 = vmatmul.mubr.f32.gmra.mrb[0].mxu0 %v3813
        %v3815 = vpop.f32.mrb[0].mxu0
        %v3816 = vadd.f32 %v3607, %v3815
        %v3817 = vpop.f32.mrb[0].mxu0
        %v3818 = vadd.f32 %v3609, %v3817
        %3819 = vmatprep.mubr.f32.mxu0 0.0
        %v3820 = vand.u32 %v461, 4294901760
        %3821 = vmatmul.mubr.f32.gmra.mrb[0].mxu0 %v3820
        %v3822 = vpop.f32.mrb[0].mxu0
        %v3823 = vadd.f32 %v3614, %v3822
        %v3824 = vpop.f32.mrb[0].mxu0
        %v3825 = vadd.f32 %v3616, %v3824
        %3826 = vmatprep.mubr.f32.mxu0 0.0
        %v3827 = vand.u32 %v464, 4294901760
        %3828 = vmatmul.mubr.f32.gmra.mrb[0].mxu0 %v3827
        %v3829 = vpop.f32.mrb[0].mxu0
        %v3830 = vadd.f32 %v3621, %v3829
        %v3831 = vpop.f32.mrb[0].mxu0
        %v3832 = vadd.f32 %v3623, %v3831
        %3833 = vmatprep.mubr.f32.mxu0 0.0
        %v3834 = vand.u32 %v467, 4294901760
        %3835 = vmatmul.mubr.f32.gmra.mrb[0].mxu0 %v3834
        %v3836 = vpop.f32.mrb[0].mxu0
        %v3837 = vadd.f32 %v3628, %v3836
        %v3838 = vpop.f32.mrb[0].mxu0
        %v3839 = vadd.f32 %v3630, %v3838
        %3840 = vdwg.mxu0
        %v3842 = vsel %vm420, %v276, 0
        %v3845 = vsel %vm420, %v277, 0
        %v3848 = vsel %vm420, %v278, 0
        %v3851 = vsel %vm420, %v279, 0
        %v3854 = vsel %vm420, %v280, 0
        %v3857 = vsel %vm420, %v281, 0
        %v3860 = vsel %vm420, %v282, 0
        %v3863 = vsel %vm420, %v283, 0
        %v3866 = vsel %vm420, %v284, 0
        %v3869 = vsel %vm420, %v285, 0
        %v3872 = vsel %vm420, %v286, 0
        %v3875 = vsel %vm420, %v287, 0
        %v3878 = vsel %vm420, %v288, 0
        %v3881 = vsel %vm420, %v289, 0
        %v3884 = vsel %vm420, %v290, 0
        %v3887 = vsel %vm420, %v291, 0
        %v3890 = vsel %vm420, %v356, 0
        %v3893 = vsel %vm420, %v357, 0
        %v3896 = vsel %vm420, %v358, 0
        %v3899 = vsel %vm420, %v359, 0
        %v3902 = vsel %vm420, %v360, 0
        %v3905 = vsel %vm420, %v361, 0
        %v3908 = vsel %vm420, %v362, 0
        %v3911 = vsel %vm420, %v363, 0
        %v3914 = vsel %vm420, %v364, 0
        %v3917 = vsel %vm420, %v365, 0
        %v3920 = vsel %vm420, %v366, 0
        %v3923 = vsel %vm420, %v367, 0
        %v3926 = vsel %vm420, %v368, 0
        %v3929 = vsel %vm420, %v369, 0
        %v3932 = vsel %vm420, %v370, 0
        %v3935 = vsel %vm420, %v371, 0
        %v3938 = vsel %vm420, %v372, 0
        %v3941 = vsel %vm420, %v373, 0
        %v3944 = vsel %vm420, %v374, 0
        %v3947 = vsel %vm420, %v375, 0
        %v3950 = vsel %vm420, %v376, 0
        %v3953 = vsel %vm420, %v377, 0
        %v3956 = vsel %vm420, %v378, 0
        %v3959 = vsel %vm420, %v379, 0
        %v3962 = vsel %vm420, %v380, 0
        %v3965 = vsel %vm420, %v381, 0
        %v3968 = vsel %vm420, %v382, 0
        %v3971 = vsel %vm420, %v383, 0
        %v3974 = vsel %vm420, %v384, 0
        %v3977 = vsel %vm420, %v385, 0
        %v3980 = vsel %vm420, %v386, 0
        %v3983 = vsel %vm420, %v387, 0
        %v3986 = vsel %vm420, %v388, 0
        %v3989 = vsel %vm420, %v389, 0
        %v3992 = vsel %vm420, %v390, 0
        %v3995 = vsel %vm420, %v391, 0
        %v3998 = vsel %vm420, %v392, 0
        %v4001 = vsel %vm420, %v393, 0
        %v4004 = vsel %vm420, %v394, 0
        %v4007 = vsel %vm420, %v395, 0
        %v4010 = vsel %vm420, %v396, 0
        %v4013 = vsel %vm420, %v397, 0
        %v4016 = vsel %vm420, %v398, 0
        %v4019 = vsel %vm420, %v399, 0
        %v4022 = vsel %vm420, %v400, 0
        %v4025 = vsel %vm420, %v401, 0
        %v4028 = vsel %vm420, %v402, 0
        %v4031 = vsel %vm420, %v403, 0
        %v4034 = vsel %vm420, %v404, 0
        %v4037 = vsel %vm420, %v405, 0
        %v4040 = vsel %vm420, %v406, 0
        %v4043 = vsel %vm420, %v407, 0
        %v4046 = vsel %vm420, %v408, 0
        %v4049 = vsel %vm420, %v409, 0
        %v4052 = vsel %vm420, %v410, 0
        %v4055 = vsel %vm420, %v411, 0
        %v4058 = vsel %vm420, %v412, 0
        %v4061 = vsel %vm420, %v413, 0
        %v4064 = vsel %vm420, %v414, 0
        %v4067 = vsel %vm420, %v415, 0
        %v4070 = vsel %vm420, %v416, 0
        %v4073 = vsel %vm420, %v417, 0
        %v4076 = vsel %vm420, %v418, 0
        %v4079 = vsel %vm420, %v419, 0
        %4081 = vmatprep.subr.mxu0 0.0
        %v4082 = vand.u32 %v3890, 4294901760
        %4083 = vmatpush1.xpose.msra.mxu0 %v4082
        %4084 = vmatprep.subr.mxu0 0.0
        %v4085 = vand.u32 %v3893, 4294901760
        %4086 = vmatpush1.xpose.msra.mxu0 %v4085
        %4087 = vmatprep.subr.mxu0 0.0
        %v4088 = vand.u32 %v3896, 4294901760
        %4089 = vmatpush1.xpose.msra.mxu0 %v4088
        %4090 = vmatprep.subr.mxu0 0.0
        %v4091 = vand.u32 %v3899, 4294901760
        %4092 = vmatpush1.xpose.msra.mxu0 %v4091
        %4093 = vmatprep.subr.mxu0 0.0
        %v4094 = vand.u32 %v3902, 4294901760
        %4095 = vmatpush1.xpose.msra.mxu0 %v4094
        %4096 = vmatprep.subr.mxu0 0.0
        %v4097 = vand.u32 %v3905, 4294901760
        %4098 = vmatpush1.xpose.msra.mxu0 %v4097
        %4099 = vmatprep.subr.mxu0 0.0
        %v4100 = vand.u32 %v3908, 4294901760
        %4101 = vmatpush1.xpose.msra.mxu0 %v4100
        %4102 = vmatprep.subr.mxu0 0.0
        %v4103 = vand.u32 %v3911, 4294901760
        %4104 = vmatpush1.xpose.msra.mxu0 %v4103
        %4105 = vmatprep.subr.mxu0 0.0
        %v4106 = vand.u32 %v3914, 4294901760
        %4107 = vmatpush1.xpose.msra.mxu0 %v4106
        %4108 = vmatprep.subr.mxu0 0.0
        %v4109 = vand.u32 %v3917, 4294901760
        %4110 = vmatpush1.xpose.msra.mxu0 %v4109
        %4111 = vmatprep.subr.mxu0 0.0
        %v4112 = vand.u32 %v3920, 4294901760
        %4113 = vmatpush1.xpose.msra.mxu0 %v4112
        %4114 = vmatprep.subr.mxu0 0.0
        %v4115 = vand.u32 %v3923, 4294901760
        %4116 = vmatpush1.xpose.msra.mxu0 %v4115
        %4117 = vmatprep.subr.mxu0 0.0
        %v4118 = vand.u32 %v3926, 4294901760
        %4119 = vmatpush1.xpose.msra.mxu0 %v4118
        %4120 = vmatprep.subr.mxu0 0.0
        %v4121 = vand.u32 %v3929, 4294901760
        %4122 = vmatpush1.xpose.msra.mxu0 %v4121
        %4123 = vmatprep.subr.mxu0 0.0
        %v4124 = vand.u32 %v3932, 4294901760
        %4125 = vmatpush1.xpose.msra.mxu0 %v4124
        %4126 = vmatprep.subr.mxu0 0.0
        %v4127 = vand.u32 %v3935, 4294901760
        %4128 = vmatpush1.xpose.msra.mxu0 %v4127
        %4129 = vmatprep.subr.mxu0 0.0
        %v4130 = vand.u32 %v3938, 4294901760
        %4131 = vmatpush1.xpose.msra.mxu0 %v4130
        %4132 = vmatprep.subr.mxu0 0.0
        %v4133 = vand.u32 %v3941, 4294901760
        %4134 = vmatpush1.xpose.msra.mxu0 %v4133
        %4135 = vmatprep.subr.mxu0 0.0
        %v4136 = vand.u32 %v3944, 4294901760
        %4137 = vmatpush1.xpose.msra.mxu0 %v4136
        %4138 = vmatprep.subr.mxu0 0.0
        %v4139 = vand.u32 %v3947, 4294901760
        %4140 = vmatpush1.xpose.msra.mxu0 %v4139
        %4141 = vmatprep.subr.mxu0 0.0
        %v4142 = vand.u32 %v3950, 4294901760
        %4143 = vmatpush1.xpose.msra.mxu0 %v4142
        %4144 = vmatprep.subr.mxu0 0.0
        %v4145 = vand.u32 %v3953, 4294901760
        %4146 = vmatpush1.xpose.msra.mxu0 %v4145
        %4147 = vmatprep.subr.mxu0 0.0
        %v4148 = vand.u32 %v3956, 4294901760
        %4149 = vmatpush1.xpose.msra.mxu0 %v4148
        %4150 = vmatprep.subr.mxu0 0.0
        %v4151 = vand.u32 %v3959, 4294901760
        %4152 = vmatpush1.xpose.msra.mxu0 %v4151
        %4153 = vmatprep.subr.mxu0 0.0
        %v4154 = vand.u32 %v3962, 4294901760
        %4155 = vmatpush1.xpose.msra.mxu0 %v4154
        %4156 = vmatprep.subr.mxu0 0.0
        %v4157 = vand.u32 %v3965, 4294901760
        %4158 = vmatpush1.xpose.msra.mxu0 %v4157
        %4159 = vmatprep.subr.mxu0 0.0
        %v4160 = vand.u32 %v3968, 4294901760
        %4161 = vmatpush1.xpose.msra.mxu0 %v4160
        %4162 = vmatprep.subr.mxu0 0.0
        %v4163 = vand.u32 %v3971, 4294901760
        %4164 = vmatpush1.xpose.msra.mxu0 %v4163
        %4165 = vmatprep.subr.mxu0 0.0
        %v4166 = vand.u32 %v3974, 4294901760
        %4167 = vmatpush1.xpose.msra.mxu0 %v4166
        %4168 = vmatprep.subr.mxu0 0.0
        %v4169 = vand.u32 %v3977, 4294901760
        %4170 = vmatpush1.xpose.msra.mxu0 %v4169
        %4171 = vmatprep.subr.mxu0 0.0
        %v4172 = vand.u32 %v3980, 4294901760
        %4173 = vmatpush1.xpose.msra.mxu0 %v4172
        %4174 = vmatprep.subr.mxu0 0.0
        %v4175 = vand.u32 %v3983, 4294901760
        %4176 = vmatpush1.xpose.msra.mxu0 %v4175
        %4177 = vmatprep.mubr.f32.mxu0 0.0
        %v4178 = vand.u32 %v3842, 4294901760
        %v4179 = vsub.f32 %v3842, %v4178
        %v4180 = vand.u32 %v4179, 4294901760
        %v4181 = vsub.f32 %v4179, %v4180
        %v4182 = vand.u32 %v4181, 4294901760
        %4183 = vmatmul.mubr.f32.gmra.mrb[0].mxu0 %v4182
        %v4184 = vpop.f32.mrb[0].mxu0
        %v4185 = vadd.f32 0.0, %v4184
        %v4186 = vpop.f32.mrb[0].mxu0
        %v4187 = vadd.f32 0.0, %v4186
        %4188 = vmatprep.mubr.f32.mxu0 0.0
        %v4189 = vand.u32 %v3845, 4294901760
        %v4190 = vsub.f32 %v3845, %v4189
        %v4191 = vand.u32 %v4190, 4294901760
        %v4192 = vsub.f32 %v4190, %v4191
        %v4193 = vand.u32 %v4192, 4294901760
        %4194 = vmatmul.mubr.f32.gmra.mrb[0].mxu0 %v4193
        %v4195 = vpop.f32.mrb[0].mxu0
        %v4196 = vadd.f32 0.0, %v4195
        %v4197 = vpop.f32.mrb[0].mxu0
        %v4198 = vadd.f32 0.0, %v4197
        %4199 = vmatprep.mubr.f32.mxu0 0.0
        %v4200 = vand.u32 %v3848, 4294901760
        %v4201 = vsub.f32 %v3848, %v4200
        %v4202 = vand.u32 %v4201, 4294901760
        %v4203 = vsub.f32 %v4201, %v4202
        %v4204 = vand.u32 %v4203, 4294901760
        %4205 = vmatmul.mubr.f32.gmra.mrb[0].mxu0 %v4204
        %v4206 = vpop.f32.mrb[0].mxu0
        %v4207 = vadd.f32 0.0, %v4206
        %v4208 = vpop.f32.mrb[0].mxu0
        %v4209 = vadd.f32 0.0, %v4208
        %4210 = vmatprep.mubr.f32.mxu0 0.0
        %v4211 = vand.u32 %v3851, 4294901760
        %v4212 = vsub.f32 %v3851, %v4211
        %v4213 = vand.u32 %v4212, 4294901760
        %v4214 = vsub.f32 %v4212, %v4213
        %v4215 = vand.u32 %v4214, 4294901760
        %4216 = vmatmul.mubr.f32.gmra.mrb[0].mxu0 %v4215
        %v4217 = vpop.f32.mrb[0].mxu0
        %v4218 = vadd.f32 0.0, %v4217
        %v4219 = vpop.f32.mrb[0].mxu0
        %v4220 = vadd.f32 0.0, %v4219
        %4221 = vmatprep.mubr.f32.mxu0 0.0
        %v4222 = vand.u32 %v3854, 4294901760
        %v4223 = vsub.f32 %v3854, %v4222
        %v4224 = vand.u32 %v4223, 4294901760
        %v4225 = vsub.f32 %v4223, %v4224
        %v4226 = vand.u32 %v4225, 4294901760
        %4227 = vmatmul.mubr.f32.gmra.mrb[0].mxu0 %v4226
        %v4228 = vpop.f32.mrb[0].mxu0
        %v4229 = vadd.f32 0.0, %v4228
        %v4230 = vpop.f32.mrb[0].mxu0
        %v4231 = vadd.f32 0.0, %v4230
        %4232 = vmatprep.mubr.f32.mxu0 0.0
        %v4233 = vand.u32 %v3857, 4294901760
        %v4234 = vsub.f32 %v3857, %v4233
        %v4235 = vand.u32 %v4234, 4294901760
        %v4236 = vsub.f32 %v4234, %v4235
        %v4237 = vand.u32 %v4236, 4294901760
        %4238 = vmatmul.mubr.f32.gmra.mrb[0].mxu0 %v4237
        %v4239 = vpop.f32.mrb[0].mxu0
        %v4240 = vadd.f32 0.0, %v4239
        %v4241 = vpop.f32.mrb[0].mxu0
        %v4242 = vadd.f32 0.0, %v4241
        %4243 = vmatprep.mubr.f32.mxu0 0.0
        %v4244 = vand.u32 %v3860, 4294901760
        %v4245 = vsub.f32 %v3860, %v4244
        %v4246 = vand.u32 %v4245, 4294901760
        %v4247 = vsub.f32 %v4245, %v4246
        %v4248 = vand.u32 %v4247, 4294901760
        %4249 = vmatmul.mubr.f32.gmra.mrb[0].mxu0 %v4248
        %v4250 = vpop.f32.mrb[0].mxu0
        %v4251 = vadd.f32 0.0, %v4250
        %v4252 = vpop.f32.mrb[0].mxu0
        %v4253 = vadd.f32 0.0, %v4252
        %4254 = vmatprep.mubr.f32.mxu0 0.0
        %v4255 = vand.u32 %v3863, 4294901760
        %v4256 = vsub.f32 %v3863, %v4255
        %v4257 = vand.u32 %v4256, 4294901760
        %v4258 = vsub.f32 %v4256, %v4257
        %v4259 = vand.u32 %v4258, 4294901760
        %4260 = vmatmul.mubr.f32.gmra.mrb[0].mxu0 %v4259
        %v4261 = vpop.f32.mrb[0].mxu0
        %v4262 = vadd.f32 0.0, %v4261
        %v4263 = vpop.f32.mrb[0].mxu0
        %v4264 = vadd.f32 0.0, %v4263
        %4265 = vmatprep.mubr.f32.mxu0 0.0
        %v4266 = vand.u32 %v3866, 4294901760
        %v4267 = vsub.f32 %v3866, %v4266
        %v4268 = vand.u32 %v4267, 4294901760
        %v4269 = vsub.f32 %v4267, %v4268
        %v4270 = vand.u32 %v4269, 4294901760
        %4271 = vmatmul.mubr.f32.gmra.mrb[0].mxu0 %v4270
        %v4272 = vpop.f32.mrb[0].mxu0
        %v4273 = vadd.f32 0.0, %v4272
        %v4274 = vpop.f32.mrb[0].mxu0
        %v4275 = vadd.f32 0.0, %v4274
        %4276 = vmatprep.mubr.f32.mxu0 0.0
        %v4277 = vand.u32 %v3869, 4294901760
        %v4278 = vsub.f32 %v3869, %v4277
        %v4279 = vand.u32 %v4278, 4294901760
        %v4280 = vsub.f32 %v4278, %v4279
        %v4281 = vand.u32 %v4280, 4294901760
        %4282 = vmatmul.mubr.f32.gmra.mrb[0].mxu0 %v4281
        %v4283 = vpop.f32.mrb[0].mxu0
        %v4284 = vadd.f32 0.0, %v4283
        %v4285 = vpop.f32.mrb[0].mxu0
        %v4286 = vadd.f32 0.0, %v4285
        %4287 = vmatprep.mubr.f32.mxu0 0.0
        %v4288 = vand.u32 %v3872, 4294901760
        %v4289 = vsub.f32 %v3872, %v4288
        %v4290 = vand.u32 %v4289, 4294901760
        %v4291 = vsub.f32 %v4289, %v4290
        %v4292 = vand.u32 %v4291, 4294901760
        %4293 = vmatmul.mubr.f32.gmra.mrb[0].mxu0 %v4292
        %v4294 = vpop.f32.mrb[0].mxu0
        %v4295 = vadd.f32 0.0, %v4294
        %v4296 = vpop.f32.mrb[0].mxu0
        %v4297 = vadd.f32 0.0, %v4296
        %4298 = vmatprep.mubr.f32.mxu0 0.0
        %v4299 = vand.u32 %v3875, 4294901760
        %v4300 = vsub.f32 %v3875, %v4299
        %v4301 = vand.u32 %v4300, 4294901760
        %v4302 = vsub.f32 %v4300, %v4301
        %v4303 = vand.u32 %v4302, 4294901760
        %4304 = vmatmul.mubr.f32.gmra.mrb[0].mxu0 %v4303
        %v4305 = vpop.f32.mrb[0].mxu0
        %v4306 = vadd.f32 0.0, %v4305
        %v4307 = vpop.f32.mrb[0].mxu0
        %v4308 = vadd.f32 0.0, %v4307
        %4309 = vmatprep.mubr.f32.mxu0 0.0
        %v4310 = vand.u32 %v3878, 4294901760
        %v4311 = vsub.f32 %v3878, %v4310
        %v4312 = vand.u32 %v4311, 4294901760
        %v4313 = vsub.f32 %v4311, %v4312
        %v4314 = vand.u32 %v4313, 4294901760
        %4315 = vmatmul.mubr.f32.gmra.mrb[0].mxu0 %v4314
        %v4316 = vpop.f32.mrb[0].mxu0
        %v4317 = vadd.f32 0.0, %v4316
        %v4318 = vpop.f32.mrb[0].mxu0
        %v4319 = vadd.f32 0.0, %v4318
        %4320 = vmatprep.mubr.f32.mxu0 0.0
        %v4321 = vand.u32 %v3881, 4294901760
        %v4322 = vsub.f32 %v3881, %v4321
        %v4323 = vand.u32 %v4322, 4294901760
        %v4324 = vsub.f32 %v4322, %v4323
        %v4325 = vand.u32 %v4324, 4294901760
        %4326 = vmatmul.mubr.f32.gmra.mrb[0].mxu0 %v4325
        %v4327 = vpop.f32.mrb[0].mxu0
        %v4328 = vadd.f32 0.0, %v4327
        %v4329 = vpop.f32.mrb[0].mxu0
        %v4330 = vadd.f32 0.0, %v4329
        %4331 = vmatprep.mubr.f32.mxu0 0.0
        %v4332 = vand.u32 %v3884, 4294901760
        %v4333 = vsub.f32 %v3884, %v4332
        %v4334 = vand.u32 %v4333, 4294901760
        %v4335 = vsub.f32 %v4333, %v4334
        %v4336 = vand.u32 %v4335, 4294901760
        %4337 = vmatmul.mubr.f32.gmra.mrb[0].mxu0 %v4336
        %v4338 = vpop.f32.mrb[0].mxu0
        %v4339 = vadd.f32 0.0, %v4338
        %v4340 = vpop.f32.mrb[0].mxu0
        %v4341 = vadd.f32 0.0, %v4340
        %4342 = vmatprep.mubr.f32.mxu0 0.0
        %v4343 = vand.u32 %v3887, 4294901760
        %v4344 = vsub.f32 %v3887, %v4343
        %v4345 = vand.u32 %v4344, 4294901760
        %v4346 = vsub.f32 %v4344, %v4345
        %v4347 = vand.u32 %v4346, 4294901760
        %4348 = vmatmul.mubr.f32.gmra.mrb[0].mxu0 %v4347
        %v4349 = vpop.f32.mrb[0].mxu0
        %v4350 = vadd.f32 0.0, %v4349
        %v4351 = vpop.f32.mrb[0].mxu0
        %v4352 = vadd.f32 0.0, %v4351
        %4353 = vdwg.mxu0
        %4354 = vmatprep.subr.mxu0 0.0
        %v4355 = vand.u32 %v3890, 4294901760
        %v4356 = vsub.f32 %v3890, %v4355
        %v4357 = vand.u32 %v4356, 4294901760
        %v4358 = vsub.f32 %v4356, %v4357
        %v4359 = vand.u32 %v4358, 4294901760
        %4360 = vmatpush1.xpose.msra.mxu0 %v4359
        %4361 = vmatprep.subr.mxu0 0.0
        %v4362 = vand.u32 %v3893, 4294901760
        %v4363 = vsub.f32 %v3893, %v4362
        %v4364 = vand.u32 %v4363, 4294901760
        %v4365 = vsub.f32 %v4363, %v4364
        %v4366 = vand.u32 %v4365, 4294901760
        %4367 = vmatpush1.xpose.msra.mxu0 %v4366
        %4368 = vmatprep.subr.mxu0 0.0
        %v4369 = vand.u32 %v3896, 4294901760
        %v4370 = vsub.f32 %v3896, %v4369
        %v4371 = vand.u32 %v4370, 4294901760
        %v4372 = vsub.f32 %v4370, %v4371
        %v4373 = vand.u32 %v4372, 4294901760
        %4374 = vmatpush1.xpose.msra.mxu0 %v4373
        %4375 = vmatprep.subr.mxu0 0.0
        %v4376 = vand.u32 %v3899, 4294901760
        %v4377 = vsub.f32 %v3899, %v4376
        %v4378 = vand.u32 %v4377, 4294901760
        %v4379 = vsub.f32 %v4377, %v4378
        %v4380 = vand.u32 %v4379, 4294901760
        %4381 = vmatpush1.xpose.msra.mxu0 %v4380
        %4382 = vmatprep.subr.mxu0 0.0
        %v4383 = vand.u32 %v3902, 4294901760
        %v4384 = vsub.f32 %v3902, %v4383
        %v4385 = vand.u32 %v4384, 4294901760
        %v4386 = vsub.f32 %v4384, %v4385
        %v4387 = vand.u32 %v4386, 4294901760
        %4388 = vmatpush1.xpose.msra.mxu0 %v4387
        %4389 = vmatprep.subr.mxu0 0.0
        %v4390 = vand.u32 %v3905, 4294901760
        %v4391 = vsub.f32 %v3905, %v4390
        %v4392 = vand.u32 %v4391, 4294901760
        %v4393 = vsub.f32 %v4391, %v4392
        %v4394 = vand.u32 %v4393, 4294901760
        %4395 = vmatpush1.xpose.msra.mxu0 %v4394
        %4396 = vmatprep.subr.mxu0 0.0
        %v4397 = vand.u32 %v3908, 4294901760
        %v4398 = vsub.f32 %v3908, %v4397
        %v4399 = vand.u32 %v4398, 4294901760
        %v4400 = vsub.f32 %v4398, %v4399
        %v4401 = vand.u32 %v4400, 4294901760
        %4402 = vmatpush1.xpose.msra.mxu0 %v4401
        %4403 = vmatprep.subr.mxu0 0.0
        %v4404 = vand.u32 %v3911, 4294901760
        %v4405 = vsub.f32 %v3911, %v4404
        %v4406 = vand.u32 %v4405, 4294901760
        %v4407 = vsub.f32 %v4405, %v4406
        %v4408 = vand.u32 %v4407, 4294901760
        %4409 = vmatpush1.xpose.msra.mxu0 %v4408
        %4410 = vmatprep.subr.mxu0 0.0
        %v4411 = vand.u32 %v3914, 4294901760
        %v4412 = vsub.f32 %v3914, %v4411
        %v4413 = vand.u32 %v4412, 4294901760
        %v4414 = vsub.f32 %v4412, %v4413
        %v4415 = vand.u32 %v4414, 4294901760
        %4416 = vmatpush1.xpose.msra.mxu0 %v4415
        %4417 = vmatprep.subr.mxu0 0.0
        %v4418 = vand.u32 %v3917, 4294901760
        %v4419 = vsub.f32 %v3917, %v4418
        %v4420 = vand.u32 %v4419, 4294901760
        %v4421 = vsub.f32 %v4419, %v4420
        %v4422 = vand.u32 %v4421, 4294901760
        %4423 = vmatpush1.xpose.msra.mxu0 %v4422
        %4424 = vmatprep.subr.mxu0 0.0
        %v4425 = vand.u32 %v3920, 4294901760
        %v4426 = vsub.f32 %v3920, %v4425
        %v4427 = vand.u32 %v4426, 4294901760
        %v4428 = vsub.f32 %v4426, %v4427
        %v4429 = vand.u32 %v4428, 4294901760
        %4430 = vmatpush1.xpose.msra.mxu0 %v4429
        %4431 = vmatprep.subr.mxu0 0.0
        %v4432 = vand.u32 %v3923, 4294901760
        %v4433 = vsub.f32 %v3923, %v4432
        %v4434 = vand.u32 %v4433, 4294901760
        %v4435 = vsub.f32 %v4433, %v4434
        %v4436 = vand.u32 %v4435, 4294901760
        %4437 = vmatpush1.xpose.msra.mxu0 %v4436
        %4438 = vmatprep.subr.mxu0 0.0
        %v4439 = vand.u32 %v3926, 4294901760
        %v4440 = vsub.f32 %v3926, %v4439
        %v4441 = vand.u32 %v4440, 4294901760
        %v4442 = vsub.f32 %v4440, %v4441
        %v4443 = vand.u32 %v4442, 4294901760
        %4444 = vmatpush1.xpose.msra.mxu0 %v4443
        %4445 = vmatprep.subr.mxu0 0.0
        %v4446 = vand.u32 %v3929, 4294901760
        %v4447 = vsub.f32 %v3929, %v4446
        %v4448 = vand.u32 %v4447, 4294901760
        %v4449 = vsub.f32 %v4447, %v4448
        %v4450 = vand.u32 %v4449, 4294901760
        %4451 = vmatpush1.xpose.msra.mxu0 %v4450
        %4452 = vmatprep.subr.mxu0 0.0
        %v4453 = vand.u32 %v3932, 4294901760
        %v4454 = vsub.f32 %v3932, %v4453
        %v4455 = vand.u32 %v4454, 4294901760
        %v4456 = vsub.f32 %v4454, %v4455
        %v4457 = vand.u32 %v4456, 4294901760
        %4458 = vmatpush1.xpose.msra.mxu0 %v4457
        %4459 = vmatprep.subr.mxu0 0.0
        %v4460 = vand.u32 %v3935, 4294901760
        %v4461 = vsub.f32 %v3935, %v4460
        %v4462 = vand.u32 %v4461, 4294901760
        %v4463 = vsub.f32 %v4461, %v4462
        %v4464 = vand.u32 %v4463, 4294901760
        %4465 = vmatpush1.xpose.msra.mxu0 %v4464
        %4466 = vmatprep.subr.mxu0 0.0
        %v4467 = vand.u32 %v3938, 4294901760
        %v4468 = vsub.f32 %v3938, %v4467
        %v4469 = vand.u32 %v4468, 4294901760
        %v4470 = vsub.f32 %v4468, %v4469
        %v4471 = vand.u32 %v4470, 4294901760
        %4472 = vmatpush1.xpose.msra.mxu0 %v4471
        %4473 = vmatprep.subr.mxu0 0.0
        %v4474 = vand.u32 %v3941, 4294901760
        %v4475 = vsub.f32 %v3941, %v4474
        %v4476 = vand.u32 %v4475, 4294901760
        %v4477 = vsub.f32 %v4475, %v4476
        %v4478 = vand.u32 %v4477, 4294901760
        %4479 = vmatpush1.xpose.msra.mxu0 %v4478
        %4480 = vmatprep.subr.mxu0 0.0
        %v4481 = vand.u32 %v3944, 4294901760
        %v4482 = vsub.f32 %v3944, %v4481
        %v4483 = vand.u32 %v4482, 4294901760
        %v4484 = vsub.f32 %v4482, %v4483
        %v4485 = vand.u32 %v4484, 4294901760
        %4486 = vmatpush1.xpose.msra.mxu0 %v4485
        %4487 = vmatprep.subr.mxu0 0.0
        %v4488 = vand.u32 %v3947, 4294901760
        %v4489 = vsub.f32 %v3947, %v4488
        %v4490 = vand.u32 %v4489, 4294901760
        %v4491 = vsub.f32 %v4489, %v4490
        %v4492 = vand.u32 %v4491, 4294901760
        %4493 = vmatpush1.xpose.msra.mxu0 %v4492
        %4494 = vmatprep.subr.mxu0 0.0
        %v4495 = vand.u32 %v3950, 4294901760
        %v4496 = vsub.f32 %v3950, %v4495
        %v4497 = vand.u32 %v4496, 4294901760
        %v4498 = vsub.f32 %v4496, %v4497
        %v4499 = vand.u32 %v4498, 4294901760
        %4500 = vmatpush1.xpose.msra.mxu0 %v4499
        %4501 = vmatprep.subr.mxu0 0.0
        %v4502 = vand.u32 %v3953, 4294901760
        %v4503 = vsub.f32 %v3953, %v4502
        %v4504 = vand.u32 %v4503, 4294901760
        %v4505 = vsub.f32 %v4503, %v4504
        %v4506 = vand.u32 %v4505, 4294901760
        %4507 = vmatpush1.xpose.msra.mxu0 %v4506
        %4508 = vmatprep.subr.mxu0 0.0
        %v4509 = vand.u32 %v3956, 4294901760
        %v4510 = vsub.f32 %v3956, %v4509
        %v4511 = vand.u32 %v4510, 4294901760
        %v4512 = vsub.f32 %v4510, %v4511
        %v4513 = vand.u32 %v4512, 4294901760
        %4514 = vmatpush1.xpose.msra.mxu0 %v4513
        %4515 = vmatprep.subr.mxu0 0.0
        %v4516 = vand.u32 %v3959, 4294901760
        %v4517 = vsub.f32 %v3959, %v4516
        %v4518 = vand.u32 %v4517, 4294901760
        %v4519 = vsub.f32 %v4517, %v4518
        %v4520 = vand.u32 %v4519, 4294901760
        %4521 = vmatpush1.xpose.msra.mxu0 %v4520
        %4522 = vmatprep.subr.mxu0 0.0
        %v4523 = vand.u32 %v3962, 4294901760
        %v4524 = vsub.f32 %v3962, %v4523
        %v4525 = vand.u32 %v4524, 4294901760
        %v4526 = vsub.f32 %v4524, %v4525
        %v4527 = vand.u32 %v4526, 4294901760
        %4528 = vmatpush1.xpose.msra.mxu0 %v4527
        %4529 = vmatprep.subr.mxu0 0.0
        %v4530 = vand.u32 %v3965, 4294901760
        %v4531 = vsub.f32 %v3965, %v4530
        %v4532 = vand.u32 %v4531, 4294901760
        %v4533 = vsub.f32 %v4531, %v4532
        %v4534 = vand.u32 %v4533, 4294901760
        %4535 = vmatpush1.xpose.msra.mxu0 %v4534
        %4536 = vmatprep.subr.mxu0 0.0
        %v4537 = vand.u32 %v3968, 4294901760
        %v4538 = vsub.f32 %v3968, %v4537
        %v4539 = vand.u32 %v4538, 4294901760
        %v4540 = vsub.f32 %v4538, %v4539
        %v4541 = vand.u32 %v4540, 4294901760
        %4542 = vmatpush1.xpose.msra.mxu0 %v4541
        %4543 = vmatprep.subr.mxu0 0.0
        %v4544 = vand.u32 %v3971, 4294901760
        %v4545 = vsub.f32 %v3971, %v4544
        %v4546 = vand.u32 %v4545, 4294901760
        %v4547 = vsub.f32 %v4545, %v4546
        %v4548 = vand.u32 %v4547, 4294901760
        %4549 = vmatpush1.xpose.msra.mxu0 %v4548
        %4550 = vmatprep.subr.mxu0 0.0
        %v4551 = vand.u32 %v3974, 4294901760
        %v4552 = vsub.f32 %v3974, %v4551
        %v4553 = vand.u32 %v4552, 4294901760
        %v4554 = vsub.f32 %v4552, %v4553
        %v4555 = vand.u32 %v4554, 4294901760
        %4556 = vmatpush1.xpose.msra.mxu0 %v4555
        %4557 = vmatprep.subr.mxu0 0.0
        %v4558 = vand.u32 %v3977, 4294901760
        %v4559 = vsub.f32 %v3977, %v4558
        %v4560 = vand.u32 %v4559, 4294901760
        %v4561 = vsub.f32 %v4559, %v4560
        %v4562 = vand.u32 %v4561, 4294901760
        %4563 = vmatpush1.xpose.msra.mxu0 %v4562
        %4564 = vmatprep.subr.mxu0 0.0
        %v4565 = vand.u32 %v3980, 4294901760
        %v4566 = vsub.f32 %v3980, %v4565
        %v4567 = vand.u32 %v4566, 4294901760
        %v4568 = vsub.f32 %v4566, %v4567
        %v4569 = vand.u32 %v4568, 4294901760
        %4570 = vmatpush1.xpose.msra.mxu0 %v4569
        %4571 = vmatprep.subr.mxu0 0.0
        %v4572 = vand.u32 %v3983, 4294901760
        %v4573 = vsub.f32 %v3983, %v4572
        %v4574 = vand.u32 %v4573, 4294901760
        %v4575 = vsub.f32 %v4573, %v4574
        %v4576 = vand.u32 %v4575, 4294901760
        %4577 = vmatpush1.xpose.msra.mxu0 %v4576
        %4578 = vmatprep.mubr.f32.mxu0 0.0
        %v4579 = vand.u32 %v3842, 4294901760
        %4580 = vmatmul.mubr.f32.gmra.mrb[0].mxu0 %v4579
        %v4581 = vpop.f32.mrb[0].mxu0
        %v4582 = vadd.f32 %v4185, %v4581
        %v4583 = vpop.f32.mrb[0].mxu0
        %v4584 = vadd.f32 %v4187, %v4583
        %4585 = vmatprep.mubr.f32.mxu0 0.0
        %v4586 = vand.u32 %v3845, 4294901760
        %4587 = vmatmul.mubr.f32.gmra.mrb[0].mxu0 %v4586
        %v4588 = vpop.f32.mrb[0].mxu0
        %v4589 = vadd.f32 %v4196, %v4588
        %v4590 = vpop.f32.mrb[0].mxu0
        %v4591 = vadd.f32 %v4198, %v4590
        %4592 = vmatprep.mubr.f32.mxu0 0.0
        %v4593 = vand.u32 %v3848, 4294901760
        %4594 = vmatmul.mubr.f32.gmra.mrb[0].mxu0 %v4593
        %v4595 = vpop.f32.mrb[0].mxu0
        %v4596 = vadd.f32 %v4207, %v4595
        %v4597 = vpop.f32.mrb[0].mxu0
        %v4598 = vadd.f32 %v4209, %v4597
        %4599 = vmatprep.mubr.f32.mxu0 0.0
        %v4600 = vand.u32 %v3851, 4294901760
        %4601 = vmatmul.mubr.f32.gmra.mrb[0].mxu0 %v4600
        %v4602 = vpop.f32.mrb[0].mxu0
        %v4603 = vadd.f32 %v4218, %v4602
        %v4604 = vpop.f32.mrb[0].mxu0
        %v4605 = vadd.f32 %v4220, %v4604
        %4606 = vmatprep.mubr.f32.mxu0 0.0
        %v4607 = vand.u32 %v3854, 4294901760
        %4608 = vmatmul.mubr.f32.gmra.mrb[0].mxu0 %v4607
        %v4609 = vpop.f32.mrb[0].mxu0
        %v4610 = vadd.f32 %v4229, %v4609
        %v4611 = vpop.f32.mrb[0].mxu0
        %v4612 = vadd.f32 %v4231, %v4611
        %4613 = vmatprep.mubr.f32.mxu0 0.0
        %v4614 = vand.u32 %v3857, 4294901760
        %4615 = vmatmul.mubr.f32.gmra.mrb[0].mxu0 %v4614
        %v4616 = vpop.f32.mrb[0].mxu0
        %v4617 = vadd.f32 %v4240, %v4616
        %v4618 = vpop.f32.mrb[0].mxu0
        %v4619 = vadd.f32 %v4242, %v4618
        %4620 = vmatprep.mubr.f32.mxu0 0.0
        %v4621 = vand.u32 %v3860, 4294901760
        %4622 = vmatmul.mubr.f32.gmra.mrb[0].mxu0 %v4621
        %v4623 = vpop.f32.mrb[0].mxu0
        %v4624 = vadd.f32 %v4251, %v4623
        %v4625 = vpop.f32.mrb[0].mxu0
        %v4626 = vadd.f32 %v4253, %v4625
        %4627 = vmatprep.mubr.f32.mxu0 0.0
        %v4628 = vand.u32 %v3863, 4294901760
        %4629 = vmatmul.mubr.f32.gmra.mrb[0].mxu0 %v4628
        %v4630 = vpop.f32.mrb[0].mxu0
        %v4631 = vadd.f32 %v4262, %v4630
        %v4632 = vpop.f32.mrb[0].mxu0
        %v4633 = vadd.f32 %v4264, %v4632
        %4634 = vmatprep.mubr.f32.mxu0 0.0
        %v4635 = vand.u32 %v3866, 4294901760
        %4636 = vmatmul.mubr.f32.gmra.mrb[0].mxu0 %v4635
        %v4637 = vpop.f32.mrb[0].mxu0
        %v4638 = vadd.f32 %v4273, %v4637
        %v4639 = vpop.f32.mrb[0].mxu0
        %v4640 = vadd.f32 %v4275, %v4639
        %4641 = vmatprep.mubr.f32.mxu0 0.0
        %v4642 = vand.u32 %v3869, 4294901760
        %4643 = vmatmul.mubr.f32.gmra.mrb[0].mxu0 %v4642
        %v4644 = vpop.f32.mrb[0].mxu0
        %v4645 = vadd.f32 %v4284, %v4644
        %v4646 = vpop.f32.mrb[0].mxu0
        %v4647 = vadd.f32 %v4286, %v4646
        %4648 = vmatprep.mubr.f32.mxu0 0.0
        %v4649 = vand.u32 %v3872, 4294901760
        %4650 = vmatmul.mubr.f32.gmra.mrb[0].mxu0 %v4649
        %v4651 = vpop.f32.mrb[0].mxu0
        %v4652 = vadd.f32 %v4295, %v4651
        %v4653 = vpop.f32.mrb[0].mxu0
        %v4654 = vadd.f32 %v4297, %v4653
        %4655 = vmatprep.mubr.f32.mxu0 0.0
        %v4656 = vand.u32 %v3875, 4294901760
        %4657 = vmatmul.mubr.f32.gmra.mrb[0].mxu0 %v4656
        %v4658 = vpop.f32.mrb[0].mxu0
        %v4659 = vadd.f32 %v4306, %v4658
        %v4660 = vpop.f32.mrb[0].mxu0
        %v4661 = vadd.f32 %v4308, %v4660
        %4662 = vmatprep.mubr.f32.mxu0 0.0
        %v4663 = vand.u32 %v3878, 4294901760
        %4664 = vmatmul.mubr.f32.gmra.mrb[0].mxu0 %v4663
        %v4665 = vpop.f32.mrb[0].mxu0
        %v4666 = vadd.f32 %v4317, %v4665
        %v4667 = vpop.f32.mrb[0].mxu0
        %v4668 = vadd.f32 %v4319, %v4667
        %4669 = vmatprep.mubr.f32.mxu0 0.0
        %v4670 = vand.u32 %v3881, 4294901760
        %4671 = vmatmul.mubr.f32.gmra.mrb[0].mxu0 %v4670
        %v4672 = vpop.f32.mrb[0].mxu0
        %v4673 = vadd.f32 %v4328, %v4672
        %v4674 = vpop.f32.mrb[0].mxu0
        %v4675 = vadd.f32 %v4330, %v4674
        %4676 = vmatprep.mubr.f32.mxu0 0.0
        %v4677 = vand.u32 %v3884, 4294901760
        %4678 = vmatmul.mubr.f32.gmra.mrb[0].mxu0 %v4677
        %v4679 = vpop.f32.mrb[0].mxu0
        %v4680 = vadd.f32 %v4339, %v4679
        %v4681 = vpop.f32.mrb[0].mxu0
        %v4682 = vadd.f32 %v4341, %v4681
        %4683 = vmatprep.mubr.f32.mxu0 0.0
        %v4684 = vand.u32 %v3887, 4294901760
        %4685 = vmatmul.mubr.f32.gmra.mrb[0].mxu0 %v4684
        %v4686 = vpop.f32.mrb[0].mxu0
        %v4687 = vadd.f32 %v4350, %v4686
        %v4688 = vpop.f32.mrb[0].mxu0
        %v4689 = vadd.f32 %v4352, %v4688
        %4690 = vdwg.mxu0
        %4691 = vmatprep.subr.mxu0 0.0
        %v4692 = vand.u32 %v3890, 4294901760
        %v4693 = vsub.f32 %v3890, %v4692
        %4694 = vmatpush1.xpose.msra.mxu0 %v4693
        %4695 = vmatprep.subr.mxu0 0.0
        %v4696 = vand.u32 %v3893, 4294901760
        %v4697 = vsub.f32 %v3893, %v4696
        %4698 = vmatpush1.xpose.msra.mxu0 %v4697
        %4699 = vmatprep.subr.mxu0 0.0
        %v4700 = vand.u32 %v3896, 4294901760
        %v4701 = vsub.f32 %v3896, %v4700
        %4702 = vmatpush1.xpose.msra.mxu0 %v4701
        %4703 = vmatprep.subr.mxu0 0.0
        %v4704 = vand.u32 %v3899, 4294901760
        %v4705 = vsub.f32 %v3899, %v4704
        %4706 = vmatpush1.xpose.msra.mxu0 %v4705
        %4707 = vmatprep.subr.mxu0 0.0
        %v4708 = vand.u32 %v3902, 4294901760
        %v4709 = vsub.f32 %v3902, %v4708
        %4710 = vmatpush1.xpose.msra.mxu0 %v4709
        %4711 = vmatprep.subr.mxu0 0.0
        %v4712 = vand.u32 %v3905, 4294901760
        %v4713 = vsub.f32 %v3905, %v4712
        %4714 = vmatpush1.xpose.msra.mxu0 %v4713
        %4715 = vmatprep.subr.mxu0 0.0
        %v4716 = vand.u32 %v3908, 4294901760
        %v4717 = vsub.f32 %v3908, %v4716
        %4718 = vmatpush1.xpose.msra.mxu0 %v4717
        %4719 = vmatprep.subr.mxu0 0.0
        %v4720 = vand.u32 %v3911, 4294901760
        %v4721 = vsub.f32 %v3911, %v4720
        %4722 = vmatpush1.xpose.msra.mxu0 %v4721
        %4723 = vmatprep.subr.mxu0 0.0
        %v4724 = vand.u32 %v3914, 4294901760
        %v4725 = vsub.f32 %v3914, %v4724
        %4726 = vmatpush1.xpose.msra.mxu0 %v4725
        %4727 = vmatprep.subr.mxu0 0.0
        %v4728 = vand.u32 %v3917, 4294901760
        %v4729 = vsub.f32 %v3917, %v4728
        %4730 = vmatpush1.xpose.msra.mxu0 %v4729
        %4731 = vmatprep.subr.mxu0 0.0
        %v4732 = vand.u32 %v3920, 4294901760
        %v4733 = vsub.f32 %v3920, %v4732
        %4734 = vmatpush1.xpose.msra.mxu0 %v4733
        %4735 = vmatprep.subr.mxu0 0.0
        %v4736 = vand.u32 %v3923, 4294901760
        %v4737 = vsub.f32 %v3923, %v4736
        %4738 = vmatpush1.xpose.msra.mxu0 %v4737
        %4739 = vmatprep.subr.mxu0 0.0
        %v4740 = vand.u32 %v3926, 4294901760
        %v4741 = vsub.f32 %v3926, %v4740
        %4742 = vmatpush1.xpose.msra.mxu0 %v4741
        %4743 = vmatprep.subr.mxu0 0.0
        %v4744 = vand.u32 %v3929, 4294901760
        %v4745 = vsub.f32 %v3929, %v4744
        %4746 = vmatpush1.xpose.msra.mxu0 %v4745
        %4747 = vmatprep.subr.mxu0 0.0
        %v4748 = vand.u32 %v3932, 4294901760
        %v4749 = vsub.f32 %v3932, %v4748
        %4750 = vmatpush1.xpose.msra.mxu0 %v4749
        %4751 = vmatprep.subr.mxu0 0.0
        %v4752 = vand.u32 %v3935, 4294901760
        %v4753 = vsub.f32 %v3935, %v4752
        %4754 = vmatpush1.xpose.msra.mxu0 %v4753
        %4755 = vmatprep.subr.mxu0 0.0
        %v4756 = vand.u32 %v3938, 4294901760
        %v4757 = vsub.f32 %v3938, %v4756
        %4758 = vmatpush1.xpose.msra.mxu0 %v4757
        %4759 = vmatprep.subr.mxu0 0.0
        %v4760 = vand.u32 %v3941, 4294901760
        %v4761 = vsub.f32 %v3941, %v4760
        %4762 = vmatpush1.xpose.msra.mxu0 %v4761
        %4763 = vmatprep.subr.mxu0 0.0
        %v4764 = vand.u32 %v3944, 4294901760
        %v4765 = vsub.f32 %v3944, %v4764
        %4766 = vmatpush1.xpose.msra.mxu0 %v4765
        %4767 = vmatprep.subr.mxu0 0.0
        %v4768 = vand.u32 %v3947, 4294901760
        %v4769 = vsub.f32 %v3947, %v4768
        %4770 = vmatpush1.xpose.msra.mxu0 %v4769
        %4771 = vmatprep.subr.mxu0 0.0
        %v4772 = vand.u32 %v3950, 4294901760
        %v4773 = vsub.f32 %v3950, %v4772
        %4774 = vmatpush1.xpose.msra.mxu0 %v4773
        %4775 = vmatprep.subr.mxu0 0.0
        %v4776 = vand.u32 %v3953, 4294901760
        %v4777 = vsub.f32 %v3953, %v4776
        %4778 = vmatpush1.xpose.msra.mxu0 %v4777
        %4779 = vmatprep.subr.mxu0 0.0
        %v4780 = vand.u32 %v3956, 4294901760
        %v4781 = vsub.f32 %v3956, %v4780
        %4782 = vmatpush1.xpose.msra.mxu0 %v4781
        %4783 = vmatprep.subr.mxu0 0.0
        %v4784 = vand.u32 %v3959, 4294901760
        %v4785 = vsub.f32 %v3959, %v4784
        %4786 = vmatpush1.xpose.msra.mxu0 %v4785
        %4787 = vmatprep.subr.mxu0 0.0
        %v4788 = vand.u32 %v3962, 4294901760
        %v4789 = vsub.f32 %v3962, %v4788
        %4790 = vmatpush1.xpose.msra.mxu0 %v4789
        %4791 = vmatprep.subr.mxu0 0.0
        %v4792 = vand.u32 %v3965, 4294901760
        %v4793 = vsub.f32 %v3965, %v4792
        %4794 = vmatpush1.xpose.msra.mxu0 %v4793
        %4795 = vmatprep.subr.mxu0 0.0
        %v4796 = vand.u32 %v3968, 4294901760
        %v4797 = vsub.f32 %v3968, %v4796
        %4798 = vmatpush1.xpose.msra.mxu0 %v4797
        %4799 = vmatprep.subr.mxu0 0.0
        %v4800 = vand.u32 %v3971, 4294901760
        %v4801 = vsub.f32 %v3971, %v4800
        %4802 = vmatpush1.xpose.msra.mxu0 %v4801
        %4803 = vmatprep.subr.mxu0 0.0
        %v4804 = vand.u32 %v3974, 4294901760
        %v4805 = vsub.f32 %v3974, %v4804
        %4806 = vmatpush1.xpose.msra.mxu0 %v4805
        %4807 = vmatprep.subr.mxu0 0.0
        %v4808 = vand.u32 %v3977, 4294901760
        %v4809 = vsub.f32 %v3977, %v4808
        %4810 = vmatpush1.xpose.msra.mxu0 %v4809
        %4811 = vmatprep.subr.mxu0 0.0
        %v4812 = vand.u32 %v3980, 4294901760
        %v4813 = vsub.f32 %v3980, %v4812
        %4814 = vmatpush1.xpose.msra.mxu0 %v4813
        %4815 = vmatprep.subr.mxu0 0.0
        %v4816 = vand.u32 %v3983, 4294901760
        %v4817 = vsub.f32 %v3983, %v4816
        %4818 = vmatpush1.xpose.msra.mxu0 %v4817
        %4819 = vmatprep.mubr.f32.mxu0 0.0
        %v4820 = vand.u32 %v3842, 4294901760
        %v4821 = vsub.f32 %v3842, %v4820
        %4822 = vmatmul.mubr.f32.gmra.mrb[0].mxu0 %v4821
        %v4823 = vpop.f32.mrb[0].mxu0
        %v4824 = vadd.f32 %v4582, %v4823
        %v4825 = vpop.f32.mrb[0].mxu0
        %v4826 = vadd.f32 %v4584, %v4825
        %4827 = vmatprep.mubr.f32.mxu0 0.0
        %v4828 = vand.u32 %v3845, 4294901760
        %v4829 = vsub.f32 %v3845, %v4828
        %4830 = vmatmul.mubr.f32.gmra.mrb[0].mxu0 %v4829
        %v4831 = vpop.f32.mrb[0].mxu0
        %v4832 = vadd.f32 %v4589, %v4831
        %v4833 = vpop.f32.mrb[0].mxu0
        %v4834 = vadd.f32 %v4591, %v4833
        %4835 = vmatprep.mubr.f32.mxu0 0.0
        %v4836 = vand.u32 %v3848, 4294901760
        %v4837 = vsub.f32 %v3848, %v4836
        %4838 = vmatmul.mubr.f32.gmra.mrb[0].mxu0 %v4837
        %v4839 = vpop.f32.mrb[0].mxu0
        %v4840 = vadd.f32 %v4596, %v4839
        %v4841 = vpop.f32.mrb[0].mxu0
        %v4842 = vadd.f32 %v4598, %v4841
        %4843 = vmatprep.mubr.f32.mxu0 0.0
        %v4844 = vand.u32 %v3851, 4294901760
        %v4845 = vsub.f32 %v3851, %v4844
        %4846 = vmatmul.mubr.f32.gmra.mrb[0].mxu0 %v4845
        %v4847 = vpop.f32.mrb[0].mxu0
        %v4848 = vadd.f32 %v4603, %v4847
        %v4849 = vpop.f32.mrb[0].mxu0
        %v4850 = vadd.f32 %v4605, %v4849
        %4851 = vmatprep.mubr.f32.mxu0 0.0
        %v4852 = vand.u32 %v3854, 4294901760
        %v4853 = vsub.f32 %v3854, %v4852
        %4854 = vmatmul.mubr.f32.gmra.mrb[0].mxu0 %v4853
        %v4855 = vpop.f32.mrb[0].mxu0
        %v4856 = vadd.f32 %v4610, %v4855
        %v4857 = vpop.f32.mrb[0].mxu0
        %v4858 = vadd.f32 %v4612, %v4857
        %4859 = vmatprep.mubr.f32.mxu0 0.0
        %v4860 = vand.u32 %v3857, 4294901760
        %v4861 = vsub.f32 %v3857, %v4860
        %4862 = vmatmul.mubr.f32.gmra.mrb[0].mxu0 %v4861
        %v4863 = vpop.f32.mrb[0].mxu0
        %v4864 = vadd.f32 %v4617, %v4863
        %v4865 = vpop.f32.mrb[0].mxu0
        %v4866 = vadd.f32 %v4619, %v4865
        %4867 = vmatprep.mubr.f32.mxu0 0.0
        %v4868 = vand.u32 %v3860, 4294901760
        %v4869 = vsub.f32 %v3860, %v4868
        %4870 = vmatmul.mubr.f32.gmra.mrb[0].mxu0 %v4869
        %v4871 = vpop.f32.mrb[0].mxu0
        %v4872 = vadd.f32 %v4624, %v4871
        %v4873 = vpop.f32.mrb[0].mxu0
        %v4874 = vadd.f32 %v4626, %v4873
        %4875 = vmatprep.mubr.f32.mxu0 0.0
        %v4876 = vand.u32 %v3863, 4294901760
        %v4877 = vsub.f32 %v3863, %v4876
        %4878 = vmatmul.mubr.f32.gmra.mrb[0].mxu0 %v4877
        %v4879 = vpop.f32.mrb[0].mxu0
        %v4880 = vadd.f32 %v4631, %v4879
        %v4881 = vpop.f32.mrb[0].mxu0
        %v4882 = vadd.f32 %v4633, %v4881
        %4883 = vmatprep.mubr.f32.mxu0 0.0
        %v4884 = vand.u32 %v3866, 4294901760
        %v4885 = vsub.f32 %v3866, %v4884
        %4886 = vmatmul.mubr.f32.gmra.mrb[0].mxu0 %v4885
        %v4887 = vpop.f32.mrb[0].mxu0
        %v4888 = vadd.f32 %v4638, %v4887
        %v4889 = vpop.f32.mrb[0].mxu0
        %v4890 = vadd.f32 %v4640, %v4889
        %4891 = vmatprep.mubr.f32.mxu0 0.0
        %v4892 = vand.u32 %v3869, 4294901760
        %v4893 = vsub.f32 %v3869, %v4892
        %4894 = vmatmul.mubr.f32.gmra.mrb[0].mxu0 %v4893
        %v4895 = vpop.f32.mrb[0].mxu0
        %v4896 = vadd.f32 %v4645, %v4895
        %v4897 = vpop.f32.mrb[0].mxu0
        %v4898 = vadd.f32 %v4647, %v4897
        %4899 = vmatprep.mubr.f32.mxu0 0.0
        %v4900 = vand.u32 %v3872, 4294901760
        %v4901 = vsub.f32 %v3872, %v4900
        %4902 = vmatmul.mubr.f32.gmra.mrb[0].mxu0 %v4901
        %v4903 = vpop.f32.mrb[0].mxu0
        %v4904 = vadd.f32 %v4652, %v4903
        %v4905 = vpop.f32.mrb[0].mxu0
        %v4906 = vadd.f32 %v4654, %v4905
        %4907 = vmatprep.mubr.f32.mxu0 0.0
        %v4908 = vand.u32 %v3875, 4294901760
        %v4909 = vsub.f32 %v3875, %v4908
        %4910 = vmatmul.mubr.f32.gmra.mrb[0].mxu0 %v4909
        %v4911 = vpop.f32.mrb[0].mxu0
        %v4912 = vadd.f32 %v4659, %v4911
        %v4913 = vpop.f32.mrb[0].mxu0
        %v4914 = vadd.f32 %v4661, %v4913
        %4915 = vmatprep.mubr.f32.mxu0 0.0
        %v4916 = vand.u32 %v3878, 4294901760
        %v4917 = vsub.f32 %v3878, %v4916
        %4918 = vmatmul.mubr.f32.gmra.mrb[0].mxu0 %v4917
        %v4919 = vpop.f32.mrb[0].mxu0
        %v4920 = vadd.f32 %v4666, %v4919
        %v4921 = vpop.f32.mrb[0].mxu0
        %v4922 = vadd.f32 %v4668, %v4921
        %4923 = vmatprep.mubr.f32.mxu0 0.0
        %v4924 = vand.u32 %v3881, 4294901760
        %v4925 = vsub.f32 %v3881, %v4924
        %4926 = vmatmul.mubr.f32.gmra.mrb[0].mxu0 %v4925
        %v4927 = vpop.f32.mrb[0].mxu0
        %v4928 = vadd.f32 %v4673, %v4927
        %v4929 = vpop.f32.mrb[0].mxu0
        %v4930 = vadd.f32 %v4675, %v4929
        %4931 = vmatprep.mubr.f32.mxu0 0.0
        %v4932 = vand.u32 %v3884, 4294901760
        %v4933 = vsub.f32 %v3884, %v4932
        %4934 = vmatmul.mubr.f32.gmra.mrb[0].mxu0 %v4933
        %v4935 = vpop.f32.mrb[0].mxu0
        %v4936 = vadd.f32 %v4680, %v4935
        %v4937 = vpop.f32.mrb[0].mxu0
        %v4938 = vadd.f32 %v4682, %v4937
        %4939 = vmatprep.mubr.f32.mxu0 0.0
        %v4940 = vand.u32 %v3887, 4294901760
        %v4941 = vsub.f32 %v3887, %v4940
        %4942 = vmatmul.mubr.f32.gmra.mrb[0].mxu0 %v4941
        %v4943 = vpop.f32.mrb[0].mxu0
        %v4944 = vadd.f32 %v4687, %v4943
        %v4945 = vpop.f32.mrb[0].mxu0
        %v4946 = vadd.f32 %v4689, %v4945
        %4947 = vdwg.mxu0
        %4948 = vmatprep.subr.mxu0 0.0
        %v4949 = vand.u32 %v3890, 4294901760
        %4950 = vmatpush1.xpose.msra.mxu0 %v4949
        %4951 = vmatprep.subr.mxu0 0.0
        %v4952 = vand.u32 %v3893, 4294901760
        %4953 = vmatpush1.xpose.msra.mxu0 %v4952
        %4954 = vmatprep.subr.mxu0 0.0
        %v4955 = vand.u32 %v3896, 4294901760
        %4956 = vmatpush1.xpose.msra.mxu0 %v4955
        %4957 = vmatprep.subr.mxu0 0.0
        %v4958 = vand.u32 %v3899, 4294901760
        %4959 = vmatpush1.xpose.msra.mxu0 %v4958
        %4960 = vmatprep.subr.mxu0 0.0
        %v4961 = vand.u32 %v3902, 4294901760
        %4962 = vmatpush1.xpose.msra.mxu0 %v4961
        %4963 = vmatprep.subr.mxu0 0.0
        %v4964 = vand.u32 %v3905, 4294901760
        %4965 = vmatpush1.xpose.msra.mxu0 %v4964
        %4966 = vmatprep.subr.mxu0 0.0
        %v4967 = vand.u32 %v3908, 4294901760
        %4968 = vmatpush1.xpose.msra.mxu0 %v4967
        %4969 = vmatprep.subr.mxu0 0.0
        %v4970 = vand.u32 %v3911, 4294901760
        %4971 = vmatpush1.xpose.msra.mxu0 %v4970
        %4972 = vmatprep.subr.mxu0 0.0
        %v4973 = vand.u32 %v3914, 4294901760
        %4974 = vmatpush1.xpose.msra.mxu0 %v4973
        %4975 = vmatprep.subr.mxu0 0.0
        %v4976 = vand.u32 %v3917, 4294901760
        %4977 = vmatpush1.xpose.msra.mxu0 %v4976
        %4978 = vmatprep.subr.mxu0 0.0
        %v4979 = vand.u32 %v3920, 4294901760
        %4980 = vmatpush1.xpose.msra.mxu0 %v4979
        %4981 = vmatprep.subr.mxu0 0.0
        %v4982 = vand.u32 %v3923, 4294901760
        %4983 = vmatpush1.xpose.msra.mxu0 %v4982
        %4984 = vmatprep.subr.mxu0 0.0
        %v4985 = vand.u32 %v3926, 4294901760
        %4986 = vmatpush1.xpose.msra.mxu0 %v4985
        %4987 = vmatprep.subr.mxu0 0.0
        %v4988 = vand.u32 %v3929, 4294901760
        %4989 = vmatpush1.xpose.msra.mxu0 %v4988
        %4990 = vmatprep.subr.mxu0 0.0
        %v4991 = vand.u32 %v3932, 4294901760
        %4992 = vmatpush1.xpose.msra.mxu0 %v4991
        %4993 = vmatprep.subr.mxu0 0.0
        %v4994 = vand.u32 %v3935, 4294901760
        %4995 = vmatpush1.xpose.msra.mxu0 %v4994
        %4996 = vmatprep.subr.mxu0 0.0
        %v4997 = vand.u32 %v3938, 4294901760
        %4998 = vmatpush1.xpose.msra.mxu0 %v4997
        %4999 = vmatprep.subr.mxu0 0.0
        %v5000 = vand.u32 %v3941, 4294901760
        %5001 = vmatpush1.xpose.msra.mxu0 %v5000
        %5002 = vmatprep.subr.mxu0 0.0
        %v5003 = vand.u32 %v3944, 4294901760
        %5004 = vmatpush1.xpose.msra.mxu0 %v5003
        %5005 = vmatprep.subr.mxu0 0.0
        %v5006 = vand.u32 %v3947, 4294901760
        %5007 = vmatpush1.xpose.msra.mxu0 %v5006
        %5008 = vmatprep.subr.mxu0 0.0
        %v5009 = vand.u32 %v3950, 4294901760
        %5010 = vmatpush1.xpose.msra.mxu0 %v5009
        %5011 = vmatprep.subr.mxu0 0.0
        %v5012 = vand.u32 %v3953, 4294901760
        %5013 = vmatpush1.xpose.msra.mxu0 %v5012
        %5014 = vmatprep.subr.mxu0 0.0
        %v5015 = vand.u32 %v3956, 4294901760
        %5016 = vmatpush1.xpose.msra.mxu0 %v5015
        %5017 = vmatprep.subr.mxu0 0.0
        %v5018 = vand.u32 %v3959, 4294901760
        %5019 = vmatpush1.xpose.msra.mxu0 %v5018
        %5020 = vmatprep.subr.mxu0 0.0
        %v5021 = vand.u32 %v3962, 4294901760
        %5022 = vmatpush1.xpose.msra.mxu0 %v5021
        %5023 = vmatprep.subr.mxu0 0.0
        %v5024 = vand.u32 %v3965, 4294901760
        %5025 = vmatpush1.xpose.msra.mxu0 %v5024
        %5026 = vmatprep.subr.mxu0 0.0
        %v5027 = vand.u32 %v3968, 4294901760
        %5028 = vmatpush1.xpose.msra.mxu0 %v5027
        %5029 = vmatprep.subr.mxu0 0.0
        %v5030 = vand.u32 %v3971, 4294901760
        %5031 = vmatpush1.xpose.msra.mxu0 %v5030
        %5032 = vmatprep.subr.mxu0 0.0
        %v5033 = vand.u32 %v3974, 4294901760
        %5034 = vmatpush1.xpose.msra.mxu0 %v5033
        %5035 = vmatprep.subr.mxu0 0.0
        %v5036 = vand.u32 %v3977, 4294901760
        %5037 = vmatpush1.xpose.msra.mxu0 %v5036
        %5038 = vmatprep.subr.mxu0 0.0
        %v5039 = vand.u32 %v3980, 4294901760
        %5040 = vmatpush1.xpose.msra.mxu0 %v5039
        %5041 = vmatprep.subr.mxu0 0.0
        %v5042 = vand.u32 %v3983, 4294901760
        %5043 = vmatpush1.xpose.msra.mxu0 %v5042
        %5044 = vmatprep.mubr.f32.mxu0 0.0
        %v5045 = vand.u32 %v3842, 4294901760
        %v5046 = vsub.f32 %v3842, %v5045
        %v5047 = vand.u32 %v5046, 4294901760
        %5048 = vmatmul.mubr.f32.gmra.mrb[0].mxu0 %v5047
        %v5049 = vpop.f32.mrb[0].mxu0
        %v5050 = vadd.f32 %v4824, %v5049
        %v5051 = vpop.f32.mrb[0].mxu0
        %v5052 = vadd.f32 %v4826, %v5051
        %5053 = vmatprep.mubr.f32.mxu0 0.0
        %v5054 = vand.u32 %v3845, 4294901760
        %v5055 = vsub.f32 %v3845, %v5054
        %v5056 = vand.u32 %v5055, 4294901760
        %5057 = vmatmul.mubr.f32.gmra.mrb[0].mxu0 %v5056
        %v5058 = vpop.f32.mrb[0].mxu0
        %v5059 = vadd.f32 %v4832, %v5058
        %v5060 = vpop.f32.mrb[0].mxu0
        %v5061 = vadd.f32 %v4834, %v5060
        %5062 = vmatprep.mubr.f32.mxu0 0.0
        %v5063 = vand.u32 %v3848, 4294901760
        %v5064 = vsub.f32 %v3848, %v5063
        %v5065 = vand.u32 %v5064, 4294901760
        %5066 = vmatmul.mubr.f32.gmra.mrb[0].mxu0 %v5065
        %v5067 = vpop.f32.mrb[0].mxu0
        %v5068 = vadd.f32 %v4840, %v5067
        %v5069 = vpop.f32.mrb[0].mxu0
        %v5070 = vadd.f32 %v4842, %v5069
        %5071 = vmatprep.mubr.f32.mxu0 0.0
        %v5072 = vand.u32 %v3851, 4294901760
        %v5073 = vsub.f32 %v3851, %v5072
        %v5074 = vand.u32 %v5073, 4294901760
        %5075 = vmatmul.mubr.f32.gmra.mrb[0].mxu0 %v5074
        %v5076 = vpop.f32.mrb[0].mxu0
        %v5077 = vadd.f32 %v4848, %v5076
        %v5078 = vpop.f32.mrb[0].mxu0
        %v5079 = vadd.f32 %v4850, %v5078
        %5080 = vmatprep.mubr.f32.mxu0 0.0
        %v5081 = vand.u32 %v3854, 4294901760
        %v5082 = vsub.f32 %v3854, %v5081
        %v5083 = vand.u32 %v5082, 4294901760
        %5084 = vmatmul.mubr.f32.gmra.mrb[0].mxu0 %v5083
        %v5085 = vpop.f32.mrb[0].mxu0
        %v5086 = vadd.f32 %v4856, %v5085
        %v5087 = vpop.f32.mrb[0].mxu0
        %v5088 = vadd.f32 %v4858, %v5087
        %5089 = vmatprep.mubr.f32.mxu0 0.0
        %v5090 = vand.u32 %v3857, 4294901760
        %v5091 = vsub.f32 %v3857, %v5090
        %v5092 = vand.u32 %v5091, 4294901760
        %5093 = vmatmul.mubr.f32.gmra.mrb[0].mxu0 %v5092
        %v5094 = vpop.f32.mrb[0].mxu0
        %v5095 = vadd.f32 %v4864, %v5094
        %v5096 = vpop.f32.mrb[0].mxu0
        %v5097 = vadd.f32 %v4866, %v5096
        %5098 = vmatprep.mubr.f32.mxu0 0.0
        %v5099 = vand.u32 %v3860, 4294901760
        %v5100 = vsub.f32 %v3860, %v5099
        %v5101 = vand.u32 %v5100, 4294901760
        %5102 = vmatmul.mubr.f32.gmra.mrb[0].mxu0 %v5101
        %v5103 = vpop.f32.mrb[0].mxu0
        %v5104 = vadd.f32 %v4872, %v5103
        %v5105 = vpop.f32.mrb[0].mxu0
        %v5106 = vadd.f32 %v4874, %v5105
        %5107 = vmatprep.mubr.f32.mxu0 0.0
        %v5108 = vand.u32 %v3863, 4294901760
        %v5109 = vsub.f32 %v3863, %v5108
        %v5110 = vand.u32 %v5109, 4294901760
        %5111 = vmatmul.mubr.f32.gmra.mrb[0].mxu0 %v5110
        %v5112 = vpop.f32.mrb[0].mxu0
        %v5113 = vadd.f32 %v4880, %v5112
        %v5114 = vpop.f32.mrb[0].mxu0
        %v5115 = vadd.f32 %v4882, %v5114
        %5116 = vmatprep.mubr.f32.mxu0 0.0
        %v5117 = vand.u32 %v3866, 4294901760
        %v5118 = vsub.f32 %v3866, %v5117
        %v5119 = vand.u32 %v5118, 4294901760
        %5120 = vmatmul.mubr.f32.gmra.mrb[0].mxu0 %v5119
        %v5121 = vpop.f32.mrb[0].mxu0
        %v5122 = vadd.f32 %v4888, %v5121
        %v5123 = vpop.f32.mrb[0].mxu0
        %v5124 = vadd.f32 %v4890, %v5123
        %5125 = vmatprep.mubr.f32.mxu0 0.0
        %v5126 = vand.u32 %v3869, 4294901760
        %v5127 = vsub.f32 %v3869, %v5126
        %v5128 = vand.u32 %v5127, 4294901760
        %5129 = vmatmul.mubr.f32.gmra.mrb[0].mxu0 %v5128
        %v5130 = vpop.f32.mrb[0].mxu0
        %v5131 = vadd.f32 %v4896, %v5130
        %v5132 = vpop.f32.mrb[0].mxu0
        %v5133 = vadd.f32 %v4898, %v5132
        %5134 = vmatprep.mubr.f32.mxu0 0.0
        %v5135 = vand.u32 %v3872, 4294901760
        %v5136 = vsub.f32 %v3872, %v5135
        %v5137 = vand.u32 %v5136, 4294901760
        %5138 = vmatmul.mubr.f32.gmra.mrb[0].mxu0 %v5137
        %v5139 = vpop.f32.mrb[0].mxu0
        %v5140 = vadd.f32 %v4904, %v5139
        %v5141 = vpop.f32.mrb[0].mxu0
        %v5142 = vadd.f32 %v4906, %v5141
        %5143 = vmatprep.mubr.f32.mxu0 0.0
        %v5144 = vand.u32 %v3875, 4294901760
        %v5145 = vsub.f32 %v3875, %v5144
        %v5146 = vand.u32 %v5145, 4294901760
        %5147 = vmatmul.mubr.f32.gmra.mrb[0].mxu0 %v5146
        %v5148 = vpop.f32.mrb[0].mxu0
        %v5149 = vadd.f32 %v4912, %v5148
        %v5150 = vpop.f32.mrb[0].mxu0
        %v5151 = vadd.f32 %v4914, %v5150
        %5152 = vmatprep.mubr.f32.mxu0 0.0
        %v5153 = vand.u32 %v3878, 4294901760
        %v5154 = vsub.f32 %v3878, %v5153
        %v5155 = vand.u32 %v5154, 4294901760
        %5156 = vmatmul.mubr.f32.gmra.mrb[0].mxu0 %v5155
        %v5157 = vpop.f32.mrb[0].mxu0
        %v5158 = vadd.f32 %v4920, %v5157
        %v5159 = vpop.f32.mrb[0].mxu0
        %v5160 = vadd.f32 %v4922, %v5159
        %5161 = vmatprep.mubr.f32.mxu0 0.0
        %v5162 = vand.u32 %v3881, 4294901760
        %v5163 = vsub.f32 %v3881, %v5162
        %v5164 = vand.u32 %v5163, 4294901760
        %5165 = vmatmul.mubr.f32.gmra.mrb[0].mxu0 %v5164
        %v5166 = vpop.f32.mrb[0].mxu0
        %v5167 = vadd.f32 %v4928, %v5166
        %v5168 = vpop.f32.mrb[0].mxu0
        %v5169 = vadd.f32 %v4930, %v5168
        %5170 = vmatprep.mubr.f32.mxu0 0.0
        %v5171 = vand.u32 %v3884, 4294901760
        %v5172 = vsub.f32 %v3884, %v5171
        %v5173 = vand.u32 %v5172, 4294901760
        %5174 = vmatmul.mubr.f32.gmra.mrb[0].mxu0 %v5173
        %v5175 = vpop.f32.mrb[0].mxu0
        %v5176 = vadd.f32 %v4936, %v5175
        %v5177 = vpop.f32.mrb[0].mxu0
        %v5178 = vadd.f32 %v4938, %v5177
        %5179 = vmatprep.mubr.f32.mxu0 0.0
        %v5180 = vand.u32 %v3887, 4294901760
        %v5181 = vsub.f32 %v3887, %v5180
        %v5182 = vand.u32 %v5181, 4294901760
        %5183 = vmatmul.mubr.f32.gmra.mrb[0].mxu0 %v5182
        %v5184 = vpop.f32.mrb[0].mxu0
        %v5185 = vadd.f32 %v4944, %v5184
        %v5186 = vpop.f32.mrb[0].mxu0
        %v5187 = vadd.f32 %v4946, %v5186
        %5188 = vdwg.mxu0
        %5189 = vmatprep.subr.mxu0 0.0
        %v5190 = vand.u32 %v3890, 4294901760
        %v5191 = vsub.f32 %v3890, %v5190
        %v5192 = vand.u32 %v5191, 4294901760
        %5193 = vmatpush1.xpose.msra.mxu0 %v5192
        %5194 = vmatprep.subr.mxu0 0.0
        %v5195 = vand.u32 %v3893, 4294901760
        %v5196 = vsub.f32 %v3893, %v5195
        %v5197 = vand.u32 %v5196, 4294901760
        %5198 = vmatpush1.xpose.msra.mxu0 %v5197
        %5199 = vmatprep.subr.mxu0 0.0
        %v5200 = vand.u32 %v3896, 4294901760
        %v5201 = vsub.f32 %v3896, %v5200
        %v5202 = vand.u32 %v5201, 4294901760
        %5203 = vmatpush1.xpose.msra.mxu0 %v5202
        %5204 = vmatprep.subr.mxu0 0.0
        %v5205 = vand.u32 %v3899, 4294901760
        %v5206 = vsub.f32 %v3899, %v5205
        %v5207 = vand.u32 %v5206, 4294901760
        %5208 = vmatpush1.xpose.msra.mxu0 %v5207
        %5209 = vmatprep.subr.mxu0 0.0
        %v5210 = vand.u32 %v3902, 4294901760
        %v5211 = vsub.f32 %v3902, %v5210
        %v5212 = vand.u32 %v5211, 4294901760
        %5213 = vmatpush1.xpose.msra.mxu0 %v5212
        %5214 = vmatprep.subr.mxu0 0.0
        %v5215 = vand.u32 %v3905, 4294901760
        %v5216 = vsub.f32 %v3905, %v5215
        %v5217 = vand.u32 %v5216, 4294901760
        %5218 = vmatpush1.xpose.msra.mxu0 %v5217
        %5219 = vmatprep.subr.mxu0 0.0
        %v5220 = vand.u32 %v3908, 4294901760
        %v5221 = vsub.f32 %v3908, %v5220
        %v5222 = vand.u32 %v5221, 4294901760
        %5223 = vmatpush1.xpose.msra.mxu0 %v5222
        %5224 = vmatprep.subr.mxu0 0.0
        %v5225 = vand.u32 %v3911, 4294901760
        %v5226 = vsub.f32 %v3911, %v5225
        %v5227 = vand.u32 %v5226, 4294901760
        %5228 = vmatpush1.xpose.msra.mxu0 %v5227
        %5229 = vmatprep.subr.mxu0 0.0
        %v5230 = vand.u32 %v3914, 4294901760
        %v5231 = vsub.f32 %v3914, %v5230
        %v5232 = vand.u32 %v5231, 4294901760
        %5233 = vmatpush1.xpose.msra.mxu0 %v5232
        %5234 = vmatprep.subr.mxu0 0.0
        %v5235 = vand.u32 %v3917, 4294901760
        %v5236 = vsub.f32 %v3917, %v5235
        %v5237 = vand.u32 %v5236, 4294901760
        %5238 = vmatpush1.xpose.msra.mxu0 %v5237
        %5239 = vmatprep.subr.mxu0 0.0
        %v5240 = vand.u32 %v3920, 4294901760
        %v5241 = vsub.f32 %v3920, %v5240
        %v5242 = vand.u32 %v5241, 4294901760
        %5243 = vmatpush1.xpose.msra.mxu0 %v5242
        %5244 = vmatprep.subr.mxu0 0.0
        %v5245 = vand.u32 %v3923, 4294901760
        %v5246 = vsub.f32 %v3923, %v5245
        %v5247 = vand.u32 %v5246, 4294901760
        %5248 = vmatpush1.xpose.msra.mxu0 %v5247
        %5249 = vmatprep.subr.mxu0 0.0
        %v5250 = vand.u32 %v3926, 4294901760
        %v5251 = vsub.f32 %v3926, %v5250
        %v5252 = vand.u32 %v5251, 4294901760
        %5253 = vmatpush1.xpose.msra.mxu0 %v5252
        %5254 = vmatprep.subr.mxu0 0.0
        %v5255 = vand.u32 %v3929, 4294901760
        %v5256 = vsub.f32 %v3929, %v5255
        %v5257 = vand.u32 %v5256, 4294901760
        %5258 = vmatpush1.xpose.msra.mxu0 %v5257
        %5259 = vmatprep.subr.mxu0 0.0
        %v5260 = vand.u32 %v3932, 4294901760
        %v5261 = vsub.f32 %v3932, %v5260
        %v5262 = vand.u32 %v5261, 4294901760
        %5263 = vmatpush1.xpose.msra.mxu0 %v5262
        %5264 = vmatprep.subr.mxu0 0.0
        %v5265 = vand.u32 %v3935, 4294901760
        %v5266 = vsub.f32 %v3935, %v5265
        %v5267 = vand.u32 %v5266, 4294901760
        %5268 = vmatpush1.xpose.msra.mxu0 %v5267
        %5269 = vmatprep.subr.mxu0 0.0
        %v5270 = vand.u32 %v3938, 4294901760
        %v5271 = vsub.f32 %v3938, %v5270
        %v5272 = vand.u32 %v5271, 4294901760
        %5273 = vmatpush1.xpose.msra.mxu0 %v5272
        %5274 = vmatprep.subr.mxu0 0.0
        %v5275 = vand.u32 %v3941, 4294901760
        %v5276 = vsub.f32 %v3941, %v5275
        %v5277 = vand.u32 %v5276, 4294901760
        %5278 = vmatpush1.xpose.msra.mxu0 %v5277
        %5279 = vmatprep.subr.mxu0 0.0
        %v5280 = vand.u32 %v3944, 4294901760
        %v5281 = vsub.f32 %v3944, %v5280
        %v5282 = vand.u32 %v5281, 4294901760
        %5283 = vmatpush1.xpose.msra.mxu0 %v5282
        %5284 = vmatprep.subr.mxu0 0.0
        %v5285 = vand.u32 %v3947, 4294901760
        %v5286 = vsub.f32 %v3947, %v5285
        %v5287 = vand.u32 %v5286, 4294901760
        %5288 = vmatpush1.xpose.msra.mxu0 %v5287
        %5289 = vmatprep.subr.mxu0 0.0
        %v5290 = vand.u32 %v3950, 4294901760
        %v5291 = vsub.f32 %v3950, %v5290
        %v5292 = vand.u32 %v5291, 4294901760
        %5293 = vmatpush1.xpose.msra.mxu0 %v5292
        %5294 = vmatprep.subr.mxu0 0.0
        %v5295 = vand.u32 %v3953, 4294901760
        %v5296 = vsub.f32 %v3953, %v5295
        %v5297 = vand.u32 %v5296, 4294901760
        %5298 = vmatpush1.xpose.msra.mxu0 %v5297
        %5299 = vmatprep.subr.mxu0 0.0
        %v5300 = vand.u32 %v3956, 4294901760
        %v5301 = vsub.f32 %v3956, %v5300
        %v5302 = vand.u32 %v5301, 4294901760
        %5303 = vmatpush1.xpose.msra.mxu0 %v5302
        %5304 = vmatprep.subr.mxu0 0.0
        %v5305 = vand.u32 %v3959, 4294901760
        %v5306 = vsub.f32 %v3959, %v5305
        %v5307 = vand.u32 %v5306, 4294901760
        %5308 = vmatpush1.xpose.msra.mxu0 %v5307
        %5309 = vmatprep.subr.mxu0 0.0
        %v5310 = vand.u32 %v3962, 4294901760
        %v5311 = vsub.f32 %v3962, %v5310
        %v5312 = vand.u32 %v5311, 4294901760
        %5313 = vmatpush1.xpose.msra.mxu0 %v5312
        %5314 = vmatprep.subr.mxu0 0.0
        %v5315 = vand.u32 %v3965, 4294901760
        %v5316 = vsub.f32 %v3965, %v5315
        %v5317 = vand.u32 %v5316, 4294901760
        %5318 = vmatpush1.xpose.msra.mxu0 %v5317
        %5319 = vmatprep.subr.mxu0 0.0
        %v5320 = vand.u32 %v3968, 4294901760
        %v5321 = vsub.f32 %v3968, %v5320
        %v5322 = vand.u32 %v5321, 4294901760
        %5323 = vmatpush1.xpose.msra.mxu0 %v5322
        %5324 = vmatprep.subr.mxu0 0.0
        %v5325 = vand.u32 %v3971, 4294901760
        %v5326 = vsub.f32 %v3971, %v5325
        %v5327 = vand.u32 %v5326, 4294901760
        %5328 = vmatpush1.xpose.msra.mxu0 %v5327
        %5329 = vmatprep.subr.mxu0 0.0
        %v5330 = vand.u32 %v3974, 4294901760
        %v5331 = vsub.f32 %v3974, %v5330
        %v5332 = vand.u32 %v5331, 4294901760
        %5333 = vmatpush1.xpose.msra.mxu0 %v5332
        %5334 = vmatprep.subr.mxu0 0.0
        %v5335 = vand.u32 %v3977, 4294901760
        %v5336 = vsub.f32 %v3977, %v5335
        %v5337 = vand.u32 %v5336, 4294901760
        %5338 = vmatpush1.xpose.msra.mxu0 %v5337
        %5339 = vmatprep.subr.mxu0 0.0
        %v5340 = vand.u32 %v3980, 4294901760
        %v5341 = vsub.f32 %v3980, %v5340
        %v5342 = vand.u32 %v5341, 4294901760
        %5343 = vmatpush1.xpose.msra.mxu0 %v5342
        %5344 = vmatprep.subr.mxu0 0.0
        %v5345 = vand.u32 %v3983, 4294901760
        %v5346 = vsub.f32 %v3983, %v5345
        %v5347 = vand.u32 %v5346, 4294901760
        %5348 = vmatpush1.xpose.msra.mxu0 %v5347
        %5349 = vmatprep.mubr.f32.mxu0 0.0
        %v5350 = vand.u32 %v3842, 4294901760
        %5351 = vmatmul.mubr.f32.gmra.mrb[0].mxu0 %v5350
        %v5352 = vpop.f32.mrb[0].mxu0
        %v5353 = vadd.f32 %v5050, %v5352
        %v5354 = vpop.f32.mrb[0].mxu0
        %v5355 = vadd.f32 %v5052, %v5354
        %5356 = vmatprep.mubr.f32.mxu0 0.0
        %v5357 = vand.u32 %v3845, 4294901760
        %5358 = vmatmul.mubr.f32.gmra.mrb[0].mxu0 %v5357
        %v5359 = vpop.f32.mrb[0].mxu0
        %v5360 = vadd.f32 %v5059, %v5359
        %v5361 = vpop.f32.mrb[0].mxu0
        %v5362 = vadd.f32 %v5061, %v5361
        %5363 = vmatprep.mubr.f32.mxu0 0.0
        %v5364 = vand.u32 %v3848, 4294901760
        %5365 = vmatmul.mubr.f32.gmra.mrb[0].mxu0 %v5364
        %v5366 = vpop.f32.mrb[0].mxu0
        %v5367 = vadd.f32 %v5068, %v5366
        %v5368 = vpop.f32.mrb[0].mxu0
        %v5369 = vadd.f32 %v5070, %v5368
        %5370 = vmatprep.mubr.f32.mxu0 0.0
        %v5371 = vand.u32 %v3851, 4294901760
        %5372 = vmatmul.mubr.f32.gmra.mrb[0].mxu0 %v5371
        %v5373 = vpop.f32.mrb[0].mxu0
        %v5374 = vadd.f32 %v5077, %v5373
        %v5375 = vpop.f32.mrb[0].mxu0
        %v5376 = vadd.f32 %v5079, %v5375
        %5377 = vmatprep.mubr.f32.mxu0 0.0
        %v5378 = vand.u32 %v3854, 4294901760
        %5379 = vmatmul.mubr.f32.gmra.mrb[0].mxu0 %v5378
        %v5380 = vpop.f32.mrb[0].mxu0
        %v5381 = vadd.f32 %v5086, %v5380
        %v5382 = vpop.f32.mrb[0].mxu0
        %v5383 = vadd.f32 %v5088, %v5382
        %5384 = vmatprep.mubr.f32.mxu0 0.0
        %v5385 = vand.u32 %v3857, 4294901760
        %5386 = vmatmul.mubr.f32.gmra.mrb[0].mxu0 %v5385
        %v5387 = vpop.f32.mrb[0].mxu0
        %v5388 = vadd.f32 %v5095, %v5387
        %v5389 = vpop.f32.mrb[0].mxu0
        %v5390 = vadd.f32 %v5097, %v5389
        %5391 = vmatprep.mubr.f32.mxu0 0.0
        %v5392 = vand.u32 %v3860, 4294901760
        %5393 = vmatmul.mubr.f32.gmra.mrb[0].mxu0 %v5392
        %v5394 = vpop.f32.mrb[0].mxu0
        %v5395 = vadd.f32 %v5104, %v5394
        %v5396 = vpop.f32.mrb[0].mxu0
        %v5397 = vadd.f32 %v5106, %v5396
        %5398 = vmatprep.mubr.f32.mxu0 0.0
        %v5399 = vand.u32 %v3863, 4294901760
        %5400 = vmatmul.mubr.f32.gmra.mrb[0].mxu0 %v5399
        %v5401 = vpop.f32.mrb[0].mxu0
        %v5402 = vadd.f32 %v5113, %v5401
        %v5403 = vpop.f32.mrb[0].mxu0
        %v5404 = vadd.f32 %v5115, %v5403
        %5405 = vmatprep.mubr.f32.mxu0 0.0
        %v5406 = vand.u32 %v3866, 4294901760
        %5407 = vmatmul.mubr.f32.gmra.mrb[0].mxu0 %v5406
        %v5408 = vpop.f32.mrb[0].mxu0
        %v5409 = vadd.f32 %v5122, %v5408
        %v5410 = vpop.f32.mrb[0].mxu0
        %v5411 = vadd.f32 %v5124, %v5410
        %5412 = vmatprep.mubr.f32.mxu0 0.0
        %v5413 = vand.u32 %v3869, 4294901760
        %5414 = vmatmul.mubr.f32.gmra.mrb[0].mxu0 %v5413
        %v5415 = vpop.f32.mrb[0].mxu0
        %v5416 = vadd.f32 %v5131, %v5415
        %v5417 = vpop.f32.mrb[0].mxu0
        %v5418 = vadd.f32 %v5133, %v5417
        %5419 = vmatprep.mubr.f32.mxu0 0.0
        %v5420 = vand.u32 %v3872, 4294901760
        %5421 = vmatmul.mubr.f32.gmra.mrb[0].mxu0 %v5420
        %v5422 = vpop.f32.mrb[0].mxu0
        %v5423 = vadd.f32 %v5140, %v5422
        %v5424 = vpop.f32.mrb[0].mxu0
        %v5425 = vadd.f32 %v5142, %v5424
        %5426 = vmatprep.mubr.f32.mxu0 0.0
        %v5427 = vand.u32 %v3875, 4294901760
        %5428 = vmatmul.mubr.f32.gmra.mrb[0].mxu0 %v5427
        %v5429 = vpop.f32.mrb[0].mxu0
        %v5430 = vadd.f32 %v5149, %v5429
        %v5431 = vpop.f32.mrb[0].mxu0
        %v5432 = vadd.f32 %v5151, %v5431
        %5433 = vmatprep.mubr.f32.mxu0 0.0
        %v5434 = vand.u32 %v3878, 4294901760
        %5435 = vmatmul.mubr.f32.gmra.mrb[0].mxu0 %v5434
        %v5436 = vpop.f32.mrb[0].mxu0
        %v5437 = vadd.f32 %v5158, %v5436
        %v5438 = vpop.f32.mrb[0].mxu0
        %v5439 = vadd.f32 %v5160, %v5438
        %5440 = vmatprep.mubr.f32.mxu0 0.0
        %v5441 = vand.u32 %v3881, 4294901760
        %5442 = vmatmul.mubr.f32.gmra.mrb[0].mxu0 %v5441
        %v5443 = vpop.f32.mrb[0].mxu0
        %v5444 = vadd.f32 %v5167, %v5443
        %v5445 = vpop.f32.mrb[0].mxu0
        %v5446 = vadd.f32 %v5169, %v5445
        %5447 = vmatprep.mubr.f32.mxu0 0.0
        %v5448 = vand.u32 %v3884, 4294901760
        %5449 = vmatmul.mubr.f32.gmra.mrb[0].mxu0 %v5448
        %v5450 = vpop.f32.mrb[0].mxu0
        %v5451 = vadd.f32 %v5176, %v5450
        %v5452 = vpop.f32.mrb[0].mxu0
        %v5453 = vadd.f32 %v5178, %v5452
        %5454 = vmatprep.mubr.f32.mxu0 0.0
        %v5455 = vand.u32 %v3887, 4294901760
        %5456 = vmatmul.mubr.f32.gmra.mrb[0].mxu0 %v5455
        %v5457 = vpop.f32.mrb[0].mxu0
        %v5458 = vadd.f32 %v5185, %v5457
        %v5459 = vpop.f32.mrb[0].mxu0
        %v5460 = vadd.f32 %v5187, %v5459
        %5461 = vdwg.mxu0
        %5462 = vmatprep.subr.mxu0 0.0
        %v5463 = vand.u32 %v3890, 4294901760
        %5464 = vmatpush1.xpose.msra.mxu0 %v5463
        %5465 = vmatprep.subr.mxu0 0.0
        %v5466 = vand.u32 %v3893, 4294901760
        %5467 = vmatpush1.xpose.msra.mxu0 %v5466
        %5468 = vmatprep.subr.mxu0 0.0
        %v5469 = vand.u32 %v3896, 4294901760
        %5470 = vmatpush1.xpose.msra.mxu0 %v5469
        %5471 = vmatprep.subr.mxu0 0.0
        %v5472 = vand.u32 %v3899, 4294901760
        %5473 = vmatpush1.xpose.msra.mxu0 %v5472
        %5474 = vmatprep.subr.mxu0 0.0
        %v5475 = vand.u32 %v3902, 4294901760
        %5476 = vmatpush1.xpose.msra.mxu0 %v5475
        %5477 = vmatprep.subr.mxu0 0.0
        %v5478 = vand.u32 %v3905, 4294901760
        %5479 = vmatpush1.xpose.msra.mxu0 %v5478
        %5480 = vmatprep.subr.mxu0 0.0
        %v5481 = vand.u32 %v3908, 4294901760
        %5482 = vmatpush1.xpose.msra.mxu0 %v5481
        %5483 = vmatprep.subr.mxu0 0.0
        %v5484 = vand.u32 %v3911, 4294901760
        %5485 = vmatpush1.xpose.msra.mxu0 %v5484
        %5486 = vmatprep.subr.mxu0 0.0
        %v5487 = vand.u32 %v3914, 4294901760
        %5488 = vmatpush1.xpose.msra.mxu0 %v5487
        %5489 = vmatprep.subr.mxu0 0.0
        %v5490 = vand.u32 %v3917, 4294901760
        %5491 = vmatpush1.xpose.msra.mxu0 %v5490
        %5492 = vmatprep.subr.mxu0 0.0
        %v5493 = vand.u32 %v3920, 4294901760
        %5494 = vmatpush1.xpose.msra.mxu0 %v5493
        %5495 = vmatprep.subr.mxu0 0.0
        %v5496 = vand.u32 %v3923, 4294901760
        %5497 = vmatpush1.xpose.msra.mxu0 %v5496
        %5498 = vmatprep.subr.mxu0 0.0
        %v5499 = vand.u32 %v3926, 4294901760
        %5500 = vmatpush1.xpose.msra.mxu0 %v5499
        %5501 = vmatprep.subr.mxu0 0.0
        %v5502 = vand.u32 %v3929, 4294901760
        %5503 = vmatpush1.xpose.msra.mxu0 %v5502
        %5504 = vmatprep.subr.mxu0 0.0
        %v5505 = vand.u32 %v3932, 4294901760
        %5506 = vmatpush1.xpose.msra.mxu0 %v5505
        %5507 = vmatprep.subr.mxu0 0.0
        %v5508 = vand.u32 %v3935, 4294901760
        %5509 = vmatpush1.xpose.msra.mxu0 %v5508
        %5510 = vmatprep.subr.mxu0 0.0
        %v5511 = vand.u32 %v3938, 4294901760
        %5512 = vmatpush1.xpose.msra.mxu0 %v5511
        %5513 = vmatprep.subr.mxu0 0.0
        %v5514 = vand.u32 %v3941, 4294901760
        %5515 = vmatpush1.xpose.msra.mxu0 %v5514
        %5516 = vmatprep.subr.mxu0 0.0
        %v5517 = vand.u32 %v3944, 4294901760
        %5518 = vmatpush1.xpose.msra.mxu0 %v5517
        %5519 = vmatprep.subr.mxu0 0.0
        %v5520 = vand.u32 %v3947, 4294901760
        %5521 = vmatpush1.xpose.msra.mxu0 %v5520
        %5522 = vmatprep.subr.mxu0 0.0
        %v5523 = vand.u32 %v3950, 4294901760
        %5524 = vmatpush1.xpose.msra.mxu0 %v5523
        %5525 = vmatprep.subr.mxu0 0.0
        %v5526 = vand.u32 %v3953, 4294901760
        %5527 = vmatpush1.xpose.msra.mxu0 %v5526
        %5528 = vmatprep.subr.mxu0 0.0
        %v5529 = vand.u32 %v3956, 4294901760
        %5530 = vmatpush1.xpose.msra.mxu0 %v5529
        %5531 = vmatprep.subr.mxu0 0.0
        %v5532 = vand.u32 %v3959, 4294901760
        %5533 = vmatpush1.xpose.msra.mxu0 %v5532
        %5534 = vmatprep.subr.mxu0 0.0
        %v5535 = vand.u32 %v3962, 4294901760
        %5536 = vmatpush1.xpose.msra.mxu0 %v5535
        %5537 = vmatprep.subr.mxu0 0.0
        %v5538 = vand.u32 %v3965, 4294901760
        %5539 = vmatpush1.xpose.msra.mxu0 %v5538
        %5540 = vmatprep.subr.mxu0 0.0
        %v5541 = vand.u32 %v3968, 4294901760
        %5542 = vmatpush1.xpose.msra.mxu0 %v5541
        %5543 = vmatprep.subr.mxu0 0.0
        %v5544 = vand.u32 %v3971, 4294901760
        %5545 = vmatpush1.xpose.msra.mxu0 %v5544
        %5546 = vmatprep.subr.mxu0 0.0
        %v5547 = vand.u32 %v3974, 4294901760
        %5548 = vmatpush1.xpose.msra.mxu0 %v5547
        %5549 = vmatprep.subr.mxu0 0.0
        %v5550 = vand.u32 %v3977, 4294901760
        %5551 = vmatpush1.xpose.msra.mxu0 %v5550
        %5552 = vmatprep.subr.mxu0 0.0
        %v5553 = vand.u32 %v3980, 4294901760
        %5554 = vmatpush1.xpose.msra.mxu0 %v5553
        %5555 = vmatprep.subr.mxu0 0.0
        %v5556 = vand.u32 %v3983, 4294901760
        %5557 = vmatpush1.xpose.msra.mxu0 %v5556
        %5558 = vmatprep.mubr.f32.mxu0 0.0
        %v5559 = vand.u32 %v3842, 4294901760
        %5560 = vmatmul.mubr.f32.gmra.mrb[0].mxu0 %v5559
        %v5561 = vpop.f32.mrb[0].mxu0
        %v5562 = vadd.f32 %v5353, %v5561
        %v5563 = vpop.f32.mrb[0].mxu0
        %v5564 = vadd.f32 %v5355, %v5563
        %5565 = vmatprep.mubr.f32.mxu0 0.0
        %v5566 = vand.u32 %v3845, 4294901760
        %5567 = vmatmul.mubr.f32.gmra.mrb[0].mxu0 %v5566
        %v5568 = vpop.f32.mrb[0].mxu0
        %v5569 = vadd.f32 %v5360, %v5568
        %v5570 = vpop.f32.mrb[0].mxu0
        %v5571 = vadd.f32 %v5362, %v5570
        %5572 = vmatprep.mubr.f32.mxu0 0.0
        %v5573 = vand.u32 %v3848, 4294901760
        %5574 = vmatmul.mubr.f32.gmra.mrb[0].mxu0 %v5573
        %v5575 = vpop.f32.mrb[0].mxu0
        %v5576 = vadd.f32 %v5367, %v5575
        %v5577 = vpop.f32.mrb[0].mxu0
        %v5578 = vadd.f32 %v5369, %v5577
        %5579 = vmatprep.mubr.f32.mxu0 0.0
        %v5580 = vand.u32 %v3851, 4294901760
        %5581 = vmatmul.mubr.f32.gmra.mrb[0].mxu0 %v5580
        %v5582 = vpop.f32.mrb[0].mxu0
        %v5583 = vadd.f32 %v5374, %v5582
        %v5584 = vpop.f32.mrb[0].mxu0
        %v5585 = vadd.f32 %v5376, %v5584
        %5586 = vmatprep.mubr.f32.mxu0 0.0
        %v5587 = vand.u32 %v3854, 4294901760
        %5588 = vmatmul.mubr.f32.gmra.mrb[0].mxu0 %v5587
        %v5589 = vpop.f32.mrb[0].mxu0
        %v5590 = vadd.f32 %v5381, %v5589
        %v5591 = vpop.f32.mrb[0].mxu0
        %v5592 = vadd.f32 %v5383, %v5591
        %5593 = vmatprep.mubr.f32.mxu0 0.0
        %v5594 = vand.u32 %v3857, 4294901760
        %5595 = vmatmul.mubr.f32.gmra.mrb[0].mxu0 %v5594
        %v5596 = vpop.f32.mrb[0].mxu0
        %v5597 = vadd.f32 %v5388, %v5596
        %v5598 = vpop.f32.mrb[0].mxu0
        %v5599 = vadd.f32 %v5390, %v5598
        %5600 = vmatprep.mubr.f32.mxu0 0.0
        %v5601 = vand.u32 %v3860, 4294901760
        %5602 = vmatmul.mubr.f32.gmra.mrb[0].mxu0 %v5601
        %v5603 = vpop.f32.mrb[0].mxu0
        %v5604 = vadd.f32 %v5395, %v5603
        %v5605 = vpop.f32.mrb[0].mxu0
        %v5606 = vadd.f32 %v5397, %v5605
        %5607 = vmatprep.mubr.f32.mxu0 0.0
        %v5608 = vand.u32 %v3863, 4294901760
        %5609 = vmatmul.mubr.f32.gmra.mrb[0].mxu0 %v5608
        %v5610 = vpop.f32.mrb[0].mxu0
        %v5611 = vadd.f32 %v5402, %v5610
        %v5612 = vpop.f32.mrb[0].mxu0
        %v5613 = vadd.f32 %v5404, %v5612
        %5614 = vmatprep.mubr.f32.mxu0 0.0
        %v5615 = vand.u32 %v3866, 4294901760
        %5616 = vmatmul.mubr.f32.gmra.mrb[0].mxu0 %v5615
        %v5617 = vpop.f32.mrb[0].mxu0
        %v5618 = vadd.f32 %v5409, %v5617
        %v5619 = vpop.f32.mrb[0].mxu0
        %v5620 = vadd.f32 %v5411, %v5619
        %5621 = vmatprep.mubr.f32.mxu0 0.0
        %v5622 = vand.u32 %v3869, 4294901760
        %5623 = vmatmul.mubr.f32.gmra.mrb[0].mxu0 %v5622
        %v5624 = vpop.f32.mrb[0].mxu0
        %v5625 = vadd.f32 %v5416, %v5624
        %v5626 = vpop.f32.mrb[0].mxu0
        %v5627 = vadd.f32 %v5418, %v5626
        %5628 = vmatprep.mubr.f32.mxu0 0.0
        %v5629 = vand.u32 %v3872, 4294901760
        %5630 = vmatmul.mubr.f32.gmra.mrb[0].mxu0 %v5629
        %v5631 = vpop.f32.mrb[0].mxu0
        %v5632 = vadd.f32 %v5423, %v5631
        %v5633 = vpop.f32.mrb[0].mxu0
        %v5634 = vadd.f32 %v5425, %v5633
        %5635 = vmatprep.mubr.f32.mxu0 0.0
        %v5636 = vand.u32 %v3875, 4294901760
        %5637 = vmatmul.mubr.f32.gmra.mrb[0].mxu0 %v5636
        %v5638 = vpop.f32.mrb[0].mxu0
        %v5639 = vadd.f32 %v5430, %v5638
        %v5640 = vpop.f32.mrb[0].mxu0
        %v5641 = vadd.f32 %v5432, %v5640
        %5642 = vmatprep.mubr.f32.mxu0 0.0
        %v5643 = vand.u32 %v3878, 4294901760
        %5644 = vmatmul.mubr.f32.gmra.mrb[0].mxu0 %v5643
        %v5645 = vpop.f32.mrb[0].mxu0
        %v5646 = vadd.f32 %v5437, %v5645
        %v5647 = vpop.f32.mrb[0].mxu0
        %v5648 = vadd.f32 %v5439, %v5647
        %5649 = vmatprep.mubr.f32.mxu0 0.0
        %v5650 = vand.u32 %v3881, 4294901760
        %5651 = vmatmul.mubr.f32.gmra.mrb[0].mxu0 %v5650
        %v5652 = vpop.f32.mrb[0].mxu0
        %v5653 = vadd.f32 %v5444, %v5652
        %v5654 = vpop.f32.mrb[0].mxu0
        %v5655 = vadd.f32 %v5446, %v5654
        %5656 = vmatprep.mubr.f32.mxu0 0.0
        %v5657 = vand.u32 %v3884, 4294901760
        %5658 = vmatmul.mubr.f32.gmra.mrb[0].mxu0 %v5657
        %v5659 = vpop.f32.mrb[0].mxu0
        %v5660 = vadd.f32 %v5451, %v5659
        %v5661 = vpop.f32.mrb[0].mxu0
        %v5662 = vadd.f32 %v5453, %v5661
        %5663 = vmatprep.mubr.f32.mxu0 0.0
        %v5664 = vand.u32 %v3887, 4294901760
        %5665 = vmatmul.mubr.f32.gmra.mrb[0].mxu0 %v5664
        %v5666 = vpop.f32.mrb[0].mxu0
        %v5667 = vadd.f32 %v5458, %v5666
        %v5668 = vpop.f32.mrb[0].mxu0
        %v5669 = vadd.f32 %v5460, %v5668
        %5670 = vdwg.mxu0
        %5671 = vmatprep.subr.mxu0 0.0
        %v5672 = vand.u32 %v3986, 4294901760
        %5673 = vmatpush1.xpose.msra.mxu0 %v5672
        %5674 = vmatprep.subr.mxu0 0.0
        %v5675 = vand.u32 %v3989, 4294901760
        %5676 = vmatpush1.xpose.msra.mxu0 %v5675
        %5677 = vmatprep.subr.mxu0 0.0
        %v5678 = vand.u32 %v3992, 4294901760
        %5679 = vmatpush1.xpose.msra.mxu0 %v5678
        %5680 = vmatprep.subr.mxu0 0.0
        %v5681 = vand.u32 %v3995, 4294901760
        %5682 = vmatpush1.xpose.msra.mxu0 %v5681
        %5683 = vmatprep.subr.mxu0 0.0
        %v5684 = vand.u32 %v3998, 4294901760
        %5685 = vmatpush1.xpose.msra.mxu0 %v5684
        %5686 = vmatprep.subr.mxu0 0.0
        %v5687 = vand.u32 %v4001, 4294901760
        %5688 = vmatpush1.xpose.msra.mxu0 %v5687
        %5689 = vmatprep.subr.mxu0 0.0
        %v5690 = vand.u32 %v4004, 4294901760
        %5691 = vmatpush1.xpose.msra.mxu0 %v5690
        %5692 = vmatprep.subr.mxu0 0.0
        %v5693 = vand.u32 %v4007, 4294901760
        %5694 = vmatpush1.xpose.msra.mxu0 %v5693
        %5695 = vmatprep.subr.mxu0 0.0
        %v5696 = vand.u32 %v4010, 4294901760
        %5697 = vmatpush1.xpose.msra.mxu0 %v5696
        %5698 = vmatprep.subr.mxu0 0.0
        %v5699 = vand.u32 %v4013, 4294901760
        %5700 = vmatpush1.xpose.msra.mxu0 %v5699
        %5701 = vmatprep.subr.mxu0 0.0
        %v5702 = vand.u32 %v4016, 4294901760
        %5703 = vmatpush1.xpose.msra.mxu0 %v5702
        %5704 = vmatprep.subr.mxu0 0.0
        %v5705 = vand.u32 %v4019, 4294901760
        %5706 = vmatpush1.xpose.msra.mxu0 %v5705
        %5707 = vmatprep.subr.mxu0 0.0
        %v5708 = vand.u32 %v4022, 4294901760
        %5709 = vmatpush1.xpose.msra.mxu0 %v5708
        %5710 = vmatprep.subr.mxu0 0.0
        %v5711 = vand.u32 %v4025, 4294901760
        %5712 = vmatpush1.xpose.msra.mxu0 %v5711
        %5713 = vmatprep.subr.mxu0 0.0
        %v5714 = vand.u32 %v4028, 4294901760
        %5715 = vmatpush1.xpose.msra.mxu0 %v5714
        %5716 = vmatprep.subr.mxu0 0.0
        %v5717 = vand.u32 %v4031, 4294901760
        %5718 = vmatpush1.xpose.msra.mxu0 %v5717
        %5719 = vmatprep.subr.mxu0 0.0
        %v5720 = vand.u32 %v4034, 4294901760
        %5721 = vmatpush1.xpose.msra.mxu0 %v5720
        %5722 = vmatprep.subr.mxu0 0.0
        %v5723 = vand.u32 %v4037, 4294901760
        %5724 = vmatpush1.xpose.msra.mxu0 %v5723
        %5725 = vmatprep.subr.mxu0 0.0
        %v5726 = vand.u32 %v4040, 4294901760
        %5727 = vmatpush1.xpose.msra.mxu0 %v5726
        %5728 = vmatprep.subr.mxu0 0.0
        %v5729 = vand.u32 %v4043, 4294901760
        %5730 = vmatpush1.xpose.msra.mxu0 %v5729
        %5731 = vmatprep.subr.mxu0 0.0
        %v5732 = vand.u32 %v4046, 4294901760
        %5733 = vmatpush1.xpose.msra.mxu0 %v5732
        %5734 = vmatprep.subr.mxu0 0.0
        %v5735 = vand.u32 %v4049, 4294901760
        %5736 = vmatpush1.xpose.msra.mxu0 %v5735
        %5737 = vmatprep.subr.mxu0 0.0
        %v5738 = vand.u32 %v4052, 4294901760
        %5739 = vmatpush1.xpose.msra.mxu0 %v5738
        %5740 = vmatprep.subr.mxu0 0.0
        %v5741 = vand.u32 %v4055, 4294901760
        %5742 = vmatpush1.xpose.msra.mxu0 %v5741
        %5743 = vmatprep.subr.mxu0 0.0
        %v5744 = vand.u32 %v4058, 4294901760
        %5745 = vmatpush1.xpose.msra.mxu0 %v5744
        %5746 = vmatprep.subr.mxu0 0.0
        %v5747 = vand.u32 %v4061, 4294901760
        %5748 = vmatpush1.xpose.msra.mxu0 %v5747
        %5749 = vmatprep.subr.mxu0 0.0
        %v5750 = vand.u32 %v4064, 4294901760
        %5751 = vmatpush1.xpose.msra.mxu0 %v5750
        %5752 = vmatprep.subr.mxu0 0.0
        %v5753 = vand.u32 %v4067, 4294901760
        %5754 = vmatpush1.xpose.msra.mxu0 %v5753
        %5755 = vmatprep.subr.mxu0 0.0
        %v5756 = vand.u32 %v4070, 4294901760
        %5757 = vmatpush1.xpose.msra.mxu0 %v5756
        %5758 = vmatprep.subr.mxu0 0.0
        %v5759 = vand.u32 %v4073, 4294901760
        %5760 = vmatpush1.xpose.msra.mxu0 %v5759
        %5761 = vmatprep.subr.mxu0 0.0
        %v5762 = vand.u32 %v4076, 4294901760
        %5763 = vmatpush1.xpose.msra.mxu0 %v5762
        %5764 = vmatprep.subr.mxu0 0.0
        %v5765 = vand.u32 %v4079, 4294901760
        %5766 = vmatpush1.xpose.msra.mxu0 %v5765
        %5767 = vmatprep.mubr.f32.mxu0 0.0
        %v5768 = vand.u32 %v3842, 4294901760
        %v5769 = vsub.f32 %v3842, %v5768
        %v5770 = vand.u32 %v5769, 4294901760
        %v5771 = vsub.f32 %v5769, %v5770
        %v5772 = vand.u32 %v5771, 4294901760
        %5773 = vmatmul.mubr.f32.gmra.mrb[0].mxu0 %v5772
        %v5774 = vpop.f32.mrb[0].mxu0
        %v5775 = vadd.f32 0.0, %v5774
        %v5776 = vpop.f32.mrb[0].mxu0
        %v5777 = vadd.f32 0.0, %v5776
        %5778 = vmatprep.mubr.f32.mxu0 0.0
        %v5779 = vand.u32 %v3845, 4294901760
        %v5780 = vsub.f32 %v3845, %v5779
        %v5781 = vand.u32 %v5780, 4294901760
        %v5782 = vsub.f32 %v5780, %v5781
        %v5783 = vand.u32 %v5782, 4294901760
        %5784 = vmatmul.mubr.f32.gmra.mrb[0].mxu0 %v5783
        %v5785 = vpop.f32.mrb[0].mxu0
        %v5786 = vadd.f32 0.0, %v5785
        %v5787 = vpop.f32.mrb[0].mxu0
        %v5788 = vadd.f32 0.0, %v5787
        %5789 = vmatprep.mubr.f32.mxu0 0.0
        %v5790 = vand.u32 %v3848, 4294901760
        %v5791 = vsub.f32 %v3848, %v5790
        %v5792 = vand.u32 %v5791, 4294901760
        %v5793 = vsub.f32 %v5791, %v5792
        %v5794 = vand.u32 %v5793, 4294901760
        %5795 = vmatmul.mubr.f32.gmra.mrb[0].mxu0 %v5794
        %v5796 = vpop.f32.mrb[0].mxu0
        %v5797 = vadd.f32 0.0, %v5796
        %v5798 = vpop.f32.mrb[0].mxu0
        %v5799 = vadd.f32 0.0, %v5798
        %5800 = vmatprep.mubr.f32.mxu0 0.0
        %v5801 = vand.u32 %v3851, 4294901760
        %v5802 = vsub.f32 %v3851, %v5801
        %v5803 = vand.u32 %v5802, 4294901760
        %v5804 = vsub.f32 %v5802, %v5803
        %v5805 = vand.u32 %v5804, 4294901760
        %5806 = vmatmul.mubr.f32.gmra.mrb[0].mxu0 %v5805
        %v5807 = vpop.f32.mrb[0].mxu0
        %v5808 = vadd.f32 0.0, %v5807
        %v5809 = vpop.f32.mrb[0].mxu0
        %v5810 = vadd.f32 0.0, %v5809
        %5811 = vmatprep.mubr.f32.mxu0 0.0
        %v5812 = vand.u32 %v3854, 4294901760
        %v5813 = vsub.f32 %v3854, %v5812
        %v5814 = vand.u32 %v5813, 4294901760
        %v5815 = vsub.f32 %v5813, %v5814
        %v5816 = vand.u32 %v5815, 4294901760
        %5817 = vmatmul.mubr.f32.gmra.mrb[0].mxu0 %v5816
        %v5818 = vpop.f32.mrb[0].mxu0
        %v5819 = vadd.f32 0.0, %v5818
        %v5820 = vpop.f32.mrb[0].mxu0
        %v5821 = vadd.f32 0.0, %v5820
        %5822 = vmatprep.mubr.f32.mxu0 0.0
        %v5823 = vand.u32 %v3857, 4294901760
        %v5824 = vsub.f32 %v3857, %v5823
        %v5825 = vand.u32 %v5824, 4294901760
        %v5826 = vsub.f32 %v5824, %v5825
        %v5827 = vand.u32 %v5826, 4294901760
        %5828 = vmatmul.mubr.f32.gmra.mrb[0].mxu0 %v5827
        %v5829 = vpop.f32.mrb[0].mxu0
        %v5830 = vadd.f32 0.0, %v5829
        %v5831 = vpop.f32.mrb[0].mxu0
        %v5832 = vadd.f32 0.0, %v5831
        %5833 = vmatprep.mubr.f32.mxu0 0.0
        %v5834 = vand.u32 %v3860, 4294901760
        %v5835 = vsub.f32 %v3860, %v5834
        %v5836 = vand.u32 %v5835, 4294901760
        %v5837 = vsub.f32 %v5835, %v5836
        %v5838 = vand.u32 %v5837, 4294901760
        %5839 = vmatmul.mubr.f32.gmra.mrb[0].mxu0 %v5838
        %v5840 = vpop.f32.mrb[0].mxu0
        %v5841 = vadd.f32 0.0, %v5840
        %v5842 = vpop.f32.mrb[0].mxu0
        %v5843 = vadd.f32 0.0, %v5842
        %5844 = vmatprep.mubr.f32.mxu0 0.0
        %v5845 = vand.u32 %v3863, 4294901760
        %v5846 = vsub.f32 %v3863, %v5845
        %v5847 = vand.u32 %v5846, 4294901760
        %v5848 = vsub.f32 %v5846, %v5847
        %v5849 = vand.u32 %v5848, 4294901760
        %5850 = vmatmul.mubr.f32.gmra.mrb[0].mxu0 %v5849
        %v5851 = vpop.f32.mrb[0].mxu0
        %v5852 = vadd.f32 0.0, %v5851
        %v5853 = vpop.f32.mrb[0].mxu0
        %v5854 = vadd.f32 0.0, %v5853
        %5855 = vmatprep.mubr.f32.mxu0 0.0
        %v5856 = vand.u32 %v3866, 4294901760
        %v5857 = vsub.f32 %v3866, %v5856
        %v5858 = vand.u32 %v5857, 4294901760
        %v5859 = vsub.f32 %v5857, %v5858
        %v5860 = vand.u32 %v5859, 4294901760
        %5861 = vmatmul.mubr.f32.gmra.mrb[0].mxu0 %v5860
        %v5862 = vpop.f32.mrb[0].mxu0
        %v5863 = vadd.f32 0.0, %v5862
        %v5864 = vpop.f32.mrb[0].mxu0
        %v5865 = vadd.f32 0.0, %v5864
        %5866 = vmatprep.mubr.f32.mxu0 0.0
        %v5867 = vand.u32 %v3869, 4294901760
        %v5868 = vsub.f32 %v3869, %v5867
        %v5869 = vand.u32 %v5868, 4294901760
        %v5870 = vsub.f32 %v5868, %v5869
        %v5871 = vand.u32 %v5870, 4294901760
        %5872 = vmatmul.mubr.f32.gmra.mrb[0].mxu0 %v5871
        %v5873 = vpop.f32.mrb[0].mxu0
        %v5874 = vadd.f32 0.0, %v5873
        %v5875 = vpop.f32.mrb[0].mxu0
        %v5876 = vadd.f32 0.0, %v5875
        %5877 = vmatprep.mubr.f32.mxu0 0.0
        %v5878 = vand.u32 %v3872, 4294901760
        %v5879 = vsub.f32 %v3872, %v5878
        %v5880 = vand.u32 %v5879, 4294901760
        %v5881 = vsub.f32 %v5879, %v5880
        %v5882 = vand.u32 %v5881, 4294901760
        %5883 = vmatmul.mubr.f32.gmra.mrb[0].mxu0 %v5882
        %v5884 = vpop.f32.mrb[0].mxu0
        %v5885 = vadd.f32 0.0, %v5884
        %v5886 = vpop.f32.mrb[0].mxu0
        %v5887 = vadd.f32 0.0, %v5886
        %5888 = vmatprep.mubr.f32.mxu0 0.0
        %v5889 = vand.u32 %v3875, 4294901760
        %v5890 = vsub.f32 %v3875, %v5889
        %v5891 = vand.u32 %v5890, 4294901760
        %v5892 = vsub.f32 %v5890, %v5891
        %v5893 = vand.u32 %v5892, 4294901760
        %5894 = vmatmul.mubr.f32.gmra.mrb[0].mxu0 %v5893
        %v5895 = vpop.f32.mrb[0].mxu0
        %v5896 = vadd.f32 0.0, %v5895
        %v5897 = vpop.f32.mrb[0].mxu0
        %v5898 = vadd.f32 0.0, %v5897
        %5899 = vmatprep.mubr.f32.mxu0 0.0
        %v5900 = vand.u32 %v3878, 4294901760
        %v5901 = vsub.f32 %v3878, %v5900
        %v5902 = vand.u32 %v5901, 4294901760
        %v5903 = vsub.f32 %v5901, %v5902
        %v5904 = vand.u32 %v5903, 4294901760
        %5905 = vmatmul.mubr.f32.gmra.mrb[0].mxu0 %v5904
        %v5906 = vpop.f32.mrb[0].mxu0
        %v5907 = vadd.f32 0.0, %v5906
        %v5908 = vpop.f32.mrb[0].mxu0
        %v5909 = vadd.f32 0.0, %v5908
        %5910 = vmatprep.mubr.f32.mxu0 0.0
        %v5911 = vand.u32 %v3881, 4294901760
        %v5912 = vsub.f32 %v3881, %v5911
        %v5913 = vand.u32 %v5912, 4294901760
        %v5914 = vsub.f32 %v5912, %v5913
        %v5915 = vand.u32 %v5914, 4294901760
        %5916 = vmatmul.mubr.f32.gmra.mrb[0].mxu0 %v5915
        %v5917 = vpop.f32.mrb[0].mxu0
        %v5918 = vadd.f32 0.0, %v5917
        %v5919 = vpop.f32.mrb[0].mxu0
        %v5920 = vadd.f32 0.0, %v5919
        %5921 = vmatprep.mubr.f32.mxu0 0.0
        %v5922 = vand.u32 %v3884, 4294901760
        %v5923 = vsub.f32 %v3884, %v5922
        %v5924 = vand.u32 %v5923, 4294901760
        %v5925 = vsub.f32 %v5923, %v5924
        %v5926 = vand.u32 %v5925, 4294901760
        %5927 = vmatmul.mubr.f32.gmra.mrb[0].mxu0 %v5926
        %v5928 = vpop.f32.mrb[0].mxu0
        %v5929 = vadd.f32 0.0, %v5928
        %v5930 = vpop.f32.mrb[0].mxu0
        %v5931 = vadd.f32 0.0, %v5930
        %5932 = vmatprep.mubr.f32.mxu0 0.0
        %v5933 = vand.u32 %v3887, 4294901760
        %v5934 = vsub.f32 %v3887, %v5933
        %v5935 = vand.u32 %v5934, 4294901760
        %v5936 = vsub.f32 %v5934, %v5935
        %v5937 = vand.u32 %v5936, 4294901760
        %5938 = vmatmul.mubr.f32.gmra.mrb[0].mxu0 %v5937
        %v5939 = vpop.f32.mrb[0].mxu0
        %v5940 = vadd.f32 0.0, %v5939
        %v5941 = vpop.f32.mrb[0].mxu0
        %v5942 = vadd.f32 0.0, %v5941
        %5943 = vdwg.mxu0
        %5944 = vmatprep.subr.mxu0 0.0
        %v5945 = vand.u32 %v3986, 4294901760
        %v5946 = vsub.f32 %v3986, %v5945
        %v5947 = vand.u32 %v5946, 4294901760
        %v5948 = vsub.f32 %v5946, %v5947
        %v5949 = vand.u32 %v5948, 4294901760
        %5950 = vmatpush1.xpose.msra.mxu0 %v5949
        %5951 = vmatprep.subr.mxu0 0.0
        %v5952 = vand.u32 %v3989, 4294901760
        %v5953 = vsub.f32 %v3989, %v5952
        %v5954 = vand.u32 %v5953, 4294901760
        %v5955 = vsub.f32 %v5953, %v5954
        %v5956 = vand.u32 %v5955, 4294901760
        %5957 = vmatpush1.xpose.msra.mxu0 %v5956
        %5958 = vmatprep.subr.mxu0 0.0
        %v5959 = vand.u32 %v3992, 4294901760
        %v5960 = vsub.f32 %v3992, %v5959
        %v5961 = vand.u32 %v5960, 4294901760
        %v5962 = vsub.f32 %v5960, %v5961
        %v5963 = vand.u32 %v5962, 4294901760
        %5964 = vmatpush1.xpose.msra.mxu0 %v5963
        %5965 = vmatprep.subr.mxu0 0.0
        %v5966 = vand.u32 %v3995, 4294901760
        %v5967 = vsub.f32 %v3995, %v5966
        %v5968 = vand.u32 %v5967, 4294901760
        %v5969 = vsub.f32 %v5967, %v5968
        %v5970 = vand.u32 %v5969, 4294901760
        %5971 = vmatpush1.xpose.msra.mxu0 %v5970
        %5972 = vmatprep.subr.mxu0 0.0
        %v5973 = vand.u32 %v3998, 4294901760
        %v5974 = vsub.f32 %v3998, %v5973
        %v5975 = vand.u32 %v5974, 4294901760
        %v5976 = vsub.f32 %v5974, %v5975
        %v5977 = vand.u32 %v5976, 4294901760
        %5978 = vmatpush1.xpose.msra.mxu0 %v5977
        %5979 = vmatprep.subr.mxu0 0.0
        %v5980 = vand.u32 %v4001, 4294901760
        %v5981 = vsub.f32 %v4001, %v5980
        %v5982 = vand.u32 %v5981, 4294901760
        %v5983 = vsub.f32 %v5981, %v5982
        %v5984 = vand.u32 %v5983, 4294901760
        %5985 = vmatpush1.xpose.msra.mxu0 %v5984
        %5986 = vmatprep.subr.mxu0 0.0
        %v5987 = vand.u32 %v4004, 4294901760
        %v5988 = vsub.f32 %v4004, %v5987
        %v5989 = vand.u32 %v5988, 4294901760
        %v5990 = vsub.f32 %v5988, %v5989
        %v5991 = vand.u32 %v5990, 4294901760
        %5992 = vmatpush1.xpose.msra.mxu0 %v5991
        %5993 = vmatprep.subr.mxu0 0.0
        %v5994 = vand.u32 %v4007, 4294901760
        %v5995 = vsub.f32 %v4007, %v5994
        %v5996 = vand.u32 %v5995, 4294901760
        %v5997 = vsub.f32 %v5995, %v5996
        %v5998 = vand.u32 %v5997, 4294901760
        %5999 = vmatpush1.xpose.msra.mxu0 %v5998
        %6000 = vmatprep.subr.mxu0 0.0
        %v6001 = vand.u32 %v4010, 4294901760
        %v6002 = vsub.f32 %v4010, %v6001
        %v6003 = vand.u32 %v6002, 4294901760
        %v6004 = vsub.f32 %v6002, %v6003
        %v6005 = vand.u32 %v6004, 4294901760
        %6006 = vmatpush1.xpose.msra.mxu0 %v6005
        %6007 = vmatprep.subr.mxu0 0.0
        %v6008 = vand.u32 %v4013, 4294901760
        %v6009 = vsub.f32 %v4013, %v6008
        %v6010 = vand.u32 %v6009, 4294901760
        %v6011 = vsub.f32 %v6009, %v6010
        %v6012 = vand.u32 %v6011, 4294901760
        %6013 = vmatpush1.xpose.msra.mxu0 %v6012
        %6014 = vmatprep.subr.mxu0 0.0
        %v6015 = vand.u32 %v4016, 4294901760
        %v6016 = vsub.f32 %v4016, %v6015
        %v6017 = vand.u32 %v6016, 4294901760
        %v6018 = vsub.f32 %v6016, %v6017
        %v6019 = vand.u32 %v6018, 4294901760
        %6020 = vmatpush1.xpose.msra.mxu0 %v6019
        %6021 = vmatprep.subr.mxu0 0.0
        %v6022 = vand.u32 %v4019, 4294901760
        %v6023 = vsub.f32 %v4019, %v6022
        %v6024 = vand.u32 %v6023, 4294901760
        %v6025 = vsub.f32 %v6023, %v6024
        %v6026 = vand.u32 %v6025, 4294901760
        %6027 = vmatpush1.xpose.msra.mxu0 %v6026
        %6028 = vmatprep.subr.mxu0 0.0
        %v6029 = vand.u32 %v4022, 4294901760
        %v6030 = vsub.f32 %v4022, %v6029
        %v6031 = vand.u32 %v6030, 4294901760
        %v6032 = vsub.f32 %v6030, %v6031
        %v6033 = vand.u32 %v6032, 4294901760
        %6034 = vmatpush1.xpose.msra.mxu0 %v6033
        %6035 = vmatprep.subr.mxu0 0.0
        %v6036 = vand.u32 %v4025, 4294901760
        %v6037 = vsub.f32 %v4025, %v6036
        %v6038 = vand.u32 %v6037, 4294901760
        %v6039 = vsub.f32 %v6037, %v6038
        %v6040 = vand.u32 %v6039, 4294901760
        %6041 = vmatpush1.xpose.msra.mxu0 %v6040
        %6042 = vmatprep.subr.mxu0 0.0
        %v6043 = vand.u32 %v4028, 4294901760
        %v6044 = vsub.f32 %v4028, %v6043
        %v6045 = vand.u32 %v6044, 4294901760
        %v6046 = vsub.f32 %v6044, %v6045
        %v6047 = vand.u32 %v6046, 4294901760
        %6048 = vmatpush1.xpose.msra.mxu0 %v6047
        %6049 = vmatprep.subr.mxu0 0.0
        %v6050 = vand.u32 %v4031, 4294901760
        %v6051 = vsub.f32 %v4031, %v6050
        %v6052 = vand.u32 %v6051, 4294901760
        %v6053 = vsub.f32 %v6051, %v6052
        %v6054 = vand.u32 %v6053, 4294901760
        %6055 = vmatpush1.xpose.msra.mxu0 %v6054
        %6056 = vmatprep.subr.mxu0 0.0
        %v6057 = vand.u32 %v4034, 4294901760
        %v6058 = vsub.f32 %v4034, %v6057
        %v6059 = vand.u32 %v6058, 4294901760
        %v6060 = vsub.f32 %v6058, %v6059
        %v6061 = vand.u32 %v6060, 4294901760
        %6062 = vmatpush1.xpose.msra.mxu0 %v6061
        %6063 = vmatprep.subr.mxu0 0.0
        %v6064 = vand.u32 %v4037, 4294901760
        %v6065 = vsub.f32 %v4037, %v6064
        %v6066 = vand.u32 %v6065, 4294901760
        %v6067 = vsub.f32 %v6065, %v6066
        %v6068 = vand.u32 %v6067, 4294901760
        %6069 = vmatpush1.xpose.msra.mxu0 %v6068
        %6070 = vmatprep.subr.mxu0 0.0
        %v6071 = vand.u32 %v4040, 4294901760
        %v6072 = vsub.f32 %v4040, %v6071
        %v6073 = vand.u32 %v6072, 4294901760
        %v6074 = vsub.f32 %v6072, %v6073
        %v6075 = vand.u32 %v6074, 4294901760
        %6076 = vmatpush1.xpose.msra.mxu0 %v6075
        %6077 = vmatprep.subr.mxu0 0.0
        %v6078 = vand.u32 %v4043, 4294901760
        %v6079 = vsub.f32 %v4043, %v6078
        %v6080 = vand.u32 %v6079, 4294901760
        %v6081 = vsub.f32 %v6079, %v6080
        %v6082 = vand.u32 %v6081, 4294901760
        %6083 = vmatpush1.xpose.msra.mxu0 %v6082
        %6084 = vmatprep.subr.mxu0 0.0
        %v6085 = vand.u32 %v4046, 4294901760
        %v6086 = vsub.f32 %v4046, %v6085
        %v6087 = vand.u32 %v6086, 4294901760
        %v6088 = vsub.f32 %v6086, %v6087
        %v6089 = vand.u32 %v6088, 4294901760
        %6090 = vmatpush1.xpose.msra.mxu0 %v6089
        %6091 = vmatprep.subr.mxu0 0.0
        %v6092 = vand.u32 %v4049, 4294901760
        %v6093 = vsub.f32 %v4049, %v6092
        %v6094 = vand.u32 %v6093, 4294901760
        %v6095 = vsub.f32 %v6093, %v6094
        %v6096 = vand.u32 %v6095, 4294901760
        %6097 = vmatpush1.xpose.msra.mxu0 %v6096
        %6098 = vmatprep.subr.mxu0 0.0
        %v6099 = vand.u32 %v4052, 4294901760
        %v6100 = vsub.f32 %v4052, %v6099
        %v6101 = vand.u32 %v6100, 4294901760
        %v6102 = vsub.f32 %v6100, %v6101
        %v6103 = vand.u32 %v6102, 4294901760
        %6104 = vmatpush1.xpose.msra.mxu0 %v6103
        %6105 = vmatprep.subr.mxu0 0.0
        %v6106 = vand.u32 %v4055, 4294901760
        %v6107 = vsub.f32 %v4055, %v6106
        %v6108 = vand.u32 %v6107, 4294901760
        %v6109 = vsub.f32 %v6107, %v6108
        %v6110 = vand.u32 %v6109, 4294901760
        %6111 = vmatpush1.xpose.msra.mxu0 %v6110
        %6112 = vmatprep.subr.mxu0 0.0
        %v6113 = vand.u32 %v4058, 4294901760
        %v6114 = vsub.f32 %v4058, %v6113
        %v6115 = vand.u32 %v6114, 4294901760
        %v6116 = vsub.f32 %v6114, %v6115
        %v6117 = vand.u32 %v6116, 4294901760
        %6118 = vmatpush1.xpose.msra.mxu0 %v6117
        %6119 = vmatprep.subr.mxu0 0.0
        %v6120 = vand.u32 %v4061, 4294901760
        %v6121 = vsub.f32 %v4061, %v6120
        %v6122 = vand.u32 %v6121, 4294901760
        %v6123 = vsub.f32 %v6121, %v6122
        %v6124 = vand.u32 %v6123, 4294901760
        %6125 = vmatpush1.xpose.msra.mxu0 %v6124
        %6126 = vmatprep.subr.mxu0 0.0
        %v6127 = vand.u32 %v4064, 4294901760
        %v6128 = vsub.f32 %v4064, %v6127
        %v6129 = vand.u32 %v6128, 4294901760
        %v6130 = vsub.f32 %v6128, %v6129
        %v6131 = vand.u32 %v6130, 4294901760
        %6132 = vmatpush1.xpose.msra.mxu0 %v6131
        %6133 = vmatprep.subr.mxu0 0.0
        %v6134 = vand.u32 %v4067, 4294901760
        %v6135 = vsub.f32 %v4067, %v6134
        %v6136 = vand.u32 %v6135, 4294901760
        %v6137 = vsub.f32 %v6135, %v6136
        %v6138 = vand.u32 %v6137, 4294901760
        %6139 = vmatpush1.xpose.msra.mxu0 %v6138
        %6140 = vmatprep.subr.mxu0 0.0
        %v6141 = vand.u32 %v4070, 4294901760
        %v6142 = vsub.f32 %v4070, %v6141
        %v6143 = vand.u32 %v6142, 4294901760
        %v6144 = vsub.f32 %v6142, %v6143
        %v6145 = vand.u32 %v6144, 4294901760
        %6146 = vmatpush1.xpose.msra.mxu0 %v6145
        %6147 = vmatprep.subr.mxu0 0.0
        %v6148 = vand.u32 %v4073, 4294901760
        %v6149 = vsub.f32 %v4073, %v6148
        %v6150 = vand.u32 %v6149, 4294901760
        %v6151 = vsub.f32 %v6149, %v6150
        %v6152 = vand.u32 %v6151, 4294901760
        %6153 = vmatpush1.xpose.msra.mxu0 %v6152
        %6154 = vmatprep.subr.mxu0 0.0
        %v6155 = vand.u32 %v4076, 4294901760
        %v6156 = vsub.f32 %v4076, %v6155
        %v6157 = vand.u32 %v6156, 4294901760
        %v6158 = vsub.f32 %v6156, %v6157
        %v6159 = vand.u32 %v6158, 4294901760
        %6160 = vmatpush1.xpose.msra.mxu0 %v6159
        %6161 = vmatprep.subr.mxu0 0.0
        %v6162 = vand.u32 %v4079, 4294901760
        %v6163 = vsub.f32 %v4079, %v6162
        %v6164 = vand.u32 %v6163, 4294901760
        %v6165 = vsub.f32 %v6163, %v6164
        %v6166 = vand.u32 %v6165, 4294901760
        %6167 = vmatpush1.xpose.msra.mxu0 %v6166
        %6168 = vmatprep.mubr.f32.mxu0 0.0
        %v6169 = vand.u32 %v3842, 4294901760
        %6170 = vmatmul.mubr.f32.gmra.mrb[0].mxu0 %v6169
        %v6171 = vpop.f32.mrb[0].mxu0
        %v6172 = vadd.f32 %v5775, %v6171
        %v6173 = vpop.f32.mrb[0].mxu0
        %v6174 = vadd.f32 %v5777, %v6173
        %6175 = vmatprep.mubr.f32.mxu0 0.0
        %v6176 = vand.u32 %v3845, 4294901760
        %6177 = vmatmul.mubr.f32.gmra.mrb[0].mxu0 %v6176
        %v6178 = vpop.f32.mrb[0].mxu0
        %v6179 = vadd.f32 %v5786, %v6178
        %v6180 = vpop.f32.mrb[0].mxu0
        %v6181 = vadd.f32 %v5788, %v6180
        %6182 = vmatprep.mubr.f32.mxu0 0.0
        %v6183 = vand.u32 %v3848, 4294901760
        %6184 = vmatmul.mubr.f32.gmra.mrb[0].mxu0 %v6183
        %v6185 = vpop.f32.mrb[0].mxu0
        %v6186 = vadd.f32 %v5797, %v6185
        %v6187 = vpop.f32.mrb[0].mxu0
        %v6188 = vadd.f32 %v5799, %v6187
        %6189 = vmatprep.mubr.f32.mxu0 0.0
        %v6190 = vand.u32 %v3851, 4294901760
        %6191 = vmatmul.mubr.f32.gmra.mrb[0].mxu0 %v6190
        %v6192 = vpop.f32.mrb[0].mxu0
        %v6193 = vadd.f32 %v5808, %v6192
        %v6194 = vpop.f32.mrb[0].mxu0
        %v6195 = vadd.f32 %v5810, %v6194
        %6196 = vmatprep.mubr.f32.mxu0 0.0
        %v6197 = vand.u32 %v3854, 4294901760
        %6198 = vmatmul.mubr.f32.gmra.mrb[0].mxu0 %v6197
        %v6199 = vpop.f32.mrb[0].mxu0
        %v6200 = vadd.f32 %v5819, %v6199
        %v6201 = vpop.f32.mrb[0].mxu0
        %v6202 = vadd.f32 %v5821, %v6201
        %6203 = vmatprep.mubr.f32.mxu0 0.0
        %v6204 = vand.u32 %v3857, 4294901760
        %6205 = vmatmul.mubr.f32.gmra.mrb[0].mxu0 %v6204
        %v6206 = vpop.f32.mrb[0].mxu0
        %v6207 = vadd.f32 %v5830, %v6206
        %v6208 = vpop.f32.mrb[0].mxu0
        %v6209 = vadd.f32 %v5832, %v6208
        %6210 = vmatprep.mubr.f32.mxu0 0.0
        %v6211 = vand.u32 %v3860, 4294901760
        %6212 = vmatmul.mubr.f32.gmra.mrb[0].mxu0 %v6211
        %v6213 = vpop.f32.mrb[0].mxu0
        %v6214 = vadd.f32 %v5841, %v6213
        %v6215 = vpop.f32.mrb[0].mxu0
        %v6216 = vadd.f32 %v5843, %v6215
        %6217 = vmatprep.mubr.f32.mxu0 0.0
        %v6218 = vand.u32 %v3863, 4294901760
        %6219 = vmatmul.mubr.f32.gmra.mrb[0].mxu0 %v6218
        %v6220 = vpop.f32.mrb[0].mxu0
        %v6221 = vadd.f32 %v5852, %v6220
        %v6222 = vpop.f32.mrb[0].mxu0
        %v6223 = vadd.f32 %v5854, %v6222
        %6224 = vmatprep.mubr.f32.mxu0 0.0
        %v6225 = vand.u32 %v3866, 4294901760
        %6226 = vmatmul.mubr.f32.gmra.mrb[0].mxu0 %v6225
        %v6227 = vpop.f32.mrb[0].mxu0
        %v6228 = vadd.f32 %v5863, %v6227
        %v6229 = vpop.f32.mrb[0].mxu0
        %v6230 = vadd.f32 %v5865, %v6229
        %6231 = vmatprep.mubr.f32.mxu0 0.0
        %v6232 = vand.u32 %v3869, 4294901760
        %6233 = vmatmul.mubr.f32.gmra.mrb[0].mxu0 %v6232
        %v6234 = vpop.f32.mrb[0].mxu0
        %v6235 = vadd.f32 %v5874, %v6234
        %v6236 = vpop.f32.mrb[0].mxu0
        %v6237 = vadd.f32 %v5876, %v6236
        %6238 = vmatprep.mubr.f32.mxu0 0.0
        %v6239 = vand.u32 %v3872, 4294901760
        %6240 = vmatmul.mubr.f32.gmra.mrb[0].mxu0 %v6239
        %v6241 = vpop.f32.mrb[0].mxu0
        %v6242 = vadd.f32 %v5885, %v6241
        %v6243 = vpop.f32.mrb[0].mxu0
        %v6244 = vadd.f32 %v5887, %v6243
        %6245 = vmatprep.mubr.f32.mxu0 0.0
        %v6246 = vand.u32 %v3875, 4294901760
        %6247 = vmatmul.mubr.f32.gmra.mrb[0].mxu0 %v6246
        %v6248 = vpop.f32.mrb[0].mxu0
        %v6249 = vadd.f32 %v5896, %v6248
        %v6250 = vpop.f32.mrb[0].mxu0
        %v6251 = vadd.f32 %v5898, %v6250
        %6252 = vmatprep.mubr.f32.mxu0 0.0
        %v6253 = vand.u32 %v3878, 4294901760
        %6254 = vmatmul.mubr.f32.gmra.mrb[0].mxu0 %v6253
        %v6255 = vpop.f32.mrb[0].mxu0
        %v6256 = vadd.f32 %v5907, %v6255
        %v6257 = vpop.f32.mrb[0].mxu0
        %v6258 = vadd.f32 %v5909, %v6257
        %6259 = vmatprep.mubr.f32.mxu0 0.0
        %v6260 = vand.u32 %v3881, 4294901760
        %6261 = vmatmul.mubr.f32.gmra.mrb[0].mxu0 %v6260
        %v6262 = vpop.f32.mrb[0].mxu0
        %v6263 = vadd.f32 %v5918, %v6262
        %v6264 = vpop.f32.mrb[0].mxu0
        %v6265 = vadd.f32 %v5920, %v6264
        %6266 = vmatprep.mubr.f32.mxu0 0.0
        %v6267 = vand.u32 %v3884, 4294901760
        %6268 = vmatmul.mubr.f32.gmra.mrb[0].mxu0 %v6267
        %v6269 = vpop.f32.mrb[0].mxu0
        %v6270 = vadd.f32 %v5929, %v6269
        %v6271 = vpop.f32.mrb[0].mxu0
        %v6272 = vadd.f32 %v5931, %v6271
        %6273 = vmatprep.mubr.f32.mxu0 0.0
        %v6274 = vand.u32 %v3887, 4294901760
        %6275 = vmatmul.mubr.f32.gmra.mrb[0].mxu0 %v6274
        %v6276 = vpop.f32.mrb[0].mxu0
        %v6277 = vadd.f32 %v5940, %v6276
        %v6278 = vpop.f32.mrb[0].mxu0
        %v6279 = vadd.f32 %v5942, %v6278
        %6280 = vdwg.mxu0
        %6281 = vmatprep.subr.mxu0 0.0
        %v6282 = vand.u32 %v3986, 4294901760
        %v6283 = vsub.f32 %v3986, %v6282
        %6284 = vmatpush1.xpose.msra.mxu0 %v6283
        %6285 = vmatprep.subr.mxu0 0.0
        %v6286 = vand.u32 %v3989, 4294901760
        %v6287 = vsub.f32 %v3989, %v6286
        %6288 = vmatpush1.xpose.msra.mxu0 %v6287
        %6289 = vmatprep.subr.mxu0 0.0
        %v6290 = vand.u32 %v3992, 4294901760
        %v6291 = vsub.f32 %v3992, %v6290
        %6292 = vmatpush1.xpose.msra.mxu0 %v6291
        %6293 = vmatprep.subr.mxu0 0.0
        %v6294 = vand.u32 %v3995, 4294901760
        %v6295 = vsub.f32 %v3995, %v6294
        %6296 = vmatpush1.xpose.msra.mxu0 %v6295
        %6297 = vmatprep.subr.mxu0 0.0
        %v6298 = vand.u32 %v3998, 4294901760
        %v6299 = vsub.f32 %v3998, %v6298
        %6300 = vmatpush1.xpose.msra.mxu0 %v6299
        %6301 = vmatprep.subr.mxu0 0.0
        %v6302 = vand.u32 %v4001, 4294901760
        %v6303 = vsub.f32 %v4001, %v6302
        %6304 = vmatpush1.xpose.msra.mxu0 %v6303
        %6305 = vmatprep.subr.mxu0 0.0
        %v6306 = vand.u32 %v4004, 4294901760
        %v6307 = vsub.f32 %v4004, %v6306
        %6308 = vmatpush1.xpose.msra.mxu0 %v6307
        %6309 = vmatprep.subr.mxu0 0.0
        %v6310 = vand.u32 %v4007, 4294901760
        %v6311 = vsub.f32 %v4007, %v6310
        %6312 = vmatpush1.xpose.msra.mxu0 %v6311
        %6313 = vmatprep.subr.mxu0 0.0
        %v6314 = vand.u32 %v4010, 4294901760
        %v6315 = vsub.f32 %v4010, %v6314
        %6316 = vmatpush1.xpose.msra.mxu0 %v6315
        %6317 = vmatprep.subr.mxu0 0.0
        %v6318 = vand.u32 %v4013, 4294901760
        %v6319 = vsub.f32 %v4013, %v6318
        %6320 = vmatpush1.xpose.msra.mxu0 %v6319
        %6321 = vmatprep.subr.mxu0 0.0
        %v6322 = vand.u32 %v4016, 4294901760
        %v6323 = vsub.f32 %v4016, %v6322
        %6324 = vmatpush1.xpose.msra.mxu0 %v6323
        %6325 = vmatprep.subr.mxu0 0.0
        %v6326 = vand.u32 %v4019, 4294901760
        %v6327 = vsub.f32 %v4019, %v6326
        %6328 = vmatpush1.xpose.msra.mxu0 %v6327
        %6329 = vmatprep.subr.mxu0 0.0
        %v6330 = vand.u32 %v4022, 4294901760
        %v6331 = vsub.f32 %v4022, %v6330
        %6332 = vmatpush1.xpose.msra.mxu0 %v6331
        %6333 = vmatprep.subr.mxu0 0.0
        %v6334 = vand.u32 %v4025, 4294901760
        %v6335 = vsub.f32 %v4025, %v6334
        %6336 = vmatpush1.xpose.msra.mxu0 %v6335
        %6337 = vmatprep.subr.mxu0 0.0
        %v6338 = vand.u32 %v4028, 4294901760
        %v6339 = vsub.f32 %v4028, %v6338
        %6340 = vmatpush1.xpose.msra.mxu0 %v6339
        %6341 = vmatprep.subr.mxu0 0.0
        %v6342 = vand.u32 %v4031, 4294901760
        %v6343 = vsub.f32 %v4031, %v6342
        %6344 = vmatpush1.xpose.msra.mxu0 %v6343
        %6345 = vmatprep.subr.mxu0 0.0
        %v6346 = vand.u32 %v4034, 4294901760
        %v6347 = vsub.f32 %v4034, %v6346
        %6348 = vmatpush1.xpose.msra.mxu0 %v6347
        %6349 = vmatprep.subr.mxu0 0.0
        %v6350 = vand.u32 %v4037, 4294901760
        %v6351 = vsub.f32 %v4037, %v6350
        %6352 = vmatpush1.xpose.msra.mxu0 %v6351
        %6353 = vmatprep.subr.mxu0 0.0
        %v6354 = vand.u32 %v4040, 4294901760
        %v6355 = vsub.f32 %v4040, %v6354
        %6356 = vmatpush1.xpose.msra.mxu0 %v6355
        %6357 = vmatprep.subr.mxu0 0.0
        %v6358 = vand.u32 %v4043, 4294901760
        %v6359 = vsub.f32 %v4043, %v6358
        %6360 = vmatpush1.xpose.msra.mxu0 %v6359
        %6361 = vmatprep.subr.mxu0 0.0
        %v6362 = vand.u32 %v4046, 4294901760
        %v6363 = vsub.f32 %v4046, %v6362
        %6364 = vmatpush1.xpose.msra.mxu0 %v6363
        %6365 = vmatprep.subr.mxu0 0.0
        %v6366 = vand.u32 %v4049, 4294901760
        %v6367 = vsub.f32 %v4049, %v6366
        %6368 = vmatpush1.xpose.msra.mxu0 %v6367
        %6369 = vmatprep.subr.mxu0 0.0
        %v6370 = vand.u32 %v4052, 4294901760
        %v6371 = vsub.f32 %v4052, %v6370
        %6372 = vmatpush1.xpose.msra.mxu0 %v6371
        %6373 = vmatprep.subr.mxu0 0.0
        %v6374 = vand.u32 %v4055, 4294901760
        %v6375 = vsub.f32 %v4055, %v6374
        %6376 = vmatpush1.xpose.msra.mxu0 %v6375
        %6377 = vmatprep.subr.mxu0 0.0
        %v6378 = vand.u32 %v4058, 4294901760
        %v6379 = vsub.f32 %v4058, %v6378
        %6380 = vmatpush1.xpose.msra.mxu0 %v6379
        %6381 = vmatprep.subr.mxu0 0.0
        %v6382 = vand.u32 %v4061, 4294901760
        %v6383 = vsub.f32 %v4061, %v6382
        %6384 = vmatpush1.xpose.msra.mxu0 %v6383
        %6385 = vmatprep.subr.mxu0 0.0
        %v6386 = vand.u32 %v4064, 4294901760
        %v6387 = vsub.f32 %v4064, %v6386
        %6388 = vmatpush1.xpose.msra.mxu0 %v6387
        %6389 = vmatprep.subr.mxu0 0.0
        %v6390 = vand.u32 %v4067, 4294901760
        %v6391 = vsub.f32 %v4067, %v6390
        %6392 = vmatpush1.xpose.msra.mxu0 %v6391
        %6393 = vmatprep.subr.mxu0 0.0
        %v6394 = vand.u32 %v4070, 4294901760
        %v6395 = vsub.f32 %v4070, %v6394
        %6396 = vmatpush1.xpose.msra.mxu0 %v6395
        %6397 = vmatprep.subr.mxu0 0.0
        %v6398 = vand.u32 %v4073, 4294901760
        %v6399 = vsub.f32 %v4073, %v6398
        %6400 = vmatpush1.xpose.msra.mxu0 %v6399
        %6401 = vmatprep.subr.mxu0 0.0
        %v6402 = vand.u32 %v4076, 4294901760
        %v6403 = vsub.f32 %v4076, %v6402
        %6404 = vmatpush1.xpose.msra.mxu0 %v6403
        %6405 = vmatprep.subr.mxu0 0.0
        %v6406 = vand.u32 %v4079, 4294901760
        %v6407 = vsub.f32 %v4079, %v6406
        %6408 = vmatpush1.xpose.msra.mxu0 %v6407
        %6409 = vmatprep.mubr.f32.mxu0 0.0
        %v6410 = vand.u32 %v3842, 4294901760
        %v6411 = vsub.f32 %v3842, %v6410
        %6412 = vmatmul.mubr.f32.gmra.mrb[0].mxu0 %v6411
        %v6413 = vpop.f32.mrb[0].mxu0
        %v6414 = vadd.f32 %v6172, %v6413
        %v6415 = vpop.f32.mrb[0].mxu0
        %v6416 = vadd.f32 %v6174, %v6415
        %6417 = vmatprep.mubr.f32.mxu0 0.0
        %v6418 = vand.u32 %v3845, 4294901760
        %v6419 = vsub.f32 %v3845, %v6418
        %6420 = vmatmul.mubr.f32.gmra.mrb[0].mxu0 %v6419
        %v6421 = vpop.f32.mrb[0].mxu0
        %v6422 = vadd.f32 %v6179, %v6421
        %v6423 = vpop.f32.mrb[0].mxu0
        %v6424 = vadd.f32 %v6181, %v6423
        %6425 = vmatprep.mubr.f32.mxu0 0.0
        %v6426 = vand.u32 %v3848, 4294901760
        %v6427 = vsub.f32 %v3848, %v6426
        %6428 = vmatmul.mubr.f32.gmra.mrb[0].mxu0 %v6427
        %v6429 = vpop.f32.mrb[0].mxu0
        %v6430 = vadd.f32 %v6186, %v6429
        %v6431 = vpop.f32.mrb[0].mxu0
        %v6432 = vadd.f32 %v6188, %v6431
        %6433 = vmatprep.mubr.f32.mxu0 0.0
        %v6434 = vand.u32 %v3851, 4294901760
        %v6435 = vsub.f32 %v3851, %v6434
        %6436 = vmatmul.mubr.f32.gmra.mrb[0].mxu0 %v6435
        %v6437 = vpop.f32.mrb[0].mxu0
        %v6438 = vadd.f32 %v6193, %v6437
        %v6439 = vpop.f32.mrb[0].mxu0
        %v6440 = vadd.f32 %v6195, %v6439
        %6441 = vmatprep.mubr.f32.mxu0 0.0
        %v6442 = vand.u32 %v3854, 4294901760
        %v6443 = vsub.f32 %v3854, %v6442
        %6444 = vmatmul.mubr.f32.gmra.mrb[0].mxu0 %v6443
        %v6445 = vpop.f32.mrb[0].mxu0
        %v6446 = vadd.f32 %v6200, %v6445
        %v6447 = vpop.f32.mrb[0].mxu0
        %v6448 = vadd.f32 %v6202, %v6447
        %6449 = vmatprep.mubr.f32.mxu0 0.0
        %v6450 = vand.u32 %v3857, 4294901760
        %v6451 = vsub.f32 %v3857, %v6450
        %6452 = vmatmul.mubr.f32.gmra.mrb[0].mxu0 %v6451
        %v6453 = vpop.f32.mrb[0].mxu0
        %v6454 = vadd.f32 %v6207, %v6453
        %v6455 = vpop.f32.mrb[0].mxu0
        %v6456 = vadd.f32 %v6209, %v6455
        %6457 = vmatprep.mubr.f32.mxu0 0.0
        %v6458 = vand.u32 %v3860, 4294901760
        %v6459 = vsub.f32 %v3860, %v6458
        %6460 = vmatmul.mubr.f32.gmra.mrb[0].mxu0 %v6459
        %v6461 = vpop.f32.mrb[0].mxu0
        %v6462 = vadd.f32 %v6214, %v6461
        %v6463 = vpop.f32.mrb[0].mxu0
        %v6464 = vadd.f32 %v6216, %v6463
        %6465 = vmatprep.mubr.f32.mxu0 0.0
        %v6466 = vand.u32 %v3863, 4294901760
        %v6467 = vsub.f32 %v3863, %v6466
        %6468 = vmatmul.mubr.f32.gmra.mrb[0].mxu0 %v6467
        %v6469 = vpop.f32.mrb[0].mxu0
        %v6470 = vadd.f32 %v6221, %v6469
        %v6471 = vpop.f32.mrb[0].mxu0
        %v6472 = vadd.f32 %v6223, %v6471
        %6473 = vmatprep.mubr.f32.mxu0 0.0
        %v6474 = vand.u32 %v3866, 4294901760
        %v6475 = vsub.f32 %v3866, %v6474
        %6476 = vmatmul.mubr.f32.gmra.mrb[0].mxu0 %v6475
        %v6477 = vpop.f32.mrb[0].mxu0
        %v6478 = vadd.f32 %v6228, %v6477
        %v6479 = vpop.f32.mrb[0].mxu0
        %v6480 = vadd.f32 %v6230, %v6479
        %6481 = vmatprep.mubr.f32.mxu0 0.0
        %v6482 = vand.u32 %v3869, 4294901760
        %v6483 = vsub.f32 %v3869, %v6482
        %6484 = vmatmul.mubr.f32.gmra.mrb[0].mxu0 %v6483
        %v6485 = vpop.f32.mrb[0].mxu0
        %v6486 = vadd.f32 %v6235, %v6485
        %v6487 = vpop.f32.mrb[0].mxu0
        %v6488 = vadd.f32 %v6237, %v6487
        %6489 = vmatprep.mubr.f32.mxu0 0.0
        %v6490 = vand.u32 %v3872, 4294901760
        %v6491 = vsub.f32 %v3872, %v6490
        %6492 = vmatmul.mubr.f32.gmra.mrb[0].mxu0 %v6491
        %v6493 = vpop.f32.mrb[0].mxu0
        %v6494 = vadd.f32 %v6242, %v6493
        %v6495 = vpop.f32.mrb[0].mxu0
        %v6496 = vadd.f32 %v6244, %v6495
        %6497 = vmatprep.mubr.f32.mxu0 0.0
        %v6498 = vand.u32 %v3875, 4294901760
        %v6499 = vsub.f32 %v3875, %v6498
        %6500 = vmatmul.mubr.f32.gmra.mrb[0].mxu0 %v6499
        %v6501 = vpop.f32.mrb[0].mxu0
        %v6502 = vadd.f32 %v6249, %v6501
        %v6503 = vpop.f32.mrb[0].mxu0
        %v6504 = vadd.f32 %v6251, %v6503
        %6505 = vmatprep.mubr.f32.mxu0 0.0
        %v6506 = vand.u32 %v3878, 4294901760
        %v6507 = vsub.f32 %v3878, %v6506
        %6508 = vmatmul.mubr.f32.gmra.mrb[0].mxu0 %v6507
        %v6509 = vpop.f32.mrb[0].mxu0
        %v6510 = vadd.f32 %v6256, %v6509
        %v6511 = vpop.f32.mrb[0].mxu0
        %v6512 = vadd.f32 %v6258, %v6511
        %6513 = vmatprep.mubr.f32.mxu0 0.0
        %v6514 = vand.u32 %v3881, 4294901760
        %v6515 = vsub.f32 %v3881, %v6514
        %6516 = vmatmul.mubr.f32.gmra.mrb[0].mxu0 %v6515
        %v6517 = vpop.f32.mrb[0].mxu0
        %v6518 = vadd.f32 %v6263, %v6517
        %v6519 = vpop.f32.mrb[0].mxu0
        %v6520 = vadd.f32 %v6265, %v6519
        %6521 = vmatprep.mubr.f32.mxu0 0.0
        %v6522 = vand.u32 %v3884, 4294901760
        %v6523 = vsub.f32 %v3884, %v6522
        %6524 = vmatmul.mubr.f32.gmra.mrb[0].mxu0 %v6523
        %v6525 = vpop.f32.mrb[0].mxu0
        %v6526 = vadd.f32 %v6270, %v6525
        %v6527 = vpop.f32.mrb[0].mxu0
        %v6528 = vadd.f32 %v6272, %v6527
        %6529 = vmatprep.mubr.f32.mxu0 0.0
        %v6530 = vand.u32 %v3887, 4294901760
        %v6531 = vsub.f32 %v3887, %v6530
        %6532 = vmatmul.mubr.f32.gmra.mrb[0].mxu0 %v6531
        %v6533 = vpop.f32.mrb[0].mxu0
        %v6534 = vadd.f32 %v6277, %v6533
        %v6535 = vpop.f32.mrb[0].mxu0
        %v6536 = vadd.f32 %v6279, %v6535
        %6537 = vdwg.mxu0
        %6538 = vmatprep.subr.mxu0 0.0
        %v6539 = vand.u32 %v3986, 4294901760
        %6540 = vmatpush1.xpose.msra.mxu0 %v6539
        %6541 = vmatprep.subr.mxu0 0.0
        %v6542 = vand.u32 %v3989, 4294901760
        %6543 = vmatpush1.xpose.msra.mxu0 %v6542
        %6544 = vmatprep.subr.mxu0 0.0
        %v6545 = vand.u32 %v3992, 4294901760
        %6546 = vmatpush1.xpose.msra.mxu0 %v6545
        %6547 = vmatprep.subr.mxu0 0.0
        %v6548 = vand.u32 %v3995, 4294901760
        %6549 = vmatpush1.xpose.msra.mxu0 %v6548
        %6550 = vmatprep.subr.mxu0 0.0
        %v6551 = vand.u32 %v3998, 4294901760
        %6552 = vmatpush1.xpose.msra.mxu0 %v6551
        %6553 = vmatprep.subr.mxu0 0.0
        %v6554 = vand.u32 %v4001, 4294901760
        %6555 = vmatpush1.xpose.msra.mxu0 %v6554
        %6556 = vmatprep.subr.mxu0 0.0
        %v6557 = vand.u32 %v4004, 4294901760
        %6558 = vmatpush1.xpose.msra.mxu0 %v6557
        %6559 = vmatprep.subr.mxu0 0.0
        %v6560 = vand.u32 %v4007, 4294901760
        %6561 = vmatpush1.xpose.msra.mxu0 %v6560
        %6562 = vmatprep.subr.mxu0 0.0
        %v6563 = vand.u32 %v4010, 4294901760
        %6564 = vmatpush1.xpose.msra.mxu0 %v6563
        %6565 = vmatprep.subr.mxu0 0.0
        %v6566 = vand.u32 %v4013, 4294901760
        %6567 = vmatpush1.xpose.msra.mxu0 %v6566
        %6568 = vmatprep.subr.mxu0 0.0
        %v6569 = vand.u32 %v4016, 4294901760
        %6570 = vmatpush1.xpose.msra.mxu0 %v6569
        %6571 = vmatprep.subr.mxu0 0.0
        %v6572 = vand.u32 %v4019, 4294901760
        %6573 = vmatpush1.xpose.msra.mxu0 %v6572
        %6574 = vmatprep.subr.mxu0 0.0
        %v6575 = vand.u32 %v4022, 4294901760
        %6576 = vmatpush1.xpose.msra.mxu0 %v6575
        %6577 = vmatprep.subr.mxu0 0.0
        %v6578 = vand.u32 %v4025, 4294901760
        %6579 = vmatpush1.xpose.msra.mxu0 %v6578
        %6580 = vmatprep.subr.mxu0 0.0
        %v6581 = vand.u32 %v4028, 4294901760
        %6582 = vmatpush1.xpose.msra.mxu0 %v6581
        %6583 = vmatprep.subr.mxu0 0.0
        %v6584 = vand.u32 %v4031, 4294901760
        %6585 = vmatpush1.xpose.msra.mxu0 %v6584
        %6586 = vmatprep.subr.mxu0 0.0
        %v6587 = vand.u32 %v4034, 4294901760
        %6588 = vmatpush1.xpose.msra.mxu0 %v6587
        %6589 = vmatprep.subr.mxu0 0.0
        %v6590 = vand.u32 %v4037, 4294901760
        %6591 = vmatpush1.xpose.msra.mxu0 %v6590
        %6592 = vmatprep.subr.mxu0 0.0
        %v6593 = vand.u32 %v4040, 4294901760
        %6594 = vmatpush1.xpose.msra.mxu0 %v6593
        %6595 = vmatprep.subr.mxu0 0.0
        %v6596 = vand.u32 %v4043, 4294901760
        %6597 = vmatpush1.xpose.msra.mxu0 %v6596
        %6598 = vmatprep.subr.mxu0 0.0
        %v6599 = vand.u32 %v4046, 4294901760
        %6600 = vmatpush1.xpose.msra.mxu0 %v6599
        %6601 = vmatprep.subr.mxu0 0.0
        %v6602 = vand.u32 %v4049, 4294901760
        %6603 = vmatpush1.xpose.msra.mxu0 %v6602
        %6604 = vmatprep.subr.mxu0 0.0
        %v6605 = vand.u32 %v4052, 4294901760
        %6606 = vmatpush1.xpose.msra.mxu0 %v6605
        %6607 = vmatprep.subr.mxu0 0.0
        %v6608 = vand.u32 %v4055, 4294901760
        %6609 = vmatpush1.xpose.msra.mxu0 %v6608
        %6610 = vmatprep.subr.mxu0 0.0
        %v6611 = vand.u32 %v4058, 4294901760
        %6612 = vmatpush1.xpose.msra.mxu0 %v6611
        %6613 = vmatprep.subr.mxu0 0.0
        %v6614 = vand.u32 %v4061, 4294901760
        %6615 = vmatpush1.xpose.msra.mxu0 %v6614
        %6616 = vmatprep.subr.mxu0 0.0
        %v6617 = vand.u32 %v4064, 4294901760
        %6618 = vmatpush1.xpose.msra.mxu0 %v6617
        %6619 = vmatprep.subr.mxu0 0.0
        %v6620 = vand.u32 %v4067, 4294901760
        %6621 = vmatpush1.xpose.msra.mxu0 %v6620
        %6622 = vmatprep.subr.mxu0 0.0
        %v6623 = vand.u32 %v4070, 4294901760
        %6624 = vmatpush1.xpose.msra.mxu0 %v6623
        %6625 = vmatprep.subr.mxu0 0.0
        %v6626 = vand.u32 %v4073, 4294901760
        %6627 = vmatpush1.xpose.msra.mxu0 %v6626
        %6628 = vmatprep.subr.mxu0 0.0
        %v6629 = vand.u32 %v4076, 4294901760
        %6630 = vmatpush1.xpose.msra.mxu0 %v6629
        %6631 = vmatprep.subr.mxu0 0.0
        %v6632 = vand.u32 %v4079, 4294901760
        %6633 = vmatpush1.xpose.msra.mxu0 %v6632
        %6634 = vmatprep.mubr.f32.mxu0 0.0
        %v6635 = vand.u32 %v3842, 4294901760
        %v6636 = vsub.f32 %v3842, %v6635
        %v6637 = vand.u32 %v6636, 4294901760
        %6638 = vmatmul.mubr.f32.gmra.mrb[0].mxu0 %v6637
        %v6639 = vpop.f32.mrb[0].mxu0
        %v6640 = vadd.f32 %v6414, %v6639
        %v6641 = vpop.f32.mrb[0].mxu0
        %v6642 = vadd.f32 %v6416, %v6641
        %6643 = vmatprep.mubr.f32.mxu0 0.0
        %v6644 = vand.u32 %v3845, 4294901760
        %v6645 = vsub.f32 %v3845, %v6644
        %v6646 = vand.u32 %v6645, 4294901760
        %6647 = vmatmul.mubr.f32.gmra.mrb[0].mxu0 %v6646
        %v6648 = vpop.f32.mrb[0].mxu0
        %v6649 = vadd.f32 %v6422, %v6648
        %v6650 = vpop.f32.mrb[0].mxu0
        %v6651 = vadd.f32 %v6424, %v6650
        %6652 = vmatprep.mubr.f32.mxu0 0.0
        %v6653 = vand.u32 %v3848, 4294901760
        %v6654 = vsub.f32 %v3848, %v6653
        %v6655 = vand.u32 %v6654, 4294901760
        %6656 = vmatmul.mubr.f32.gmra.mrb[0].mxu0 %v6655
        %v6657 = vpop.f32.mrb[0].mxu0
        %v6658 = vadd.f32 %v6430, %v6657
        %v6659 = vpop.f32.mrb[0].mxu0
        %v6660 = vadd.f32 %v6432, %v6659
        %6661 = vmatprep.mubr.f32.mxu0 0.0
        %v6662 = vand.u32 %v3851, 4294901760
        %v6663 = vsub.f32 %v3851, %v6662
        %v6664 = vand.u32 %v6663, 4294901760
        %6665 = vmatmul.mubr.f32.gmra.mrb[0].mxu0 %v6664
        %v6666 = vpop.f32.mrb[0].mxu0
        %v6667 = vadd.f32 %v6438, %v6666
        %v6668 = vpop.f32.mrb[0].mxu0
        %v6669 = vadd.f32 %v6440, %v6668
        %6670 = vmatprep.mubr.f32.mxu0 0.0
        %v6671 = vand.u32 %v3854, 4294901760
        %v6672 = vsub.f32 %v3854, %v6671
        %v6673 = vand.u32 %v6672, 4294901760
        %6674 = vmatmul.mubr.f32.gmra.mrb[0].mxu0 %v6673
        %v6675 = vpop.f32.mrb[0].mxu0
        %v6676 = vadd.f32 %v6446, %v6675
        %v6677 = vpop.f32.mrb[0].mxu0
        %v6678 = vadd.f32 %v6448, %v6677
        %6679 = vmatprep.mubr.f32.mxu0 0.0
        %v6680 = vand.u32 %v3857, 4294901760
        %v6681 = vsub.f32 %v3857, %v6680
        %v6682 = vand.u32 %v6681, 4294901760
        %6683 = vmatmul.mubr.f32.gmra.mrb[0].mxu0 %v6682
        %v6684 = vpop.f32.mrb[0].mxu0
        %v6685 = vadd.f32 %v6454, %v6684
        %v6686 = vpop.f32.mrb[0].mxu0
        %v6687 = vadd.f32 %v6456, %v6686
        %6688 = vmatprep.mubr.f32.mxu0 0.0
        %v6689 = vand.u32 %v3860, 4294901760
        %v6690 = vsub.f32 %v3860, %v6689
        %v6691 = vand.u32 %v6690, 4294901760
        %6692 = vmatmul.mubr.f32.gmra.mrb[0].mxu0 %v6691
        %v6693 = vpop.f32.mrb[0].mxu0
        %v6694 = vadd.f32 %v6462, %v6693
        %v6695 = vpop.f32.mrb[0].mxu0
        %v6696 = vadd.f32 %v6464, %v6695
        %6697 = vmatprep.mubr.f32.mxu0 0.0
        %v6698 = vand.u32 %v3863, 4294901760
        %v6699 = vsub.f32 %v3863, %v6698
        %v6700 = vand.u32 %v6699, 4294901760
        %6701 = vmatmul.mubr.f32.gmra.mrb[0].mxu0 %v6700
        %v6702 = vpop.f32.mrb[0].mxu0
        %v6703 = vadd.f32 %v6470, %v6702
        %v6704 = vpop.f32.mrb[0].mxu0
        %v6705 = vadd.f32 %v6472, %v6704
        %6706 = vmatprep.mubr.f32.mxu0 0.0
        %v6707 = vand.u32 %v3866, 4294901760
        %v6708 = vsub.f32 %v3866, %v6707
        %v6709 = vand.u32 %v6708, 4294901760
        %6710 = vmatmul.mubr.f32.gmra.mrb[0].mxu0 %v6709
        %v6711 = vpop.f32.mrb[0].mxu0
        %v6712 = vadd.f32 %v6478, %v6711
        %v6713 = vpop.f32.mrb[0].mxu0
        %v6714 = vadd.f32 %v6480, %v6713
        %6715 = vmatprep.mubr.f32.mxu0 0.0
        %v6716 = vand.u32 %v3869, 4294901760
        %v6717 = vsub.f32 %v3869, %v6716
        %v6718 = vand.u32 %v6717, 4294901760
        %6719 = vmatmul.mubr.f32.gmra.mrb[0].mxu0 %v6718
        %v6720 = vpop.f32.mrb[0].mxu0
        %v6721 = vadd.f32 %v6486, %v6720
        %v6722 = vpop.f32.mrb[0].mxu0
        %v6723 = vadd.f32 %v6488, %v6722
        %6724 = vmatprep.mubr.f32.mxu0 0.0
        %v6725 = vand.u32 %v3872, 4294901760
        %v6726 = vsub.f32 %v3872, %v6725
        %v6727 = vand.u32 %v6726, 4294901760
        %6728 = vmatmul.mubr.f32.gmra.mrb[0].mxu0 %v6727
        %v6729 = vpop.f32.mrb[0].mxu0
        %v6730 = vadd.f32 %v6494, %v6729
        %v6731 = vpop.f32.mrb[0].mxu0
        %v6732 = vadd.f32 %v6496, %v6731
        %6733 = vmatprep.mubr.f32.mxu0 0.0
        %v6734 = vand.u32 %v3875, 4294901760
        %v6735 = vsub.f32 %v3875, %v6734
        %v6736 = vand.u32 %v6735, 4294901760
        %6737 = vmatmul.mubr.f32.gmra.mrb[0].mxu0 %v6736
        %v6738 = vpop.f32.mrb[0].mxu0
        %v6739 = vadd.f32 %v6502, %v6738
        %v6740 = vpop.f32.mrb[0].mxu0
        %v6741 = vadd.f32 %v6504, %v6740
        %6742 = vmatprep.mubr.f32.mxu0 0.0
        %v6743 = vand.u32 %v3878, 4294901760
        %v6744 = vsub.f32 %v3878, %v6743
        %v6745 = vand.u32 %v6744, 4294901760
        %6746 = vmatmul.mubr.f32.gmra.mrb[0].mxu0 %v6745
        %v6747 = vpop.f32.mrb[0].mxu0
        %v6748 = vadd.f32 %v6510, %v6747
        %v6749 = vpop.f32.mrb[0].mxu0
        %v6750 = vadd.f32 %v6512, %v6749
        %6751 = vmatprep.mubr.f32.mxu0 0.0
        %v6752 = vand.u32 %v3881, 4294901760
        %v6753 = vsub.f32 %v3881, %v6752
        %v6754 = vand.u32 %v6753, 4294901760
        %6755 = vmatmul.mubr.f32.gmra.mrb[0].mxu0 %v6754
        %v6756 = vpop.f32.mrb[0].mxu0
        %v6757 = vadd.f32 %v6518, %v6756
        %v6758 = vpop.f32.mrb[0].mxu0
        %v6759 = vadd.f32 %v6520, %v6758
        %6760 = vmatprep.mubr.f32.mxu0 0.0
        %v6761 = vand.u32 %v3884, 4294901760
        %v6762 = vsub.f32 %v3884, %v6761
        %v6763 = vand.u32 %v6762, 4294901760
        %6764 = vmatmul.mubr.f32.gmra.mrb[0].mxu0 %v6763
        %v6765 = vpop.f32.mrb[0].mxu0
        %v6766 = vadd.f32 %v6526, %v6765
        %v6767 = vpop.f32.mrb[0].mxu0
        %v6768 = vadd.f32 %v6528, %v6767
        %6769 = vmatprep.mubr.f32.mxu0 0.0
        %v6770 = vand.u32 %v3887, 4294901760
        %v6771 = vsub.f32 %v3887, %v6770
        %v6772 = vand.u32 %v6771, 4294901760
        %6773 = vmatmul.mubr.f32.gmra.mrb[0].mxu0 %v6772
        %v6774 = vpop.f32.mrb[0].mxu0
        %v6775 = vadd.f32 %v6534, %v6774
        %v6776 = vpop.f32.mrb[0].mxu0
        %v6777 = vadd.f32 %v6536, %v6776
        %6778 = vdwg.mxu0
        %6779 = vmatprep.subr.mxu0 0.0
        %v6780 = vand.u32 %v3986, 4294901760
        %v6781 = vsub.f32 %v3986, %v6780
        %v6782 = vand.u32 %v6781, 4294901760
        %6783 = vmatpush1.xpose.msra.mxu0 %v6782
        %6784 = vmatprep.subr.mxu0 0.0
        %v6785 = vand.u32 %v3989, 4294901760
        %v6786 = vsub.f32 %v3989, %v6785
        %v6787 = vand.u32 %v6786, 4294901760
        %6788 = vmatpush1.xpose.msra.mxu0 %v6787
        %6789 = vmatprep.subr.mxu0 0.0
        %v6790 = vand.u32 %v3992, 4294901760
        %v6791 = vsub.f32 %v3992, %v6790
        %v6792 = vand.u32 %v6791, 4294901760
        %6793 = vmatpush1.xpose.msra.mxu0 %v6792
        %6794 = vmatprep.subr.mxu0 0.0
        %v6795 = vand.u32 %v3995, 4294901760
        %v6796 = vsub.f32 %v3995, %v6795
        %v6797 = vand.u32 %v6796, 4294901760
        %6798 = vmatpush1.xpose.msra.mxu0 %v6797
        %6799 = vmatprep.subr.mxu0 0.0
        %v6800 = vand.u32 %v3998, 4294901760
        %v6801 = vsub.f32 %v3998, %v6800
        %v6802 = vand.u32 %v6801, 4294901760
        %6803 = vmatpush1.xpose.msra.mxu0 %v6802
        %6804 = vmatprep.subr.mxu0 0.0
        %v6805 = vand.u32 %v4001, 4294901760
        %v6806 = vsub.f32 %v4001, %v6805
        %v6807 = vand.u32 %v6806, 4294901760
        %6808 = vmatpush1.xpose.msra.mxu0 %v6807
        %6809 = vmatprep.subr.mxu0 0.0
        %v6810 = vand.u32 %v4004, 4294901760
        %v6811 = vsub.f32 %v4004, %v6810
        %v6812 = vand.u32 %v6811, 4294901760
        %6813 = vmatpush1.xpose.msra.mxu0 %v6812
        %6814 = vmatprep.subr.mxu0 0.0
        %v6815 = vand.u32 %v4007, 4294901760
        %v6816 = vsub.f32 %v4007, %v6815
        %v6817 = vand.u32 %v6816, 4294901760
        %6818 = vmatpush1.xpose.msra.mxu0 %v6817
        %6819 = vmatprep.subr.mxu0 0.0
        %v6820 = vand.u32 %v4010, 4294901760
        %v6821 = vsub.f32 %v4010, %v6820
        %v6822 = vand.u32 %v6821, 4294901760
        %6823 = vmatpush1.xpose.msra.mxu0 %v6822
        %6824 = vmatprep.subr.mxu0 0.0
        %v6825 = vand.u32 %v4013, 4294901760
        %v6826 = vsub.f32 %v4013, %v6825
        %v6827 = vand.u32 %v6826, 4294901760
        %6828 = vmatpush1.xpose.msra.mxu0 %v6827
        %6829 = vmatprep.subr.mxu0 0.0
        %v6830 = vand.u32 %v4016, 4294901760
        %v6831 = vsub.f32 %v4016, %v6830
        %v6832 = vand.u32 %v6831, 4294901760
        %6833 = vmatpush1.xpose.msra.mxu0 %v6832
        %6834 = vmatprep.subr.mxu0 0.0
        %v6835 = vand.u32 %v4019, 4294901760
        %v6836 = vsub.f32 %v4019, %v6835
        %v6837 = vand.u32 %v6836, 4294901760
        %6838 = vmatpush1.xpose.msra.mxu0 %v6837
        %6839 = vmatprep.subr.mxu0 0.0
        %v6840 = vand.u32 %v4022, 4294901760
        %v6841 = vsub.f32 %v4022, %v6840
        %v6842 = vand.u32 %v6841, 4294901760
        %6843 = vmatpush1.xpose.msra.mxu0 %v6842
        %6844 = vmatprep.subr.mxu0 0.0
        %v6845 = vand.u32 %v4025, 4294901760
        %v6846 = vsub.f32 %v4025, %v6845
        %v6847 = vand.u32 %v6846, 4294901760
        %6848 = vmatpush1.xpose.msra.mxu0 %v6847
        %6849 = vmatprep.subr.mxu0 0.0
        %v6850 = vand.u32 %v4028, 4294901760
        %v6851 = vsub.f32 %v4028, %v6850
        %v6852 = vand.u32 %v6851, 4294901760
        %6853 = vmatpush1.xpose.msra.mxu0 %v6852
        %6854 = vmatprep.subr.mxu0 0.0
        %v6855 = vand.u32 %v4031, 4294901760
        %v6856 = vsub.f32 %v4031, %v6855
        %v6857 = vand.u32 %v6856, 4294901760
        %6858 = vmatpush1.xpose.msra.mxu0 %v6857
        %6859 = vmatprep.subr.mxu0 0.0
        %v6860 = vand.u32 %v4034, 4294901760
        %v6861 = vsub.f32 %v4034, %v6860
        %v6862 = vand.u32 %v6861, 4294901760
        %6863 = vmatpush1.xpose.msra.mxu0 %v6862
        %6864 = vmatprep.subr.mxu0 0.0
        %v6865 = vand.u32 %v4037, 4294901760
        %v6866 = vsub.f32 %v4037, %v6865
        %v6867 = vand.u32 %v6866, 4294901760
        %6868 = vmatpush1.xpose.msra.mxu0 %v6867
        %6869 = vmatprep.subr.mxu0 0.0
        %v6870 = vand.u32 %v4040, 4294901760
        %v6871 = vsub.f32 %v4040, %v6870
        %v6872 = vand.u32 %v6871, 4294901760
        %6873 = vmatpush1.xpose.msra.mxu0 %v6872
        %6874 = vmatprep.subr.mxu0 0.0
        %v6875 = vand.u32 %v4043, 4294901760
        %v6876 = vsub.f32 %v4043, %v6875
        %v6877 = vand.u32 %v6876, 4294901760
        %6878 = vmatpush1.xpose.msra.mxu0 %v6877
        %6879 = vmatprep.subr.mxu0 0.0
        %v6880 = vand.u32 %v4046, 4294901760
        %v6881 = vsub.f32 %v4046, %v6880
        %v6882 = vand.u32 %v6881, 4294901760
        %6883 = vmatpush1.xpose.msra.mxu0 %v6882
        %6884 = vmatprep.subr.mxu0 0.0
        %v6885 = vand.u32 %v4049, 4294901760
        %v6886 = vsub.f32 %v4049, %v6885
        %v6887 = vand.u32 %v6886, 4294901760
        %6888 = vmatpush1.xpose.msra.mxu0 %v6887
        %6889 = vmatprep.subr.mxu0 0.0
        %v6890 = vand.u32 %v4052, 4294901760
        %v6891 = vsub.f32 %v4052, %v6890
        %v6892 = vand.u32 %v6891, 4294901760
        %6893 = vmatpush1.xpose.msra.mxu0 %v6892
        %6894 = vmatprep.subr.mxu0 0.0
        %v6895 = vand.u32 %v4055, 4294901760
        %v6896 = vsub.f32 %v4055, %v6895
        %v6897 = vand.u32 %v6896, 4294901760
        %6898 = vmatpush1.xpose.msra.mxu0 %v6897
        %6899 = vmatprep.subr.mxu0 0.0
        %v6900 = vand.u32 %v4058, 4294901760
        %v6901 = vsub.f32 %v4058, %v6900
        %v6902 = vand.u32 %v6901, 4294901760
        %6903 = vmatpush1.xpose.msra.mxu0 %v6902
        %6904 = vmatprep.subr.mxu0 0.0
        %v6905 = vand.u32 %v4061, 4294901760
        %v6906 = vsub.f32 %v4061, %v6905
        %v6907 = vand.u32 %v6906, 4294901760
        %6908 = vmatpush1.xpose.msra.mxu0 %v6907
        %6909 = vmatprep.subr.mxu0 0.0
        %v6910 = vand.u32 %v4064, 4294901760
        %v6911 = vsub.f32 %v4064, %v6910
        %v6912 = vand.u32 %v6911, 4294901760
        %6913 = vmatpush1.xpose.msra.mxu0 %v6912
        %6914 = vmatprep.subr.mxu0 0.0
        %v6915 = vand.u32 %v4067, 4294901760
        %v6916 = vsub.f32 %v4067, %v6915
        %v6917 = vand.u32 %v6916, 4294901760
        %6918 = vmatpush1.xpose.msra.mxu0 %v6917
        %6919 = vmatprep.subr.mxu0 0.0
        %v6920 = vand.u32 %v4070, 4294901760
        %v6921 = vsub.f32 %v4070, %v6920
        %v6922 = vand.u32 %v6921, 4294901760
        %6923 = vmatpush1.xpose.msra.mxu0 %v6922
        %6924 = vmatprep.subr.mxu0 0.0
        %v6925 = vand.u32 %v4073, 4294901760
        %v6926 = vsub.f32 %v4073, %v6925
        %v6927 = vand.u32 %v6926, 4294901760
        %6928 = vmatpush1.xpose.msra.mxu0 %v6927
        %6929 = vmatprep.subr.mxu0 0.0
        %v6930 = vand.u32 %v4076, 4294901760
        %v6931 = vsub.f32 %v4076, %v6930
        %v6932 = vand.u32 %v6931, 4294901760
        %6933 = vmatpush1.xpose.msra.mxu0 %v6932
        %6934 = vmatprep.subr.mxu0 0.0
        %v6935 = vand.u32 %v4079, 4294901760
        %v6936 = vsub.f32 %v4079, %v6935
        %v6937 = vand.u32 %v6936, 4294901760
        %6938 = vmatpush1.xpose.msra.mxu0 %v6937
        %6939 = vmatprep.mubr.f32.mxu0 0.0
        %v6940 = vand.u32 %v3842, 4294901760
        %6941 = vmatmul.mubr.f32.gmra.mrb[0].mxu0 %v6940
        %v6942 = vpop.f32.mrb[0].mxu0
        %v6943 = vadd.f32 %v6640, %v6942
        %v6944 = vpop.f32.mrb[0].mxu0
        %v6945 = vadd.f32 %v6642, %v6944
        %6946 = vmatprep.mubr.f32.mxu0 0.0
        %v6947 = vand.u32 %v3845, 4294901760
        %6948 = vmatmul.mubr.f32.gmra.mrb[0].mxu0 %v6947
        %v6949 = vpop.f32.mrb[0].mxu0
        %v6950 = vadd.f32 %v6649, %v6949
        %v6951 = vpop.f32.mrb[0].mxu0
        %v6952 = vadd.f32 %v6651, %v6951
        %6953 = vmatprep.mubr.f32.mxu0 0.0
        %v6954 = vand.u32 %v3848, 4294901760
        %6955 = vmatmul.mubr.f32.gmra.mrb[0].mxu0 %v6954
        %v6956 = vpop.f32.mrb[0].mxu0
        %v6957 = vadd.f32 %v6658, %v6956
        %v6958 = vpop.f32.mrb[0].mxu0
        %v6959 = vadd.f32 %v6660, %v6958
        %6960 = vmatprep.mubr.f32.mxu0 0.0
        %v6961 = vand.u32 %v3851, 4294901760
        %6962 = vmatmul.mubr.f32.gmra.mrb[0].mxu0 %v6961
        %v6963 = vpop.f32.mrb[0].mxu0
        %v6964 = vadd.f32 %v6667, %v6963
        %v6965 = vpop.f32.mrb[0].mxu0
        %v6966 = vadd.f32 %v6669, %v6965
        %6967 = vmatprep.mubr.f32.mxu0 0.0
        %v6968 = vand.u32 %v3854, 4294901760
        %6969 = vmatmul.mubr.f32.gmra.mrb[0].mxu0 %v6968
        %v6970 = vpop.f32.mrb[0].mxu0
        %v6971 = vadd.f32 %v6676, %v6970
        %v6972 = vpop.f32.mrb[0].mxu0
        %v6973 = vadd.f32 %v6678, %v6972
        %6974 = vmatprep.mubr.f32.mxu0 0.0
        %v6975 = vand.u32 %v3857, 4294901760
        %6976 = vmatmul.mubr.f32.gmra.mrb[0].mxu0 %v6975
        %v6977 = vpop.f32.mrb[0].mxu0
        %v6978 = vadd.f32 %v6685, %v6977
        %v6979 = vpop.f32.mrb[0].mxu0
        %v6980 = vadd.f32 %v6687, %v6979
        %6981 = vmatprep.mubr.f32.mxu0 0.0
        %v6982 = vand.u32 %v3860, 4294901760
        %6983 = vmatmul.mubr.f32.gmra.mrb[0].mxu0 %v6982
        %v6984 = vpop.f32.mrb[0].mxu0
        %v6985 = vadd.f32 %v6694, %v6984
        %v6986 = vpop.f32.mrb[0].mxu0
        %v6987 = vadd.f32 %v6696, %v6986
        %6988 = vmatprep.mubr.f32.mxu0 0.0
        %v6989 = vand.u32 %v3863, 4294901760
        %6990 = vmatmul.mubr.f32.gmra.mrb[0].mxu0 %v6989
        %v6991 = vpop.f32.mrb[0].mxu0
        %v6992 = vadd.f32 %v6703, %v6991
        %v6993 = vpop.f32.mrb[0].mxu0
        %v6994 = vadd.f32 %v6705, %v6993
        %6995 = vmatprep.mubr.f32.mxu0 0.0
        %v6996 = vand.u32 %v3866, 4294901760
        %6997 = vmatmul.mubr.f32.gmra.mrb[0].mxu0 %v6996
        %v6998 = vpop.f32.mrb[0].mxu0
        %v6999 = vadd.f32 %v6712, %v6998
        %v7000 = vpop.f32.mrb[0].mxu0
        %v7001 = vadd.f32 %v6714, %v7000
        %7002 = vmatprep.mubr.f32.mxu0 0.0
        %v7003 = vand.u32 %v3869, 4294901760
        %7004 = vmatmul.mubr.f32.gmra.mrb[0].mxu0 %v7003
        %v7005 = vpop.f32.mrb[0].mxu0
        %v7006 = vadd.f32 %v6721, %v7005
        %v7007 = vpop.f32.mrb[0].mxu0
        %v7008 = vadd.f32 %v6723, %v7007
        %7009 = vmatprep.mubr.f32.mxu0 0.0
        %v7010 = vand.u32 %v3872, 4294901760
        %7011 = vmatmul.mubr.f32.gmra.mrb[0].mxu0 %v7010
        %v7012 = vpop.f32.mrb[0].mxu0
        %v7013 = vadd.f32 %v6730, %v7012
        %v7014 = vpop.f32.mrb[0].mxu0
        %v7015 = vadd.f32 %v6732, %v7014
        %7016 = vmatprep.mubr.f32.mxu0 0.0
        %v7017 = vand.u32 %v3875, 4294901760
        %7018 = vmatmul.mubr.f32.gmra.mrb[0].mxu0 %v7017
        %v7019 = vpop.f32.mrb[0].mxu0
        %v7020 = vadd.f32 %v6739, %v7019
        %v7021 = vpop.f32.mrb[0].mxu0
        %v7022 = vadd.f32 %v6741, %v7021
        %7023 = vmatprep.mubr.f32.mxu0 0.0
        %v7024 = vand.u32 %v3878, 4294901760
        %7025 = vmatmul.mubr.f32.gmra.mrb[0].mxu0 %v7024
        %v7026 = vpop.f32.mrb[0].mxu0
        %v7027 = vadd.f32 %v6748, %v7026
        %v7028 = vpop.f32.mrb[0].mxu0
        %v7029 = vadd.f32 %v6750, %v7028
        %7030 = vmatprep.mubr.f32.mxu0 0.0
        %v7031 = vand.u32 %v3881, 4294901760
        %7032 = vmatmul.mubr.f32.gmra.mrb[0].mxu0 %v7031
        %v7033 = vpop.f32.mrb[0].mxu0
        %v7034 = vadd.f32 %v6757, %v7033
        %v7035 = vpop.f32.mrb[0].mxu0
        %v7036 = vadd.f32 %v6759, %v7035
        %7037 = vmatprep.mubr.f32.mxu0 0.0
        %v7038 = vand.u32 %v3884, 4294901760
        %7039 = vmatmul.mubr.f32.gmra.mrb[0].mxu0 %v7038
        %v7040 = vpop.f32.mrb[0].mxu0
        %v7041 = vadd.f32 %v6766, %v7040
        %v7042 = vpop.f32.mrb[0].mxu0
        %v7043 = vadd.f32 %v6768, %v7042
        %7044 = vmatprep.mubr.f32.mxu0 0.0
        %v7045 = vand.u32 %v3887, 4294901760
        %7046 = vmatmul.mubr.f32.gmra.mrb[0].mxu0 %v7045
        %v7047 = vpop.f32.mrb[0].mxu0
        %v7048 = vadd.f32 %v6775, %v7047
        %v7049 = vpop.f32.mrb[0].mxu0
        %v7050 = vadd.f32 %v6777, %v7049
        %7051 = vdwg.mxu0
        %7052 = vmatprep.subr.mxu0 0.0
        %v7053 = vand.u32 %v3986, 4294901760
        %7054 = vmatpush1.xpose.msra.mxu0 %v7053
        %7055 = vmatprep.subr.mxu0 0.0
        %v7056 = vand.u32 %v3989, 4294901760
        %7057 = vmatpush1.xpose.msra.mxu0 %v7056
        %7058 = vmatprep.subr.mxu0 0.0
        %v7059 = vand.u32 %v3992, 4294901760
        %7060 = vmatpush1.xpose.msra.mxu0 %v7059
        %7061 = vmatprep.subr.mxu0 0.0
        %v7062 = vand.u32 %v3995, 4294901760
        %7063 = vmatpush1.xpose.msra.mxu0 %v7062
        %7064 = vmatprep.subr.mxu0 0.0
        %v7065 = vand.u32 %v3998, 4294901760
        %7066 = vmatpush1.xpose.msra.mxu0 %v7065
        %7067 = vmatprep.subr.mxu0 0.0
        %v7068 = vand.u32 %v4001, 4294901760
        %7069 = vmatpush1.xpose.msra.mxu0 %v7068
        %7070 = vmatprep.subr.mxu0 0.0
        %v7071 = vand.u32 %v4004, 4294901760
        %7072 = vmatpush1.xpose.msra.mxu0 %v7071
        %7073 = vmatprep.subr.mxu0 0.0
        %v7074 = vand.u32 %v4007, 4294901760
        %7075 = vmatpush1.xpose.msra.mxu0 %v7074
        %7076 = vmatprep.subr.mxu0 0.0
        %v7077 = vand.u32 %v4010, 4294901760
        %7078 = vmatpush1.xpose.msra.mxu0 %v7077
        %7079 = vmatprep.subr.mxu0 0.0
        %v7080 = vand.u32 %v4013, 4294901760
        %7081 = vmatpush1.xpose.msra.mxu0 %v7080
        %7082 = vmatprep.subr.mxu0 0.0
        %v7083 = vand.u32 %v4016, 4294901760
        %7084 = vmatpush1.xpose.msra.mxu0 %v7083
        %7085 = vmatprep.subr.mxu0 0.0
        %v7086 = vand.u32 %v4019, 4294901760
        %7087 = vmatpush1.xpose.msra.mxu0 %v7086
        %7088 = vmatprep.subr.mxu0 0.0
        %v7089 = vand.u32 %v4022, 4294901760
        %7090 = vmatpush1.xpose.msra.mxu0 %v7089
        %7091 = vmatprep.subr.mxu0 0.0
        %v7092 = vand.u32 %v4025, 4294901760
        %7093 = vmatpush1.xpose.msra.mxu0 %v7092
        %7094 = vmatprep.subr.mxu0 0.0
        %v7095 = vand.u32 %v4028, 4294901760
        %7096 = vmatpush1.xpose.msra.mxu0 %v7095
        %7097 = vmatprep.subr.mxu0 0.0
        %v7098 = vand.u32 %v4031, 4294901760
        %7099 = vmatpush1.xpose.msra.mxu0 %v7098
        %7100 = vmatprep.subr.mxu0 0.0
        %v7101 = vand.u32 %v4034, 4294901760
        %7102 = vmatpush1.xpose.msra.mxu0 %v7101
        %7103 = vmatprep.subr.mxu0 0.0
        %v7104 = vand.u32 %v4037, 4294901760
        %7105 = vmatpush1.xpose.msra.mxu0 %v7104
        %7106 = vmatprep.subr.mxu0 0.0
        %v7107 = vand.u32 %v4040, 4294901760
        %7108 = vmatpush1.xpose.msra.mxu0 %v7107
        %7109 = vmatprep.subr.mxu0 0.0
        %v7110 = vand.u32 %v4043, 4294901760
        %7111 = vmatpush1.xpose.msra.mxu0 %v7110
        %7112 = vmatprep.subr.mxu0 0.0
        %v7113 = vand.u32 %v4046, 4294901760
        %7114 = vmatpush1.xpose.msra.mxu0 %v7113
        %7115 = vmatprep.subr.mxu0 0.0
        %v7116 = vand.u32 %v4049, 4294901760
        %7117 = vmatpush1.xpose.msra.mxu0 %v7116
        %7118 = vmatprep.subr.mxu0 0.0
        %v7119 = vand.u32 %v4052, 4294901760
        %7120 = vmatpush1.xpose.msra.mxu0 %v7119
        %7121 = vmatprep.subr.mxu0 0.0
        %v7122 = vand.u32 %v4055, 4294901760
        %7123 = vmatpush1.xpose.msra.mxu0 %v7122
        %7124 = vmatprep.subr.mxu0 0.0
        %v7125 = vand.u32 %v4058, 4294901760
        %7126 = vmatpush1.xpose.msra.mxu0 %v7125
        %7127 = vmatprep.subr.mxu0 0.0
        %v7128 = vand.u32 %v4061, 4294901760
        %7129 = vmatpush1.xpose.msra.mxu0 %v7128
        %7130 = vmatprep.subr.mxu0 0.0
        %v7131 = vand.u32 %v4064, 4294901760
        %7132 = vmatpush1.xpose.msra.mxu0 %v7131
        %7133 = vmatprep.subr.mxu0 0.0
        %v7134 = vand.u32 %v4067, 4294901760
        %7135 = vmatpush1.xpose.msra.mxu0 %v7134
        %7136 = vmatprep.subr.mxu0 0.0
        %v7137 = vand.u32 %v4070, 4294901760
        %7138 = vmatpush1.xpose.msra.mxu0 %v7137
        %7139 = vmatprep.subr.mxu0 0.0
        %v7140 = vand.u32 %v4073, 4294901760
        %7141 = vmatpush1.xpose.msra.mxu0 %v7140
        %7142 = vmatprep.subr.mxu0 0.0
        %v7143 = vand.u32 %v4076, 4294901760
        %7144 = vmatpush1.xpose.msra.mxu0 %v7143
        %7145 = vmatprep.subr.mxu0 0.0
        %v7146 = vand.u32 %v4079, 4294901760
        %7147 = vmatpush1.xpose.msra.mxu0 %v7146
        %7148 = vmatprep.mubr.f32.mxu0 0.0
        %v7149 = vand.u32 %v3842, 4294901760
        %7150 = vmatmul.mubr.f32.gmra.mrb[0].mxu0 %v7149
        %v7151 = vpop.f32.mrb[0].mxu0
        %v7152 = vadd.f32 %v6943, %v7151
        %v7153 = vpop.f32.mrb[0].mxu0
        %v7154 = vadd.f32 %v6945, %v7153
        %7155 = vmatprep.mubr.f32.mxu0 0.0
        %v7156 = vand.u32 %v3845, 4294901760
        %7157 = vmatmul.mubr.f32.gmra.mrb[0].mxu0 %v7156
        %v7158 = vpop.f32.mrb[0].mxu0
        %v7159 = vadd.f32 %v6950, %v7158
        %v7160 = vpop.f32.mrb[0].mxu0
        %v7161 = vadd.f32 %v6952, %v7160
        %7162 = vmatprep.mubr.f32.mxu0 0.0
        %v7163 = vand.u32 %v3848, 4294901760
        %7164 = vmatmul.mubr.f32.gmra.mrb[0].mxu0 %v7163
        %v7165 = vpop.f32.mrb[0].mxu0
        %v7166 = vadd.f32 %v6957, %v7165
        %v7167 = vpop.f32.mrb[0].mxu0
        %v7168 = vadd.f32 %v6959, %v7167
        %7169 = vmatprep.mubr.f32.mxu0 0.0
        %v7170 = vand.u32 %v3851, 4294901760
        %7171 = vmatmul.mubr.f32.gmra.mrb[0].mxu0 %v7170
        %v7172 = vpop.f32.mrb[0].mxu0
        %v7173 = vadd.f32 %v6964, %v7172
        %v7174 = vpop.f32.mrb[0].mxu0
        %v7175 = vadd.f32 %v6966, %v7174
        %7176 = vmatprep.mubr.f32.mxu0 0.0
        %v7177 = vand.u32 %v3854, 4294901760
        %7178 = vmatmul.mubr.f32.gmra.mrb[0].mxu0 %v7177
        %v7179 = vpop.f32.mrb[0].mxu0
        %v7180 = vadd.f32 %v6971, %v7179
        %v7181 = vpop.f32.mrb[0].mxu0
        %v7182 = vadd.f32 %v6973, %v7181
        %7183 = vmatprep.mubr.f32.mxu0 0.0
        %v7184 = vand.u32 %v3857, 4294901760
        %7185 = vmatmul.mubr.f32.gmra.mrb[0].mxu0 %v7184
        %v7186 = vpop.f32.mrb[0].mxu0
        %v7187 = vadd.f32 %v6978, %v7186
        %v7188 = vpop.f32.mrb[0].mxu0
        %v7189 = vadd.f32 %v6980, %v7188
        %7190 = vmatprep.mubr.f32.mxu0 0.0
        %v7191 = vand.u32 %v3860, 4294901760
        %7192 = vmatmul.mubr.f32.gmra.mrb[0].mxu0 %v7191
        %v7193 = vpop.f32.mrb[0].mxu0
        %v7194 = vadd.f32 %v6985, %v7193
        %v7195 = vpop.f32.mrb[0].mxu0
        %v7196 = vadd.f32 %v6987, %v7195
        %7197 = vmatprep.mubr.f32.mxu0 0.0
        %v7198 = vand.u32 %v3863, 4294901760
        %7199 = vmatmul.mubr.f32.gmra.mrb[0].mxu0 %v7198
        %v7200 = vpop.f32.mrb[0].mxu0
        %v7201 = vadd.f32 %v6992, %v7200
        %v7202 = vpop.f32.mrb[0].mxu0
        %v7203 = vadd.f32 %v6994, %v7202
        %7204 = vmatprep.mubr.f32.mxu0 0.0
        %v7205 = vand.u32 %v3866, 4294901760
        %7206 = vmatmul.mubr.f32.gmra.mrb[0].mxu0 %v7205
        %v7207 = vpop.f32.mrb[0].mxu0
        %v7208 = vadd.f32 %v6999, %v7207
        %v7209 = vpop.f32.mrb[0].mxu0
        %v7210 = vadd.f32 %v7001, %v7209
        %7211 = vmatprep.mubr.f32.mxu0 0.0
        %v7212 = vand.u32 %v3869, 4294901760
        %7213 = vmatmul.mubr.f32.gmra.mrb[0].mxu0 %v7212
        %v7214 = vpop.f32.mrb[0].mxu0
        %v7215 = vadd.f32 %v7006, %v7214
        %v7216 = vpop.f32.mrb[0].mxu0
        %v7217 = vadd.f32 %v7008, %v7216
        %7218 = vmatprep.mubr.f32.mxu0 0.0
        %v7219 = vand.u32 %v3872, 4294901760
        %7220 = vmatmul.mubr.f32.gmra.mrb[0].mxu0 %v7219
        %v7221 = vpop.f32.mrb[0].mxu0
        %v7222 = vadd.f32 %v7013, %v7221
        %v7223 = vpop.f32.mrb[0].mxu0
        %v7224 = vadd.f32 %v7015, %v7223
        %7225 = vmatprep.mubr.f32.mxu0 0.0
        %v7226 = vand.u32 %v3875, 4294901760
        %7227 = vmatmul.mubr.f32.gmra.mrb[0].mxu0 %v7226
        %v7228 = vpop.f32.mrb[0].mxu0
        %v7229 = vadd.f32 %v7020, %v7228
        %v7230 = vpop.f32.mrb[0].mxu0
        %v7231 = vadd.f32 %v7022, %v7230
        %7232 = vmatprep.mubr.f32.mxu0 0.0
        %v7233 = vand.u32 %v3878, 4294901760
        %7234 = vmatmul.mubr.f32.gmra.mrb[0].mxu0 %v7233
        %v7235 = vpop.f32.mrb[0].mxu0
        %v7236 = vadd.f32 %v7027, %v7235
        %v7237 = vpop.f32.mrb[0].mxu0
        %v7238 = vadd.f32 %v7029, %v7237
        %7239 = vmatprep.mubr.f32.mxu0 0.0
        %v7240 = vand.u32 %v3881, 4294901760
        %7241 = vmatmul.mubr.f32.gmra.mrb[0].mxu0 %v7240
        %v7242 = vpop.f32.mrb[0].mxu0
        %v7243 = vadd.f32 %v7034, %v7242
        %v7244 = vpop.f32.mrb[0].mxu0
        %v7245 = vadd.f32 %v7036, %v7244
        %7246 = vmatprep.mubr.f32.mxu0 0.0
        %v7247 = vand.u32 %v3884, 4294901760
        %7248 = vmatmul.mubr.f32.gmra.mrb[0].mxu0 %v7247
        %v7249 = vpop.f32.mrb[0].mxu0
        %v7250 = vadd.f32 %v7041, %v7249
        %v7251 = vpop.f32.mrb[0].mxu0
        %v7252 = vadd.f32 %v7043, %v7251
        %7253 = vmatprep.mubr.f32.mxu0 0.0
        %v7254 = vand.u32 %v3887, 4294901760
        %7255 = vmatmul.mubr.f32.gmra.mrb[0].mxu0 %v7254
        %v7256 = vpop.f32.mrb[0].mxu0
        %v7257 = vadd.f32 %v7048, %v7256
        %v7258 = vpop.f32.mrb[0].mxu0
        %v7259 = vadd.f32 %v7050, %v7258
        %7260 = vdwg.mxu0
        %v7261 = vmax.f32 %v2142, %v2144
        %v7262 = vmax.f32 %v7261, %v3732
        %v7263 = vmax.f32 %v7262, %v3734
        %7264 = vmax.xlane.f32.xlu0 %v7263
        %v7265 = vpop.xlane.xlu0 %7264
        %v7266 = vmax.f32 %v2149, %v2151
        %v7267 = vmax.f32 %v7266, %v3739
        %v7268 = vmax.f32 %v7267, %v3741
        %7269 = vmax.xlane.f32.xlu0 %v7268
        %v7270 = vpop.xlane.xlu0 %7269
        %v7271 = vmax.f32 %v2156, %v2158
        %v7272 = vmax.f32 %v7271, %v3746
        %v7273 = vmax.f32 %v7272, %v3748
        %7274 = vmax.xlane.f32.xlu0 %v7273
        %v7275 = vpop.xlane.xlu0 %7274
        %v7276 = vmax.f32 %v2163, %v2165
        %v7277 = vmax.f32 %v7276, %v3753
        %v7278 = vmax.f32 %v7277, %v3755
        %7279 = vmax.xlane.f32.xlu0 %v7278
        %v7280 = vpop.xlane.xlu0 %7279
        %v7281 = vmax.f32 %v2170, %v2172
        %v7282 = vmax.f32 %v7281, %v3760
        %v7283 = vmax.f32 %v7282, %v3762
        %7284 = vmax.xlane.f32.xlu0 %v7283
        %v7285 = vpop.xlane.xlu0 %7284
        %v7286 = vmax.f32 %v2177, %v2179
        %v7287 = vmax.f32 %v7286, %v3767
        %v7288 = vmax.f32 %v7287, %v3769
        %7289 = vmax.xlane.f32.xlu0 %v7288
        %v7290 = vpop.xlane.xlu0 %7289
        %v7291 = vmax.f32 %v2184, %v2186
        %v7292 = vmax.f32 %v7291, %v3774
        %v7293 = vmax.f32 %v7292, %v3776
        %7294 = vmax.xlane.f32.xlu0 %v7293
        %v7295 = vpop.xlane.xlu0 %7294
        %v7296 = vmax.f32 %v2191, %v2193
        %v7297 = vmax.f32 %v7296, %v3781
        %v7298 = vmax.f32 %v7297, %v3783
        %7299 = vmax.xlane.f32.xlu0 %v7298
        %v7300 = vpop.xlane.xlu0 %7299
        %v7301 = vmax.f32 %v2198, %v2200
        %v7302 = vmax.f32 %v7301, %v3788
        %v7303 = vmax.f32 %v7302, %v3790
        %7304 = vmax.xlane.f32.xlu0 %v7303
        %v7305 = vpop.xlane.xlu0 %7304
        %v7306 = vmax.f32 %v2205, %v2207
        %v7307 = vmax.f32 %v7306, %v3795
        %v7308 = vmax.f32 %v7307, %v3797
        %7309 = vmax.xlane.f32.xlu0 %v7308
        %v7310 = vpop.xlane.xlu0 %7309
        %v7311 = vmax.f32 %v2212, %v2214
        %v7312 = vmax.f32 %v7311, %v3802
        %v7313 = vmax.f32 %v7312, %v3804
        %7314 = vmax.xlane.f32.xlu0 %v7313
        %v7315 = vpop.xlane.xlu0 %7314
        %v7316 = vmax.f32 %v2219, %v2221
        %v7317 = vmax.f32 %v7316, %v3809
        %v7318 = vmax.f32 %v7317, %v3811
        %7319 = vmax.xlane.f32.xlu0 %v7318
        %v7320 = vpop.xlane.xlu0 %7319
        %v7321 = vmax.f32 %v2226, %v2228
        %v7322 = vmax.f32 %v7321, %v3816
        %v7323 = vmax.f32 %v7322, %v3818
        %7324 = vmax.xlane.f32.xlu0 %v7323
        %v7325 = vpop.xlane.xlu0 %7324
        %v7326 = vmax.f32 %v2233, %v2235
        %v7327 = vmax.f32 %v7326, %v3823
        %v7328 = vmax.f32 %v7327, %v3825
        %7329 = vmax.xlane.f32.xlu0 %v7328
        %v7330 = vpop.xlane.xlu0 %7329
        %v7331 = vmax.f32 %v2240, %v2242
        %v7332 = vmax.f32 %v7331, %v3830
        %v7333 = vmax.f32 %v7332, %v3832
        %7334 = vmax.xlane.f32.xlu0 %v7333
        %v7335 = vpop.xlane.xlu0 %7334
        %v7336 = vmax.f32 %v2247, %v2249
        %v7337 = vmax.f32 %v7336, %v3837
        %v7338 = vmax.f32 %v7337, %v3839
        %7339 = vmax.xlane.f32.xlu0 %v7338
        %v7340 = vpop.xlane.xlu0 %7339
        %v7341 = vmax.f32 %v5562, %v5564
        %v7342 = vmax.f32 %v7341, %v7152
        %v7343 = vmax.f32 %v7342, %v7154
        %7344 = vmax.xlane.f32.xlu0 %v7343
        %v7345 = vpop.xlane.xlu0 %7344
        %v7346 = vmax.f32 %v5569, %v5571
        %v7347 = vmax.f32 %v7346, %v7159
        %v7348 = vmax.f32 %v7347, %v7161
        %7349 = vmax.xlane.f32.xlu0 %v7348
        %v7350 = vpop.xlane.xlu0 %7349
        %v7351 = vmax.f32 %v5576, %v5578
        %v7352 = vmax.f32 %v7351, %v7166
        %v7353 = vmax.f32 %v7352, %v7168
        %7354 = vmax.xlane.f32.xlu0 %v7353
        %v7355 = vpop.xlane.xlu0 %7354
        %v7356 = vmax.f32 %v5583, %v5585
        %v7357 = vmax.f32 %v7356, %v7173
        %v7358 = vmax.f32 %v7357, %v7175
        %7359 = vmax.xlane.f32.xlu0 %v7358
        %v7360 = vpop.xlane.xlu0 %7359
        %v7361 = vmax.f32 %v5590, %v5592
        %v7362 = vmax.f32 %v7361, %v7180
        %v7363 = vmax.f32 %v7362, %v7182
        %7364 = vmax.xlane.f32.xlu0 %v7363
        %v7365 = vpop.xlane.xlu0 %7364
        %v7366 = vmax.f32 %v5597, %v5599
        %v7367 = vmax.f32 %v7366, %v7187
        %v7368 = vmax.f32 %v7367, %v7189
        %7369 = vmax.xlane.f32.xlu0 %v7368
        %v7370 = vpop.xlane.xlu0 %7369
        %v7371 = vmax.f32 %v5604, %v5606
        %v7372 = vmax.f32 %v7371, %v7194
        %v7373 = vmax.f32 %v7372, %v7196
        %7374 = vmax.xlane.f32.xlu0 %v7373
        %v7375 = vpop.xlane.xlu0 %7374
        %v7376 = vmax.f32 %v5611, %v5613
        %v7377 = vmax.f32 %v7376, %v7201
        %v7378 = vmax.f32 %v7377, %v7203
        %7379 = vmax.xlane.f32.xlu0 %v7378
        %v7380 = vpop.xlane.xlu0 %7379
        %v7381 = vmax.f32 %v5618, %v5620
        %v7382 = vmax.f32 %v7381, %v7208
        %v7383 = vmax.f32 %v7382, %v7210
        %7384 = vmax.xlane.f32.xlu0 %v7383
        %v7385 = vpop.xlane.xlu0 %7384
        %v7386 = vmax.f32 %v5625, %v5627
        %v7387 = vmax.f32 %v7386, %v7215
        %v7388 = vmax.f32 %v7387, %v7217
        %7389 = vmax.xlane.f32.xlu0 %v7388
        %v7390 = vpop.xlane.xlu0 %7389
        %v7391 = vmax.f32 %v5632, %v5634
        %v7392 = vmax.f32 %v7391, %v7222
        %v7393 = vmax.f32 %v7392, %v7224
        %7394 = vmax.xlane.f32.xlu0 %v7393
        %v7395 = vpop.xlane.xlu0 %7394
        %v7396 = vmax.f32 %v5639, %v5641
        %v7397 = vmax.f32 %v7396, %v7229
        %v7398 = vmax.f32 %v7397, %v7231
        %7399 = vmax.xlane.f32.xlu0 %v7398
        %v7400 = vpop.xlane.xlu0 %7399
        %v7401 = vmax.f32 %v5646, %v5648
        %v7402 = vmax.f32 %v7401, %v7236
        %v7403 = vmax.f32 %v7402, %v7238
        %7404 = vmax.xlane.f32.xlu0 %v7403
        %v7405 = vpop.xlane.xlu0 %7404
        %v7406 = vmax.f32 %v5653, %v5655
        %v7407 = vmax.f32 %v7406, %v7243
        %v7408 = vmax.f32 %v7407, %v7245
        %7409 = vmax.xlane.f32.xlu0 %v7408
        %v7410 = vpop.xlane.xlu0 %7409
        %v7411 = vmax.f32 %v5660, %v5662
        %v7412 = vmax.f32 %v7411, %v7250
        %v7413 = vmax.f32 %v7412, %v7252
        %7414 = vmax.xlane.f32.xlu0 %v7413
        %v7415 = vpop.xlane.xlu0 %7414
        %v7416 = vmax.f32 %v5667, %v5669
        %v7417 = vmax.f32 %v7416, %v7257
        %v7418 = vmax.f32 %v7417, %v7259
        %7419 = vmax.xlane.f32.xlu0 %v7418
        %v7420 = vpop.xlane.xlu0 %7419
        %v7421 = vsub.f32 %v2142, %v7265
        %v7422 = vsub.f32 %v2144, %v7265
        %v7423 = vsub.f32 %v3732, %v7265
        %v7424 = vsub.f32 %v3734, %v7265
        %v7425 = vsub.f32 %v2149, %v7270
        %v7426 = vsub.f32 %v2151, %v7270
        %v7427 = vsub.f32 %v3739, %v7270
        %v7428 = vsub.f32 %v3741, %v7270
        %v7429 = vsub.f32 %v2156, %v7275
        %v7430 = vsub.f32 %v2158, %v7275
        %v7431 = vsub.f32 %v3746, %v7275
        %v7432 = vsub.f32 %v3748, %v7275
        %v7433 = vsub.f32 %v2163, %v7280
        %v7434 = vsub.f32 %v2165, %v7280
        %v7435 = vsub.f32 %v3753, %v7280
        %v7436 = vsub.f32 %v3755, %v7280
        %v7437 = vsub.f32 %v2170, %v7285
        %v7438 = vsub.f32 %v2172, %v7285
        %v7439 = vsub.f32 %v3760, %v7285
        %v7440 = vsub.f32 %v3762, %v7285
        %v7441 = vsub.f32 %v2177, %v7290
        %v7442 = vsub.f32 %v2179, %v7290
        %v7443 = vsub.f32 %v3767, %v7290
        %v7444 = vsub.f32 %v3769, %v7290
        %v7445 = vsub.f32 %v2184, %v7295
        %v7446 = vsub.f32 %v2186, %v7295
        %v7447 = vsub.f32 %v3774, %v7295
        %v7448 = vsub.f32 %v3776, %v7295
        %v7449 = vsub.f32 %v2191, %v7300
        %v7450 = vsub.f32 %v2193, %v7300
        %v7451 = vsub.f32 %v3781, %v7300
        %v7452 = vsub.f32 %v3783, %v7300
        %v7453 = vsub.f32 %v2198, %v7305
        %v7454 = vsub.f32 %v2200, %v7305
        %v7455 = vsub.f32 %v3788, %v7305
        %v7456 = vsub.f32 %v3790, %v7305
        %v7457 = vsub.f32 %v2205, %v7310
        %v7458 = vsub.f32 %v2207, %v7310
        %v7459 = vsub.f32 %v3795, %v7310
        %v7460 = vsub.f32 %v3797, %v7310
        %v7461 = vsub.f32 %v2212, %v7315
        %v7462 = vsub.f32 %v2214, %v7315
        %v7463 = vsub.f32 %v3802, %v7315
        %v7464 = vsub.f32 %v3804, %v7315
        %v7465 = vsub.f32 %v2219, %v7320
        %v7466 = vsub.f32 %v2221, %v7320
        %v7467 = vsub.f32 %v3809, %v7320
        %v7468 = vsub.f32 %v3811, %v7320
        %v7469 = vsub.f32 %v2226, %v7325
        %v7470 = vsub.f32 %v2228, %v7325
        %v7471 = vsub.f32 %v3816, %v7325
        %v7472 = vsub.f32 %v3818, %v7325
        %v7473 = vsub.f32 %v2233, %v7330
        %v7474 = vsub.f32 %v2235, %v7330
        %v7475 = vsub.f32 %v3823, %v7330
        %v7476 = vsub.f32 %v3825, %v7330
        %v7477 = vsub.f32 %v2240, %v7335
        %v7478 = vsub.f32 %v2242, %v7335
        %v7479 = vsub.f32 %v3830, %v7335
        %v7480 = vsub.f32 %v3832, %v7335
        %v7481 = vsub.f32 %v2247, %v7340
        %v7482 = vsub.f32 %v2249, %v7340
        %v7483 = vsub.f32 %v3837, %v7340
        %v7484 = vsub.f32 %v3839, %v7340
        %v7485 = vsub.f32 %v5562, %v7345
        %v7486 = vsub.f32 %v5564, %v7345
        %v7487 = vsub.f32 %v7152, %v7345
        %v7488 = vsub.f32 %v7154, %v7345
        %v7489 = vsub.f32 %v5569, %v7350
        %v7490 = vsub.f32 %v5571, %v7350
        %v7491 = vsub.f32 %v7159, %v7350
        %v7492 = vsub.f32 %v7161, %v7350
        %v7493 = vsub.f32 %v5576, %v7355
        %v7494 = vsub.f32 %v5578, %v7355
        %v7495 = vsub.f32 %v7166, %v7355
        %v7496 = vsub.f32 %v7168, %v7355
        %v7497 = vsub.f32 %v5583, %v7360
        %v7498 = vsub.f32 %v5585, %v7360
        %v7499 = vsub.f32 %v7173, %v7360
        %v7500 = vsub.f32 %v7175, %v7360
        %v7501 = vsub.f32 %v5590, %v7365
        %v7502 = vsub.f32 %v5592, %v7365
        %v7503 = vsub.f32 %v7180, %v7365
        %v7504 = vsub.f32 %v7182, %v7365
        %v7505 = vsub.f32 %v5597, %v7370
        %v7506 = vsub.f32 %v5599, %v7370
        %v7507 = vsub.f32 %v7187, %v7370
        %v7508 = vsub.f32 %v7189, %v7370
        %v7509 = vsub.f32 %v5604, %v7375
        %v7510 = vsub.f32 %v5606, %v7375
        %v7511 = vsub.f32 %v7194, %v7375
        %v7512 = vsub.f32 %v7196, %v7375
        %v7513 = vsub.f32 %v5611, %v7380
        %v7514 = vsub.f32 %v5613, %v7380
        %v7515 = vsub.f32 %v7201, %v7380
        %v7516 = vsub.f32 %v7203, %v7380
        %v7517 = vsub.f32 %v5618, %v7385
        %v7518 = vsub.f32 %v5620, %v7385
        %v7519 = vsub.f32 %v7208, %v7385
        %v7520 = vsub.f32 %v7210, %v7385
        %v7521 = vsub.f32 %v5625, %v7390
        %v7522 = vsub.f32 %v5627, %v7390
        %v7523 = vsub.f32 %v7215, %v7390
        %v7524 = vsub.f32 %v7217, %v7390
        %v7525 = vsub.f32 %v5632, %v7395
        %v7526 = vsub.f32 %v5634, %v7395
        %v7527 = vsub.f32 %v7222, %v7395
        %v7528 = vsub.f32 %v7224, %v7395
        %v7529 = vsub.f32 %v5639, %v7400
        %v7530 = vsub.f32 %v5641, %v7400
        %v7531 = vsub.f32 %v7229, %v7400
        %v7532 = vsub.f32 %v7231, %v7400
        %v7533 = vsub.f32 %v5646, %v7405
        %v7534 = vsub.f32 %v5648, %v7405
        %v7535 = vsub.f32 %v7236, %v7405
        %v7536 = vsub.f32 %v7238, %v7405
        %v7537 = vsub.f32 %v5653, %v7410
        %v7538 = vsub.f32 %v5655, %v7410
        %v7539 = vsub.f32 %v7243, %v7410
        %v7540 = vsub.f32 %v7245, %v7410
        %v7541 = vsub.f32 %v5660, %v7415
        %v7542 = vsub.f32 %v5662, %v7415
        %v7543 = vsub.f32 %v7250, %v7415
        %v7544 = vsub.f32 %v7252, %v7415
        %v7545 = vsub.f32 %v5667, %v7420
        %v7546 = vsub.f32 %v5669, %v7420
        %v7547 = vsub.f32 %v7257, %v7420
        %v7548 = vsub.f32 %v7259, %v7420
        %v7549 = vmul.f32 %v7421, 1.442695
        %v7550 = vpow.pop %v7549
        %v7551 = vmul.f32 %v7422, 1.442695
        %v7552 = vpow.pop %v7551
        %v7553 = vmul.f32 %v7423, 1.442695
        %v7554 = vpow.pop %v7553
        %v7555 = vmul.f32 %v7424, 1.442695
        %v7556 = vpow.pop %v7555
        %v7557 = vmul.f32 %v7425, 1.442695
        %v7558 = vpow.pop %v7557
        %v7559 = vmul.f32 %v7426, 1.442695
        %v7560 = vpow.pop %v7559
        %v7561 = vmul.f32 %v7427, 1.442695
        %v7562 = vpow.pop %v7561
        %v7563 = vmul.f32 %v7428, 1.442695
        %v7564 = vpow.pop %v7563
        %v7565 = vmul.f32 %v7429, 1.442695
        %v7566 = vpow.pop %v7565
        %v7567 = vmul.f32 %v7430, 1.442695
        %v7568 = vpow.pop %v7567
        %v7569 = vmul.f32 %v7431, 1.442695
        %v7570 = vpow.pop %v7569
        %v7571 = vmul.f32 %v7432, 1.442695
        %v7572 = vpow.pop %v7571
        %v7573 = vmul.f32 %v7433, 1.442695
        %v7574 = vpow.pop %v7573
        %v7575 = vmul.f32 %v7434, 1.442695
        %v7576 = vpow.pop %v7575
        %v7577 = vmul.f32 %v7435, 1.442695
        %v7578 = vpow.pop %v7577
        %v7579 = vmul.f32 %v7436, 1.442695
        %v7580 = vpow.pop %v7579
        %v7581 = vmul.f32 %v7437, 1.442695
        %v7582 = vpow.pop %v7581
        %v7583 = vmul.f32 %v7438, 1.442695
        %v7584 = vpow.pop %v7583
        %v7585 = vmul.f32 %v7439, 1.442695
        %v7586 = vpow.pop %v7585
        %v7587 = vmul.f32 %v7440, 1.442695
        %v7588 = vpow.pop %v7587
        %v7589 = vmul.f32 %v7441, 1.442695
        %v7590 = vpow.pop %v7589
        %v7591 = vmul.f32 %v7442, 1.442695
        %v7592 = vpow.pop %v7591
        %v7593 = vmul.f32 %v7443, 1.442695
        %v7594 = vpow.pop %v7593
        %v7595 = vmul.f32 %v7444, 1.442695
        %v7596 = vpow.pop %v7595
        %v7597 = vmul.f32 %v7445, 1.442695
        %v7598 = vpow.pop %v7597
        %v7599 = vmul.f32 %v7446, 1.442695
        %v7600 = vpow.pop %v7599
        %v7601 = vmul.f32 %v7447, 1.442695
        %v7602 = vpow.pop %v7601
        %v7603 = vmul.f32 %v7448, 1.442695
        %v7604 = vpow.pop %v7603
        %v7605 = vmul.f32 %v7449, 1.442695
        %v7606 = vpow.pop %v7605
        %v7607 = vmul.f32 %v7450, 1.442695
        %v7608 = vpow.pop %v7607
        %v7609 = vmul.f32 %v7451, 1.442695
        %v7610 = vpow.pop %v7609
        %v7611 = vmul.f32 %v7452, 1.442695
        %v7612 = vpow.pop %v7611
        %v7613 = vmul.f32 %v7453, 1.442695
        %v7614 = vpow.pop %v7613
        %v7615 = vmul.f32 %v7454, 1.442695
        %v7616 = vpow.pop %v7615
        %v7617 = vmul.f32 %v7455, 1.442695
        %v7618 = vpow.pop %v7617
        %v7619 = vmul.f32 %v7456, 1.442695
        %v7620 = vpow.pop %v7619
        %v7621 = vmul.f32 %v7457, 1.442695
        %v7622 = vpow.pop %v7621
        %v7623 = vmul.f32 %v7458, 1.442695
        %v7624 = vpow.pop %v7623
        %v7625 = vmul.f32 %v7459, 1.442695
        %v7626 = vpow.pop %v7625
        %v7627 = vmul.f32 %v7460, 1.442695
        %v7628 = vpow.pop %v7627
        %v7629 = vmul.f32 %v7461, 1.442695
        %v7630 = vpow.pop %v7629
        %v7631 = vmul.f32 %v7462, 1.442695
        %v7632 = vpow.pop %v7631
        %v7633 = vmul.f32 %v7463, 1.442695
        %v7634 = vpow.pop %v7633
        %v7635 = vmul.f32 %v7464, 1.442695
        %v7636 = vpow.pop %v7635
        %v7637 = vmul.f32 %v7465, 1.442695
        %v7638 = vpow.pop %v7637
        %v7639 = vmul.f32 %v7466, 1.442695
        %v7640 = vpow.pop %v7639
        %v7641 = vmul.f32 %v7467, 1.442695
        %v7642 = vpow.pop %v7641
        %v7643 = vmul.f32 %v7468, 1.442695
        %v7644 = vpow.pop %v7643
        %v7645 = vmul.f32 %v7469, 1.442695
        %v7646 = vpow.pop %v7645
        %v7647 = vmul.f32 %v7470, 1.442695
        %v7648 = vpow.pop %v7647
        %v7649 = vmul.f32 %v7471, 1.442695
        %v7650 = vpow.pop %v7649
        %v7651 = vmul.f32 %v7472, 1.442695
        %v7652 = vpow.pop %v7651
        %v7653 = vmul.f32 %v7473, 1.442695
        %v7654 = vpow.pop %v7653
        %v7655 = vmul.f32 %v7474, 1.442695
        %v7656 = vpow.pop %v7655
        %v7657 = vmul.f32 %v7475, 1.442695
        %v7658 = vpow.pop %v7657
        %v7659 = vmul.f32 %v7476, 1.442695
        %v7660 = vpow.pop %v7659
        %v7661 = vmul.f32 %v7477, 1.442695
        %v7662 = vpow.pop %v7661
        %v7663 = vmul.f32 %v7478, 1.442695
        %v7664 = vpow.pop %v7663
        %v7665 = vmul.f32 %v7479, 1.442695
        %v7666 = vpow.pop %v7665
        %v7667 = vmul.f32 %v7480, 1.442695
        %v7668 = vpow.pop %v7667
        %v7669 = vmul.f32 %v7481, 1.442695
        %v7670 = vpow.pop %v7669
        %v7671 = vmul.f32 %v7482, 1.442695
        %v7672 = vpow.pop %v7671
        %v7673 = vmul.f32 %v7483, 1.442695
        %v7674 = vpow.pop %v7673
        %v7675 = vmul.f32 %v7484, 1.442695
        %v7676 = vpow.pop %v7675
        %v7677 = vmul.f32 %v7485, 1.442695
        %v7678 = vpow.pop %v7677
        %v7679 = vmul.f32 %v7486, 1.442695
        %v7680 = vpow.pop %v7679
        %v7681 = vmul.f32 %v7487, 1.442695
        %v7682 = vpow.pop %v7681
        %v7683 = vmul.f32 %v7488, 1.442695
        %v7684 = vpow.pop %v7683
        %v7685 = vmul.f32 %v7489, 1.442695
        %v7686 = vpow.pop %v7685
        %v7687 = vmul.f32 %v7490, 1.442695
        %v7688 = vpow.pop %v7687
        %v7689 = vmul.f32 %v7491, 1.442695
        %v7690 = vpow.pop %v7689
        %v7691 = vmul.f32 %v7492, 1.442695
        %v7692 = vpow.pop %v7691
        %v7693 = vmul.f32 %v7493, 1.442695
        %v7694 = vpow.pop %v7693
        %v7695 = vmul.f32 %v7494, 1.442695
        %v7696 = vpow.pop %v7695
        %v7697 = vmul.f32 %v7495, 1.442695
        %v7698 = vpow.pop %v7697
        %v7699 = vmul.f32 %v7496, 1.442695
        %v7700 = vpow.pop %v7699
        %v7701 = vmul.f32 %v7497, 1.442695
        %v7702 = vpow.pop %v7701
        %v7703 = vmul.f32 %v7498, 1.442695
        %v7704 = vpow.pop %v7703
        %v7705 = vmul.f32 %v7499, 1.442695
        %v7706 = vpow.pop %v7705
        %v7707 = vmul.f32 %v7500, 1.442695
        %v7708 = vpow.pop %v7707
        %v7709 = vmul.f32 %v7501, 1.442695
        %v7710 = vpow.pop %v7709
        %v7711 = vmul.f32 %v7502, 1.442695
        %v7712 = vpow.pop %v7711
        %v7713 = vmul.f32 %v7503, 1.442695
        %v7714 = vpow.pop %v7713
        %v7715 = vmul.f32 %v7504, 1.442695
        %v7716 = vpow.pop %v7715
        %v7717 = vmul.f32 %v7505, 1.442695
        %v7718 = vpow.pop %v7717
        %v7719 = vmul.f32 %v7506, 1.442695
        %v7720 = vpow.pop %v7719
        %v7721 = vmul.f32 %v7507, 1.442695
        %v7722 = vpow.pop %v7721
        %v7723 = vmul.f32 %v7508, 1.442695
        %v7724 = vpow.pop %v7723
        %v7725 = vmul.f32 %v7509, 1.442695
        %v7726 = vpow.pop %v7725
        %v7727 = vmul.f32 %v7510, 1.442695
        %v7728 = vpow.pop %v7727
        %v7729 = vmul.f32 %v7511, 1.442695
        %v7730 = vpow.pop %v7729
        %v7731 = vmul.f32 %v7512, 1.442695
        %v7732 = vpow.pop %v7731
        %v7733 = vmul.f32 %v7513, 1.442695
        %v7734 = vpow.pop %v7733
        %v7735 = vmul.f32 %v7514, 1.442695
        %v7736 = vpow.pop %v7735
        %v7737 = vmul.f32 %v7515, 1.442695
        %v7738 = vpow.pop %v7737
        %v7739 = vmul.f32 %v7516, 1.442695
        %v7740 = vpow.pop %v7739
        %v7741 = vmul.f32 %v7517, 1.442695
        %v7742 = vpow.pop %v7741
        %v7743 = vmul.f32 %v7518, 1.442695
        %v7744 = vpow.pop %v7743
        %v7745 = vmul.f32 %v7519, 1.442695
        %v7746 = vpow.pop %v7745
        %v7747 = vmul.f32 %v7520, 1.442695
        %v7748 = vpow.pop %v7747
        %v7749 = vmul.f32 %v7521, 1.442695
        %v7750 = vpow.pop %v7749
        %v7751 = vmul.f32 %v7522, 1.442695
        %v7752 = vpow.pop %v7751
        %v7753 = vmul.f32 %v7523, 1.442695
        %v7754 = vpow.pop %v7753
        %v7755 = vmul.f32 %v7524, 1.442695
        %v7756 = vpow.pop %v7755
        %v7757 = vmul.f32 %v7525, 1.442695
        %v7758 = vpow.pop %v7757
        %v7759 = vmul.f32 %v7526, 1.442695
        %v7760 = vpow.pop %v7759
        %v7761 = vmul.f32 %v7527, 1.442695
        %v7762 = vpow.pop %v7761
        %v7763 = vmul.f32 %v7528, 1.442695
        %v7764 = vpow.pop %v7763
        %v7765 = vmul.f32 %v7529, 1.442695
        %v7766 = vpow.pop %v7765
        %v7767 = vmul.f32 %v7530, 1.442695
        %v7768 = vpow.pop %v7767
        %v7769 = vmul.f32 %v7531, 1.442695
        %v7770 = vpow.pop %v7769
        %v7771 = vmul.f32 %v7532, 1.442695
        %v7772 = vpow.pop %v7771
        %v7773 = vmul.f32 %v7533, 1.442695
        %v7774 = vpow.pop %v7773
        %v7775 = vmul.f32 %v7534, 1.442695
        %v7776 = vpow.pop %v7775
        %v7777 = vmul.f32 %v7535, 1.442695
        %v7778 = vpow.pop %v7777
        %v7779 = vmul.f32 %v7536, 1.442695
        %v7780 = vpow.pop %v7779
        %v7781 = vmul.f32 %v7537, 1.442695
        %v7782 = vpow.pop %v7781
        %v7783 = vmul.f32 %v7538, 1.442695
        %v7784 = vpow.pop %v7783
        %v7785 = vmul.f32 %v7539, 1.442695
        %v7786 = vpow.pop %v7785
        %v7787 = vmul.f32 %v7540, 1.442695
        %v7788 = vpow.pop %v7787
        %v7789 = vmul.f32 %v7541, 1.442695
        %v7790 = vpow.pop %v7789
        %v7791 = vmul.f32 %v7542, 1.442695
        %v7792 = vpow.pop %v7791
        %v7793 = vmul.f32 %v7543, 1.442695
        %v7794 = vpow.pop %v7793
        %v7795 = vmul.f32 %v7544, 1.442695
        %v7796 = vpow.pop %v7795
        %v7797 = vmul.f32 %v7545, 1.442695
        %v7798 = vpow.pop %v7797
        %v7799 = vmul.f32 %v7546, 1.442695
        %v7800 = vpow.pop %v7799
        %v7801 = vmul.f32 %v7547, 1.442695
        %v7802 = vpow.pop %v7801
        %v7803 = vmul.f32 %v7548, 1.442695
        %v7804 = vpow.pop %v7803
        %v7805 = vadd.f32 %v7550, %v7552
        %v7806 = vadd.f32 %v7805, %v7554
        %v7807 = vadd.f32 %v7806, %v7556
        %7808 = vadd.xlane.f32.xlu0 %v7807
        %v7809 = vpop.xlane.xlu0 %7808
        %v7810 = vadd.f32 %v7558, %v7560
        %v7811 = vadd.f32 %v7810, %v7562
        %v7812 = vadd.f32 %v7811, %v7564
        %7813 = vadd.xlane.f32.xlu0 %v7812
        %v7814 = vpop.xlane.xlu0 %7813
        %v7815 = vadd.f32 %v7566, %v7568
        %v7816 = vadd.f32 %v7815, %v7570
        %v7817 = vadd.f32 %v7816, %v7572
        %7818 = vadd.xlane.f32.xlu0 %v7817
        %v7819 = vpop.xlane.xlu0 %7818
        %v7820 = vadd.f32 %v7574, %v7576
        %v7821 = vadd.f32 %v7820, %v7578
        %v7822 = vadd.f32 %v7821, %v7580
        %7823 = vadd.xlane.f32.xlu0 %v7822
        %v7824 = vpop.xlane.xlu0 %7823
        %v7825 = vadd.f32 %v7582, %v7584
        %v7826 = vadd.f32 %v7825, %v7586
        %v7827 = vadd.f32 %v7826, %v7588
        %7828 = vadd.xlane.f32.xlu0 %v7827
        %v7829 = vpop.xlane.xlu0 %7828
        %v7830 = vadd.f32 %v7590, %v7592
        %v7831 = vadd.f32 %v7830, %v7594
        %v7832 = vadd.f32 %v7831, %v7596
        %7833 = vadd.xlane.f32.xlu0 %v7832
        %v7834 = vpop.xlane.xlu0 %7833
        %v7835 = vadd.f32 %v7598, %v7600
        %v7836 = vadd.f32 %v7835, %v7602
        %v7837 = vadd.f32 %v7836, %v7604
        %7838 = vadd.xlane.f32.xlu0 %v7837
        %v7839 = vpop.xlane.xlu0 %7838
        %v7840 = vadd.f32 %v7606, %v7608
        %v7841 = vadd.f32 %v7840, %v7610
        %v7842 = vadd.f32 %v7841, %v7612
        %7843 = vadd.xlane.f32.xlu0 %v7842
        %v7844 = vpop.xlane.xlu0 %7843
        %v7845 = vadd.f32 %v7614, %v7616
        %v7846 = vadd.f32 %v7845, %v7618
        %v7847 = vadd.f32 %v7846, %v7620
        %7848 = vadd.xlane.f32.xlu0 %v7847
        %v7849 = vpop.xlane.xlu0 %7848
        %v7850 = vadd.f32 %v7622, %v7624
        %v7851 = vadd.f32 %v7850, %v7626
        %v7852 = vadd.f32 %v7851, %v7628
        %7853 = vadd.xlane.f32.xlu0 %v7852
        %v7854 = vpop.xlane.xlu0 %7853
        %v7855 = vadd.f32 %v7630, %v7632
        %v7856 = vadd.f32 %v7855, %v7634
        %v7857 = vadd.f32 %v7856, %v7636
        %7858 = vadd.xlane.f32.xlu0 %v7857
        %v7859 = vpop.xlane.xlu0 %7858
        %v7860 = vadd.f32 %v7638, %v7640
        %v7861 = vadd.f32 %v7860, %v7642
        %v7862 = vadd.f32 %v7861, %v7644
        %7863 = vadd.xlane.f32.xlu0 %v7862
        %v7864 = vpop.xlane.xlu0 %7863
        %v7865 = vadd.f32 %v7646, %v7648
        %v7866 = vadd.f32 %v7865, %v7650
        %v7867 = vadd.f32 %v7866, %v7652
        %7868 = vadd.xlane.f32.xlu0 %v7867
        %v7869 = vpop.xlane.xlu0 %7868
        %v7870 = vadd.f32 %v7654, %v7656
        %v7871 = vadd.f32 %v7870, %v7658
        %v7872 = vadd.f32 %v7871, %v7660
        %7873 = vadd.xlane.f32.xlu0 %v7872
        %v7874 = vpop.xlane.xlu0 %7873
        %v7875 = vadd.f32 %v7662, %v7664
        %v7876 = vadd.f32 %v7875, %v7666
        %v7877 = vadd.f32 %v7876, %v7668
        %7878 = vadd.xlane.f32.xlu0 %v7877
        %v7879 = vpop.xlane.xlu0 %7878
        %v7880 = vadd.f32 %v7670, %v7672
        %v7881 = vadd.f32 %v7880, %v7674
        %v7882 = vadd.f32 %v7881, %v7676
        %7883 = vadd.xlane.f32.xlu0 %v7882
        %v7884 = vpop.xlane.xlu0 %7883
        %v7885 = vadd.f32 %v7678, %v7680
        %v7886 = vadd.f32 %v7885, %v7682
        %v7887 = vadd.f32 %v7886, %v7684
        %7888 = vadd.xlane.f32.xlu0 %v7887
        %v7889 = vpop.xlane.xlu0 %7888
        %v7890 = vadd.f32 %v7686, %v7688
        %v7891 = vadd.f32 %v7890, %v7690
        %v7892 = vadd.f32 %v7891, %v7692
        %7893 = vadd.xlane.f32.xlu0 %v7892
        %v7894 = vpop.xlane.xlu0 %7893
        %v7895 = vadd.f32 %v7694, %v7696
        %v7896 = vadd.f32 %v7895, %v7698
        %v7897 = vadd.f32 %v7896, %v7700
        %7898 = vadd.xlane.f32.xlu0 %v7897
        %v7899 = vpop.xlane.xlu0 %7898
        %v7900 = vadd.f32 %v7702, %v7704
        %v7901 = vadd.f32 %v7900, %v7706
        %v7902 = vadd.f32 %v7901, %v7708
        %7903 = vadd.xlane.f32.xlu0 %v7902
        %v7904 = vpop.xlane.xlu0 %7903
        %v7905 = vadd.f32 %v7710, %v7712
        %v7906 = vadd.f32 %v7905, %v7714
        %v7907 = vadd.f32 %v7906, %v7716
        %7908 = vadd.xlane.f32.xlu0 %v7907
        %v7909 = vpop.xlane.xlu0 %7908
        %v7910 = vadd.f32 %v7718, %v7720
        %v7911 = vadd.f32 %v7910, %v7722
        %v7912 = vadd.f32 %v7911, %v7724
        %7913 = vadd.xlane.f32.xlu0 %v7912
        %v7914 = vpop.xlane.xlu0 %7913
        %v7915 = vadd.f32 %v7726, %v7728
        %v7916 = vadd.f32 %v7915, %v7730
        %v7917 = vadd.f32 %v7916, %v7732
        %7918 = vadd.xlane.f32.xlu0 %v7917
        %v7919 = vpop.xlane.xlu0 %7918
        %v7920 = vadd.f32 %v7734, %v7736
        %v7921 = vadd.f32 %v7920, %v7738
        %v7922 = vadd.f32 %v7921, %v7740
        %7923 = vadd.xlane.f32.xlu0 %v7922
        %v7924 = vpop.xlane.xlu0 %7923
        %v7925 = vadd.f32 %v7742, %v7744
        %v7926 = vadd.f32 %v7925, %v7746
        %v7927 = vadd.f32 %v7926, %v7748
        %7928 = vadd.xlane.f32.xlu0 %v7927
        %v7929 = vpop.xlane.xlu0 %7928
        %v7930 = vadd.f32 %v7750, %v7752
        %v7931 = vadd.f32 %v7930, %v7754
        %v7932 = vadd.f32 %v7931, %v7756
        %7933 = vadd.xlane.f32.xlu0 %v7932
        %v7934 = vpop.xlane.xlu0 %7933
        %v7935 = vadd.f32 %v7758, %v7760
        %v7936 = vadd.f32 %v7935, %v7762
        %v7937 = vadd.f32 %v7936, %v7764
        %7938 = vadd.xlane.f32.xlu0 %v7937
        %v7939 = vpop.xlane.xlu0 %7938
        %v7940 = vadd.f32 %v7766, %v7768
        %v7941 = vadd.f32 %v7940, %v7770
        %v7942 = vadd.f32 %v7941, %v7772
        %7943 = vadd.xlane.f32.xlu0 %v7942
        %v7944 = vpop.xlane.xlu0 %7943
        %v7945 = vadd.f32 %v7774, %v7776
        %v7946 = vadd.f32 %v7945, %v7778
        %v7947 = vadd.f32 %v7946, %v7780
        %7948 = vadd.xlane.f32.xlu0 %v7947
        %v7949 = vpop.xlane.xlu0 %7948
        %v7950 = vadd.f32 %v7782, %v7784
        %v7951 = vadd.f32 %v7950, %v7786
        %v7952 = vadd.f32 %v7951, %v7788
        %7953 = vadd.xlane.f32.xlu0 %v7952
        %v7954 = vpop.xlane.xlu0 %7953
        %v7955 = vadd.f32 %v7790, %v7792
        %v7956 = vadd.f32 %v7955, %v7794
        %v7957 = vadd.f32 %v7956, %v7796
        %7958 = vadd.xlane.f32.xlu0 %v7957
        %v7959 = vpop.xlane.xlu0 %7958
        %v7960 = vadd.f32 %v7798, %v7800
        %v7961 = vadd.f32 %v7960, %v7802
        %v7962 = vadd.f32 %v7961, %v7804
        %7963 = vadd.xlane.f32.xlu0 %v7962
        %v7964 = vpop.xlane.xlu0 %7963
        %v7965 = vrcp.pop %v7809
        %v7966 = vrcp.pop %v7814
        %v7967 = vrcp.pop %v7819
        %v7968 = vrcp.pop %v7824
        %v7969 = vrcp.pop %v7829
        %v7970 = vrcp.pop %v7834
        %v7971 = vrcp.pop %v7839
        %v7972 = vrcp.pop %v7844
        %v7973 = vrcp.pop %v7849
        %v7974 = vrcp.pop %v7854
        %v7975 = vrcp.pop %v7859
        %v7976 = vrcp.pop %v7864
        %v7977 = vrcp.pop %v7869
        %v7978 = vrcp.pop %v7874
        %v7979 = vrcp.pop %v7879
        %v7980 = vrcp.pop %v7884
        %v7981 = vrcp.pop %v7889
        %v7982 = vrcp.pop %v7894
        %v7983 = vrcp.pop %v7899
        %v7984 = vrcp.pop %v7904
        %v7985 = vrcp.pop %v7909
        %v7986 = vrcp.pop %v7914
        %v7987 = vrcp.pop %v7919
        %v7988 = vrcp.pop %v7924
        %v7989 = vrcp.pop %v7929
        %v7990 = vrcp.pop %v7934
        %v7991 = vrcp.pop %v7939
        %v7992 = vrcp.pop %v7944
        %v7993 = vrcp.pop %v7949
        %v7994 = vrcp.pop %v7954
        %v7995 = vrcp.pop %v7959
        %v7996 = vrcp.pop %v7964
        %v7997 = vmul.f32 %v7550, %v7965
        %v7998 = vmul.f32 %v7552, %v7965
        %v7999 = vmul.f32 %v7554, %v7965
        %v8000 = vmul.f32 %v7556, %v7965
        %v8001 = vmul.f32 %v7558, %v7966
        %v8002 = vmul.f32 %v7560, %v7966
        %v8003 = vmul.f32 %v7562, %v7966
        %v8004 = vmul.f32 %v7564, %v7966
        %v8005 = vmul.f32 %v7566, %v7967
        %v8006 = vmul.f32 %v7568, %v7967
        %v8007 = vmul.f32 %v7570, %v7967
        %v8008 = vmul.f32 %v7572, %v7967
        %v8009 = vmul.f32 %v7574, %v7968
        %v8010 = vmul.f32 %v7576, %v7968
        %v8011 = vmul.f32 %v7578, %v7968
        %v8012 = vmul.f32 %v7580, %v7968
        %v8013 = vmul.f32 %v7582, %v7969
        %v8014 = vmul.f32 %v7584, %v7969
        %v8015 = vmul.f32 %v7586, %v7969
        %v8016 = vmul.f32 %v7588, %v7969
        %v8017 = vmul.f32 %v7590, %v7970
        %v8018 = vmul.f32 %v7592, %v7970
        %v8019 = vmul.f32 %v7594, %v7970
        %v8020 = vmul.f32 %v7596, %v7970
        %v8021 = vmul.f32 %v7598, %v7971
        %v8022 = vmul.f32 %v7600, %v7971
        %v8023 = vmul.f32 %v7602, %v7971
        %v8024 = vmul.f32 %v7604, %v7971
        %v8025 = vmul.f32 %v7606, %v7972
        %v8026 = vmul.f32 %v7608, %v7972
        %v8027 = vmul.f32 %v7610, %v7972
        %v8028 = vmul.f32 %v7612, %v7972
        %v8029 = vmul.f32 %v7614, %v7973
        %v8030 = vmul.f32 %v7616, %v7973
        %v8031 = vmul.f32 %v7618, %v7973
        %v8032 = vmul.f32 %v7620, %v7973
        %v8033 = vmul.f32 %v7622, %v7974
        %v8034 = vmul.f32 %v7624, %v7974
        %v8035 = vmul.f32 %v7626, %v7974
        %v8036 = vmul.f32 %v7628, %v7974
        %v8037 = vmul.f32 %v7630, %v7975
        %v8038 = vmul.f32 %v7632, %v7975
        %v8039 = vmul.f32 %v7634, %v7975
        %v8040 = vmul.f32 %v7636, %v7975
        %v8041 = vmul.f32 %v7638, %v7976
        %v8042 = vmul.f32 %v7640, %v7976
        %v8043 = vmul.f32 %v7642, %v7976
        %v8044 = vmul.f32 %v7644, %v7976
        %v8045 = vmul.f32 %v7646, %v7977
        %v8046 = vmul.f32 %v7648, %v7977
        %v8047 = vmul.f32 %v7650, %v7977
        %v8048 = vmul.f32 %v7652, %v7977
        %v8049 = vmul.f32 %v7654, %v7978
        %v8050 = vmul.f32 %v7656, %v7978
        %v8051 = vmul.f32 %v7658, %v7978
        %v8052 = vmul.f32 %v7660, %v7978
        %v8053 = vmul.f32 %v7662, %v7979
        %v8054 = vmul.f32 %v7664, %v7979
        %v8055 = vmul.f32 %v7666, %v7979
        %v8056 = vmul.f32 %v7668, %v7979
        %v8057 = vmul.f32 %v7670, %v7980
        %v8058 = vmul.f32 %v7672, %v7980
        %v8059 = vmul.f32 %v7674, %v7980
        %v8060 = vmul.f32 %v7676, %v7980
        %v8061 = vmul.f32 %v7678, %v7981
        %v8062 = vmul.f32 %v7680, %v7981
        %v8063 = vmul.f32 %v7682, %v7981
        %v8064 = vmul.f32 %v7684, %v7981
        %v8065 = vmul.f32 %v7686, %v7982
        %v8066 = vmul.f32 %v7688, %v7982
        %v8067 = vmul.f32 %v7690, %v7982
        %v8068 = vmul.f32 %v7692, %v7982
        %v8069 = vmul.f32 %v7694, %v7983
        %v8070 = vmul.f32 %v7696, %v7983
        %v8071 = vmul.f32 %v7698, %v7983
        %v8072 = vmul.f32 %v7700, %v7983
        %v8073 = vmul.f32 %v7702, %v7984
        %v8074 = vmul.f32 %v7704, %v7984
        %v8075 = vmul.f32 %v7706, %v7984
        %v8076 = vmul.f32 %v7708, %v7984
        %v8077 = vmul.f32 %v7710, %v7985
        %v8078 = vmul.f32 %v7712, %v7985
        %v8079 = vmul.f32 %v7714, %v7985
        %v8080 = vmul.f32 %v7716, %v7985
        %v8081 = vmul.f32 %v7718, %v7986
        %v8082 = vmul.f32 %v7720, %v7986
        %v8083 = vmul.f32 %v7722, %v7986
        %v8084 = vmul.f32 %v7724, %v7986
        %v8085 = vmul.f32 %v7726, %v7987
        %v8086 = vmul.f32 %v7728, %v7987
        %v8087 = vmul.f32 %v7730, %v7987
        %v8088 = vmul.f32 %v7732, %v7987
        %v8089 = vmul.f32 %v7734, %v7988
        %v8090 = vmul.f32 %v7736, %v7988
        %v8091 = vmul.f32 %v7738, %v7988
        %v8092 = vmul.f32 %v7740, %v7988
        %v8093 = vmul.f32 %v7742, %v7989
        %v8094 = vmul.f32 %v7744, %v7989
        %v8095 = vmul.f32 %v7746, %v7989
        %v8096 = vmul.f32 %v7748, %v7989
        %v8097 = vmul.f32 %v7750, %v7990
        %v8098 = vmul.f32 %v7752, %v7990
        %v8099 = vmul.f32 %v7754, %v7990
        %v8100 = vmul.f32 %v7756, %v7990
        %v8101 = vmul.f32 %v7758, %v7991
        %v8102 = vmul.f32 %v7760, %v7991
        %v8103 = vmul.f32 %v7762, %v7991
        %v8104 = vmul.f32 %v7764, %v7991
        %v8105 = vmul.f32 %v7766, %v7992
        %v8106 = vmul.f32 %v7768, %v7992
        %v8107 = vmul.f32 %v7770, %v7992
        %v8108 = vmul.f32 %v7772, %v7992
        %v8109 = vmul.f32 %v7774, %v7993
        %v8110 = vmul.f32 %v7776, %v7993
        %v8111 = vmul.f32 %v7778, %v7993
        %v8112 = vmul.f32 %v7780, %v7993
        %v8113 = vmul.f32 %v7782, %v7994
        %v8114 = vmul.f32 %v7784, %v7994
        %v8115 = vmul.f32 %v7786, %v7994
        %v8116 = vmul.f32 %v7788, %v7994
        %v8117 = vmul.f32 %v7790, %v7995
        %v8118 = vmul.f32 %v7792, %v7995
        %v8119 = vmul.f32 %v7794, %v7995
        %v8120 = vmul.f32 %v7796, %v7995
        %v8121 = vmul.f32 %v7798, %v7996
        %v8122 = vmul.f32 %v7800, %v7996
        %v8123 = vmul.f32 %v7802, %v7996
        %v8124 = vmul.f32 %v7804, %v7996
        %v8125 = vpack.c.bf16 %v8001, %v7997
        %v8126 = vpack.c.bf16 %v8002, %v7998
        %v8127 = vpack.c.bf16 %v8003, %v7999
        %v8128 = vpack.c.bf16 %v8004, %v8000
        %v8129 = vpack.c.bf16 %v8009, %v8005
        %v8130 = vpack.c.bf16 %v8010, %v8006
        %v8131 = vpack.c.bf16 %v8011, %v8007
        %v8132 = vpack.c.bf16 %v8012, %v8008
        %v8133 = vpack.c.bf16 %v8017, %v8013
        %v8134 = vpack.c.bf16 %v8018, %v8014
        %v8135 = vpack.c.bf16 %v8019, %v8015
        %v8136 = vpack.c.bf16 %v8020, %v8016
        %v8137 = vpack.c.bf16 %v8025, %v8021
        %v8138 = vpack.c.bf16 %v8026, %v8022
        %v8139 = vpack.c.bf16 %v8027, %v8023
        %v8140 = vpack.c.bf16 %v8028, %v8024
        %v8141 = vpack.c.bf16 %v8033, %v8029
        %v8142 = vpack.c.bf16 %v8034, %v8030
        %v8143 = vpack.c.bf16 %v8035, %v8031
        %v8144 = vpack.c.bf16 %v8036, %v8032
        %v8145 = vpack.c.bf16 %v8041, %v8037
        %v8146 = vpack.c.bf16 %v8042, %v8038
        %v8147 = vpack.c.bf16 %v8043, %v8039
        %v8148 = vpack.c.bf16 %v8044, %v8040
        %v8149 = vpack.c.bf16 %v8049, %v8045
        %v8150 = vpack.c.bf16 %v8050, %v8046
        %v8151 = vpack.c.bf16 %v8051, %v8047
        %v8152 = vpack.c.bf16 %v8052, %v8048
        %v8153 = vpack.c.bf16 %v8057, %v8053
        %v8154 = vpack.c.bf16 %v8058, %v8054
        %v8155 = vpack.c.bf16 %v8059, %v8055
        %v8156 = vpack.c.bf16 %v8060, %v8056
        %v8157 = vpack.c.bf16 %v8065, %v8061
        %v8158 = vpack.c.bf16 %v8066, %v8062
        %v8159 = vpack.c.bf16 %v8067, %v8063
        %v8160 = vpack.c.bf16 %v8068, %v8064
        %v8161 = vpack.c.bf16 %v8073, %v8069
        %v8162 = vpack.c.bf16 %v8074, %v8070
        %v8163 = vpack.c.bf16 %v8075, %v8071
        %v8164 = vpack.c.bf16 %v8076, %v8072
        %v8165 = vpack.c.bf16 %v8081, %v8077
        %v8166 = vpack.c.bf16 %v8082, %v8078
        %v8167 = vpack.c.bf16 %v8083, %v8079
        %v8168 = vpack.c.bf16 %v8084, %v8080
        %v8169 = vpack.c.bf16 %v8089, %v8085
        %v8170 = vpack.c.bf16 %v8090, %v8086
        %v8171 = vpack.c.bf16 %v8091, %v8087
        %v8172 = vpack.c.bf16 %v8092, %v8088
        %v8173 = vpack.c.bf16 %v8097, %v8093
        %v8174 = vpack.c.bf16 %v8098, %v8094
        %v8175 = vpack.c.bf16 %v8099, %v8095
        %v8176 = vpack.c.bf16 %v8100, %v8096
        %v8177 = vpack.c.bf16 %v8105, %v8101
        %v8178 = vpack.c.bf16 %v8106, %v8102
        %v8179 = vpack.c.bf16 %v8107, %v8103
        %v8180 = vpack.c.bf16 %v8108, %v8104
        %v8181 = vpack.c.bf16 %v8113, %v8109
        %v8182 = vpack.c.bf16 %v8114, %v8110
        %v8183 = vpack.c.bf16 %v8115, %v8111
        %v8184 = vpack.c.bf16 %v8116, %v8112
        %v8185 = vpack.c.bf16 %v8121, %v8117
        %v8186 = vpack.c.bf16 %v8122, %v8118
        %v8187 = vpack.c.bf16 %v8123, %v8119
        %v8188 = vpack.c.bf16 %v8124, %v8120
        %v8189 = vld [vmem:[%s191] sm:$0xff]
        %v8190 = vld [vmem:[%s191 + $0x8] sm:$0xff]
        %v8191 = vld [vmem:[%s191 + $0x10] sm:$0xff]
        %v8192 = vld [vmem:[%s191 + $0x18] sm:$0xff]
        %v8193 = vld [vmem:[%s191 + $0x20] sm:$0xff]
        %v8194 = vld [vmem:[%s191 + $0x28] sm:$0xff]
        %v8195 = vld [vmem:[%s191 + $0x30] sm:$0xff]
        %v8196 = vld [vmem:[%s191 + $0x38] sm:$0xff]
        %v8197 = vld [vmem:[%s191 + $0x40] sm:$0xff]
        %v8198 = vld [vmem:[%s191 + $0x48] sm:$0xff]
        %v8199 = vld [vmem:[%s191 + $0x50] sm:$0xff]
        %v8200 = vld [vmem:[%s191 + $0x58] sm:$0xff]
        %v8201 = vld [vmem:[%s191 + $0x60] sm:$0xff]
        %v8202 = vld [vmem:[%s191 + $0x68] sm:$0xff]
        %v8203 = vld [vmem:[%s191 + $0x70] sm:$0xff]
        %v8204 = vld [vmem:[%s191 + $0x78] sm:$0xff]
        %v8205 = vld [vmem:[%s191 + $0x80] sm:$0xff]
        %v8206 = vld [vmem:[%s191 + $0x88] sm:$0xff]
        %v8207 = vld [vmem:[%s191 + $0x90] sm:$0xff]
        %v8208 = vld [vmem:[%s191 + $0x98] sm:$0xff]
        %v8209 = vld [vmem:[%s191 + $0xa0] sm:$0xff]
        %v8210 = vld [vmem:[%s191 + $0xa8] sm:$0xff]
        %v8211 = vld [vmem:[%s191 + $0xb0] sm:$0xff]
        %v8212 = vld [vmem:[%s191 + $0xb8] sm:$0xff]
        %v8213 = vld [vmem:[%s191 + $0xc0] sm:$0xff]
        %v8214 = vld [vmem:[%s191 + $0xc8] sm:$0xff]
        %v8215 = vld [vmem:[%s191 + $0xd0] sm:$0xff]
        %v8216 = vld [vmem:[%s191 + $0xd8] sm:$0xff]
        %v8217 = vld [vmem:[%s191 + $0xe0] sm:$0xff]
        %v8218 = vld [vmem:[%s191 + $0xe8] sm:$0xff]
        %v8219 = vld [vmem:[%s191 + $0xf0] sm:$0xff]
        %v8220 = vld [vmem:[%s191 + $0xf8] sm:$0xff]
        %v8221 = vld [vmem:[%s191 + $0x100] sm:$0xff]
        %v8222 = vld [vmem:[%s191 + $0x108] sm:$0xff]
        %v8223 = vld [vmem:[%s191 + $0x110] sm:$0xff]
        %v8224 = vld [vmem:[%s191 + $0x118] sm:$0xff]
        %v8225 = vld [vmem:[%s191 + $0x120] sm:$0xff]
        %v8226 = vld [vmem:[%s191 + $0x128] sm:$0xff]
        %v8227 = vld [vmem:[%s191 + $0x130] sm:$0xff]
        %v8228 = vld [vmem:[%s191 + $0x138] sm:$0xff]
        %v8229 = vld [vmem:[%s191 + $0x140] sm:$0xff]
        %v8230 = vld [vmem:[%s191 + $0x148] sm:$0xff]
        %v8231 = vld [vmem:[%s191 + $0x150] sm:$0xff]
        %v8232 = vld [vmem:[%s191 + $0x158] sm:$0xff]
        %v8233 = vld [vmem:[%s191 + $0x160] sm:$0xff]
        %v8234 = vld [vmem:[%s191 + $0x168] sm:$0xff]
        %v8235 = vld [vmem:[%s191 + $0x170] sm:$0xff]
        %v8236 = vld [vmem:[%s191 + $0x178] sm:$0xff]
        %v8237 = vld [vmem:[%s191 + $0x180] sm:$0xff]
        %v8238 = vld [vmem:[%s191 + $0x188] sm:$0xff]
        %v8239 = vld [vmem:[%s191 + $0x190] sm:$0xff]
        %v8240 = vld [vmem:[%s191 + $0x198] sm:$0xff]
        %v8241 = vld [vmem:[%s191 + $0x1a0] sm:$0xff]
        %v8242 = vld [vmem:[%s191 + $0x1a8] sm:$0xff]
        %v8243 = vld [vmem:[%s191 + $0x1b0] sm:$0xff]
        %v8244 = vld [vmem:[%s191 + $0x1b8] sm:$0xff]
        %v8245 = vld [vmem:[%s191 + $0x1c0] sm:$0xff]
        %v8246 = vld [vmem:[%s191 + $0x1c8] sm:$0xff]
        %v8247 = vld [vmem:[%s191 + $0x1d0] sm:$0xff]
        %v8248 = vld [vmem:[%s191 + $0x1d8] sm:$0xff]
        %v8249 = vld [vmem:[%s191 + $0x1e0] sm:$0xff]
        %v8250 = vld [vmem:[%s191 + $0x1e8] sm:$0xff]
        %v8251 = vld [vmem:[%s191 + $0x1f0] sm:$0xff]
        %v8252 = vld [vmem:[%s191 + $0x1f8] sm:$0xff]
        %v8253 = vld [vmem:[%s191 + $0x200] sm:$0xff]
        %v8254 = vld [vmem:[%s191 + $0x208] sm:$0xff]
        %v8255 = vld [vmem:[%s191 + $0x210] sm:$0xff]
        %v8256 = vld [vmem:[%s191 + $0x218] sm:$0xff]
        %v8257 = vld [vmem:[%s191 + $0x220] sm:$0xff]
        %v8258 = vld [vmem:[%s191 + $0x228] sm:$0xff]
        %v8259 = vld [vmem:[%s191 + $0x230] sm:$0xff]
        %v8260 = vld [vmem:[%s191 + $0x238] sm:$0xff]
        %v8261 = vld [vmem:[%s191 + $0x240] sm:$0xff]
        %v8262 = vld [vmem:[%s191 + $0x248] sm:$0xff]
        %v8263 = vld [vmem:[%s191 + $0x250] sm:$0xff]
        %v8264 = vld [vmem:[%s191 + $0x258] sm:$0xff]
        %v8265 = vld [vmem:[%s191 + $0x260] sm:$0xff]
        %v8266 = vld [vmem:[%s191 + $0x268] sm:$0xff]
        %v8267 = vld [vmem:[%s191 + $0x270] sm:$0xff]
        %v8268 = vld [vmem:[%s191 + $0x278] sm:$0xff]
        %v8269 = vld [vmem:[%s191 + $0x280] sm:$0xff]
        %v8270 = vld [vmem:[%s191 + $0x288] sm:$0xff]
        %v8271 = vld [vmem:[%s191 + $0x290] sm:$0xff]
        %v8272 = vld [vmem:[%s191 + $0x298] sm:$0xff]
        %v8273 = vld [vmem:[%s191 + $0x2a0] sm:$0xff]
        %v8274 = vld [vmem:[%s191 + $0x2a8] sm:$0xff]
        %v8275 = vld [vmem:[%s191 + $0x2b0] sm:$0xff]
        %v8276 = vld [vmem:[%s191 + $0x2b8] sm:$0xff]
        %v8277 = vld [vmem:[%s191 + $0x2c0] sm:$0xff]
        %v8278 = vld [vmem:[%s191 + $0x2c8] sm:$0xff]
        %v8279 = vld [vmem:[%s191 + $0x2d0] sm:$0xff]
        %v8280 = vld [vmem:[%s191 + $0x2d8] sm:$0xff]
        %v8281 = vld [vmem:[%s191 + $0x2e0] sm:$0xff]
        %v8282 = vld [vmem:[%s191 + $0x2e8] sm:$0xff]
        %v8283 = vld [vmem:[%s191 + $0x2f0] sm:$0xff]
        %v8284 = vld [vmem:[%s191 + $0x2f8] sm:$0xff]
        %v8285 = vld [vmem:[%s191 + $0x300] sm:$0xff]
        %v8286 = vld [vmem:[%s191 + $0x308] sm:$0xff]
        %v8287 = vld [vmem:[%s191 + $0x310] sm:$0xff]
        %v8288 = vld [vmem:[%s191 + $0x318] sm:$0xff]
        %v8289 = vld [vmem:[%s191 + $0x320] sm:$0xff]
        %v8290 = vld [vmem:[%s191 + $0x328] sm:$0xff]
        %v8291 = vld [vmem:[%s191 + $0x330] sm:$0xff]
        %v8292 = vld [vmem:[%s191 + $0x338] sm:$0xff]
        %v8293 = vld [vmem:[%s191 + $0x340] sm:$0xff]
        %v8294 = vld [vmem:[%s191 + $0x348] sm:$0xff]
        %v8295 = vld [vmem:[%s191 + $0x350] sm:$0xff]
        %v8296 = vld [vmem:[%s191 + $0x358] sm:$0xff]
        %v8297 = vld [vmem:[%s191 + $0x360] sm:$0xff]
        %v8298 = vld [vmem:[%s191 + $0x368] sm:$0xff]
        %v8299 = vld [vmem:[%s191 + $0x370] sm:$0xff]
        %v8300 = vld [vmem:[%s191 + $0x378] sm:$0xff]
        %v8301 = vld [vmem:[%s191 + $0x380] sm:$0xff]
        %v8302 = vld [vmem:[%s191 + $0x388] sm:$0xff]
        %v8303 = vld [vmem:[%s191 + $0x390] sm:$0xff]
        %v8304 = vld [vmem:[%s191 + $0x398] sm:$0xff]
        %v8305 = vld [vmem:[%s191 + $0x3a0] sm:$0xff]
        %v8306 = vld [vmem:[%s191 + $0x3a8] sm:$0xff]
        %v8307 = vld [vmem:[%s191 + $0x3b0] sm:$0xff]
        %v8308 = vld [vmem:[%s191 + $0x3b8] sm:$0xff]
        %v8309 = vld [vmem:[%s191 + $0x3c0] sm:$0xff]
        %v8310 = vld [vmem:[%s191 + $0x3c8] sm:$0xff]
        %v8311 = vld [vmem:[%s191 + $0x3d0] sm:$0xff]
        %v8312 = vld [vmem:[%s191 + $0x3d8] sm:$0xff]
        %v8313 = vld [vmem:[%s191 + $0x3e0] sm:$0xff]
        %v8314 = vld [vmem:[%s191 + $0x3e8] sm:$0xff]
        %v8315 = vld [vmem:[%s191 + $0x3f0] sm:$0xff]
        %v8316 = vld [vmem:[%s191 + $0x3f8] sm:$0xff]
        %v8317 = vld [vmem:[%s191 + $0x400] sm:$0xff]
        %v8318 = vld [vmem:[%s191 + $0x408] sm:$0xff]
        %v8319 = vld [vmem:[%s191 + $0x410] sm:$0xff]
        %v8320 = vld [vmem:[%s191 + $0x418] sm:$0xff]
        %v8321 = vld [vmem:[%s191 + $0x420] sm:$0xff]
        %v8322 = vld [vmem:[%s191 + $0x428] sm:$0xff]
        %v8323 = vld [vmem:[%s191 + $0x430] sm:$0xff]
        %v8324 = vld [vmem:[%s191 + $0x438] sm:$0xff]
        %v8325 = vld [vmem:[%s191 + $0x440] sm:$0xff]
        %v8326 = vld [vmem:[%s191 + $0x448] sm:$0xff]
        %v8327 = vld [vmem:[%s191 + $0x450] sm:$0xff]
        %v8328 = vld [vmem:[%s191 + $0x458] sm:$0xff]
        %v8329 = vld [vmem:[%s191 + $0x460] sm:$0xff]
        %v8330 = vld [vmem:[%s191 + $0x468] sm:$0xff]
        %v8331 = vld [vmem:[%s191 + $0x470] sm:$0xff]
        %v8332 = vld [vmem:[%s191 + $0x478] sm:$0xff]
        %v8333 = vld [vmem:[%s191 + $0x480] sm:$0xff]
        %v8334 = vld [vmem:[%s191 + $0x488] sm:$0xff]
        %v8335 = vld [vmem:[%s191 + $0x490] sm:$0xff]
        %v8336 = vld [vmem:[%s191 + $0x498] sm:$0xff]
        %v8337 = vld [vmem:[%s191 + $0x4a0] sm:$0xff]
        %v8338 = vld [vmem:[%s191 + $0x4a8] sm:$0xff]
        %v8339 = vld [vmem:[%s191 + $0x4b0] sm:$0xff]
        %v8340 = vld [vmem:[%s191 + $0x4b8] sm:$0xff]
        %v8341 = vld [vmem:[%s191 + $0x4c0] sm:$0xff]
        %v8342 = vld [vmem:[%s191 + $0x4c8] sm:$0xff]
        %v8343 = vld [vmem:[%s191 + $0x4d0] sm:$0xff]
        %v8344 = vld [vmem:[%s191 + $0x4d8] sm:$0xff]
        %v8345 = vld [vmem:[%s191 + $0x4e0] sm:$0xff]
        %v8346 = vld [vmem:[%s191 + $0x4e8] sm:$0xff]
        %v8347 = vld [vmem:[%s191 + $0x4f0] sm:$0xff]
        %v8348 = vld [vmem:[%s191 + $0x4f8] sm:$0xff]
        %v8349 = vld [vmem:[%s191 + $0x500] sm:$0xff]
        %v8350 = vld [vmem:[%s191 + $0x508] sm:$0xff]
        %v8351 = vld [vmem:[%s191 + $0x510] sm:$0xff]
        %v8352 = vld [vmem:[%s191 + $0x518] sm:$0xff]
        %v8353 = vld [vmem:[%s191 + $0x520] sm:$0xff]
        %v8354 = vld [vmem:[%s191 + $0x528] sm:$0xff]
        %v8355 = vld [vmem:[%s191 + $0x530] sm:$0xff]
        %v8356 = vld [vmem:[%s191 + $0x538] sm:$0xff]
        %v8357 = vld [vmem:[%s191 + $0x540] sm:$0xff]
        %v8358 = vld [vmem:[%s191 + $0x548] sm:$0xff]
        %v8359 = vld [vmem:[%s191 + $0x550] sm:$0xff]
        %v8360 = vld [vmem:[%s191 + $0x558] sm:$0xff]
        %v8361 = vld [vmem:[%s191 + $0x560] sm:$0xff]
        %v8362 = vld [vmem:[%s191 + $0x568] sm:$0xff]
        %v8363 = vld [vmem:[%s191 + $0x570] sm:$0xff]
        %v8364 = vld [vmem:[%s191 + $0x578] sm:$0xff]
        %v8365 = vld [vmem:[%s191 + $0x580] sm:$0xff]
        %v8366 = vld [vmem:[%s191 + $0x588] sm:$0xff]
        %v8367 = vld [vmem:[%s191 + $0x590] sm:$0xff]
        %v8368 = vld [vmem:[%s191 + $0x598] sm:$0xff]
        %v8369 = vld [vmem:[%s191 + $0x5a0] sm:$0xff]
        %v8370 = vld [vmem:[%s191 + $0x5a8] sm:$0xff]
        %v8371 = vld [vmem:[%s191 + $0x5b0] sm:$0xff]
        %v8372 = vld [vmem:[%s191 + $0x5b8] sm:$0xff]
        %v8373 = vld [vmem:[%s191 + $0x5c0] sm:$0xff]
        %v8374 = vld [vmem:[%s191 + $0x5c8] sm:$0xff]
        %v8375 = vld [vmem:[%s191 + $0x5d0] sm:$0xff]
        %v8376 = vld [vmem:[%s191 + $0x5d8] sm:$0xff]
        %v8377 = vld [vmem:[%s191 + $0x5e0] sm:$0xff]
        %v8378 = vld [vmem:[%s191 + $0x5e8] sm:$0xff]
        %v8379 = vld [vmem:[%s191 + $0x5f0] sm:$0xff]
        %v8380 = vld [vmem:[%s191 + $0x5f8] sm:$0xff]
        %v8381 = vld [vmem:[%s191 + $0x600] sm:$0xff]
        %v8382 = vld [vmem:[%s191 + $0x608] sm:$0xff]
        %v8383 = vld [vmem:[%s191 + $0x610] sm:$0xff]
        %v8384 = vld [vmem:[%s191 + $0x618] sm:$0xff]
        %v8385 = vld [vmem:[%s191 + $0x620] sm:$0xff]
        %v8386 = vld [vmem:[%s191 + $0x628] sm:$0xff]
        %v8387 = vld [vmem:[%s191 + $0x630] sm:$0xff]
        %v8388 = vld [vmem:[%s191 + $0x638] sm:$0xff]
        %v8389 = vld [vmem:[%s191 + $0x640] sm:$0xff]
        %v8390 = vld [vmem:[%s191 + $0x648] sm:$0xff]
        %v8391 = vld [vmem:[%s191 + $0x650] sm:$0xff]
        %v8392 = vld [vmem:[%s191 + $0x658] sm:$0xff]
        %v8393 = vld [vmem:[%s191 + $0x660] sm:$0xff]
        %v8394 = vld [vmem:[%s191 + $0x668] sm:$0xff]
        %v8395 = vld [vmem:[%s191 + $0x670] sm:$0xff]
        %v8396 = vld [vmem:[%s191 + $0x678] sm:$0xff]
        %v8397 = vld [vmem:[%s191 + $0x680] sm:$0xff]
        %v8398 = vld [vmem:[%s191 + $0x688] sm:$0xff]
        %v8399 = vld [vmem:[%s191 + $0x690] sm:$0xff]
        %v8400 = vld [vmem:[%s191 + $0x698] sm:$0xff]
        %v8401 = vld [vmem:[%s191 + $0x6a0] sm:$0xff]
        %v8402 = vld [vmem:[%s191 + $0x6a8] sm:$0xff]
        %v8403 = vld [vmem:[%s191 + $0x6b0] sm:$0xff]
        %v8404 = vld [vmem:[%s191 + $0x6b8] sm:$0xff]
        %v8405 = vld [vmem:[%s191 + $0x6c0] sm:$0xff]
        %v8406 = vld [vmem:[%s191 + $0x6c8] sm:$0xff]
        %v8407 = vld [vmem:[%s191 + $0x6d0] sm:$0xff]
        %v8408 = vld [vmem:[%s191 + $0x6d8] sm:$0xff]
        %v8409 = vld [vmem:[%s191 + $0x6e0] sm:$0xff]
        %v8410 = vld [vmem:[%s191 + $0x6e8] sm:$0xff]
        %v8411 = vld [vmem:[%s191 + $0x6f0] sm:$0xff]
        %v8412 = vld [vmem:[%s191 + $0x6f8] sm:$0xff]
        %v8413 = vld [vmem:[%s191 + $0x700] sm:$0xff]
        %v8414 = vld [vmem:[%s191 + $0x708] sm:$0xff]
        %v8415 = vld [vmem:[%s191 + $0x710] sm:$0xff]
        %v8416 = vld [vmem:[%s191 + $0x718] sm:$0xff]
        %v8417 = vld [vmem:[%s191 + $0x720] sm:$0xff]
        %v8418 = vld [vmem:[%s191 + $0x728] sm:$0xff]
        %v8419 = vld [vmem:[%s191 + $0x730] sm:$0xff]
        %v8420 = vld [vmem:[%s191 + $0x738] sm:$0xff]
        %v8421 = vld [vmem:[%s191 + $0x740] sm:$0xff]
        %v8422 = vld [vmem:[%s191 + $0x748] sm:$0xff]
        %v8423 = vld [vmem:[%s191 + $0x750] sm:$0xff]
        %v8424 = vld [vmem:[%s191 + $0x758] sm:$0xff]
        %v8425 = vld [vmem:[%s191 + $0x760] sm:$0xff]
        %v8426 = vld [vmem:[%s191 + $0x768] sm:$0xff]
        %v8427 = vld [vmem:[%s191 + $0x770] sm:$0xff]
        %v8428 = vld [vmem:[%s191 + $0x778] sm:$0xff]
        %v8429 = vld [vmem:[%s191 + $0x780] sm:$0xff]
        %v8430 = vld [vmem:[%s191 + $0x788] sm:$0xff]
        %v8431 = vld [vmem:[%s191 + $0x790] sm:$0xff]
        %v8432 = vld [vmem:[%s191 + $0x798] sm:$0xff]
        %v8433 = vld [vmem:[%s191 + $0x7a0] sm:$0xff]
        %v8434 = vld [vmem:[%s191 + $0x7a8] sm:$0xff]
        %v8435 = vld [vmem:[%s191 + $0x7b0] sm:$0xff]
        %v8436 = vld [vmem:[%s191 + $0x7b8] sm:$0xff]
        %v8437 = vld [vmem:[%s191 + $0x7c0] sm:$0xff]
        %v8438 = vld [vmem:[%s191 + $0x7c8] sm:$0xff]
        %v8439 = vld [vmem:[%s191 + $0x7d0] sm:$0xff]
        %v8440 = vld [vmem:[%s191 + $0x7d8] sm:$0xff]
        %v8441 = vld [vmem:[%s191 + $0x7e0] sm:$0xff]
        %v8442 = vld [vmem:[%s191 + $0x7e8] sm:$0xff]
        %v8443 = vld [vmem:[%s191 + $0x7f0] sm:$0xff]
        %v8444 = vld [vmem:[%s191 + $0x7f8] sm:$0xff]
        %v8701 = vunpack.c.l.b16 %v8189
        %v8702 = vunpack.c.h.b16 %v8189
        %v8703 = vunpack.c.l.b16 %v8190
        %v8704 = vunpack.c.h.b16 %v8190
        %v8705 = vunpack.c.l.b16 %v8191
        %v8706 = vunpack.c.h.b16 %v8191
        %v8707 = vunpack.c.l.b16 %v8192
        %v8708 = vunpack.c.h.b16 %v8192
        %v8709 = vunpack.c.l.b16 %v8193
        %v8710 = vunpack.c.h.b16 %v8193
        %v8711 = vunpack.c.l.b16 %v8194
        %v8712 = vunpack.c.h.b16 %v8194
        %v8713 = vunpack.c.l.b16 %v8195
        %v8714 = vunpack.c.h.b16 %v8195
        %v8715 = vunpack.c.l.b16 %v8196
        %v8716 = vunpack.c.h.b16 %v8196
        %v8717 = vunpack.c.l.b16 %v8197
        %v8718 = vunpack.c.h.b16 %v8197
        %v8719 = vunpack.c.l.b16 %v8198
        %v8720 = vunpack.c.h.b16 %v8198
        %v8721 = vunpack.c.l.b16 %v8199
        %v8722 = vunpack.c.h.b16 %v8199
        %v8723 = vunpack.c.l.b16 %v8200
        %v8724 = vunpack.c.h.b16 %v8200
        %v8725 = vunpack.c.l.b16 %v8201
        %v8726 = vunpack.c.h.b16 %v8201
        %v8727 = vunpack.c.l.b16 %v8202
        %v8728 = vunpack.c.h.b16 %v8202
        %v8729 = vunpack.c.l.b16 %v8203
        %v8730 = vunpack.c.h.b16 %v8203
        %v8731 = vunpack.c.l.b16 %v8204
        %v8732 = vunpack.c.h.b16 %v8204
        %v8733 = vunpack.c.l.b16 %v8205
        %v8734 = vunpack.c.h.b16 %v8205
        %v8735 = vunpack.c.l.b16 %v8206
        %v8736 = vunpack.c.h.b16 %v8206
        %v8737 = vunpack.c.l.b16 %v8207
        %v8738 = vunpack.c.h.b16 %v8207
        %v8739 = vunpack.c.l.b16 %v8208
        %v8740 = vunpack.c.h.b16 %v8208
        %v8741 = vunpack.c.l.b16 %v8209
        %v8742 = vunpack.c.h.b16 %v8209
        %v8743 = vunpack.c.l.b16 %v8210
        %v8744 = vunpack.c.h.b16 %v8210
        %v8745 = vunpack.c.l.b16 %v8211
        %v8746 = vunpack.c.h.b16 %v8211
        %v8747 = vunpack.c.l.b16 %v8212
        %v8748 = vunpack.c.h.b16 %v8212
        %v8749 = vunpack.c.l.b16 %v8213
        %v8750 = vunpack.c.h.b16 %v8213
        %v8751 = vunpack.c.l.b16 %v8214
        %v8752 = vunpack.c.h.b16 %v8214
        %v8753 = vunpack.c.l.b16 %v8215
        %v8754 = vunpack.c.h.b16 %v8215
        %v8755 = vunpack.c.l.b16 %v8216
        %v8756 = vunpack.c.h.b16 %v8216
        %v8757 = vunpack.c.l.b16 %v8217
        %v8758 = vunpack.c.h.b16 %v8217
        %v8759 = vunpack.c.l.b16 %v8218
        %v8760 = vunpack.c.h.b16 %v8218
        %v8761 = vunpack.c.l.b16 %v8219
        %v8762 = vunpack.c.h.b16 %v8219
        %v8763 = vunpack.c.l.b16 %v8220
        %v8764 = vunpack.c.h.b16 %v8220
        %v8765 = vunpack.c.l.b16 %v8221
        %v8766 = vunpack.c.h.b16 %v8221
        %v8767 = vunpack.c.l.b16 %v8222
        %v8768 = vunpack.c.h.b16 %v8222
        %v8769 = vunpack.c.l.b16 %v8223
        %v8770 = vunpack.c.h.b16 %v8223
        %v8771 = vunpack.c.l.b16 %v8224
        %v8772 = vunpack.c.h.b16 %v8224
        %v8773 = vunpack.c.l.b16 %v8225
        %v8774 = vunpack.c.h.b16 %v8225
        %v8775 = vunpack.c.l.b16 %v8226
        %v8776 = vunpack.c.h.b16 %v8226
        %v8777 = vunpack.c.l.b16 %v8227
        %v8778 = vunpack.c.h.b16 %v8227
        %v8779 = vunpack.c.l.b16 %v8228
        %v8780 = vunpack.c.h.b16 %v8228
        %v8781 = vunpack.c.l.b16 %v8229
        %v8782 = vunpack.c.h.b16 %v8229
        %v8783 = vunpack.c.l.b16 %v8230
        %v8784 = vunpack.c.h.b16 %v8230
        %v8785 = vunpack.c.l.b16 %v8231
        %v8786 = vunpack.c.h.b16 %v8231
        %v8787 = vunpack.c.l.b16 %v8232
        %v8788 = vunpack.c.h.b16 %v8232
        %v8789 = vunpack.c.l.b16 %v8233
        %v8790 = vunpack.c.h.b16 %v8233
        %v8791 = vunpack.c.l.b16 %v8234
        %v8792 = vunpack.c.h.b16 %v8234
        %v8793 = vunpack.c.l.b16 %v8235
        %v8794 = vunpack.c.h.b16 %v8235
        %v8795 = vunpack.c.l.b16 %v8236
        %v8796 = vunpack.c.h.b16 %v8236
        %v8797 = vunpack.c.l.b16 %v8237
        %v8798 = vunpack.c.h.b16 %v8237
        %v8799 = vunpack.c.l.b16 %v8238
        %v8800 = vunpack.c.h.b16 %v8238
        %v8801 = vunpack.c.l.b16 %v8239
        %v8802 = vunpack.c.h.b16 %v8239
        %v8803 = vunpack.c.l.b16 %v8240
        %v8804 = vunpack.c.h.b16 %v8240
        %v8805 = vunpack.c.l.b16 %v8241
        %v8806 = vunpack.c.h.b16 %v8241
        %v8807 = vunpack.c.l.b16 %v8242
        %v8808 = vunpack.c.h.b16 %v8242
        %v8809 = vunpack.c.l.b16 %v8243
        %v8810 = vunpack.c.h.b16 %v8243
        %v8811 = vunpack.c.l.b16 %v8244
        %v8812 = vunpack.c.h.b16 %v8244
        %v8813 = vunpack.c.l.b16 %v8245
        %v8814 = vunpack.c.h.b16 %v8245
        %v8815 = vunpack.c.l.b16 %v8246
        %v8816 = vunpack.c.h.b16 %v8246
        %v8817 = vunpack.c.l.b16 %v8247
        %v8818 = vunpack.c.h.b16 %v8247
        %v8819 = vunpack.c.l.b16 %v8248
        %v8820 = vunpack.c.h.b16 %v8248
        %v8821 = vunpack.c.l.b16 %v8249
        %v8822 = vunpack.c.h.b16 %v8249
        %v8823 = vunpack.c.l.b16 %v8250
        %v8824 = vunpack.c.h.b16 %v8250
        %v8825 = vunpack.c.l.b16 %v8251
        %v8826 = vunpack.c.h.b16 %v8251
        %v8827 = vunpack.c.l.b16 %v8252
        %v8828 = vunpack.c.h.b16 %v8252
        %v8829 = vunpack.c.l.b16 %v8253
        %v8830 = vunpack.c.h.b16 %v8253
        %v8831 = vunpack.c.l.b16 %v8254
        %v8832 = vunpack.c.h.b16 %v8254
        %v8833 = vunpack.c.l.b16 %v8255
        %v8834 = vunpack.c.h.b16 %v8255
        %v8835 = vunpack.c.l.b16 %v8256
        %v8836 = vunpack.c.h.b16 %v8256
        %v8837 = vunpack.c.l.b16 %v8257
        %v8838 = vunpack.c.h.b16 %v8257
        %v8839 = vunpack.c.l.b16 %v8258
        %v8840 = vunpack.c.h.b16 %v8258
        %v8841 = vunpack.c.l.b16 %v8259
        %v8842 = vunpack.c.h.b16 %v8259
        %v8843 = vunpack.c.l.b16 %v8260
        %v8844 = vunpack.c.h.b16 %v8260
        %v8845 = vunpack.c.l.b16 %v8261
        %v8846 = vunpack.c.h.b16 %v8261
        %v8847 = vunpack.c.l.b16 %v8262
        %v8848 = vunpack.c.h.b16 %v8262
        %v8849 = vunpack.c.l.b16 %v8263
        %v8850 = vunpack.c.h.b16 %v8263
        %v8851 = vunpack.c.l.b16 %v8264
        %v8852 = vunpack.c.h.b16 %v8264
        %v8853 = vunpack.c.l.b16 %v8265
        %v8854 = vunpack.c.h.b16 %v8265
        %v8855 = vunpack.c.l.b16 %v8266
        %v8856 = vunpack.c.h.b16 %v8266
        %v8857 = vunpack.c.l.b16 %v8267
        %v8858 = vunpack.c.h.b16 %v8267
        %v8859 = vunpack.c.l.b16 %v8268
        %v8860 = vunpack.c.h.b16 %v8268
        %v8861 = vunpack.c.l.b16 %v8269
        %v8862 = vunpack.c.h.b16 %v8269
        %v8863 = vunpack.c.l.b16 %v8270
        %v8864 = vunpack.c.h.b16 %v8270
        %v8865 = vunpack.c.l.b16 %v8271
        %v8866 = vunpack.c.h.b16 %v8271
        %v8867 = vunpack.c.l.b16 %v8272
        %v8868 = vunpack.c.h.b16 %v8272
        %v8869 = vunpack.c.l.b16 %v8273
        %v8870 = vunpack.c.h.b16 %v8273
        %v8871 = vunpack.c.l.b16 %v8274
        %v8872 = vunpack.c.h.b16 %v8274
        %v8873 = vunpack.c.l.b16 %v8275
        %v8874 = vunpack.c.h.b16 %v8275
        %v8875 = vunpack.c.l.b16 %v8276
        %v8876 = vunpack.c.h.b16 %v8276
        %v8877 = vunpack.c.l.b16 %v8277
        %v8878 = vunpack.c.h.b16 %v8277
        %v8879 = vunpack.c.l.b16 %v8278
        %v8880 = vunpack.c.h.b16 %v8278
        %v8881 = vunpack.c.l.b16 %v8279
        %v8882 = vunpack.c.h.b16 %v8279
        %v8883 = vunpack.c.l.b16 %v8280
        %v8884 = vunpack.c.h.b16 %v8280
        %v8885 = vunpack.c.l.b16 %v8281
        %v8886 = vunpack.c.h.b16 %v8281
        %v8887 = vunpack.c.l.b16 %v8282
        %v8888 = vunpack.c.h.b16 %v8282
        %v8889 = vunpack.c.l.b16 %v8283
        %v8890 = vunpack.c.h.b16 %v8283
        %v8891 = vunpack.c.l.b16 %v8284
        %v8892 = vunpack.c.h.b16 %v8284
        %v8893 = vunpack.c.l.b16 %v8285
        %v8894 = vunpack.c.h.b16 %v8285
        %v8895 = vunpack.c.l.b16 %v8286
        %v8896 = vunpack.c.h.b16 %v8286
        %v8897 = vunpack.c.l.b16 %v8287
        %v8898 = vunpack.c.h.b16 %v8287
        %v8899 = vunpack.c.l.b16 %v8288
        %v8900 = vunpack.c.h.b16 %v8288
        %v8901 = vunpack.c.l.b16 %v8289
        %v8902 = vunpack.c.h.b16 %v8289
        %v8903 = vunpack.c.l.b16 %v8290
        %v8904 = vunpack.c.h.b16 %v8290
        %v8905 = vunpack.c.l.b16 %v8291
        %v8906 = vunpack.c.h.b16 %v8291
        %v8907 = vunpack.c.l.b16 %v8292
        %v8908 = vunpack.c.h.b16 %v8292
        %v8909 = vunpack.c.l.b16 %v8293
        %v8910 = vunpack.c.h.b16 %v8293
        %v8911 = vunpack.c.l.b16 %v8294
        %v8912 = vunpack.c.h.b16 %v8294
        %v8913 = vunpack.c.l.b16 %v8295
        %v8914 = vunpack.c.h.b16 %v8295
        %v8915 = vunpack.c.l.b16 %v8296
        %v8916 = vunpack.c.h.b16 %v8296
        %v8917 = vunpack.c.l.b16 %v8297
        %v8918 = vunpack.c.h.b16 %v8297
        %v8919 = vunpack.c.l.b16 %v8298
        %v8920 = vunpack.c.h.b16 %v8298
        %v8921 = vunpack.c.l.b16 %v8299
        %v8922 = vunpack.c.h.b16 %v8299
        %v8923 = vunpack.c.l.b16 %v8300
        %v8924 = vunpack.c.h.b16 %v8300
        %v8925 = vunpack.c.l.b16 %v8301
        %v8926 = vunpack.c.h.b16 %v8301
        %v8927 = vunpack.c.l.b16 %v8302
        %v8928 = vunpack.c.h.b16 %v8302
        %v8929 = vunpack.c.l.b16 %v8303
        %v8930 = vunpack.c.h.b16 %v8303
        %v8931 = vunpack.c.l.b16 %v8304
        %v8932 = vunpack.c.h.b16 %v8304
        %v8933 = vunpack.c.l.b16 %v8305
        %v8934 = vunpack.c.h.b16 %v8305
        %v8935 = vunpack.c.l.b16 %v8306
        %v8936 = vunpack.c.h.b16 %v8306
        %v8937 = vunpack.c.l.b16 %v8307
        %v8938 = vunpack.c.h.b16 %v8307
        %v8939 = vunpack.c.l.b16 %v8308
        %v8940 = vunpack.c.h.b16 %v8308
        %v8941 = vunpack.c.l.b16 %v8309
        %v8942 = vunpack.c.h.b16 %v8309
        %v8943 = vunpack.c.l.b16 %v8310
        %v8944 = vunpack.c.h.b16 %v8310
        %v8945 = vunpack.c.l.b16 %v8311
        %v8946 = vunpack.c.h.b16 %v8311
        %v8947 = vunpack.c.l.b16 %v8312
        %v8948 = vunpack.c.h.b16 %v8312
        %v8949 = vunpack.c.l.b16 %v8313
        %v8950 = vunpack.c.h.b16 %v8313
        %v8951 = vunpack.c.l.b16 %v8314
        %v8952 = vunpack.c.h.b16 %v8314
        %v8953 = vunpack.c.l.b16 %v8315
        %v8954 = vunpack.c.h.b16 %v8315
        %v8955 = vunpack.c.l.b16 %v8316
        %v8956 = vunpack.c.h.b16 %v8316
        %v8957 = vunpack.c.l.b16 %v8317
        %v8958 = vunpack.c.h.b16 %v8317
        %v8959 = vunpack.c.l.b16 %v8318
        %v8960 = vunpack.c.h.b16 %v8318
        %v8961 = vunpack.c.l.b16 %v8319
        %v8962 = vunpack.c.h.b16 %v8319
        %v8963 = vunpack.c.l.b16 %v8320
        %v8964 = vunpack.c.h.b16 %v8320
        %v8965 = vunpack.c.l.b16 %v8321
        %v8966 = vunpack.c.h.b16 %v8321
        %v8967 = vunpack.c.l.b16 %v8322
        %v8968 = vunpack.c.h.b16 %v8322
        %v8969 = vunpack.c.l.b16 %v8323
        %v8970 = vunpack.c.h.b16 %v8323
        %v8971 = vunpack.c.l.b16 %v8324
        %v8972 = vunpack.c.h.b16 %v8324
        %v8973 = vunpack.c.l.b16 %v8325
        %v8974 = vunpack.c.h.b16 %v8325
        %v8975 = vunpack.c.l.b16 %v8326
        %v8976 = vunpack.c.h.b16 %v8326
        %v8977 = vunpack.c.l.b16 %v8327
        %v8978 = vunpack.c.h.b16 %v8327
        %v8979 = vunpack.c.l.b16 %v8328
        %v8980 = vunpack.c.h.b16 %v8328
        %v8981 = vunpack.c.l.b16 %v8329
        %v8982 = vunpack.c.h.b16 %v8329
        %v8983 = vunpack.c.l.b16 %v8330
        %v8984 = vunpack.c.h.b16 %v8330
        %v8985 = vunpack.c.l.b16 %v8331
        %v8986 = vunpack.c.h.b16 %v8331
        %v8987 = vunpack.c.l.b16 %v8332
        %v8988 = vunpack.c.h.b16 %v8332
        %v8989 = vunpack.c.l.b16 %v8333
        %v8990 = vunpack.c.h.b16 %v8333
        %v8991 = vunpack.c.l.b16 %v8334
        %v8992 = vunpack.c.h.b16 %v8334
        %v8993 = vunpack.c.l.b16 %v8335
        %v8994 = vunpack.c.h.b16 %v8335
        %v8995 = vunpack.c.l.b16 %v8336
        %v8996 = vunpack.c.h.b16 %v8336
        %v8997 = vunpack.c.l.b16 %v8337
        %v8998 = vunpack.c.h.b16 %v8337
        %v8999 = vunpack.c.l.b16 %v8338
        %v9000 = vunpack.c.h.b16 %v8338
        %v9001 = vunpack.c.l.b16 %v8339
        %v9002 = vunpack.c.h.b16 %v8339
        %v9003 = vunpack.c.l.b16 %v8340
        %v9004 = vunpack.c.h.b16 %v8340
        %v9005 = vunpack.c.l.b16 %v8341
        %v9006 = vunpack.c.h.b16 %v8341
        %v9007 = vunpack.c.l.b16 %v8342
        %v9008 = vunpack.c.h.b16 %v8342
        %v9009 = vunpack.c.l.b16 %v8343
        %v9010 = vunpack.c.h.b16 %v8343
        %v9011 = vunpack.c.l.b16 %v8344
        %v9012 = vunpack.c.h.b16 %v8344
        %v9013 = vunpack.c.l.b16 %v8345
        %v9014 = vunpack.c.h.b16 %v8345
        %v9015 = vunpack.c.l.b16 %v8346
        %v9016 = vunpack.c.h.b16 %v8346
        %v9017 = vunpack.c.l.b16 %v8347
        %v9018 = vunpack.c.h.b16 %v8347
        %v9019 = vunpack.c.l.b16 %v8348
        %v9020 = vunpack.c.h.b16 %v8348
        %v9021 = vunpack.c.l.b16 %v8349
        %v9022 = vunpack.c.h.b16 %v8349
        %v9023 = vunpack.c.l.b16 %v8350
        %v9024 = vunpack.c.h.b16 %v8350
        %v9025 = vunpack.c.l.b16 %v8351
        %v9026 = vunpack.c.h.b16 %v8351
        %v9027 = vunpack.c.l.b16 %v8352
        %v9028 = vunpack.c.h.b16 %v8352
        %v9029 = vunpack.c.l.b16 %v8353
        %v9030 = vunpack.c.h.b16 %v8353
        %v9031 = vunpack.c.l.b16 %v8354
        %v9032 = vunpack.c.h.b16 %v8354
        %v9033 = vunpack.c.l.b16 %v8355
        %v9034 = vunpack.c.h.b16 %v8355
        %v9035 = vunpack.c.l.b16 %v8356
        %v9036 = vunpack.c.h.b16 %v8356
        %v9037 = vunpack.c.l.b16 %v8357
        %v9038 = vunpack.c.h.b16 %v8357
        %v9039 = vunpack.c.l.b16 %v8358
        %v9040 = vunpack.c.h.b16 %v8358
        %v9041 = vunpack.c.l.b16 %v8359
        %v9042 = vunpack.c.h.b16 %v8359
        %v9043 = vunpack.c.l.b16 %v8360
        %v9044 = vunpack.c.h.b16 %v8360
        %v9045 = vunpack.c.l.b16 %v8361
        %v9046 = vunpack.c.h.b16 %v8361
        %v9047 = vunpack.c.l.b16 %v8362
        %v9048 = vunpack.c.h.b16 %v8362
        %v9049 = vunpack.c.l.b16 %v8363
        %v9050 = vunpack.c.h.b16 %v8363
        %v9051 = vunpack.c.l.b16 %v8364
        %v9052 = vunpack.c.h.b16 %v8364
        %v9053 = vunpack.c.l.b16 %v8365
        %v9054 = vunpack.c.h.b16 %v8365
        %v9055 = vunpack.c.l.b16 %v8366
        %v9056 = vunpack.c.h.b16 %v8366
        %v9057 = vunpack.c.l.b16 %v8367
        %v9058 = vunpack.c.h.b16 %v8367
        %v9059 = vunpack.c.l.b16 %v8368
        %v9060 = vunpack.c.h.b16 %v8368
        %v9061 = vunpack.c.l.b16 %v8369
        %v9062 = vunpack.c.h.b16 %v8369
        %v9063 = vunpack.c.l.b16 %v8370
        %v9064 = vunpack.c.h.b16 %v8370
        %v9065 = vunpack.c.l.b16 %v8371
        %v9066 = vunpack.c.h.b16 %v8371
        %v9067 = vunpack.c.l.b16 %v8372
        %v9068 = vunpack.c.h.b16 %v8372
        %v9069 = vunpack.c.l.b16 %v8373
        %v9070 = vunpack.c.h.b16 %v8373
        %v9071 = vunpack.c.l.b16 %v8374
        %v9072 = vunpack.c.h.b16 %v8374
        %v9073 = vunpack.c.l.b16 %v8375
        %v9074 = vunpack.c.h.b16 %v8375
        %v9075 = vunpack.c.l.b16 %v8376
        %v9076 = vunpack.c.h.b16 %v8376
        %v9077 = vunpack.c.l.b16 %v8377
        %v9078 = vunpack.c.h.b16 %v8377
        %v9079 = vunpack.c.l.b16 %v8378
        %v9080 = vunpack.c.h.b16 %v8378
        %v9081 = vunpack.c.l.b16 %v8379
        %v9082 = vunpack.c.h.b16 %v8379
        %v9083 = vunpack.c.l.b16 %v8380
        %v9084 = vunpack.c.h.b16 %v8380
        %v9085 = vunpack.c.l.b16 %v8381
        %v9086 = vunpack.c.h.b16 %v8381
        %v9087 = vunpack.c.l.b16 %v8382
        %v9088 = vunpack.c.h.b16 %v8382
        %v9089 = vunpack.c.l.b16 %v8383
        %v9090 = vunpack.c.h.b16 %v8383
        %v9091 = vunpack.c.l.b16 %v8384
        %v9092 = vunpack.c.h.b16 %v8384
        %v9093 = vunpack.c.l.b16 %v8385
        %v9094 = vunpack.c.h.b16 %v8385
        %v9095 = vunpack.c.l.b16 %v8386
        %v9096 = vunpack.c.h.b16 %v8386
        %v9097 = vunpack.c.l.b16 %v8387
        %v9098 = vunpack.c.h.b16 %v8387
        %v9099 = vunpack.c.l.b16 %v8388
        %v9100 = vunpack.c.h.b16 %v8388
        %v9101 = vunpack.c.l.b16 %v8389
        %v9102 = vunpack.c.h.b16 %v8389
        %v9103 = vunpack.c.l.b16 %v8390
        %v9104 = vunpack.c.h.b16 %v8390
        %v9105 = vunpack.c.l.b16 %v8391
        %v9106 = vunpack.c.h.b16 %v8391
        %v9107 = vunpack.c.l.b16 %v8392
        %v9108 = vunpack.c.h.b16 %v8392
        %v9109 = vunpack.c.l.b16 %v8393
        %v9110 = vunpack.c.h.b16 %v8393
        %v9111 = vunpack.c.l.b16 %v8394
        %v9112 = vunpack.c.h.b16 %v8394
        %v9113 = vunpack.c.l.b16 %v8395
        %v9114 = vunpack.c.h.b16 %v8395
        %v9115 = vunpack.c.l.b16 %v8396
        %v9116 = vunpack.c.h.b16 %v8396
        %v9117 = vunpack.c.l.b16 %v8397
        %v9118 = vunpack.c.h.b16 %v8397
        %v9119 = vunpack.c.l.b16 %v8398
        %v9120 = vunpack.c.h.b16 %v8398
        %v9121 = vunpack.c.l.b16 %v8399
        %v9122 = vunpack.c.h.b16 %v8399
        %v9123 = vunpack.c.l.b16 %v8400
        %v9124 = vunpack.c.h.b16 %v8400
        %v9125 = vunpack.c.l.b16 %v8401
        %v9126 = vunpack.c.h.b16 %v8401
        %v9127 = vunpack.c.l.b16 %v8402
        %v9128 = vunpack.c.h.b16 %v8402
        %v9129 = vunpack.c.l.b16 %v8403
        %v9130 = vunpack.c.h.b16 %v8403
        %v9131 = vunpack.c.l.b16 %v8404
        %v9132 = vunpack.c.h.b16 %v8404
        %v9133 = vunpack.c.l.b16 %v8405
        %v9134 = vunpack.c.h.b16 %v8405
        %v9135 = vunpack.c.l.b16 %v8406
        %v9136 = vunpack.c.h.b16 %v8406
        %v9137 = vunpack.c.l.b16 %v8407
        %v9138 = vunpack.c.h.b16 %v8407
        %v9139 = vunpack.c.l.b16 %v8408
        %v9140 = vunpack.c.h.b16 %v8408
        %v9141 = vunpack.c.l.b16 %v8409
        %v9142 = vunpack.c.h.b16 %v8409
        %v9143 = vunpack.c.l.b16 %v8410
        %v9144 = vunpack.c.h.b16 %v8410
        %v9145 = vunpack.c.l.b16 %v8411
        %v9146 = vunpack.c.h.b16 %v8411
        %v9147 = vunpack.c.l.b16 %v8412
        %v9148 = vunpack.c.h.b16 %v8412
        %v9149 = vunpack.c.l.b16 %v8413
        %v9150 = vunpack.c.h.b16 %v8413
        %v9151 = vunpack.c.l.b16 %v8414
        %v9152 = vunpack.c.h.b16 %v8414
        %v9153 = vunpack.c.l.b16 %v8415
        %v9154 = vunpack.c.h.b16 %v8415
        %v9155 = vunpack.c.l.b16 %v8416
        %v9156 = vunpack.c.h.b16 %v8416
        %v9157 = vunpack.c.l.b16 %v8417
        %v9158 = vunpack.c.h.b16 %v8417
        %v9159 = vunpack.c.l.b16 %v8418
        %v9160 = vunpack.c.h.b16 %v8418
        %v9161 = vunpack.c.l.b16 %v8419
        %v9162 = vunpack.c.h.b16 %v8419
        %v9163 = vunpack.c.l.b16 %v8420
        %v9164 = vunpack.c.h.b16 %v8420
        %v9165 = vunpack.c.l.b16 %v8421
        %v9166 = vunpack.c.h.b16 %v8421
        %v9167 = vunpack.c.l.b16 %v8422
        %v9168 = vunpack.c.h.b16 %v8422
        %v9169 = vunpack.c.l.b16 %v8423
        %v9170 = vunpack.c.h.b16 %v8423
        %v9171 = vunpack.c.l.b16 %v8424
        %v9172 = vunpack.c.h.b16 %v8424
        %v9173 = vunpack.c.l.b16 %v8425
        %v9174 = vunpack.c.h.b16 %v8425
        %v9175 = vunpack.c.l.b16 %v8426
        %v9176 = vunpack.c.h.b16 %v8426
        %v9177 = vunpack.c.l.b16 %v8427
        %v9178 = vunpack.c.h.b16 %v8427
        %v9179 = vunpack.c.l.b16 %v8428
        %v9180 = vunpack.c.h.b16 %v8428
        %v9181 = vunpack.c.l.b16 %v8429
        %v9182 = vunpack.c.h.b16 %v8429
        %v9183 = vunpack.c.l.b16 %v8430
        %v9184 = vunpack.c.h.b16 %v8430
        %v9185 = vunpack.c.l.b16 %v8431
        %v9186 = vunpack.c.h.b16 %v8431
        %v9187 = vunpack.c.l.b16 %v8432
        %v9188 = vunpack.c.h.b16 %v8432
        %v9189 = vunpack.c.l.b16 %v8433
        %v9190 = vunpack.c.h.b16 %v8433
        %v9191 = vunpack.c.l.b16 %v8434
        %v9192 = vunpack.c.h.b16 %v8434
        %v9193 = vunpack.c.l.b16 %v8435
        %v9194 = vunpack.c.h.b16 %v8435
        %v9195 = vunpack.c.l.b16 %v8436
        %v9196 = vunpack.c.h.b16 %v8436
        %v9197 = vunpack.c.l.b16 %v8437
        %v9198 = vunpack.c.h.b16 %v8437
        %v9199 = vunpack.c.l.b16 %v8438
        %v9200 = vunpack.c.h.b16 %v8438
        %v9201 = vunpack.c.l.b16 %v8439
        %v9202 = vunpack.c.h.b16 %v8439
        %v9203 = vunpack.c.l.b16 %v8440
        %v9204 = vunpack.c.h.b16 %v8440
        %v9205 = vunpack.c.l.b16 %v8441
        %v9206 = vunpack.c.h.b16 %v8441
        %v9207 = vunpack.c.l.b16 %v8442
        %v9208 = vunpack.c.h.b16 %v8442
        %v9209 = vunpack.c.l.b16 %v8443
        %v9210 = vunpack.c.h.b16 %v8443
        %v9211 = vunpack.c.l.b16 %v8444
        %v9212 = vunpack.c.h.b16 %v8444
        %v9213 = vpack.c.b16 %v8709, %v8701
        %v9214 = vpack.c.b16 %v8710, %v8702
        %v9215 = vpack.c.b16 %v8711, %v8703
        %v9216 = vpack.c.b16 %v8712, %v8704
        %v9217 = vpack.c.b16 %v8713, %v8705
        %v9218 = vpack.c.b16 %v8714, %v8706
        %v9219 = vpack.c.b16 %v8715, %v8707
        %v9220 = vpack.c.b16 %v8716, %v8708
        %v9221 = vpack.c.b16 %v8725, %v8717
        %v9222 = vpack.c.b16 %v8726, %v8718
        %v9223 = vpack.c.b16 %v8727, %v8719
        %v9224 = vpack.c.b16 %v8728, %v8720
        %v9225 = vpack.c.b16 %v8729, %v8721
        %v9226 = vpack.c.b16 %v8730, %v8722
        %v9227 = vpack.c.b16 %v8731, %v8723
        %v9228 = vpack.c.b16 %v8732, %v8724
        %v9229 = vpack.c.b16 %v8741, %v8733
        %v9230 = vpack.c.b16 %v8742, %v8734
        %v9231 = vpack.c.b16 %v8743, %v8735
        %v9232 = vpack.c.b16 %v8744, %v8736
        %v9233 = vpack.c.b16 %v8745, %v8737
        %v9234 = vpack.c.b16 %v8746, %v8738
        %v9235 = vpack.c.b16 %v8747, %v8739
        %v9236 = vpack.c.b16 %v8748, %v8740
        %v9237 = vpack.c.b16 %v8757, %v8749
        %v9238 = vpack.c.b16 %v8758, %v8750
        %v9239 = vpack.c.b16 %v8759, %v8751
        %v9240 = vpack.c.b16 %v8760, %v8752
        %v9241 = vpack.c.b16 %v8761, %v8753
        %v9242 = vpack.c.b16 %v8762, %v8754
        %v9243 = vpack.c.b16 %v8763, %v8755
        %v9244 = vpack.c.b16 %v8764, %v8756
        %v9245 = vpack.c.b16 %v8773, %v8765
        %v9246 = vpack.c.b16 %v8774, %v8766
        %v9247 = vpack.c.b16 %v8775, %v8767
        %v9248 = vpack.c.b16 %v8776, %v8768
        %v9249 = vpack.c.b16 %v8777, %v8769
        %v9250 = vpack.c.b16 %v8778, %v8770
        %v9251 = vpack.c.b16 %v8779, %v8771
        %v9252 = vpack.c.b16 %v8780, %v8772
        %v9253 = vpack.c.b16 %v8789, %v8781
        %v9254 = vpack.c.b16 %v8790, %v8782
        %v9255 = vpack.c.b16 %v8791, %v8783
        %v9256 = vpack.c.b16 %v8792, %v8784
        %v9257 = vpack.c.b16 %v8793, %v8785
        %v9258 = vpack.c.b16 %v8794, %v8786
        %v9259 = vpack.c.b16 %v8795, %v8787
        %v9260 = vpack.c.b16 %v8796, %v8788
        %v9261 = vpack.c.b16 %v8805, %v8797
        %v9262 = vpack.c.b16 %v8806, %v8798
        %v9263 = vpack.c.b16 %v8807, %v8799
        %v9264 = vpack.c.b16 %v8808, %v8800
        %v9265 = vpack.c.b16 %v8809, %v8801
        %v9266 = vpack.c.b16 %v8810, %v8802
        %v9267 = vpack.c.b16 %v8811, %v8803
        %v9268 = vpack.c.b16 %v8812, %v8804
        %v9269 = vpack.c.b16 %v8821, %v8813
        %v9270 = vpack.c.b16 %v8822, %v8814
        %v9271 = vpack.c.b16 %v8823, %v8815
        %v9272 = vpack.c.b16 %v8824, %v8816
        %v9273 = vpack.c.b16 %v8825, %v8817
        %v9274 = vpack.c.b16 %v8826, %v8818
        %v9275 = vpack.c.b16 %v8827, %v8819
        %v9276 = vpack.c.b16 %v8828, %v8820
        %v9277 = vpack.c.b16 %v8837, %v8829
        %v9278 = vpack.c.b16 %v8838, %v8830
        %v9279 = vpack.c.b16 %v8839, %v8831
        %v9280 = vpack.c.b16 %v8840, %v8832
        %v9281 = vpack.c.b16 %v8841, %v8833
        %v9282 = vpack.c.b16 %v8842, %v8834
        %v9283 = vpack.c.b16 %v8843, %v8835
        %v9284 = vpack.c.b16 %v8844, %v8836
        %v9285 = vpack.c.b16 %v8853, %v8845
        %v9286 = vpack.c.b16 %v8854, %v8846
        %v9287 = vpack.c.b16 %v8855, %v8847
        %v9288 = vpack.c.b16 %v8856, %v8848
        %v9289 = vpack.c.b16 %v8857, %v8849
        %v9290 = vpack.c.b16 %v8858, %v8850
        %v9291 = vpack.c.b16 %v8859, %v8851
        %v9292 = vpack.c.b16 %v8860, %v8852
        %v9293 = vpack.c.b16 %v8869, %v8861
        %v9294 = vpack.c.b16 %v8870, %v8862
        %v9295 = vpack.c.b16 %v8871, %v8863
        %v9296 = vpack.c.b16 %v8872, %v8864
        %v9297 = vpack.c.b16 %v8873, %v8865
        %v9298 = vpack.c.b16 %v8874, %v8866
        %v9299 = vpack.c.b16 %v8875, %v8867
        %v9300 = vpack.c.b16 %v8876, %v8868
        %v9301 = vpack.c.b16 %v8885, %v8877
        %v9302 = vpack.c.b16 %v8886, %v8878
        %v9303 = vpack.c.b16 %v8887, %v8879
        %v9304 = vpack.c.b16 %v8888, %v8880
        %v9305 = vpack.c.b16 %v8889, %v8881
        %v9306 = vpack.c.b16 %v8890, %v8882
        %v9307 = vpack.c.b16 %v8891, %v8883
        %v9308 = vpack.c.b16 %v8892, %v8884
        %v9309 = vpack.c.b16 %v8901, %v8893
        %v9310 = vpack.c.b16 %v8902, %v8894
        %v9311 = vpack.c.b16 %v8903, %v8895
        %v9312 = vpack.c.b16 %v8904, %v8896
        %v9313 = vpack.c.b16 %v8905, %v8897
        %v9314 = vpack.c.b16 %v8906, %v8898
        %v9315 = vpack.c.b16 %v8907, %v8899
        %v9316 = vpack.c.b16 %v8908, %v8900
        %v9317 = vpack.c.b16 %v8917, %v8909
        %v9318 = vpack.c.b16 %v8918, %v8910
        %v9319 = vpack.c.b16 %v8919, %v8911
        %v9320 = vpack.c.b16 %v8920, %v8912
        %v9321 = vpack.c.b16 %v8921, %v8913
        %v9322 = vpack.c.b16 %v8922, %v8914
        %v9323 = vpack.c.b16 %v8923, %v8915
        %v9324 = vpack.c.b16 %v8924, %v8916
        %v9325 = vpack.c.b16 %v8933, %v8925
        %v9326 = vpack.c.b16 %v8934, %v8926
        %v9327 = vpack.c.b16 %v8935, %v8927
        %v9328 = vpack.c.b16 %v8936, %v8928
        %v9329 = vpack.c.b16 %v8937, %v8929
        %v9330 = vpack.c.b16 %v8938, %v8930
        %v9331 = vpack.c.b16 %v8939, %v8931
        %v9332 = vpack.c.b16 %v8940, %v8932
        %v9333 = vpack.c.b16 %v8949, %v8941
        %v9334 = vpack.c.b16 %v8950, %v8942
        %v9335 = vpack.c.b16 %v8951, %v8943
        %v9336 = vpack.c.b16 %v8952, %v8944
        %v9337 = vpack.c.b16 %v8953, %v8945
        %v9338 = vpack.c.b16 %v8954, %v8946
        %v9339 = vpack.c.b16 %v8955, %v8947
        %v9340 = vpack.c.b16 %v8956, %v8948
        %v9341 = vpack.c.b16 %v8965, %v8957
        %v9342 = vpack.c.b16 %v8966, %v8958
        %v9343 = vpack.c.b16 %v8967, %v8959
        %v9344 = vpack.c.b16 %v8968, %v8960
        %v9345 = vpack.c.b16 %v8969, %v8961
        %v9346 = vpack.c.b16 %v8970, %v8962
        %v9347 = vpack.c.b16 %v8971, %v8963
        %v9348 = vpack.c.b16 %v8972, %v8964
        %v9349 = vpack.c.b16 %v8981, %v8973
        %v9350 = vpack.c.b16 %v8982, %v8974
        %v9351 = vpack.c.b16 %v8983, %v8975
        %v9352 = vpack.c.b16 %v8984, %v8976
        %v9353 = vpack.c.b16 %v8985, %v8977
        %v9354 = vpack.c.b16 %v8986, %v8978
        %v9355 = vpack.c.b16 %v8987, %v8979
        %v9356 = vpack.c.b16 %v8988, %v8980
        %v9357 = vpack.c.b16 %v8997, %v8989
        %v9358 = vpack.c.b16 %v8998, %v8990
        %v9359 = vpack.c.b16 %v8999, %v8991
        %v9360 = vpack.c.b16 %v9000, %v8992
        %v9361 = vpack.c.b16 %v9001, %v8993
        %v9362 = vpack.c.b16 %v9002, %v8994
        %v9363 = vpack.c.b16 %v9003, %v8995
        %v9364 = vpack.c.b16 %v9004, %v8996
        %v9365 = vpack.c.b16 %v9013, %v9005
        %v9366 = vpack.c.b16 %v9014, %v9006
        %v9367 = vpack.c.b16 %v9015, %v9007
        %v9368 = vpack.c.b16 %v9016, %v9008
        %v9369 = vpack.c.b16 %v9017, %v9009
        %v9370 = vpack.c.b16 %v9018, %v9010
        %v9371 = vpack.c.b16 %v9019, %v9011
        %v9372 = vpack.c.b16 %v9020, %v9012
        %v9373 = vpack.c.b16 %v9029, %v9021
        %v9374 = vpack.c.b16 %v9030, %v9022
        %v9375 = vpack.c.b16 %v9031, %v9023
        %v9376 = vpack.c.b16 %v9032, %v9024
        %v9377 = vpack.c.b16 %v9033, %v9025
        %v9378 = vpack.c.b16 %v9034, %v9026
        %v9379 = vpack.c.b16 %v9035, %v9027
        %v9380 = vpack.c.b16 %v9036, %v9028
        %v9381 = vpack.c.b16 %v9045, %v9037
        %v9382 = vpack.c.b16 %v9046, %v9038
        %v9383 = vpack.c.b16 %v9047, %v9039
        %v9384 = vpack.c.b16 %v9048, %v9040
        %v9385 = vpack.c.b16 %v9049, %v9041
        %v9386 = vpack.c.b16 %v9050, %v9042
        %v9387 = vpack.c.b16 %v9051, %v9043
        %v9388 = vpack.c.b16 %v9052, %v9044
        %v9389 = vpack.c.b16 %v9061, %v9053
        %v9390 = vpack.c.b16 %v9062, %v9054
        %v9391 = vpack.c.b16 %v9063, %v9055
        %v9392 = vpack.c.b16 %v9064, %v9056
        %v9393 = vpack.c.b16 %v9065, %v9057
        %v9394 = vpack.c.b16 %v9066, %v9058
        %v9395 = vpack.c.b16 %v9067, %v9059
        %v9396 = vpack.c.b16 %v9068, %v9060
        %v9397 = vpack.c.b16 %v9077, %v9069
        %v9398 = vpack.c.b16 %v9078, %v9070
        %v9399 = vpack.c.b16 %v9079, %v9071
        %v9400 = vpack.c.b16 %v9080, %v9072
        %v9401 = vpack.c.b16 %v9081, %v9073
        %v9402 = vpack.c.b16 %v9082, %v9074
        %v9403 = vpack.c.b16 %v9083, %v9075
        %v9404 = vpack.c.b16 %v9084, %v9076
        %v9405 = vpack.c.b16 %v9093, %v9085
        %v9406 = vpack.c.b16 %v9094, %v9086
        %v9407 = vpack.c.b16 %v9095, %v9087
        %v9408 = vpack.c.b16 %v9096, %v9088
        %v9409 = vpack.c.b16 %v9097, %v9089
        %v9410 = vpack.c.b16 %v9098, %v9090
        %v9411 = vpack.c.b16 %v9099, %v9091
        %v9412 = vpack.c.b16 %v9100, %v9092
        %v9413 = vpack.c.b16 %v9109, %v9101
        %v9414 = vpack.c.b16 %v9110, %v9102
        %v9415 = vpack.c.b16 %v9111, %v9103
        %v9416 = vpack.c.b16 %v9112, %v9104
        %v9417 = vpack.c.b16 %v9113, %v9105
        %v9418 = vpack.c.b16 %v9114, %v9106
        %v9419 = vpack.c.b16 %v9115, %v9107
        %v9420 = vpack.c.b16 %v9116, %v9108
        %v9421 = vpack.c.b16 %v9125, %v9117
        %v9422 = vpack.c.b16 %v9126, %v9118
        %v9423 = vpack.c.b16 %v9127, %v9119
        %v9424 = vpack.c.b16 %v9128, %v9120
        %v9425 = vpack.c.b16 %v9129, %v9121
        %v9426 = vpack.c.b16 %v9130, %v9122
        %v9427 = vpack.c.b16 %v9131, %v9123
        %v9428 = vpack.c.b16 %v9132, %v9124
        %v9429 = vpack.c.b16 %v9141, %v9133
        %v9430 = vpack.c.b16 %v9142, %v9134
        %v9431 = vpack.c.b16 %v9143, %v9135
        %v9432 = vpack.c.b16 %v9144, %v9136
        %v9433 = vpack.c.b16 %v9145, %v9137
        %v9434 = vpack.c.b16 %v9146, %v9138
        %v9435 = vpack.c.b16 %v9147, %v9139
        %v9436 = vpack.c.b16 %v9148, %v9140
        %v9437 = vpack.c.b16 %v9157, %v9149
        %v9438 = vpack.c.b16 %v9158, %v9150
        %v9439 = vpack.c.b16 %v9159, %v9151
        %v9440 = vpack.c.b16 %v9160, %v9152
        %v9441 = vpack.c.b16 %v9161, %v9153
        %v9442 = vpack.c.b16 %v9162, %v9154
        %v9443 = vpack.c.b16 %v9163, %v9155
        %v9444 = vpack.c.b16 %v9164, %v9156
        %v9445 = vpack.c.b16 %v9173, %v9165
        %v9446 = vpack.c.b16 %v9174, %v9166
        %v9447 = vpack.c.b16 %v9175, %v9167
        %v9448 = vpack.c.b16 %v9176, %v9168
        %v9449 = vpack.c.b16 %v9177, %v9169
        %v9450 = vpack.c.b16 %v9178, %v9170
        %v9451 = vpack.c.b16 %v9179, %v9171
        %v9452 = vpack.c.b16 %v9180, %v9172
        %v9453 = vpack.c.b16 %v9189, %v9181
        %v9454 = vpack.c.b16 %v9190, %v9182
        %v9455 = vpack.c.b16 %v9191, %v9183
        %v9456 = vpack.c.b16 %v9192, %v9184
        %v9457 = vpack.c.b16 %v9193, %v9185
        %v9458 = vpack.c.b16 %v9194, %v9186
        %v9459 = vpack.c.b16 %v9195, %v9187
        %v9460 = vpack.c.b16 %v9196, %v9188
        %v9461 = vpack.c.b16 %v9205, %v9197
        %v9462 = vpack.c.b16 %v9206, %v9198
        %v9463 = vpack.c.b16 %v9207, %v9199
        %v9464 = vpack.c.b16 %v9208, %v9200
        %v9465 = vpack.c.b16 %v9209, %v9201
        %v9466 = vpack.c.b16 %v9210, %v9202
        %v9467 = vpack.c.b16 %v9211, %v9203
        %v9468 = vpack.c.b16 %v9212, %v9204
        %9725 = vmatprep.subr.bf16.mxu0 %v9214
        %9726 = vmatpush1.bf16.msra.mxu0 %v9213
        %9727 = vmatprep.subr.bf16.mxu0 %v9222
        %9728 = vmatpush1.bf16.msra.mxu0 %v9221
        %9729 = vmatprep.subr.bf16.mxu0 %v9230
        %9730 = vmatpush1.bf16.msra.mxu0 %v9229
        %9731 = vmatprep.subr.bf16.mxu0 %v9238
        %9732 = vmatpush1.bf16.msra.mxu0 %v9237
        %9733 = vmatprep.subr.bf16.mxu0 %v9246
        %9734 = vmatpush1.bf16.msra.mxu0 %v9245
        %9735 = vmatprep.subr.bf16.mxu0 %v9254
        %9736 = vmatpush1.bf16.msra.mxu0 %v9253
        %9737 = vmatprep.subr.bf16.mxu0 %v9262
        %9738 = vmatpush1.bf16.msra.mxu0 %v9261
        %9739 = vmatprep.subr.bf16.mxu0 %v9270
        %9740 = vmatpush1.bf16.msra.mxu0 %v9269
        %9741 = vmatprep.subr.bf16.mxu0 %v9278
        %9742 = vmatpush1.bf16.msra.mxu0 %v9277
        %9743 = vmatprep.subr.bf16.mxu0 %v9286
        %9744 = vmatpush1.bf16.msra.mxu0 %v9285
        %9745 = vmatprep.subr.bf16.mxu0 %v9294
        %9746 = vmatpush1.bf16.msra.mxu0 %v9293
        %9747 = vmatprep.subr.bf16.mxu0 %v9302
        %9748 = vmatpush1.bf16.msra.mxu0 %v9301
        %9749 = vmatprep.subr.bf16.mxu0 %v9310
        %9750 = vmatpush1.bf16.msra.mxu0 %v9309
        %9751 = vmatprep.subr.bf16.mxu0 %v9318
        %9752 = vmatpush1.bf16.msra.mxu0 %v9317
        %9753 = vmatprep.subr.bf16.mxu0 %v9326
        %9754 = vmatpush1.bf16.msra.mxu0 %v9325
        %9755 = vmatprep.subr.bf16.mxu0 %v9334
        %9756 = vmatpush1.bf16.msra.mxu0 %v9333
        %9757 = vmatprep.mubr.bf16.mxu0 %v8126
        %9758 = vmatmul.mubr.bf16.gmra.mrb[0].mxu0 %v8125
        %v9759 = vpop.f32.mrb[0].mxu0
        %v9760 = vadd.f32 0.0, %v9759
        %v9761 = vpop.f32.mrb[0].mxu0
        %v9762 = vadd.f32 0.0, %v9761
        %v9763 = vpop.f32.mrb[0].mxu0
        %v9764 = vadd.f32 0.0, %v9763
        %v9765 = vpop.f32.mrb[0].mxu0
        %v9766 = vadd.f32 0.0, %v9765
        %9767 = vmatprep.mubr.bf16.mxu0 %v8130
        %9768 = vmatmul.mubr.bf16.gmra.mrb[0].mxu0 %v8129
        %v9769 = vpop.f32.mrb[0].mxu0
        %v9770 = vadd.f32 0.0, %v9769
        %v9771 = vpop.f32.mrb[0].mxu0
        %v9772 = vadd.f32 0.0, %v9771
        %v9773 = vpop.f32.mrb[0].mxu0
        %v9774 = vadd.f32 0.0, %v9773
        %v9775 = vpop.f32.mrb[0].mxu0
        %v9776 = vadd.f32 0.0, %v9775
        %9777 = vmatprep.mubr.bf16.mxu0 %v8134
        %9778 = vmatmul.mubr.bf16.gmra.mrb[0].mxu0 %v8133
        %v9779 = vpop.f32.mrb[0].mxu0
        %v9780 = vadd.f32 0.0, %v9779
        %v9781 = vpop.f32.mrb[0].mxu0
        %v9782 = vadd.f32 0.0, %v9781
        %v9783 = vpop.f32.mrb[0].mxu0
        %v9784 = vadd.f32 0.0, %v9783
        %v9785 = vpop.f32.mrb[0].mxu0
        %v9786 = vadd.f32 0.0, %v9785
        %9787 = vmatprep.mubr.bf16.mxu0 %v8138
        %9788 = vmatmul.mubr.bf16.gmra.mrb[0].mxu0 %v8137
        %v9789 = vpop.f32.mrb[0].mxu0
        %v9790 = vadd.f32 0.0, %v9789
        %v9791 = vpop.f32.mrb[0].mxu0
        %v9792 = vadd.f32 0.0, %v9791
        %v9793 = vpop.f32.mrb[0].mxu0
        %v9794 = vadd.f32 0.0, %v9793
        %v9795 = vpop.f32.mrb[0].mxu0
        %v9796 = vadd.f32 0.0, %v9795
        %9797 = vmatprep.mubr.bf16.mxu0 %v8142
        %9798 = vmatmul.mubr.bf16.gmra.mrb[0].mxu0 %v8141
        %v9799 = vpop.f32.mrb[0].mxu0
        %v9800 = vadd.f32 0.0, %v9799
        %v9801 = vpop.f32.mrb[0].mxu0
        %v9802 = vadd.f32 0.0, %v9801
        %v9803 = vpop.f32.mrb[0].mxu0
        %v9804 = vadd.f32 0.0, %v9803
        %v9805 = vpop.f32.mrb[0].mxu0
        %v9806 = vadd.f32 0.0, %v9805
        %9807 = vmatprep.mubr.bf16.mxu0 %v8146
        %9808 = vmatmul.mubr.bf16.gmra.mrb[0].mxu0 %v8145
        %v9809 = vpop.f32.mrb[0].mxu0
        %v9810 = vadd.f32 0.0, %v9809
        %v9811 = vpop.f32.mrb[0].mxu0
        %v9812 = vadd.f32 0.0, %v9811
        %v9813 = vpop.f32.mrb[0].mxu0
        %v9814 = vadd.f32 0.0, %v9813
        %v9815 = vpop.f32.mrb[0].mxu0
        %v9816 = vadd.f32 0.0, %v9815
        %9817 = vmatprep.mubr.bf16.mxu0 %v8150
        %9818 = vmatmul.mubr.bf16.gmra.mrb[0].mxu0 %v8149
        %v9819 = vpop.f32.mrb[0].mxu0
        %v9820 = vadd.f32 0.0, %v9819
        %v9821 = vpop.f32.mrb[0].mxu0
        %v9822 = vadd.f32 0.0, %v9821
        %v9823 = vpop.f32.mrb[0].mxu0
        %v9824 = vadd.f32 0.0, %v9823
        %v9825 = vpop.f32.mrb[0].mxu0
        %v9826 = vadd.f32 0.0, %v9825
        %9827 = vmatprep.mubr.bf16.mxu0 %v8154
        %9828 = vmatmul.mubr.bf16.gmra.mrb[0].mxu0 %v8153
        %v9829 = vpop.f32.mrb[0].mxu0
        %v9830 = vadd.f32 0.0, %v9829
        %v9831 = vpop.f32.mrb[0].mxu0
        %v9832 = vadd.f32 0.0, %v9831
        %v9833 = vpop.f32.mrb[0].mxu0
        %v9834 = vadd.f32 0.0, %v9833
        %v9835 = vpop.f32.mrb[0].mxu0
        %v9836 = vadd.f32 0.0, %v9835
        %9837 = vmatprep.mubr.bf16.mxu0 %v8158
        %9838 = vmatmul.mubr.bf16.gmra.mrb[0].mxu0 %v8157
        %v9839 = vpop.f32.mrb[0].mxu0
        %v9840 = vadd.f32 0.0, %v9839
        %v9841 = vpop.f32.mrb[0].mxu0
        %v9842 = vadd.f32 0.0, %v9841
        %v9843 = vpop.f32.mrb[0].mxu0
        %v9844 = vadd.f32 0.0, %v9843
        %v9845 = vpop.f32.mrb[0].mxu0
        %v9846 = vadd.f32 0.0, %v9845
        %9847 = vmatprep.mubr.bf16.mxu0 %v8162
        %9848 = vmatmul.mubr.bf16.gmra.mrb[0].mxu0 %v8161
        %v9849 = vpop.f32.mrb[0].mxu0
        %v9850 = vadd.f32 0.0, %v9849
        %v9851 = vpop.f32.mrb[0].mxu0
        %v9852 = vadd.f32 0.0, %v9851
        %v9853 = vpop.f32.mrb[0].mxu0
        %v9854 = vadd.f32 0.0, %v9853
        %v9855 = vpop.f32.mrb[0].mxu0
        %v9856 = vadd.f32 0.0, %v9855
        %9857 = vmatprep.mubr.bf16.mxu0 %v8166
        %9858 = vmatmul.mubr.bf16.gmra.mrb[0].mxu0 %v8165
        %v9859 = vpop.f32.mrb[0].mxu0
        %v9860 = vadd.f32 0.0, %v9859
        %v9861 = vpop.f32.mrb[0].mxu0
        %v9862 = vadd.f32 0.0, %v9861
        %v9863 = vpop.f32.mrb[0].mxu0
        %v9864 = vadd.f32 0.0, %v9863
        %v9865 = vpop.f32.mrb[0].mxu0
        %v9866 = vadd.f32 0.0, %v9865
        %9867 = vmatprep.mubr.bf16.mxu0 %v8170
        %9868 = vmatmul.mubr.bf16.gmra.mrb[0].mxu0 %v8169
        %v9869 = vpop.f32.mrb[0].mxu0
        %v9870 = vadd.f32 0.0, %v9869
        %v9871 = vpop.f32.mrb[0].mxu0
        %v9872 = vadd.f32 0.0, %v9871
        %v9873 = vpop.f32.mrb[0].mxu0
        %v9874 = vadd.f32 0.0, %v9873
        %v9875 = vpop.f32.mrb[0].mxu0
        %v9876 = vadd.f32 0.0, %v9875
        %9877 = vmatprep.mubr.bf16.mxu0 %v8174
        %9878 = vmatmul.mubr.bf16.gmra.mrb[0].mxu0 %v8173
        %v9879 = vpop.f32.mrb[0].mxu0
        %v9880 = vadd.f32 0.0, %v9879
        %v9881 = vpop.f32.mrb[0].mxu0
        %v9882 = vadd.f32 0.0, %v9881
        %v9883 = vpop.f32.mrb[0].mxu0
        %v9884 = vadd.f32 0.0, %v9883
        %v9885 = vpop.f32.mrb[0].mxu0
        %v9886 = vadd.f32 0.0, %v9885
        %9887 = vmatprep.mubr.bf16.mxu0 %v8178
        %9888 = vmatmul.mubr.bf16.gmra.mrb[0].mxu0 %v8177
        %v9889 = vpop.f32.mrb[0].mxu0
        %v9890 = vadd.f32 0.0, %v9889
        %v9891 = vpop.f32.mrb[0].mxu0
        %v9892 = vadd.f32 0.0, %v9891
        %v9893 = vpop.f32.mrb[0].mxu0
        %v9894 = vadd.f32 0.0, %v9893
        %v9895 = vpop.f32.mrb[0].mxu0
        %v9896 = vadd.f32 0.0, %v9895
        %9897 = vmatprep.mubr.bf16.mxu0 %v8182
        %9898 = vmatmul.mubr.bf16.gmra.mrb[0].mxu0 %v8181
        %v9899 = vpop.f32.mrb[0].mxu0
        %v9900 = vadd.f32 0.0, %v9899
        %v9901 = vpop.f32.mrb[0].mxu0
        %v9902 = vadd.f32 0.0, %v9901
        %v9903 = vpop.f32.mrb[0].mxu0
        %v9904 = vadd.f32 0.0, %v9903
        %v9905 = vpop.f32.mrb[0].mxu0
        %v9906 = vadd.f32 0.0, %v9905
        %9907 = vmatprep.mubr.bf16.mxu0 %v8186
        %9908 = vmatmul.mubr.bf16.gmra.mrb[0].mxu0 %v8185
        %v9909 = vpop.f32.mrb[0].mxu0
        %v9910 = vadd.f32 0.0, %v9909
        %v9911 = vpop.f32.mrb[0].mxu0
        %v9912 = vadd.f32 0.0, %v9911
        %v9913 = vpop.f32.mrb[0].mxu0
        %v9914 = vadd.f32 0.0, %v9913
        %v9915 = vpop.f32.mrb[0].mxu0
        %v9916 = vadd.f32 0.0, %v9915
        %9917 = vdwg.mxu0
        %9918 = vmatprep.subr.bf16.mxu0 %v9342
        %9919 = vmatpush1.bf16.msra.mxu0 %v9341
        %9920 = vmatprep.subr.bf16.mxu0 %v9350
        %9921 = vmatpush1.bf16.msra.mxu0 %v9349
        %9922 = vmatprep.subr.bf16.mxu0 %v9358
        %9923 = vmatpush1.bf16.msra.mxu0 %v9357
        %9924 = vmatprep.subr.bf16.mxu0 %v9366
        %9925 = vmatpush1.bf16.msra.mxu0 %v9365
        %9926 = vmatprep.subr.bf16.mxu0 %v9374
        %9927 = vmatpush1.bf16.msra.mxu0 %v9373
        %9928 = vmatprep.subr.bf16.mxu0 %v9382
        %9929 = vmatpush1.bf16.msra.mxu0 %v9381
        %9930 = vmatprep.subr.bf16.mxu0 %v9390
        %9931 = vmatpush1.bf16.msra.mxu0 %v9389
        %9932 = vmatprep.subr.bf16.mxu0 %v9398
        %9933 = vmatpush1.bf16.msra.mxu0 %v9397
        %9934 = vmatprep.subr.bf16.mxu0 %v9406
        %9935 = vmatpush1.bf16.msra.mxu0 %v9405
        %9936 = vmatprep.subr.bf16.mxu0 %v9414
        %9937 = vmatpush1.bf16.msra.mxu0 %v9413
        %9938 = vmatprep.subr.bf16.mxu0 %v9422
        %9939 = vmatpush1.bf16.msra.mxu0 %v9421
        %9940 = vmatprep.subr.bf16.mxu0 %v9430
        %9941 = vmatpush1.bf16.msra.mxu0 %v9429
        %9942 = vmatprep.subr.bf16.mxu0 %v9438
        %9943 = vmatpush1.bf16.msra.mxu0 %v9437
        %9944 = vmatprep.subr.bf16.mxu0 %v9446
        %9945 = vmatpush1.bf16.msra.mxu0 %v9445
        %9946 = vmatprep.subr.bf16.mxu0 %v9454
        %9947 = vmatpush1.bf16.msra.mxu0 %v9453
        %9948 = vmatprep.subr.bf16.mxu0 %v9462
        %9949 = vmatpush1.bf16.msra.mxu0 %v9461
        %9950 = vmatprep.mubr.bf16.mxu0 %v8128
        %9951 = vmatmul.mubr.bf16.gmra.mrb[0].mxu0 %v8127
        %v9952 = vpop.f32.mrb[0].mxu0
        %v9953 = vadd.f32 %v9760, %v9952
        %v9954 = vpop.f32.mrb[0].mxu0
        %v9955 = vadd.f32 %v9762, %v9954
        %v9956 = vpop.f32.mrb[0].mxu0
        %v9957 = vadd.f32 %v9764, %v9956
        %v9958 = vpop.f32.mrb[0].mxu0
        %v9959 = vadd.f32 %v9766, %v9958
        %9960 = vmatprep.mubr.bf16.mxu0 %v8132
        %9961 = vmatmul.mubr.bf16.gmra.mrb[0].mxu0 %v8131
        %v9962 = vpop.f32.mrb[0].mxu0
        %v9963 = vadd.f32 %v9770, %v9962
        %v9964 = vpop.f32.mrb[0].mxu0
        %v9965 = vadd.f32 %v9772, %v9964
        %v9966 = vpop.f32.mrb[0].mxu0
        %v9967 = vadd.f32 %v9774, %v9966
        %v9968 = vpop.f32.mrb[0].mxu0
        %v9969 = vadd.f32 %v9776, %v9968
        %9970 = vmatprep.mubr.bf16.mxu0 %v8136
        %9971 = vmatmul.mubr.bf16.gmra.mrb[0].mxu0 %v8135
        %v9972 = vpop.f32.mrb[0].mxu0
        %v9973 = vadd.f32 %v9780, %v9972
        %v9974 = vpop.f32.mrb[0].mxu0
        %v9975 = vadd.f32 %v9782, %v9974
        %v9976 = vpop.f32.mrb[0].mxu0
        %v9977 = vadd.f32 %v9784, %v9976
        %v9978 = vpop.f32.mrb[0].mxu0
        %v9979 = vadd.f32 %v9786, %v9978
        %9980 = vmatprep.mubr.bf16.mxu0 %v8140
        %9981 = vmatmul.mubr.bf16.gmra.mrb[0].mxu0 %v8139
        %v9982 = vpop.f32.mrb[0].mxu0
        %v9983 = vadd.f32 %v9790, %v9982
        %v9984 = vpop.f32.mrb[0].mxu0
        %v9985 = vadd.f32 %v9792, %v9984
        %v9986 = vpop.f32.mrb[0].mxu0
        %v9987 = vadd.f32 %v9794, %v9986
        %v9988 = vpop.f32.mrb[0].mxu0
        %v9989 = vadd.f32 %v9796, %v9988
        %9990 = vmatprep.mubr.bf16.mxu0 %v8144
        %9991 = vmatmul.mubr.bf16.gmra.mrb[0].mxu0 %v8143
        %v9992 = vpop.f32.mrb[0].mxu0
        %v9993 = vadd.f32 %v9800, %v9992
        %v9994 = vpop.f32.mrb[0].mxu0
        %v9995 = vadd.f32 %v9802, %v9994
        %v9996 = vpop.f32.mrb[0].mxu0
        %v9997 = vadd.f32 %v9804, %v9996
        %v9998 = vpop.f32.mrb[0].mxu0
        %v9999 = vadd.f32 %v9806, %v9998
        %10000 = vmatprep.mubr.bf16.mxu0 %v8148
        %10001 = vmatmul.mubr.bf16.gmra.mrb[0].mxu0 %v8147
        %v10002 = vpop.f32.mrb[0].mxu0
        %v10003 = vadd.f32 %v9810, %v10002
        %v10004 = vpop.f32.mrb[0].mxu0
        %v10005 = vadd.f32 %v9812, %v10004
        %v10006 = vpop.f32.mrb[0].mxu0
        %v10007 = vadd.f32 %v9814, %v10006
        %v10008 = vpop.f32.mrb[0].mxu0
        %v10009 = vadd.f32 %v9816, %v10008
        %10010 = vmatprep.mubr.bf16.mxu0 %v8152
        %10011 = vmatmul.mubr.bf16.gmra.mrb[0].mxu0 %v8151
        %v10012 = vpop.f32.mrb[0].mxu0
        %v10013 = vadd.f32 %v9820, %v10012
        %v10014 = vpop.f32.mrb[0].mxu0
        %v10015 = vadd.f32 %v9822, %v10014
        %v10016 = vpop.f32.mrb[0].mxu0
        %v10017 = vadd.f32 %v9824, %v10016
        %v10018 = vpop.f32.mrb[0].mxu0
        %v10019 = vadd.f32 %v9826, %v10018
        %10020 = vmatprep.mubr.bf16.mxu0 %v8156
        %10021 = vmatmul.mubr.bf16.gmra.mrb[0].mxu0 %v8155
        %v10022 = vpop.f32.mrb[0].mxu0
        %v10023 = vadd.f32 %v9830, %v10022
        %v10024 = vpop.f32.mrb[0].mxu0
        %v10025 = vadd.f32 %v9832, %v10024
        %v10026 = vpop.f32.mrb[0].mxu0
        %v10027 = vadd.f32 %v9834, %v10026
        %v10028 = vpop.f32.mrb[0].mxu0
        %v10029 = vadd.f32 %v9836, %v10028
        %10030 = vmatprep.mubr.bf16.mxu0 %v8160
        %10031 = vmatmul.mubr.bf16.gmra.mrb[0].mxu0 %v8159
        %v10032 = vpop.f32.mrb[0].mxu0
        %v10033 = vadd.f32 %v9840, %v10032
        %v10034 = vpop.f32.mrb[0].mxu0
        %v10035 = vadd.f32 %v9842, %v10034
        %v10036 = vpop.f32.mrb[0].mxu0
        %v10037 = vadd.f32 %v9844, %v10036
        %v10038 = vpop.f32.mrb[0].mxu0
        %v10039 = vadd.f32 %v9846, %v10038
        %10040 = vmatprep.mubr.bf16.mxu0 %v8164
        %10041 = vmatmul.mubr.bf16.gmra.mrb[0].mxu0 %v8163
        %v10042 = vpop.f32.mrb[0].mxu0
        %v10043 = vadd.f32 %v9850, %v10042
        %v10044 = vpop.f32.mrb[0].mxu0
        %v10045 = vadd.f32 %v9852, %v10044
        %v10046 = vpop.f32.mrb[0].mxu0
        %v10047 = vadd.f32 %v9854, %v10046
        %v10048 = vpop.f32.mrb[0].mxu0
        %v10049 = vadd.f32 %v9856, %v10048
        %10050 = vmatprep.mubr.bf16.mxu0 %v8168
        %10051 = vmatmul.mubr.bf16.gmra.mrb[0].mxu0 %v8167
        %v10052 = vpop.f32.mrb[0].mxu0
        %v10053 = vadd.f32 %v9860, %v10052
        %v10054 = vpop.f32.mrb[0].mxu0
        %v10055 = vadd.f32 %v9862, %v10054
        %v10056 = vpop.f32.mrb[0].mxu0
        %v10057 = vadd.f32 %v9864, %v10056
        %v10058 = vpop.f32.mrb[0].mxu0
        %v10059 = vadd.f32 %v9866, %v10058
        %10060 = vmatprep.mubr.bf16.mxu0 %v8172
        %10061 = vmatmul.mubr.bf16.gmra.mrb[0].mxu0 %v8171
        %v10062 = vpop.f32.mrb[0].mxu0
        %v10063 = vadd.f32 %v9870, %v10062
        %v10064 = vpop.f32.mrb[0].mxu0
        %v10065 = vadd.f32 %v9872, %v10064
        %v10066 = vpop.f32.mrb[0].mxu0
        %v10067 = vadd.f32 %v9874, %v10066
        %v10068 = vpop.f32.mrb[0].mxu0
        %v10069 = vadd.f32 %v9876, %v10068
        %10070 = vmatprep.mubr.bf16.mxu0 %v8176
        %10071 = vmatmul.mubr.bf16.gmra.mrb[0].mxu0 %v8175
        %v10072 = vpop.f32.mrb[0].mxu0
        %v10073 = vadd.f32 %v9880, %v10072
        %v10074 = vpop.f32.mrb[0].mxu0
        %v10075 = vadd.f32 %v9882, %v10074
        %v10076 = vpop.f32.mrb[0].mxu0
        %v10077 = vadd.f32 %v9884, %v10076
        %v10078 = vpop.f32.mrb[0].mxu0
        %v10079 = vadd.f32 %v9886, %v10078
        %10080 = vmatprep.mubr.bf16.mxu0 %v8180
        %10081 = vmatmul.mubr.bf16.gmra.mrb[0].mxu0 %v8179
        %v10082 = vpop.f32.mrb[0].mxu0
        %v10083 = vadd.f32 %v9890, %v10082
        %v10084 = vpop.f32.mrb[0].mxu0
        %v10085 = vadd.f32 %v9892, %v10084
        %v10086 = vpop.f32.mrb[0].mxu0
        %v10087 = vadd.f32 %v9894, %v10086
        %v10088 = vpop.f32.mrb[0].mxu0
        %v10089 = vadd.f32 %v9896, %v10088
        %10090 = vmatprep.mubr.bf16.mxu0 %v8184
        %10091 = vmatmul.mubr.bf16.gmra.mrb[0].mxu0 %v8183
        %v10092 = vpop.f32.mrb[0].mxu0
        %v10093 = vadd.f32 %v9900, %v10092
        %v10094 = vpop.f32.mrb[0].mxu0
        %v10095 = vadd.f32 %v9902, %v10094
        %v10096 = vpop.f32.mrb[0].mxu0
        %v10097 = vadd.f32 %v9904, %v10096
        %v10098 = vpop.f32.mrb[0].mxu0
        %v10099 = vadd.f32 %v9906, %v10098
        %10100 = vmatprep.mubr.bf16.mxu0 %v8188
        %10101 = vmatmul.mubr.bf16.gmra.mrb[0].mxu0 %v8187
        %v10102 = vpop.f32.mrb[0].mxu0
        %v10103 = vadd.f32 %v9910, %v10102
        %v10104 = vpop.f32.mrb[0].mxu0
        %v10105 = vadd.f32 %v9912, %v10104
        %v10106 = vpop.f32.mrb[0].mxu0
        %v10107 = vadd.f32 %v9914, %v10106
        %v10108 = vpop.f32.mrb[0].mxu0
        %v10109 = vadd.f32 %v9916, %v10108
        %10110 = vdwg.mxu0
        %10111 = vmatprep.subr.bf16.mxu0 %v9216
        %10112 = vmatpush1.bf16.msra.mxu0 %v9215
        %10113 = vmatprep.subr.bf16.mxu0 %v9224
        %10114 = vmatpush1.bf16.msra.mxu0 %v9223
        %10115 = vmatprep.subr.bf16.mxu0 %v9232
        %10116 = vmatpush1.bf16.msra.mxu0 %v9231
        %10117 = vmatprep.subr.bf16.mxu0 %v9240
        %10118 = vmatpush1.bf16.msra.mxu0 %v9239
        %10119 = vmatprep.subr.bf16.mxu0 %v9248
        %10120 = vmatpush1.bf16.msra.mxu0 %v9247
        %10121 = vmatprep.subr.bf16.mxu0 %v9256
        %10122 = vmatpush1.bf16.msra.mxu0 %v9255
        %10123 = vmatprep.subr.bf16.mxu0 %v9264
        %10124 = vmatpush1.bf16.msra.mxu0 %v9263
        %10125 = vmatprep.subr.bf16.mxu0 %v9272
        %10126 = vmatpush1.bf16.msra.mxu0 %v9271
        %10127 = vmatprep.subr.bf16.mxu0 %v9280
        %10128 = vmatpush1.bf16.msra.mxu0 %v9279
        %10129 = vmatprep.subr.bf16.mxu0 %v9288
        %10130 = vmatpush1.bf16.msra.mxu0 %v9287
        %10131 = vmatprep.subr.bf16.mxu0 %v9296
        %10132 = vmatpush1.bf16.msra.mxu0 %v9295
        %10133 = vmatprep.subr.bf16.mxu0 %v9304
        %10134 = vmatpush1.bf16.msra.mxu0 %v9303
        %10135 = vmatprep.subr.bf16.mxu0 %v9312
        %10136 = vmatpush1.bf16.msra.mxu0 %v9311
        %10137 = vmatprep.subr.bf16.mxu0 %v9320
        %10138 = vmatpush1.bf16.msra.mxu0 %v9319
        %10139 = vmatprep.subr.bf16.mxu0 %v9328
        %10140 = vmatpush1.bf16.msra.mxu0 %v9327
        %10141 = vmatprep.subr.bf16.mxu0 %v9336
        %10142 = vmatpush1.bf16.msra.mxu0 %v9335
        %10143 = vmatprep.mubr.bf16.mxu0 %v8126
        %10144 = vmatmul.mubr.bf16.gmra.mrb[0].mxu0 %v8125
        %v10145 = vpop.f32.mrb[0].mxu0
        %v10146 = vadd.f32 0.0, %v10145
        %v10147 = vpop.f32.mrb[0].mxu0
        %v10148 = vadd.f32 0.0, %v10147
        %v10149 = vpop.f32.mrb[0].mxu0
        %v10150 = vadd.f32 0.0, %v10149
        %v10151 = vpop.f32.mrb[0].mxu0
        %v10152 = vadd.f32 0.0, %v10151
        %10153 = vmatprep.mubr.bf16.mxu0 %v8130
        %10154 = vmatmul.mubr.bf16.gmra.mrb[0].mxu0 %v8129
        %v10155 = vpop.f32.mrb[0].mxu0
        %v10156 = vadd.f32 0.0, %v10155
        %v10157 = vpop.f32.mrb[0].mxu0
        %v10158 = vadd.f32 0.0, %v10157
        %v10159 = vpop.f32.mrb[0].mxu0
        %v10160 = vadd.f32 0.0, %v10159
        %v10161 = vpop.f32.mrb[0].mxu0
        %v10162 = vadd.f32 0.0, %v10161
        %10163 = vmatprep.mubr.bf16.mxu0 %v8134
        %10164 = vmatmul.mubr.bf16.gmra.mrb[0].mxu0 %v8133
        %v10165 = vpop.f32.mrb[0].mxu0
        %v10166 = vadd.f32 0.0, %v10165
        %v10167 = vpop.f32.mrb[0].mxu0
        %v10168 = vadd.f32 0.0, %v10167
        %v10169 = vpop.f32.mrb[0].mxu0
        %v10170 = vadd.f32 0.0, %v10169
        %v10171 = vpop.f32.mrb[0].mxu0
        %v10172 = vadd.f32 0.0, %v10171
        %10173 = vmatprep.mubr.bf16.mxu0 %v8138
        %10174 = vmatmul.mubr.bf16.gmra.mrb[0].mxu0 %v8137
        %v10175 = vpop.f32.mrb[0].mxu0
        %v10176 = vadd.f32 0.0, %v10175
        %v10177 = vpop.f32.mrb[0].mxu0
        %v10178 = vadd.f32 0.0, %v10177
        %v10179 = vpop.f32.mrb[0].mxu0
        %v10180 = vadd.f32 0.0, %v10179
        %v10181 = vpop.f32.mrb[0].mxu0
        %v10182 = vadd.f32 0.0, %v10181
        %10183 = vmatprep.mubr.bf16.mxu0 %v8142
        %10184 = vmatmul.mubr.bf16.gmra.mrb[0].mxu0 %v8141
        %v10185 = vpop.f32.mrb[0].mxu0
        %v10186 = vadd.f32 0.0, %v10185
        %v10187 = vpop.f32.mrb[0].mxu0
        %v10188 = vadd.f32 0.0, %v10187
        %v10189 = vpop.f32.mrb[0].mxu0
        %v10190 = vadd.f32 0.0, %v10189
        %v10191 = vpop.f32.mrb[0].mxu0
        %v10192 = vadd.f32 0.0, %v10191
        %10193 = vmatprep.mubr.bf16.mxu0 %v8146
        %10194 = vmatmul.mubr.bf16.gmra.mrb[0].mxu0 %v8145
        %v10195 = vpop.f32.mrb[0].mxu0
        %v10196 = vadd.f32 0.0, %v10195
        %v10197 = vpop.f32.mrb[0].mxu0
        %v10198 = vadd.f32 0.0, %v10197
        %v10199 = vpop.f32.mrb[0].mxu0
        %v10200 = vadd.f32 0.0, %v10199
        %v10201 = vpop.f32.mrb[0].mxu0
        %v10202 = vadd.f32 0.0, %v10201
        %10203 = vmatprep.mubr.bf16.mxu0 %v8150
        %10204 = vmatmul.mubr.bf16.gmra.mrb[0].mxu0 %v8149
        %v10205 = vpop.f32.mrb[0].mxu0
        %v10206 = vadd.f32 0.0, %v10205
        %v10207 = vpop.f32.mrb[0].mxu0
        %v10208 = vadd.f32 0.0, %v10207
        %v10209 = vpop.f32.mrb[0].mxu0
        %v10210 = vadd.f32 0.0, %v10209
        %v10211 = vpop.f32.mrb[0].mxu0
        %v10212 = vadd.f32 0.0, %v10211
        %10213 = vmatprep.mubr.bf16.mxu0 %v8154
        %10214 = vmatmul.mubr.bf16.gmra.mrb[0].mxu0 %v8153
        %v10215 = vpop.f32.mrb[0].mxu0
        %v10216 = vadd.f32 0.0, %v10215
        %v10217 = vpop.f32.mrb[0].mxu0
        %v10218 = vadd.f32 0.0, %v10217
        %v10219 = vpop.f32.mrb[0].mxu0
        %v10220 = vadd.f32 0.0, %v10219
        %v10221 = vpop.f32.mrb[0].mxu0
        %v10222 = vadd.f32 0.0, %v10221
        %10223 = vmatprep.mubr.bf16.mxu0 %v8158
        %10224 = vmatmul.mubr.bf16.gmra.mrb[0].mxu0 %v8157
        %v10225 = vpop.f32.mrb[0].mxu0
        %v10226 = vadd.f32 0.0, %v10225
        %v10227 = vpop.f32.mrb[0].mxu0
        %v10228 = vadd.f32 0.0, %v10227
        %v10229 = vpop.f32.mrb[0].mxu0
        %v10230 = vadd.f32 0.0, %v10229
        %v10231 = vpop.f32.mrb[0].mxu0
        %v10232 = vadd.f32 0.0, %v10231
        %10233 = vmatprep.mubr.bf16.mxu0 %v8162
        %10234 = vmatmul.mubr.bf16.gmra.mrb[0].mxu0 %v8161
        %v10235 = vpop.f32.mrb[0].mxu0
        %v10236 = vadd.f32 0.0, %v10235
        %v10237 = vpop.f32.mrb[0].mxu0
        %v10238 = vadd.f32 0.0, %v10237
        %v10239 = vpop.f32.mrb[0].mxu0
        %v10240 = vadd.f32 0.0, %v10239
        %v10241 = vpop.f32.mrb[0].mxu0
        %v10242 = vadd.f32 0.0, %v10241
        %10243 = vmatprep.mubr.bf16.mxu0 %v8166
        %10244 = vmatmul.mubr.bf16.gmra.mrb[0].mxu0 %v8165
        %v10245 = vpop.f32.mrb[0].mxu0
        %v10246 = vadd.f32 0.0, %v10245
        %v10247 = vpop.f32.mrb[0].mxu0
        %v10248 = vadd.f32 0.0, %v10247
        %v10249 = vpop.f32.mrb[0].mxu0
        %v10250 = vadd.f32 0.0, %v10249
        %v10251 = vpop.f32.mrb[0].mxu0
        %v10252 = vadd.f32 0.0, %v10251
        %10253 = vmatprep.mubr.bf16.mxu0 %v8170
        %10254 = vmatmul.mubr.bf16.gmra.mrb[0].mxu0 %v8169
        %v10255 = vpop.f32.mrb[0].mxu0
        %v10256 = vadd.f32 0.0, %v10255
        %v10257 = vpop.f32.mrb[0].mxu0
        %v10258 = vadd.f32 0.0, %v10257
        %v10259 = vpop.f32.mrb[0].mxu0
        %v10260 = vadd.f32 0.0, %v10259
        %v10261 = vpop.f32.mrb[0].mxu0
        %v10262 = vadd.f32 0.0, %v10261
        %10263 = vmatprep.mubr.bf16.mxu0 %v8174
        %10264 = vmatmul.mubr.bf16.gmra.mrb[0].mxu0 %v8173
        %v10265 = vpop.f32.mrb[0].mxu0
        %v10266 = vadd.f32 0.0, %v10265
        %v10267 = vpop.f32.mrb[0].mxu0
        %v10268 = vadd.f32 0.0, %v10267
        %v10269 = vpop.f32.mrb[0].mxu0
        %v10270 = vadd.f32 0.0, %v10269
        %v10271 = vpop.f32.mrb[0].mxu0
        %v10272 = vadd.f32 0.0, %v10271
        %10273 = vmatprep.mubr.bf16.mxu0 %v8178
        %10274 = vmatmul.mubr.bf16.gmra.mrb[0].mxu0 %v8177
        %v10275 = vpop.f32.mrb[0].mxu0
        %v10276 = vadd.f32 0.0, %v10275
        %v10277 = vpop.f32.mrb[0].mxu0
        %v10278 = vadd.f32 0.0, %v10277
        %v10279 = vpop.f32.mrb[0].mxu0
        %v10280 = vadd.f32 0.0, %v10279
        %v10281 = vpop.f32.mrb[0].mxu0
        %v10282 = vadd.f32 0.0, %v10281
        %10283 = vmatprep.mubr.bf16.mxu0 %v8182
        %10284 = vmatmul.mubr.bf16.gmra.mrb[0].mxu0 %v8181
        %v10285 = vpop.f32.mrb[0].mxu0
        %v10286 = vadd.f32 0.0, %v10285
        %v10287 = vpop.f32.mrb[0].mxu0
        %v10288 = vadd.f32 0.0, %v10287
        %v10289 = vpop.f32.mrb[0].mxu0
        %v10290 = vadd.f32 0.0, %v10289
        %v10291 = vpop.f32.mrb[0].mxu0
        %v10292 = vadd.f32 0.0, %v10291
        %10293 = vmatprep.mubr.bf16.mxu0 %v8186
        %10294 = vmatmul.mubr.bf16.gmra.mrb[0].mxu0 %v8185
        %v10295 = vpop.f32.mrb[0].mxu0
        %v10296 = vadd.f32 0.0, %v10295
        %v10297 = vpop.f32.mrb[0].mxu0
        %v10298 = vadd.f32 0.0, %v10297
        %v10299 = vpop.f32.mrb[0].mxu0
        %v10300 = vadd.f32 0.0, %v10299
        %v10301 = vpop.f32.mrb[0].mxu0
        %v10302 = vadd.f32 0.0, %v10301
        %10303 = vdwg.mxu0
        %10304 = vmatprep.subr.bf16.mxu0 %v9344
        %10305 = vmatpush1.bf16.msra.mxu0 %v9343
        %10306 = vmatprep.subr.bf16.mxu0 %v9352
        %10307 = vmatpush1.bf16.msra.mxu0 %v9351
        %10308 = vmatprep.subr.bf16.mxu0 %v9360
        %10309 = vmatpush1.bf16.msra.mxu0 %v9359
        %10310 = vmatprep.subr.bf16.mxu0 %v9368
        %10311 = vmatpush1.bf16.msra.mxu0 %v9367
        %10312 = vmatprep.subr.bf16.mxu0 %v9376
        %10313 = vmatpush1.bf16.msra.mxu0 %v9375
        %10314 = vmatprep.subr.bf16.mxu0 %v9384
        %10315 = vmatpush1.bf16.msra.mxu0 %v9383
        %10316 = vmatprep.subr.bf16.mxu0 %v9392
        %10317 = vmatpush1.bf16.msra.mxu0 %v9391
        %10318 = vmatprep.subr.bf16.mxu0 %v9400
        %10319 = vmatpush1.bf16.msra.mxu0 %v9399
        %10320 = vmatprep.subr.bf16.mxu0 %v9408
        %10321 = vmatpush1.bf16.msra.mxu0 %v9407
        %10322 = vmatprep.subr.bf16.mxu0 %v9416
        %10323 = vmatpush1.bf16.msra.mxu0 %v9415
        %10324 = vmatprep.subr.bf16.mxu0 %v9424
        %10325 = vmatpush1.bf16.msra.mxu0 %v9423
        %10326 = vmatprep.subr.bf16.mxu0 %v9432
        %10327 = vmatpush1.bf16.msra.mxu0 %v9431
        %10328 = vmatprep.subr.bf16.mxu0 %v9440
        %10329 = vmatpush1.bf16.msra.mxu0 %v9439
        %10330 = vmatprep.subr.bf16.mxu0 %v9448
        %10331 = vmatpush1.bf16.msra.mxu0 %v9447
        %10332 = vmatprep.subr.bf16.mxu0 %v9456
        %10333 = vmatpush1.bf16.msra.mxu0 %v9455
        %10334 = vmatprep.subr.bf16.mxu0 %v9464
        %10335 = vmatpush1.bf16.msra.mxu0 %v9463
        %10336 = vmatprep.mubr.bf16.mxu0 %v8128
        %10337 = vmatmul.mubr.bf16.gmra.mrb[0].mxu0 %v8127
        %v10338 = vpop.f32.mrb[0].mxu0
        %v10339 = vadd.f32 %v10146, %v10338
        %v10340 = vpop.f32.mrb[0].mxu0
        %v10341 = vadd.f32 %v10148, %v10340
        %v10342 = vpop.f32.mrb[0].mxu0
        %v10343 = vadd.f32 %v10150, %v10342
        %v10344 = vpop.f32.mrb[0].mxu0
        %v10345 = vadd.f32 %v10152, %v10344
        %10346 = vmatprep.mubr.bf16.mxu0 %v8132
        %10347 = vmatmul.mubr.bf16.gmra.mrb[0].mxu0 %v8131
        %v10348 = vpop.f32.mrb[0].mxu0
        %v10349 = vadd.f32 %v10156, %v10348
        %v10350 = vpop.f32.mrb[0].mxu0
        %v10351 = vadd.f32 %v10158, %v10350
        %v10352 = vpop.f32.mrb[0].mxu0
        %v10353 = vadd.f32 %v10160, %v10352
        %v10354 = vpop.f32.mrb[0].mxu0
        %v10355 = vadd.f32 %v10162, %v10354
        %10356 = vmatprep.mubr.bf16.mxu0 %v8136
        %10357 = vmatmul.mubr.bf16.gmra.mrb[0].mxu0 %v8135
        %v10358 = vpop.f32.mrb[0].mxu0
        %v10359 = vadd.f32 %v10166, %v10358
        %v10360 = vpop.f32.mrb[0].mxu0
        %v10361 = vadd.f32 %v10168, %v10360
        %v10362 = vpop.f32.mrb[0].mxu0
        %v10363 = vadd.f32 %v10170, %v10362
        %v10364 = vpop.f32.mrb[0].mxu0
        %v10365 = vadd.f32 %v10172, %v10364
        %10366 = vmatprep.mubr.bf16.mxu0 %v8140
        %10367 = vmatmul.mubr.bf16.gmra.mrb[0].mxu0 %v8139
        %v10368 = vpop.f32.mrb[0].mxu0
        %v10369 = vadd.f32 %v10176, %v10368
        %v10370 = vpop.f32.mrb[0].mxu0
        %v10371 = vadd.f32 %v10178, %v10370
        %v10372 = vpop.f32.mrb[0].mxu0
        %v10373 = vadd.f32 %v10180, %v10372
        %v10374 = vpop.f32.mrb[0].mxu0
        %v10375 = vadd.f32 %v10182, %v10374
        %10376 = vmatprep.mubr.bf16.mxu0 %v8144
        %10377 = vmatmul.mubr.bf16.gmra.mrb[0].mxu0 %v8143
        %v10378 = vpop.f32.mrb[0].mxu0
        %v10379 = vadd.f32 %v10186, %v10378
        %v10380 = vpop.f32.mrb[0].mxu0
        %v10381 = vadd.f32 %v10188, %v10380
        %v10382 = vpop.f32.mrb[0].mxu0
        %v10383 = vadd.f32 %v10190, %v10382
        %v10384 = vpop.f32.mrb[0].mxu0
        %v10385 = vadd.f32 %v10192, %v10384
        %10386 = vmatprep.mubr.bf16.mxu0 %v8148
        %10387 = vmatmul.mubr.bf16.gmra.mrb[0].mxu0 %v8147
        %v10388 = vpop.f32.mrb[0].mxu0
        %v10389 = vadd.f32 %v10196, %v10388
        %v10390 = vpop.f32.mrb[0].mxu0
        %v10391 = vadd.f32 %v10198, %v10390
        %v10392 = vpop.f32.mrb[0].mxu0
        %v10393 = vadd.f32 %v10200, %v10392
        %v10394 = vpop.f32.mrb[0].mxu0
        %v10395 = vadd.f32 %v10202, %v10394
        %10396 = vmatprep.mubr.bf16.mxu0 %v8152
        %10397 = vmatmul.mubr.bf16.gmra.mrb[0].mxu0 %v8151
        %v10398 = vpop.f32.mrb[0].mxu0
        %v10399 = vadd.f32 %v10206, %v10398
        %v10400 = vpop.f32.mrb[0].mxu0
        %v10401 = vadd.f32 %v10208, %v10400
        %v10402 = vpop.f32.mrb[0].mxu0
        %v10403 = vadd.f32 %v10210, %v10402
        %v10404 = vpop.f32.mrb[0].mxu0
        %v10405 = vadd.f32 %v10212, %v10404
        %10406 = vmatprep.mubr.bf16.mxu0 %v8156
        %10407 = vmatmul.mubr.bf16.gmra.mrb[0].mxu0 %v8155
        %v10408 = vpop.f32.mrb[0].mxu0
        %v10409 = vadd.f32 %v10216, %v10408
        %v10410 = vpop.f32.mrb[0].mxu0
        %v10411 = vadd.f32 %v10218, %v10410
        %v10412 = vpop.f32.mrb[0].mxu0
        %v10413 = vadd.f32 %v10220, %v10412
        %v10414 = vpop.f32.mrb[0].mxu0
        %v10415 = vadd.f32 %v10222, %v10414
        %10416 = vmatprep.mubr.bf16.mxu0 %v8160
        %10417 = vmatmul.mubr.bf16.gmra.mrb[0].mxu0 %v8159
        %v10418 = vpop.f32.mrb[0].mxu0
        %v10419 = vadd.f32 %v10226, %v10418
        %v10420 = vpop.f32.mrb[0].mxu0
        %v10421 = vadd.f32 %v10228, %v10420
        %v10422 = vpop.f32.mrb[0].mxu0
        %v10423 = vadd.f32 %v10230, %v10422
        %v10424 = vpop.f32.mrb[0].mxu0
        %v10425 = vadd.f32 %v10232, %v10424
        %10426 = vmatprep.mubr.bf16.mxu0 %v8164
        %10427 = vmatmul.mubr.bf16.gmra.mrb[0].mxu0 %v8163
        %v10428 = vpop.f32.mrb[0].mxu0
        %v10429 = vadd.f32 %v10236, %v10428
        %v10430 = vpop.f32.mrb[0].mxu0
        %v10431 = vadd.f32 %v10238, %v10430
        %v10432 = vpop.f32.mrb[0].mxu0
        %v10433 = vadd.f32 %v10240, %v10432
        %v10434 = vpop.f32.mrb[0].mxu0
        %v10435 = vadd.f32 %v10242, %v10434
        %10436 = vmatprep.mubr.bf16.mxu0 %v8168
        %10437 = vmatmul.mubr.bf16.gmra.mrb[0].mxu0 %v8167
        %v10438 = vpop.f32.mrb[0].mxu0
        %v10439 = vadd.f32 %v10246, %v10438
        %v10440 = vpop.f32.mrb[0].mxu0
        %v10441 = vadd.f32 %v10248, %v10440
        %v10442 = vpop.f32.mrb[0].mxu0
        %v10443 = vadd.f32 %v10250, %v10442
        %v10444 = vpop.f32.mrb[0].mxu0
        %v10445 = vadd.f32 %v10252, %v10444
        %10446 = vmatprep.mubr.bf16.mxu0 %v8172
        %10447 = vmatmul.mubr.bf16.gmra.mrb[0].mxu0 %v8171
        %v10448 = vpop.f32.mrb[0].mxu0
        %v10449 = vadd.f32 %v10256, %v10448
        %v10450 = vpop.f32.mrb[0].mxu0
        %v10451 = vadd.f32 %v10258, %v10450
        %v10452 = vpop.f32.mrb[0].mxu0
        %v10453 = vadd.f32 %v10260, %v10452
        %v10454 = vpop.f32.mrb[0].mxu0
        %v10455 = vadd.f32 %v10262, %v10454
        %10456 = vmatprep.mubr.bf16.mxu0 %v8176
        %10457 = vmatmul.mubr.bf16.gmra.mrb[0].mxu0 %v8175
        %v10458 = vpop.f32.mrb[0].mxu0
        %v10459 = vadd.f32 %v10266, %v10458
        %v10460 = vpop.f32.mrb[0].mxu0
        %v10461 = vadd.f32 %v10268, %v10460
        %v10462 = vpop.f32.mrb[0].mxu0
        %v10463 = vadd.f32 %v10270, %v10462
        %v10464 = vpop.f32.mrb[0].mxu0
        %v10465 = vadd.f32 %v10272, %v10464
        %10466 = vmatprep.mubr.bf16.mxu0 %v8180
        %10467 = vmatmul.mubr.bf16.gmra.mrb[0].mxu0 %v8179
        %v10468 = vpop.f32.mrb[0].mxu0
        %v10469 = vadd.f32 %v10276, %v10468
        %v10470 = vpop.f32.mrb[0].mxu0
        %v10471 = vadd.f32 %v10278, %v10470
        %v10472 = vpop.f32.mrb[0].mxu0
        %v10473 = vadd.f32 %v10280, %v10472
        %v10474 = vpop.f32.mrb[0].mxu0
        %v10475 = vadd.f32 %v10282, %v10474
        %10476 = vmatprep.mubr.bf16.mxu0 %v8184
        %10477 = vmatmul.mubr.bf16.gmra.mrb[0].mxu0 %v8183
        %v10478 = vpop.f32.mrb[0].mxu0
        %v10479 = vadd.f32 %v10286, %v10478
        %v10480 = vpop.f32.mrb[0].mxu0
        %v10481 = vadd.f32 %v10288, %v10480
        %v10482 = vpop.f32.mrb[0].mxu0
        %v10483 = vadd.f32 %v10290, %v10482
        %v10484 = vpop.f32.mrb[0].mxu0
        %v10485 = vadd.f32 %v10292, %v10484
        %10486 = vmatprep.mubr.bf16.mxu0 %v8188
        %10487 = vmatmul.mubr.bf16.gmra.mrb[0].mxu0 %v8187
        %v10488 = vpop.f32.mrb[0].mxu0
        %v10489 = vadd.f32 %v10296, %v10488
        %v10490 = vpop.f32.mrb[0].mxu0
        %v10491 = vadd.f32 %v10298, %v10490
        %v10492 = vpop.f32.mrb[0].mxu0
        %v10493 = vadd.f32 %v10300, %v10492
        %v10494 = vpop.f32.mrb[0].mxu0
        %v10495 = vadd.f32 %v10302, %v10494
        %10496 = vdwg.mxu0
        %10497 = vmatprep.subr.bf16.mxu0 %v9218
        %10498 = vmatpush1.bf16.msra.mxu0 %v9217
        %10499 = vmatprep.subr.bf16.mxu0 %v9226
        %10500 = vmatpush1.bf16.msra.mxu0 %v9225
        %10501 = vmatprep.subr.bf16.mxu0 %v9234
        %10502 = vmatpush1.bf16.msra.mxu0 %v9233
        %10503 = vmatprep.subr.bf16.mxu0 %v9242
        %10504 = vmatpush1.bf16.msra.mxu0 %v9241
        %10505 = vmatprep.subr.bf16.mxu0 %v9250
        %10506 = vmatpush1.bf16.msra.mxu0 %v9249
        %10507 = vmatprep.subr.bf16.mxu0 %v9258
        %10508 = vmatpush1.bf16.msra.mxu0 %v9257
        %10509 = vmatprep.subr.bf16.mxu0 %v9266
        %10510 = vmatpush1.bf16.msra.mxu0 %v9265
        %10511 = vmatprep.subr.bf16.mxu0 %v9274
        %10512 = vmatpush1.bf16.msra.mxu0 %v9273
        %10513 = vmatprep.subr.bf16.mxu0 %v9282
        %10514 = vmatpush1.bf16.msra.mxu0 %v9281
        %10515 = vmatprep.subr.bf16.mxu0 %v9290
        %10516 = vmatpush1.bf16.msra.mxu0 %v9289
        %10517 = vmatprep.subr.bf16.mxu0 %v9298
        %10518 = vmatpush1.bf16.msra.mxu0 %v9297
        %10519 = vmatprep.subr.bf16.mxu0 %v9306
        %10520 = vmatpush1.bf16.msra.mxu0 %v9305
        %10521 = vmatprep.subr.bf16.mxu0 %v9314
        %10522 = vmatpush1.bf16.msra.mxu0 %v9313
        %10523 = vmatprep.subr.bf16.mxu0 %v9322
        %10524 = vmatpush1.bf16.msra.mxu0 %v9321
        %10525 = vmatprep.subr.bf16.mxu0 %v9330
        %10526 = vmatpush1.bf16.msra.mxu0 %v9329
        %10527 = vmatprep.subr.bf16.mxu0 %v9338
        %10528 = vmatpush1.bf16.msra.mxu0 %v9337
        %10529 = vmatprep.mubr.bf16.mxu0 %v8126
        %10530 = vmatmul.mubr.bf16.gmra.mrb[0].mxu0 %v8125
        %v10531 = vpop.f32.mrb[0].mxu0
        %v10532 = vadd.f32 0.0, %v10531
        %v10533 = vpop.f32.mrb[0].mxu0
        %v10534 = vadd.f32 0.0, %v10533
        %v10535 = vpop.f32.mrb[0].mxu0
        %v10536 = vadd.f32 0.0, %v10535
        %v10537 = vpop.f32.mrb[0].mxu0
        %v10538 = vadd.f32 0.0, %v10537
        %10539 = vmatprep.mubr.bf16.mxu0 %v8130
        %10540 = vmatmul.mubr.bf16.gmra.mrb[0].mxu0 %v8129
        %v10541 = vpop.f32.mrb[0].mxu0
        %v10542 = vadd.f32 0.0, %v10541
        %v10543 = vpop.f32.mrb[0].mxu0
        %v10544 = vadd.f32 0.0, %v10543
        %v10545 = vpop.f32.mrb[0].mxu0
        %v10546 = vadd.f32 0.0, %v10545
        %v10547 = vpop.f32.mrb[0].mxu0
        %v10548 = vadd.f32 0.0, %v10547
        %10549 = vmatprep.mubr.bf16.mxu0 %v8134
        %10550 = vmatmul.mubr.bf16.gmra.mrb[0].mxu0 %v8133
        %v10551 = vpop.f32.mrb[0].mxu0
        %v10552 = vadd.f32 0.0, %v10551
        %v10553 = vpop.f32.mrb[0].mxu0
        %v10554 = vadd.f32 0.0, %v10553
        %v10555 = vpop.f32.mrb[0].mxu0
        %v10556 = vadd.f32 0.0, %v10555
        %v10557 = vpop.f32.mrb[0].mxu0
        %v10558 = vadd.f32 0.0, %v10557
        %10559 = vmatprep.mubr.bf16.mxu0 %v8138
        %10560 = vmatmul.mubr.bf16.gmra.mrb[0].mxu0 %v8137
        %v10561 = vpop.f32.mrb[0].mxu0
        %v10562 = vadd.f32 0.0, %v10561
        %v10563 = vpop.f32.mrb[0].mxu0
        %v10564 = vadd.f32 0.0, %v10563
        %v10565 = vpop.f32.mrb[0].mxu0
        %v10566 = vadd.f32 0.0, %v10565
        %v10567 = vpop.f32.mrb[0].mxu0
        %v10568 = vadd.f32 0.0, %v10567
        %10569 = vmatprep.mubr.bf16.mxu0 %v8142
        %10570 = vmatmul.mubr.bf16.gmra.mrb[0].mxu0 %v8141
        %v10571 = vpop.f32.mrb[0].mxu0
        %v10572 = vadd.f32 0.0, %v10571
        %v10573 = vpop.f32.mrb[0].mxu0
        %v10574 = vadd.f32 0.0, %v10573
        %v10575 = vpop.f32.mrb[0].mxu0
        %v10576 = vadd.f32 0.0, %v10575
        %v10577 = vpop.f32.mrb[0].mxu0
        %v10578 = vadd.f32 0.0, %v10577
        %10579 = vmatprep.mubr.bf16.mxu0 %v8146
        %10580 = vmatmul.mubr.bf16.gmra.mrb[0].mxu0 %v8145
        %v10581 = vpop.f32.mrb[0].mxu0
        %v10582 = vadd.f32 0.0, %v10581
        %v10583 = vpop.f32.mrb[0].mxu0
        %v10584 = vadd.f32 0.0, %v10583
        %v10585 = vpop.f32.mrb[0].mxu0
        %v10586 = vadd.f32 0.0, %v10585
        %v10587 = vpop.f32.mrb[0].mxu0
        %v10588 = vadd.f32 0.0, %v10587
        %10589 = vmatprep.mubr.bf16.mxu0 %v8150
        %10590 = vmatmul.mubr.bf16.gmra.mrb[0].mxu0 %v8149
        %v10591 = vpop.f32.mrb[0].mxu0
        %v10592 = vadd.f32 0.0, %v10591
        %v10593 = vpop.f32.mrb[0].mxu0
        %v10594 = vadd.f32 0.0, %v10593
        %v10595 = vpop.f32.mrb[0].mxu0
        %v10596 = vadd.f32 0.0, %v10595
        %v10597 = vpop.f32.mrb[0].mxu0
        %v10598 = vadd.f32 0.0, %v10597
        %10599 = vmatprep.mubr.bf16.mxu0 %v8154
        %10600 = vmatmul.mubr.bf16.gmra.mrb[0].mxu0 %v8153
        %v10601 = vpop.f32.mrb[0].mxu0
        %v10602 = vadd.f32 0.0, %v10601
        %v10603 = vpop.f32.mrb[0].mxu0
        %v10604 = vadd.f32 0.0, %v10603
        %v10605 = vpop.f32.mrb[0].mxu0
        %v10606 = vadd.f32 0.0, %v10605
        %v10607 = vpop.f32.mrb[0].mxu0
        %v10608 = vadd.f32 0.0, %v10607
        %10609 = vmatprep.mubr.bf16.mxu0 %v8158
        %10610 = vmatmul.mubr.bf16.gmra.mrb[0].mxu0 %v8157
        %v10611 = vpop.f32.mrb[0].mxu0
        %v10612 = vadd.f32 0.0, %v10611
        %v10613 = vpop.f32.mrb[0].mxu0
        %v10614 = vadd.f32 0.0, %v10613
        %v10615 = vpop.f32.mrb[0].mxu0
        %v10616 = vadd.f32 0.0, %v10615
        %v10617 = vpop.f32.mrb[0].mxu0
        %v10618 = vadd.f32 0.0, %v10617
        %10619 = vmatprep.mubr.bf16.mxu0 %v8162
        %10620 = vmatmul.mubr.bf16.gmra.mrb[0].mxu0 %v8161
        %v10621 = vpop.f32.mrb[0].mxu0
        %v10622 = vadd.f32 0.0, %v10621
        %v10623 = vpop.f32.mrb[0].mxu0
        %v10624 = vadd.f32 0.0, %v10623
        %v10625 = vpop.f32.mrb[0].mxu0
        %v10626 = vadd.f32 0.0, %v10625
        %v10627 = vpop.f32.mrb[0].mxu0
        %v10628 = vadd.f32 0.0, %v10627
        %10629 = vmatprep.mubr.bf16.mxu0 %v8166
        %10630 = vmatmul.mubr.bf16.gmra.mrb[0].mxu0 %v8165
        %v10631 = vpop.f32.mrb[0].mxu0
        %v10632 = vadd.f32 0.0, %v10631
        %v10633 = vpop.f32.mrb[0].mxu0
        %v10634 = vadd.f32 0.0, %v10633
        %v10635 = vpop.f32.mrb[0].mxu0
        %v10636 = vadd.f32 0.0, %v10635
        %v10637 = vpop.f32.mrb[0].mxu0
        %v10638 = vadd.f32 0.0, %v10637
        %10639 = vmatprep.mubr.bf16.mxu0 %v8170
        %10640 = vmatmul.mubr.bf16.gmra.mrb[0].mxu0 %v8169
        %v10641 = vpop.f32.mrb[0].mxu0
        %v10642 = vadd.f32 0.0, %v10641
        %v10643 = vpop.f32.mrb[0].mxu0
        %v10644 = vadd.f32 0.0, %v10643
        %v10645 = vpop.f32.mrb[0].mxu0
        %v10646 = vadd.f32 0.0, %v10645
        %v10647 = vpop.f32.mrb[0].mxu0
        %v10648 = vadd.f32 0.0, %v10647
        %10649 = vmatprep.mubr.bf16.mxu0 %v8174
        %10650 = vmatmul.mubr.bf16.gmra.mrb[0].mxu0 %v8173
        %v10651 = vpop.f32.mrb[0].mxu0
        %v10652 = vadd.f32 0.0, %v10651
        %v10653 = vpop.f32.mrb[0].mxu0
        %v10654 = vadd.f32 0.0, %v10653
        %v10655 = vpop.f32.mrb[0].mxu0
        %v10656 = vadd.f32 0.0, %v10655
        %v10657 = vpop.f32.mrb[0].mxu0
        %v10658 = vadd.f32 0.0, %v10657
        %10659 = vmatprep.mubr.bf16.mxu0 %v8178
        %10660 = vmatmul.mubr.bf16.gmra.mrb[0].mxu0 %v8177
        %v10661 = vpop.f32.mrb[0].mxu0
        %v10662 = vadd.f32 0.0, %v10661
        %v10663 = vpop.f32.mrb[0].mxu0
        %v10664 = vadd.f32 0.0, %v10663
        %v10665 = vpop.f32.mrb[0].mxu0
        %v10666 = vadd.f32 0.0, %v10665
        %v10667 = vpop.f32.mrb[0].mxu0
        %v10668 = vadd.f32 0.0, %v10667
        %10669 = vmatprep.mubr.bf16.mxu0 %v8182
        %10670 = vmatmul.mubr.bf16.gmra.mrb[0].mxu0 %v8181
        %v10671 = vpop.f32.mrb[0].mxu0
        %v10672 = vadd.f32 0.0, %v10671
        %v10673 = vpop.f32.mrb[0].mxu0
        %v10674 = vadd.f32 0.0, %v10673
        %v10675 = vpop.f32.mrb[0].mxu0
        %v10676 = vadd.f32 0.0, %v10675
        %v10677 = vpop.f32.mrb[0].mxu0
        %v10678 = vadd.f32 0.0, %v10677
        %10679 = vmatprep.mubr.bf16.mxu0 %v8186
        %10680 = vmatmul.mubr.bf16.gmra.mrb[0].mxu0 %v8185
        %v10681 = vpop.f32.mrb[0].mxu0
        %v10682 = vadd.f32 0.0, %v10681
        %v10683 = vpop.f32.mrb[0].mxu0
        %v10684 = vadd.f32 0.0, %v10683
        %v10685 = vpop.f32.mrb[0].mxu0
        %v10686 = vadd.f32 0.0, %v10685
        %v10687 = vpop.f32.mrb[0].mxu0
        %v10688 = vadd.f32 0.0, %v10687
        %10689 = vdwg.mxu0
        %10690 = vmatprep.subr.bf16.mxu0 %v9346
        %10691 = vmatpush1.bf16.msra.mxu0 %v9345
        %10692 = vmatprep.subr.bf16.mxu0 %v9354
        %10693 = vmatpush1.bf16.msra.mxu0 %v9353
        %10694 = vmatprep.subr.bf16.mxu0 %v9362
        %10695 = vmatpush1.bf16.msra.mxu0 %v9361
        %10696 = vmatprep.subr.bf16.mxu0 %v9370
        %10697 = vmatpush1.bf16.msra.mxu0 %v9369
        %10698 = vmatprep.subr.bf16.mxu0 %v9378
        %10699 = vmatpush1.bf16.msra.mxu0 %v9377
        %10700 = vmatprep.subr.bf16.mxu0 %v9386
        %10701 = vmatpush1.bf16.msra.mxu0 %v9385
        %10702 = vmatprep.subr.bf16.mxu0 %v9394
        %10703 = vmatpush1.bf16.msra.mxu0 %v9393
        %10704 = vmatprep.subr.bf16.mxu0 %v9402
        %10705 = vmatpush1.bf16.msra.mxu0 %v9401
        %10706 = vmatprep.subr.bf16.mxu0 %v9410
        %10707 = vmatpush1.bf16.msra.mxu0 %v9409
        %10708 = vmatprep.subr.bf16.mxu0 %v9418
        %10709 = vmatpush1.bf16.msra.mxu0 %v9417
        %10710 = vmatprep.subr.bf16.mxu0 %v9426
        %10711 = vmatpush1.bf16.msra.mxu0 %v9425
        %10712 = vmatprep.subr.bf16.mxu0 %v9434
        %10713 = vmatpush1.bf16.msra.mxu0 %v9433
        %10714 = vmatprep.subr.bf16.mxu0 %v9442
        %10715 = vmatpush1.bf16.msra.mxu0 %v9441
        %10716 = vmatprep.subr.bf16.mxu0 %v9450
        %10717 = vmatpush1.bf16.msra.mxu0 %v9449
        %10718 = vmatprep.subr.bf16.mxu0 %v9458
        %10719 = vmatpush1.bf16.msra.mxu0 %v9457
        %10720 = vmatprep.subr.bf16.mxu0 %v9466
        %10721 = vmatpush1.bf16.msra.mxu0 %v9465
        %10722 = vmatprep.mubr.bf16.mxu0 %v8128
        %10723 = vmatmul.mubr.bf16.gmra.mrb[0].mxu0 %v8127
        %v10724 = vpop.f32.mrb[0].mxu0
        %v10725 = vadd.f32 %v10532, %v10724
        %v10726 = vpop.f32.mrb[0].mxu0
        %v10727 = vadd.f32 %v10534, %v10726
        %v10728 = vpop.f32.mrb[0].mxu0
        %v10729 = vadd.f32 %v10536, %v10728
        %v10730 = vpop.f32.mrb[0].mxu0
        %v10731 = vadd.f32 %v10538, %v10730
        %10732 = vmatprep.mubr.bf16.mxu0 %v8132
        %10733 = vmatmul.mubr.bf16.gmra.mrb[0].mxu0 %v8131
        %v10734 = vpop.f32.mrb[0].mxu0
        %v10735 = vadd.f32 %v10542, %v10734
        %v10736 = vpop.f32.mrb[0].mxu0
        %v10737 = vadd.f32 %v10544, %v10736
        %v10738 = vpop.f32.mrb[0].mxu0
        %v10739 = vadd.f32 %v10546, %v10738
        %v10740 = vpop.f32.mrb[0].mxu0
        %v10741 = vadd.f32 %v10548, %v10740
        %10742 = vmatprep.mubr.bf16.mxu0 %v8136
        %10743 = vmatmul.mubr.bf16.gmra.mrb[0].mxu0 %v8135
        %v10744 = vpop.f32.mrb[0].mxu0
        %v10745 = vadd.f32 %v10552, %v10744
        %v10746 = vpop.f32.mrb[0].mxu0
        %v10747 = vadd.f32 %v10554, %v10746
        %v10748 = vpop.f32.mrb[0].mxu0
        %v10749 = vadd.f32 %v10556, %v10748
        %v10750 = vpop.f32.mrb[0].mxu0
        %v10751 = vadd.f32 %v10558, %v10750
        %10752 = vmatprep.mubr.bf16.mxu0 %v8140
        %10753 = vmatmul.mubr.bf16.gmra.mrb[0].mxu0 %v8139
        %v10754 = vpop.f32.mrb[0].mxu0
        %v10755 = vadd.f32 %v10562, %v10754
        %v10756 = vpop.f32.mrb[0].mxu0
        %v10757 = vadd.f32 %v10564, %v10756
        %v10758 = vpop.f32.mrb[0].mxu0
        %v10759 = vadd.f32 %v10566, %v10758
        %v10760 = vpop.f32.mrb[0].mxu0
        %v10761 = vadd.f32 %v10568, %v10760
        %10762 = vmatprep.mubr.bf16.mxu0 %v8144
        %10763 = vmatmul.mubr.bf16.gmra.mrb[0].mxu0 %v8143
        %v10764 = vpop.f32.mrb[0].mxu0
        %v10765 = vadd.f32 %v10572, %v10764
        %v10766 = vpop.f32.mrb[0].mxu0
        %v10767 = vadd.f32 %v10574, %v10766
        %v10768 = vpop.f32.mrb[0].mxu0
        %v10769 = vadd.f32 %v10576, %v10768
        %v10770 = vpop.f32.mrb[0].mxu0
        %v10771 = vadd.f32 %v10578, %v10770
        %10772 = vmatprep.mubr.bf16.mxu0 %v8148
        %10773 = vmatmul.mubr.bf16.gmra.mrb[0].mxu0 %v8147
        %v10774 = vpop.f32.mrb[0].mxu0
        %v10775 = vadd.f32 %v10582, %v10774
        %v10776 = vpop.f32.mrb[0].mxu0
        %v10777 = vadd.f32 %v10584, %v10776
        %v10778 = vpop.f32.mrb[0].mxu0
        %v10779 = vadd.f32 %v10586, %v10778
        %v10780 = vpop.f32.mrb[0].mxu0
        %v10781 = vadd.f32 %v10588, %v10780
        %10782 = vmatprep.mubr.bf16.mxu0 %v8152
        %10783 = vmatmul.mubr.bf16.gmra.mrb[0].mxu0 %v8151
        %v10784 = vpop.f32.mrb[0].mxu0
        %v10785 = vadd.f32 %v10592, %v10784
        %v10786 = vpop.f32.mrb[0].mxu0
        %v10787 = vadd.f32 %v10594, %v10786
        %v10788 = vpop.f32.mrb[0].mxu0
        %v10789 = vadd.f32 %v10596, %v10788
        %v10790 = vpop.f32.mrb[0].mxu0
        %v10791 = vadd.f32 %v10598, %v10790
        %10792 = vmatprep.mubr.bf16.mxu0 %v8156
        %10793 = vmatmul.mubr.bf16.gmra.mrb[0].mxu0 %v8155
        %v10794 = vpop.f32.mrb[0].mxu0
        %v10795 = vadd.f32 %v10602, %v10794
        %v10796 = vpop.f32.mrb[0].mxu0
        %v10797 = vadd.f32 %v10604, %v10796
        %v10798 = vpop.f32.mrb[0].mxu0
        %v10799 = vadd.f32 %v10606, %v10798
        %v10800 = vpop.f32.mrb[0].mxu0
        %v10801 = vadd.f32 %v10608, %v10800
        %10802 = vmatprep.mubr.bf16.mxu0 %v8160
        %10803 = vmatmul.mubr.bf16.gmra.mrb[0].mxu0 %v8159
        %v10804 = vpop.f32.mrb[0].mxu0
        %v10805 = vadd.f32 %v10612, %v10804
        %v10806 = vpop.f32.mrb[0].mxu0
        %v10807 = vadd.f32 %v10614, %v10806
        %v10808 = vpop.f32.mrb[0].mxu0
        %v10809 = vadd.f32 %v10616, %v10808
        %v10810 = vpop.f32.mrb[0].mxu0
        %v10811 = vadd.f32 %v10618, %v10810
        %10812 = vmatprep.mubr.bf16.mxu0 %v8164
        %10813 = vmatmul.mubr.bf16.gmra.mrb[0].mxu0 %v8163
        %v10814 = vpop.f32.mrb[0].mxu0
        %v10815 = vadd.f32 %v10622, %v10814
        %v10816 = vpop.f32.mrb[0].mxu0
        %v10817 = vadd.f32 %v10624, %v10816
        %v10818 = vpop.f32.mrb[0].mxu0
        %v10819 = vadd.f32 %v10626, %v10818
        %v10820 = vpop.f32.mrb[0].mxu0
        %v10821 = vadd.f32 %v10628, %v10820
        %10822 = vmatprep.mubr.bf16.mxu0 %v8168
        %10823 = vmatmul.mubr.bf16.gmra.mrb[0].mxu0 %v8167
        %v10824 = vpop.f32.mrb[0].mxu0
        %v10825 = vadd.f32 %v10632, %v10824
        %v10826 = vpop.f32.mrb[0].mxu0
        %v10827 = vadd.f32 %v10634, %v10826
        %v10828 = vpop.f32.mrb[0].mxu0
        %v10829 = vadd.f32 %v10636, %v10828
        %v10830 = vpop.f32.mrb[0].mxu0
        %v10831 = vadd.f32 %v10638, %v10830
        %10832 = vmatprep.mubr.bf16.mxu0 %v8172
        %10833 = vmatmul.mubr.bf16.gmra.mrb[0].mxu0 %v8171
        %v10834 = vpop.f32.mrb[0].mxu0
        %v10835 = vadd.f32 %v10642, %v10834
        %v10836 = vpop.f32.mrb[0].mxu0
        %v10837 = vadd.f32 %v10644, %v10836
        %v10838 = vpop.f32.mrb[0].mxu0
        %v10839 = vadd.f32 %v10646, %v10838
        %v10840 = vpop.f32.mrb[0].mxu0
        %v10841 = vadd.f32 %v10648, %v10840
        %10842 = vmatprep.mubr.bf16.mxu0 %v8176
        %10843 = vmatmul.mubr.bf16.gmra.mrb[0].mxu0 %v8175
        %v10844 = vpop.f32.mrb[0].mxu0
        %v10845 = vadd.f32 %v10652, %v10844
        %v10846 = vpop.f32.mrb[0].mxu0
        %v10847 = vadd.f32 %v10654, %v10846
        %v10848 = vpop.f32.mrb[0].mxu0
        %v10849 = vadd.f32 %v10656, %v10848
        %v10850 = vpop.f32.mrb[0].mxu0
        %v10851 = vadd.f32 %v10658, %v10850
        %10852 = vmatprep.mubr.bf16.mxu0 %v8180
        %10853 = vmatmul.mubr.bf16.gmra.mrb[0].mxu0 %v8179
        %v10854 = vpop.f32.mrb[0].mxu0
        %v10855 = vadd.f32 %v10662, %v10854
        %v10856 = vpop.f32.mrb[0].mxu0
        %v10857 = vadd.f32 %v10664, %v10856
        %v10858 = vpop.f32.mrb[0].mxu0
        %v10859 = vadd.f32 %v10666, %v10858
        %v10860 = vpop.f32.mrb[0].mxu0
        %v10861 = vadd.f32 %v10668, %v10860
        %10862 = vmatprep.mubr.bf16.mxu0 %v8184
        %10863 = vmatmul.mubr.bf16.gmra.mrb[0].mxu0 %v8183
        %v10864 = vpop.f32.mrb[0].mxu0
        %v10865 = vadd.f32 %v10672, %v10864
        %v10866 = vpop.f32.mrb[0].mxu0
        %v10867 = vadd.f32 %v10674, %v10866
        %v10868 = vpop.f32.mrb[0].mxu0
        %v10869 = vadd.f32 %v10676, %v10868
        %v10870 = vpop.f32.mrb[0].mxu0
        %v10871 = vadd.f32 %v10678, %v10870
        %10872 = vmatprep.mubr.bf16.mxu0 %v8188
        %10873 = vmatmul.mubr.bf16.gmra.mrb[0].mxu0 %v8187
        %v10874 = vpop.f32.mrb[0].mxu0
        %v10875 = vadd.f32 %v10682, %v10874
        %v10876 = vpop.f32.mrb[0].mxu0
        %v10877 = vadd.f32 %v10684, %v10876
        %v10878 = vpop.f32.mrb[0].mxu0
        %v10879 = vadd.f32 %v10686, %v10878
        %v10880 = vpop.f32.mrb[0].mxu0
        %v10881 = vadd.f32 %v10688, %v10880
        %10882 = vdwg.mxu0
        %10883 = vmatprep.subr.bf16.mxu0 %v9220
        %10884 = vmatpush1.bf16.msra.mxu0 %v9219
        %10885 = vmatprep.subr.bf16.mxu0 %v9228
        %10886 = vmatpush1.bf16.msra.mxu0 %v9227
        %10887 = vmatprep.subr.bf16.mxu0 %v9236
        %10888 = vmatpush1.bf16.msra.mxu0 %v9235
        %10889 = vmatprep.subr.bf16.mxu0 %v9244
        %10890 = vmatpush1.bf16.msra.mxu0 %v9243
        %10891 = vmatprep.subr.bf16.mxu0 %v9252
        %10892 = vmatpush1.bf16.msra.mxu0 %v9251
        %10893 = vmatprep.subr.bf16.mxu0 %v9260
        %10894 = vmatpush1.bf16.msra.mxu0 %v9259
        %10895 = vmatprep.subr.bf16.mxu0 %v9268
        %10896 = vmatpush1.bf16.msra.mxu0 %v9267
        %10897 = vmatprep.subr.bf16.mxu0 %v9276
        %10898 = vmatpush1.bf16.msra.mxu0 %v9275
        %10899 = vmatprep.subr.bf16.mxu0 %v9284
        %10900 = vmatpush1.bf16.msra.mxu0 %v9283
        %10901 = vmatprep.subr.bf16.mxu0 %v9292
        %10902 = vmatpush1.bf16.msra.mxu0 %v9291
        %10903 = vmatprep.subr.bf16.mxu0 %v9300
        %10904 = vmatpush1.bf16.msra.mxu0 %v9299
        %10905 = vmatprep.subr.bf16.mxu0 %v9308
        %10906 = vmatpush1.bf16.msra.mxu0 %v9307
        %10907 = vmatprep.subr.bf16.mxu0 %v9316
        %10908 = vmatpush1.bf16.msra.mxu0 %v9315
        %10909 = vmatprep.subr.bf16.mxu0 %v9324
        %10910 = vmatpush1.bf16.msra.mxu0 %v9323
        %10911 = vmatprep.subr.bf16.mxu0 %v9332
        %10912 = vmatpush1.bf16.msra.mxu0 %v9331
        %10913 = vmatprep.subr.bf16.mxu0 %v9340
        %10914 = vmatpush1.bf16.msra.mxu0 %v9339
        %10915 = vmatprep.mubr.bf16.mxu0 %v8126
        %10916 = vmatmul.mubr.bf16.gmra.mrb[0].mxu0 %v8125
        %v10917 = vpop.f32.mrb[0].mxu0
        %v10918 = vadd.f32 0.0, %v10917
        %v10919 = vpop.f32.mrb[0].mxu0
        %v10920 = vadd.f32 0.0, %v10919
        %v10921 = vpop.f32.mrb[0].mxu0
        %v10922 = vadd.f32 0.0, %v10921
        %v10923 = vpop.f32.mrb[0].mxu0
        %v10924 = vadd.f32 0.0, %v10923
        %10925 = vmatprep.mubr.bf16.mxu0 %v8130
        %10926 = vmatmul.mubr.bf16.gmra.mrb[0].mxu0 %v8129
        %v10927 = vpop.f32.mrb[0].mxu0
        %v10928 = vadd.f32 0.0, %v10927
        %v10929 = vpop.f32.mrb[0].mxu0
        %v10930 = vadd.f32 0.0, %v10929
        %v10931 = vpop.f32.mrb[0].mxu0
        %v10932 = vadd.f32 0.0, %v10931
        %v10933 = vpop.f32.mrb[0].mxu0
        %v10934 = vadd.f32 0.0, %v10933
        %10935 = vmatprep.mubr.bf16.mxu0 %v8134
        %10936 = vmatmul.mubr.bf16.gmra.mrb[0].mxu0 %v8133
        %v10937 = vpop.f32.mrb[0].mxu0
        %v10938 = vadd.f32 0.0, %v10937
        %v10939 = vpop.f32.mrb[0].mxu0
        %v10940 = vadd.f32 0.0, %v10939
        %v10941 = vpop.f32.mrb[0].mxu0
        %v10942 = vadd.f32 0.0, %v10941
        %v10943 = vpop.f32.mrb[0].mxu0
        %v10944 = vadd.f32 0.0, %v10943
        %10945 = vmatprep.mubr.bf16.mxu0 %v8138
        %10946 = vmatmul.mubr.bf16.gmra.mrb[0].mxu0 %v8137
        %v10947 = vpop.f32.mrb[0].mxu0
        %v10948 = vadd.f32 0.0, %v10947
        %v10949 = vpop.f32.mrb[0].mxu0
        %v10950 = vadd.f32 0.0, %v10949
        %v10951 = vpop.f32.mrb[0].mxu0
        %v10952 = vadd.f32 0.0, %v10951
        %v10953 = vpop.f32.mrb[0].mxu0
        %v10954 = vadd.f32 0.0, %v10953
        %10955 = vmatprep.mubr.bf16.mxu0 %v8142
        %10956 = vmatmul.mubr.bf16.gmra.mrb[0].mxu0 %v8141
        %v10957 = vpop.f32.mrb[0].mxu0
        %v10958 = vadd.f32 0.0, %v10957
        %v10959 = vpop.f32.mrb[0].mxu0
        %v10960 = vadd.f32 0.0, %v10959
        %v10961 = vpop.f32.mrb[0].mxu0
        %v10962 = vadd.f32 0.0, %v10961
        %v10963 = vpop.f32.mrb[0].mxu0
        %v10964 = vadd.f32 0.0, %v10963
        %10965 = vmatprep.mubr.bf16.mxu0 %v8146
        %10966 = vmatmul.mubr.bf16.gmra.mrb[0].mxu0 %v8145
        %v10967 = vpop.f32.mrb[0].mxu0
        %v10968 = vadd.f32 0.0, %v10967
        %v10969 = vpop.f32.mrb[0].mxu0
        %v10970 = vadd.f32 0.0, %v10969
        %v10971 = vpop.f32.mrb[0].mxu0
        %v10972 = vadd.f32 0.0, %v10971
        %v10973 = vpop.f32.mrb[0].mxu0
        %v10974 = vadd.f32 0.0, %v10973
        %10975 = vmatprep.mubr.bf16.mxu0 %v8150
        %10976 = vmatmul.mubr.bf16.gmra.mrb[0].mxu0 %v8149
        %v10977 = vpop.f32.mrb[0].mxu0
        %v10978 = vadd.f32 0.0, %v10977
        %v10979 = vpop.f32.mrb[0].mxu0
        %v10980 = vadd.f32 0.0, %v10979
        %v10981 = vpop.f32.mrb[0].mxu0
        %v10982 = vadd.f32 0.0, %v10981
        %v10983 = vpop.f32.mrb[0].mxu0
        %v10984 = vadd.f32 0.0, %v10983
        %10985 = vmatprep.mubr.bf16.mxu0 %v8154
        %10986 = vmatmul.mubr.bf16.gmra.mrb[0].mxu0 %v8153
        %v10987 = vpop.f32.mrb[0].mxu0
        %v10988 = vadd.f32 0.0, %v10987
        %v10989 = vpop.f32.mrb[0].mxu0
        %v10990 = vadd.f32 0.0, %v10989
        %v10991 = vpop.f32.mrb[0].mxu0
        %v10992 = vadd.f32 0.0, %v10991
        %v10993 = vpop.f32.mrb[0].mxu0
        %v10994 = vadd.f32 0.0, %v10993
        %10995 = vmatprep.mubr.bf16.mxu0 %v8158
        %10996 = vmatmul.mubr.bf16.gmra.mrb[0].mxu0 %v8157
        %v10997 = vpop.f32.mrb[0].mxu0
        %v10998 = vadd.f32 0.0, %v10997
        %v10999 = vpop.f32.mrb[0].mxu0
        %v11000 = vadd.f32 0.0, %v10999
        %v11001 = vpop.f32.mrb[0].mxu0
        %v11002 = vadd.f32 0.0, %v11001
        %v11003 = vpop.f32.mrb[0].mxu0
        %v11004 = vadd.f32 0.0, %v11003
        %11005 = vmatprep.mubr.bf16.mxu0 %v8162
        %11006 = vmatmul.mubr.bf16.gmra.mrb[0].mxu0 %v8161
        %v11007 = vpop.f32.mrb[0].mxu0
        %v11008 = vadd.f32 0.0, %v11007
        %v11009 = vpop.f32.mrb[0].mxu0
        %v11010 = vadd.f32 0.0, %v11009
        %v11011 = vpop.f32.mrb[0].mxu0
        %v11012 = vadd.f32 0.0, %v11011
        %v11013 = vpop.f32.mrb[0].mxu0
        %v11014 = vadd.f32 0.0, %v11013
        %11015 = vmatprep.mubr.bf16.mxu0 %v8166
        %11016 = vmatmul.mubr.bf16.gmra.mrb[0].mxu0 %v8165
        %v11017 = vpop.f32.mrb[0].mxu0
        %v11018 = vadd.f32 0.0, %v11017
        %v11019 = vpop.f32.mrb[0].mxu0
        %v11020 = vadd.f32 0.0, %v11019
        %v11021 = vpop.f32.mrb[0].mxu0
        %v11022 = vadd.f32 0.0, %v11021
        %v11023 = vpop.f32.mrb[0].mxu0
        %v11024 = vadd.f32 0.0, %v11023
        %11025 = vmatprep.mubr.bf16.mxu0 %v8170
        %11026 = vmatmul.mubr.bf16.gmra.mrb[0].mxu0 %v8169
        %v11027 = vpop.f32.mrb[0].mxu0
        %v11028 = vadd.f32 0.0, %v11027
        %v11029 = vpop.f32.mrb[0].mxu0
        %v11030 = vadd.f32 0.0, %v11029
        %v11031 = vpop.f32.mrb[0].mxu0
        %v11032 = vadd.f32 0.0, %v11031
        %v11033 = vpop.f32.mrb[0].mxu0
        %v11034 = vadd.f32 0.0, %v11033
        %11035 = vmatprep.mubr.bf16.mxu0 %v8174
        %11036 = vmatmul.mubr.bf16.gmra.mrb[0].mxu0 %v8173
        %v11037 = vpop.f32.mrb[0].mxu0
        %v11038 = vadd.f32 0.0, %v11037
        %v11039 = vpop.f32.mrb[0].mxu0
        %v11040 = vadd.f32 0.0, %v11039
        %v11041 = vpop.f32.mrb[0].mxu0
        %v11042 = vadd.f32 0.0, %v11041
        %v11043 = vpop.f32.mrb[0].mxu0
        %v11044 = vadd.f32 0.0, %v11043
        %11045 = vmatprep.mubr.bf16.mxu0 %v8178
        %11046 = vmatmul.mubr.bf16.gmra.mrb[0].mxu0 %v8177
        %v11047 = vpop.f32.mrb[0].mxu0
        %v11048 = vadd.f32 0.0, %v11047
        %v11049 = vpop.f32.mrb[0].mxu0
        %v11050 = vadd.f32 0.0, %v11049
        %v11051 = vpop.f32.mrb[0].mxu0
        %v11052 = vadd.f32 0.0, %v11051
        %v11053 = vpop.f32.mrb[0].mxu0
        %v11054 = vadd.f32 0.0, %v11053
        %11055 = vmatprep.mubr.bf16.mxu0 %v8182
        %11056 = vmatmul.mubr.bf16.gmra.mrb[0].mxu0 %v8181
        %v11057 = vpop.f32.mrb[0].mxu0
        %v11058 = vadd.f32 0.0, %v11057
        %v11059 = vpop.f32.mrb[0].mxu0
        %v11060 = vadd.f32 0.0, %v11059
        %v11061 = vpop.f32.mrb[0].mxu0
        %v11062 = vadd.f32 0.0, %v11061
        %v11063 = vpop.f32.mrb[0].mxu0
        %v11064 = vadd.f32 0.0, %v11063
        %11065 = vmatprep.mubr.bf16.mxu0 %v8186
        %11066 = vmatmul.mubr.bf16.gmra.mrb[0].mxu0 %v8185
        %v11067 = vpop.f32.mrb[0].mxu0
        %v11068 = vadd.f32 0.0, %v11067
        %v11069 = vpop.f32.mrb[0].mxu0
        %v11070 = vadd.f32 0.0, %v11069
        %v11071 = vpop.f32.mrb[0].mxu0
        %v11072 = vadd.f32 0.0, %v11071
        %v11073 = vpop.f32.mrb[0].mxu0
        %v11074 = vadd.f32 0.0, %v11073
        %11075 = vdwg.mxu0
        %11076 = vmatprep.subr.bf16.mxu0 %v9348
        %11077 = vmatpush1.bf16.msra.mxu0 %v9347
        %11078 = vmatprep.subr.bf16.mxu0 %v9356
        %11079 = vmatpush1.bf16.msra.mxu0 %v9355
        %11080 = vmatprep.subr.bf16.mxu0 %v9364
        %11081 = vmatpush1.bf16.msra.mxu0 %v9363
        %11082 = vmatprep.subr.bf16.mxu0 %v9372
        %11083 = vmatpush1.bf16.msra.mxu0 %v9371
        %11084 = vmatprep.subr.bf16.mxu0 %v9380
        %11085 = vmatpush1.bf16.msra.mxu0 %v9379
        %11086 = vmatprep.subr.bf16.mxu0 %v9388
        %11087 = vmatpush1.bf16.msra.mxu0 %v9387
        %11088 = vmatprep.subr.bf16.mxu0 %v9396
        %11089 = vmatpush1.bf16.msra.mxu0 %v9395
        %11090 = vmatprep.subr.bf16.mxu0 %v9404
        %11091 = vmatpush1.bf16.msra.mxu0 %v9403
        %11092 = vmatprep.subr.bf16.mxu0 %v9412
        %11093 = vmatpush1.bf16.msra.mxu0 %v9411
        %11094 = vmatprep.subr.bf16.mxu0 %v9420
        %11095 = vmatpush1.bf16.msra.mxu0 %v9419
        %11096 = vmatprep.subr.bf16.mxu0 %v9428
        %11097 = vmatpush1.bf16.msra.mxu0 %v9427
        %11098 = vmatprep.subr.bf16.mxu0 %v9436
        %11099 = vmatpush1.bf16.msra.mxu0 %v9435
        %11100 = vmatprep.subr.bf16.mxu0 %v9444
        %11101 = vmatpush1.bf16.msra.mxu0 %v9443
        %11102 = vmatprep.subr.bf16.mxu0 %v9452
        %11103 = vmatpush1.bf16.msra.mxu0 %v9451
        %11104 = vmatprep.subr.bf16.mxu0 %v9460
        %11105 = vmatpush1.bf16.msra.mxu0 %v9459
        %11106 = vmatprep.subr.bf16.mxu0 %v9468
        %11107 = vmatpush1.bf16.msra.mxu0 %v9467
        %11108 = vmatprep.mubr.bf16.mxu0 %v8128
        %11109 = vmatmul.mubr.bf16.gmra.mrb[0].mxu0 %v8127
        %v11110 = vpop.f32.mrb[0].mxu0
        %v11111 = vadd.f32 %v10918, %v11110
        %v11112 = vpop.f32.mrb[0].mxu0
        %v11113 = vadd.f32 %v10920, %v11112
        %v11114 = vpop.f32.mrb[0].mxu0
        %v11115 = vadd.f32 %v10922, %v11114
        %v11116 = vpop.f32.mrb[0].mxu0
        %v11117 = vadd.f32 %v10924, %v11116
        %11118 = vmatprep.mubr.bf16.mxu0 %v8132
        %11119 = vmatmul.mubr.bf16.gmra.mrb[0].mxu0 %v8131
        %v11120 = vpop.f32.mrb[0].mxu0
        %v11121 = vadd.f32 %v10928, %v11120
        %v11122 = vpop.f32.mrb[0].mxu0
        %v11123 = vadd.f32 %v10930, %v11122
        %v11124 = vpop.f32.mrb[0].mxu0
        %v11125 = vadd.f32 %v10932, %v11124
        %v11126 = vpop.f32.mrb[0].mxu0
        %v11127 = vadd.f32 %v10934, %v11126
        %11128 = vmatprep.mubr.bf16.mxu0 %v8136
        %11129 = vmatmul.mubr.bf16.gmra.mrb[0].mxu0 %v8135
        %v11130 = vpop.f32.mrb[0].mxu0
        %v11131 = vadd.f32 %v10938, %v11130
        %v11132 = vpop.f32.mrb[0].mxu0
        %v11133 = vadd.f32 %v10940, %v11132
        %v11134 = vpop.f32.mrb[0].mxu0
        %v11135 = vadd.f32 %v10942, %v11134
        %v11136 = vpop.f32.mrb[0].mxu0
        %v11137 = vadd.f32 %v10944, %v11136
        %11138 = vmatprep.mubr.bf16.mxu0 %v8140
        %11139 = vmatmul.mubr.bf16.gmra.mrb[0].mxu0 %v8139
        %v11140 = vpop.f32.mrb[0].mxu0
        %v11141 = vadd.f32 %v10948, %v11140
        %v11142 = vpop.f32.mrb[0].mxu0
        %v11143 = vadd.f32 %v10950, %v11142
        %v11144 = vpop.f32.mrb[0].mxu0
        %v11145 = vadd.f32 %v10952, %v11144
        %v11146 = vpop.f32.mrb[0].mxu0
        %v11147 = vadd.f32 %v10954, %v11146
        %11148 = vmatprep.mubr.bf16.mxu0 %v8144
        %11149 = vmatmul.mubr.bf16.gmra.mrb[0].mxu0 %v8143
        %v11150 = vpop.f32.mrb[0].mxu0
        %v11151 = vadd.f32 %v10958, %v11150
        %v11152 = vpop.f32.mrb[0].mxu0
        %v11153 = vadd.f32 %v10960, %v11152
        %v11154 = vpop.f32.mrb[0].mxu0
        %v11155 = vadd.f32 %v10962, %v11154
        %v11156 = vpop.f32.mrb[0].mxu0
        %v11157 = vadd.f32 %v10964, %v11156
        %11158 = vmatprep.mubr.bf16.mxu0 %v8148
        %11159 = vmatmul.mubr.bf16.gmra.mrb[0].mxu0 %v8147
        %v11160 = vpop.f32.mrb[0].mxu0
        %v11161 = vadd.f32 %v10968, %v11160
        %v11162 = vpop.f32.mrb[0].mxu0
        %v11163 = vadd.f32 %v10970, %v11162
        %v11164 = vpop.f32.mrb[0].mxu0
        %v11165 = vadd.f32 %v10972, %v11164
        %v11166 = vpop.f32.mrb[0].mxu0
        %v11167 = vadd.f32 %v10974, %v11166
        %11168 = vmatprep.mubr.bf16.mxu0 %v8152
        %11169 = vmatmul.mubr.bf16.gmra.mrb[0].mxu0 %v8151
        %v11170 = vpop.f32.mrb[0].mxu0
        %v11171 = vadd.f32 %v10978, %v11170
        %v11172 = vpop.f32.mrb[0].mxu0
        %v11173 = vadd.f32 %v10980, %v11172
        %v11174 = vpop.f32.mrb[0].mxu0
        %v11175 = vadd.f32 %v10982, %v11174
        %v11176 = vpop.f32.mrb[0].mxu0
        %v11177 = vadd.f32 %v10984, %v11176
        %11178 = vmatprep.mubr.bf16.mxu0 %v8156
        %11179 = vmatmul.mubr.bf16.gmra.mrb[0].mxu0 %v8155
        %v11180 = vpop.f32.mrb[0].mxu0
        %v11181 = vadd.f32 %v10988, %v11180
        %v11182 = vpop.f32.mrb[0].mxu0
        %v11183 = vadd.f32 %v10990, %v11182
        %v11184 = vpop.f32.mrb[0].mxu0
        %v11185 = vadd.f32 %v10992, %v11184
        %v11186 = vpop.f32.mrb[0].mxu0
        %v11187 = vadd.f32 %v10994, %v11186
        %11188 = vmatprep.mubr.bf16.mxu0 %v8160
        %11189 = vmatmul.mubr.bf16.gmra.mrb[0].mxu0 %v8159
        %v11190 = vpop.f32.mrb[0].mxu0
        %v11191 = vadd.f32 %v10998, %v11190
        %v11192 = vpop.f32.mrb[0].mxu0
        %v11193 = vadd.f32 %v11000, %v11192
        %v11194 = vpop.f32.mrb[0].mxu0
        %v11195 = vadd.f32 %v11002, %v11194
        %v11196 = vpop.f32.mrb[0].mxu0
        %v11197 = vadd.f32 %v11004, %v11196
        %11198 = vmatprep.mubr.bf16.mxu0 %v8164
        %11199 = vmatmul.mubr.bf16.gmra.mrb[0].mxu0 %v8163
        %v11200 = vpop.f32.mrb[0].mxu0
        %v11201 = vadd.f32 %v11008, %v11200
        %v11202 = vpop.f32.mrb[0].mxu0
        %v11203 = vadd.f32 %v11010, %v11202
        %v11204 = vpop.f32.mrb[0].mxu0
        %v11205 = vadd.f32 %v11012, %v11204
        %v11206 = vpop.f32.mrb[0].mxu0
        %v11207 = vadd.f32 %v11014, %v11206
        %11208 = vmatprep.mubr.bf16.mxu0 %v8168
        %11209 = vmatmul.mubr.bf16.gmra.mrb[0].mxu0 %v8167
        %v11210 = vpop.f32.mrb[0].mxu0
        %v11211 = vadd.f32 %v11018, %v11210
        %v11212 = vpop.f32.mrb[0].mxu0
        %v11213 = vadd.f32 %v11020, %v11212
        %v11214 = vpop.f32.mrb[0].mxu0
        %v11215 = vadd.f32 %v11022, %v11214
        %v11216 = vpop.f32.mrb[0].mxu0
        %v11217 = vadd.f32 %v11024, %v11216
        %11218 = vmatprep.mubr.bf16.mxu0 %v8172
        %11219 = vmatmul.mubr.bf16.gmra.mrb[0].mxu0 %v8171
        %v11220 = vpop.f32.mrb[0].mxu0
        %v11221 = vadd.f32 %v11028, %v11220
        %v11222 = vpop.f32.mrb[0].mxu0
        %v11223 = vadd.f32 %v11030, %v11222
        %v11224 = vpop.f32.mrb[0].mxu0
        %v11225 = vadd.f32 %v11032, %v11224
        %v11226 = vpop.f32.mrb[0].mxu0
        %v11227 = vadd.f32 %v11034, %v11226
        %11228 = vmatprep.mubr.bf16.mxu0 %v8176
        %11229 = vmatmul.mubr.bf16.gmra.mrb[0].mxu0 %v8175
        %v11230 = vpop.f32.mrb[0].mxu0
        %v11231 = vadd.f32 %v11038, %v11230
        %v11232 = vpop.f32.mrb[0].mxu0
        %v11233 = vadd.f32 %v11040, %v11232
        %v11234 = vpop.f32.mrb[0].mxu0
        %v11235 = vadd.f32 %v11042, %v11234
        %v11236 = vpop.f32.mrb[0].mxu0
        %v11237 = vadd.f32 %v11044, %v11236
        %11238 = vmatprep.mubr.bf16.mxu0 %v8180
        %11239 = vmatmul.mubr.bf16.gmra.mrb[0].mxu0 %v8179
        %v11240 = vpop.f32.mrb[0].mxu0
        %v11241 = vadd.f32 %v11048, %v11240
        %v11242 = vpop.f32.mrb[0].mxu0
        %v11243 = vadd.f32 %v11050, %v11242
        %v11244 = vpop.f32.mrb[0].mxu0
        %v11245 = vadd.f32 %v11052, %v11244
        %v11246 = vpop.f32.mrb[0].mxu0
        %v11247 = vadd.f32 %v11054, %v11246
        %11248 = vmatprep.mubr.bf16.mxu0 %v8184
        %11249 = vmatmul.mubr.bf16.gmra.mrb[0].mxu0 %v8183
        %v11250 = vpop.f32.mrb[0].mxu0
        %v11251 = vadd.f32 %v11058, %v11250
        %v11252 = vpop.f32.mrb[0].mxu0
        %v11253 = vadd.f32 %v11060, %v11252
        %v11254 = vpop.f32.mrb[0].mxu0
        %v11255 = vadd.f32 %v11062, %v11254
        %v11256 = vpop.f32.mrb[0].mxu0
        %v11257 = vadd.f32 %v11064, %v11256
        %11258 = vmatprep.mubr.bf16.mxu0 %v8188
        %11259 = vmatmul.mubr.bf16.gmra.mrb[0].mxu0 %v8187
        %v11260 = vpop.f32.mrb[0].mxu0
        %v11261 = vadd.f32 %v11068, %v11260
        %v11262 = vpop.f32.mrb[0].mxu0
        %v11263 = vadd.f32 %v11070, %v11262
        %v11264 = vpop.f32.mrb[0].mxu0
        %v11265 = vadd.f32 %v11072, %v11264
        %v11266 = vpop.f32.mrb[0].mxu0
        %v11267 = vadd.f32 %v11074, %v11266
        %11268 = vdwg.mxu0
        %11269 = vst [vmem:[%s218] sm:$0xff] %v9953
        %11270 = vst [vmem:[%s218 + $0x8] sm:$0xff] %v9955
        %11271 = vst [vmem:[%s218 + $0x10] sm:$0xff] %v10339
        %11272 = vst [vmem:[%s218 + $0x18] sm:$0xff] %v10341
        %11273 = vst [vmem:[%s218 + $0x20] sm:$0xff] %v10725
        %11274 = vst [vmem:[%s218 + $0x28] sm:$0xff] %v10727
        %11275 = vst [vmem:[%s218 + $0x30] sm:$0xff] %v11111
        %11276 = vst [vmem:[%s218 + $0x38] sm:$0xff] %v11113
        %11277 = vst [vmem:[%s218 + $0x40] sm:$0xff] %v9957
        %11278 = vst [vmem:[%s218 + $0x48] sm:$0xff] %v9959
        %11279 = vst [vmem:[%s218 + $0x50] sm:$0xff] %v10343
        %11280 = vst [vmem:[%s218 + $0x58] sm:$0xff] %v10345
        %11281 = vst [vmem:[%s218 + $0x60] sm:$0xff] %v10729
        %11282 = vst [vmem:[%s218 + $0x68] sm:$0xff] %v10731
        %11283 = vst [vmem:[%s218 + $0x70] sm:$0xff] %v11115
        %11284 = vst [vmem:[%s218 + $0x78] sm:$0xff] %v11117
        %11285 = vst [vmem:[%s218 + $0x80] sm:$0xff] %v9963
        %11286 = vst [vmem:[%s218 + $0x88] sm:$0xff] %v9965
        %11287 = vst [vmem:[%s218 + $0x90] sm:$0xff] %v10349
        %11288 = vst [vmem:[%s218 + $0x98] sm:$0xff] %v10351
        %11289 = vst [vmem:[%s218 + $0xa0] sm:$0xff] %v10735
        %11290 = vst [vmem:[%s218 + $0xa8] sm:$0xff] %v10737
        %11291 = vst [vmem:[%s218 + $0xb0] sm:$0xff] %v11121
        %11292 = vst [vmem:[%s218 + $0xb8] sm:$0xff] %v11123
        %11293 = vst [vmem:[%s218 + $0xc0] sm:$0xff] %v9967
        %11294 = vst [vmem:[%s218 + $0xc8] sm:$0xff] %v9969
        %11295 = vst [vmem:[%s218 + $0xd0] sm:$0xff] %v10353
        %11296 = vst [vmem:[%s218 + $0xd8] sm:$0xff] %v10355
        %11297 = vst [vmem:[%s218 + $0xe0] sm:$0xff] %v10739
        %11298 = vst [vmem:[%s218 + $0xe8] sm:$0xff] %v10741
        %11299 = vst [vmem:[%s218 + $0xf0] sm:$0xff] %v11125
        %11300 = vst [vmem:[%s218 + $0xf8] sm:$0xff] %v11127
        %11301 = vst [vmem:[%s218 + $0x100] sm:$0xff] %v9973
        %11302 = vst [vmem:[%s218 + $0x108] sm:$0xff] %v9975
        %11303 = vst [vmem:[%s218 + $0x110] sm:$0xff] %v10359
        %11304 = vst [vmem:[%s218 + $0x118] sm:$0xff] %v10361
        %11305 = vst [vmem:[%s218 + $0x120] sm:$0xff] %v10745
        %11306 = vst [vmem:[%s218 + $0x128] sm:$0xff] %v10747
        %11307 = vst [vmem:[%s218 + $0x130] sm:$0xff] %v11131
        %11308 = vst [vmem:[%s218 + $0x138] sm:$0xff] %v11133
        %11309 = vst [vmem:[%s218 + $0x140] sm:$0xff] %v9977
        %11310 = vst [vmem:[%s218 + $0x148] sm:$0xff] %v9979
        %11311 = vst [vmem:[%s218 + $0x150] sm:$0xff] %v10363
        %11312 = vst [vmem:[%s218 + $0x158] sm:$0xff] %v10365
        %11313 = vst [vmem:[%s218 + $0x160] sm:$0xff] %v10749
        %11314 = vst [vmem:[%s218 + $0x168] sm:$0xff] %v10751
        %11315 = vst [vmem:[%s218 + $0x170] sm:$0xff] %v11135
        %11316 = vst [vmem:[%s218 + $0x178] sm:$0xff] %v11137
        %11317 = vst [vmem:[%s218 + $0x180] sm:$0xff] %v9983
        %11318 = vst [vmem:[%s218 + $0x188] sm:$0xff] %v9985
        %11319 = vst [vmem:[%s218 + $0x190] sm:$0xff] %v10369
        %11320 = vst [vmem:[%s218 + $0x198] sm:$0xff] %v10371
        %11321 = vst [vmem:[%s218 + $0x1a0] sm:$0xff] %v10755
        %11322 = vst [vmem:[%s218 + $0x1a8] sm:$0xff] %v10757
        %11323 = vst [vmem:[%s218 + $0x1b0] sm:$0xff] %v11141
        %11324 = vst [vmem:[%s218 + $0x1b8] sm:$0xff] %v11143
        %11325 = vst [vmem:[%s218 + $0x1c0] sm:$0xff] %v9987
        %11326 = vst [vmem:[%s218 + $0x1c8] sm:$0xff] %v9989
        %11327 = vst [vmem:[%s218 + $0x1d0] sm:$0xff] %v10373
        %11328 = vst [vmem:[%s218 + $0x1d8] sm:$0xff] %v10375
        %11329 = vst [vmem:[%s218 + $0x1e0] sm:$0xff] %v10759
        %11330 = vst [vmem:[%s218 + $0x1e8] sm:$0xff] %v10761
        %11331 = vst [vmem:[%s218 + $0x1f0] sm:$0xff] %v11145
        %11332 = vst [vmem:[%s218 + $0x1f8] sm:$0xff] %v11147
        %11333 = vst [vmem:[%s218 + $0x200] sm:$0xff] %v9993
        %11334 = vst [vmem:[%s218 + $0x208] sm:$0xff] %v9995
        %11335 = vst [vmem:[%s218 + $0x210] sm:$0xff] %v10379
        %11336 = vst [vmem:[%s218 + $0x218] sm:$0xff] %v10381
        %11337 = vst [vmem:[%s218 + $0x220] sm:$0xff] %v10765
        %11338 = vst [vmem:[%s218 + $0x228] sm:$0xff] %v10767
        %11339 = vst [vmem:[%s218 + $0x230] sm:$0xff] %v11151
        %11340 = vst [vmem:[%s218 + $0x238] sm:$0xff] %v11153
        %11341 = vst [vmem:[%s218 + $0x240] sm:$0xff] %v9997
        %11342 = vst [vmem:[%s218 + $0x248] sm:$0xff] %v9999
        %11343 = vst [vmem:[%s218 + $0x250] sm:$0xff] %v10383
        %11344 = vst [vmem:[%s218 + $0x258] sm:$0xff] %v10385
        %11345 = vst [vmem:[%s218 + $0x260] sm:$0xff] %v10769
        %11346 = vst [vmem:[%s218 + $0x268] sm:$0xff] %v10771
        %11347 = vst [vmem:[%s218 + $0x270] sm:$0xff] %v11155
        %11348 = vst [vmem:[%s218 + $0x278] sm:$0xff] %v11157
        %11349 = vst [vmem:[%s218 + $0x280] sm:$0xff] %v10003
        %11350 = vst [vmem:[%s218 + $0x288] sm:$0xff] %v10005
        %11351 = vst [vmem:[%s218 + $0x290] sm:$0xff] %v10389
        %11352 = vst [vmem:[%s218 + $0x298] sm:$0xff] %v10391
        %11353 = vst [vmem:[%s218 + $0x2a0] sm:$0xff] %v10775
        %11354 = vst [vmem:[%s218 + $0x2a8] sm:$0xff] %v10777
        %11355 = vst [vmem:[%s218 + $0x2b0] sm:$0xff] %v11161
        %11356 = vst [vmem:[%s218 + $0x2b8] sm:$0xff] %v11163
        %11357 = vst [vmem:[%s218 + $0x2c0] sm:$0xff] %v10007
        %11358 = vst [vmem:[%s218 + $0x2c8] sm:$0xff] %v10009
        %11359 = vst [vmem:[%s218 + $0x2d0] sm:$0xff] %v10393
        %11360 = vst [vmem:[%s218 + $0x2d8] sm:$0xff] %v10395
        %11361 = vst [vmem:[%s218 + $0x2e0] sm:$0xff] %v10779
        %11362 = vst [vmem:[%s218 + $0x2e8] sm:$0xff] %v10781
        %11363 = vst [vmem:[%s218 + $0x2f0] sm:$0xff] %v11165
        %11364 = vst [vmem:[%s218 + $0x2f8] sm:$0xff] %v11167
        %11365 = vst [vmem:[%s218 + $0x300] sm:$0xff] %v10013
        %11366 = vst [vmem:[%s218 + $0x308] sm:$0xff] %v10015
        %11367 = vst [vmem:[%s218 + $0x310] sm:$0xff] %v10399
        %11368 = vst [vmem:[%s218 + $0x318] sm:$0xff] %v10401
        %11369 = vst [vmem:[%s218 + $0x320] sm:$0xff] %v10785
        %11370 = vst [vmem:[%s218 + $0x328] sm:$0xff] %v10787
        %11371 = vst [vmem:[%s218 + $0x330] sm:$0xff] %v11171
        %11372 = vst [vmem:[%s218 + $0x338] sm:$0xff] %v11173
        %11373 = vst [vmem:[%s218 + $0x340] sm:$0xff] %v10017
        %11374 = vst [vmem:[%s218 + $0x348] sm:$0xff] %v10019
        %11375 = vst [vmem:[%s218 + $0x350] sm:$0xff] %v10403
        %11376 = vst [vmem:[%s218 + $0x358] sm:$0xff] %v10405
        %11377 = vst [vmem:[%s218 + $0x360] sm:$0xff] %v10789
        %11378 = vst [vmem:[%s218 + $0x368] sm:$0xff] %v10791
        %11379 = vst [vmem:[%s218 + $0x370] sm:$0xff] %v11175
        %11380 = vst [vmem:[%s218 + $0x378] sm:$0xff] %v11177
        %11381 = vst [vmem:[%s218 + $0x380] sm:$0xff] %v10023
        %11382 = vst [vmem:[%s218 + $0x388] sm:$0xff] %v10025
        %11383 = vst [vmem:[%s218 + $0x390] sm:$0xff] %v10409
        %11384 = vst [vmem:[%s218 + $0x398] sm:$0xff] %v10411
        %11385 = vst [vmem:[%s218 + $0x3a0] sm:$0xff] %v10795
        %11386 = vst [vmem:[%s218 + $0x3a8] sm:$0xff] %v10797
        %11387 = vst [vmem:[%s218 + $0x3b0] sm:$0xff] %v11181
        %11388 = vst [vmem:[%s218 + $0x3b8] sm:$0xff] %v11183
        %11389 = vst [vmem:[%s218 + $0x3c0] sm:$0xff] %v10027
        %11390 = vst [vmem:[%s218 + $0x3c8] sm:$0xff] %v10029
        %11391 = vst [vmem:[%s218 + $0x3d0] sm:$0xff] %v10413
        %11392 = vst [vmem:[%s218 + $0x3d8] sm:$0xff] %v10415
        %11393 = vst [vmem:[%s218 + $0x3e0] sm:$0xff] %v10799
        %11394 = vst [vmem:[%s218 + $0x3e8] sm:$0xff] %v10801
        %11395 = vst [vmem:[%s218 + $0x3f0] sm:$0xff] %v11185
        %11396 = vst [vmem:[%s218 + $0x3f8] sm:$0xff] %v11187
        %11397 = vst [vmem:[%s218 + $0x400] sm:$0xff] %v10033
        %11398 = vst [vmem:[%s218 + $0x408] sm:$0xff] %v10035
        %11399 = vst [vmem:[%s218 + $0x410] sm:$0xff] %v10419
        %11400 = vst [vmem:[%s218 + $0x418] sm:$0xff] %v10421
        %11401 = vst [vmem:[%s218 + $0x420] sm:$0xff] %v10805
        %11402 = vst [vmem:[%s218 + $0x428] sm:$0xff] %v10807
        %11403 = vst [vmem:[%s218 + $0x430] sm:$0xff] %v11191
        %11404 = vst [vmem:[%s218 + $0x438] sm:$0xff] %v11193
        %11405 = vst [vmem:[%s218 + $0x440] sm:$0xff] %v10037
        %11406 = vst [vmem:[%s218 + $0x448] sm:$0xff] %v10039
        %11407 = vst [vmem:[%s218 + $0x450] sm:$0xff] %v10423
        %11408 = vst [vmem:[%s218 + $0x458] sm:$0xff] %v10425
        %11409 = vst [vmem:[%s218 + $0x460] sm:$0xff] %v10809
        %11410 = vst [vmem:[%s218 + $0x468] sm:$0xff] %v10811
        %11411 = vst [vmem:[%s218 + $0x470] sm:$0xff] %v11195
        %11412 = vst [vmem:[%s218 + $0x478] sm:$0xff] %v11197
        %11413 = vst [vmem:[%s218 + $0x480] sm:$0xff] %v10043
        %11414 = vst [vmem:[%s218 + $0x488] sm:$0xff] %v10045
        %11415 = vst [vmem:[%s218 + $0x490] sm:$0xff] %v10429
        %11416 = vst [vmem:[%s218 + $0x498] sm:$0xff] %v10431
        %11417 = vst [vmem:[%s218 + $0x4a0] sm:$0xff] %v10815
        %11418 = vst [vmem:[%s218 + $0x4a8] sm:$0xff] %v10817
        %11419 = vst [vmem:[%s218 + $0x4b0] sm:$0xff] %v11201
        %11420 = vst [vmem:[%s218 + $0x4b8] sm:$0xff] %v11203
        %11421 = vst [vmem:[%s218 + $0x4c0] sm:$0xff] %v10047
        %11422 = vst [vmem:[%s218 + $0x4c8] sm:$0xff] %v10049
        %11423 = vst [vmem:[%s218 + $0x4d0] sm:$0xff] %v10433
        %11424 = vst [vmem:[%s218 + $0x4d8] sm:$0xff] %v10435
        %11425 = vst [vmem:[%s218 + $0x4e0] sm:$0xff] %v10819
        %11426 = vst [vmem:[%s218 + $0x4e8] sm:$0xff] %v10821
        %11427 = vst [vmem:[%s218 + $0x4f0] sm:$0xff] %v11205
        %11428 = vst [vmem:[%s218 + $0x4f8] sm:$0xff] %v11207
        %11429 = vst [vmem:[%s218 + $0x500] sm:$0xff] %v10053
        %11430 = vst [vmem:[%s218 + $0x508] sm:$0xff] %v10055
        %11431 = vst [vmem:[%s218 + $0x510] sm:$0xff] %v10439
        %11432 = vst [vmem:[%s218 + $0x518] sm:$0xff] %v10441
        %11433 = vst [vmem:[%s218 + $0x520] sm:$0xff] %v10825
        %11434 = vst [vmem:[%s218 + $0x528] sm:$0xff] %v10827
        %11435 = vst [vmem:[%s218 + $0x530] sm:$0xff] %v11211
        %11436 = vst [vmem:[%s218 + $0x538] sm:$0xff] %v11213
        %11437 = vst [vmem:[%s218 + $0x540] sm:$0xff] %v10057
        %11438 = vst [vmem:[%s218 + $0x548] sm:$0xff] %v10059
        %11439 = vst [vmem:[%s218 + $0x550] sm:$0xff] %v10443
        %11440 = vst [vmem:[%s218 + $0x558] sm:$0xff] %v10445
        %11441 = vst [vmem:[%s218 + $0x560] sm:$0xff] %v10829
        %11442 = vst [vmem:[%s218 + $0x568] sm:$0xff] %v10831
        %11443 = vst [vmem:[%s218 + $0x570] sm:$0xff] %v11215
        %11444 = vst [vmem:[%s218 + $0x578] sm:$0xff] %v11217
        %11445 = vst [vmem:[%s218 + $0x580] sm:$0xff] %v10063
        %11446 = vst [vmem:[%s218 + $0x588] sm:$0xff] %v10065
        %11447 = vst [vmem:[%s218 + $0x590] sm:$0xff] %v10449
        %11448 = vst [vmem:[%s218 + $0x598] sm:$0xff] %v10451
        %11449 = vst [vmem:[%s218 + $0x5a0] sm:$0xff] %v10835
        %11450 = vst [vmem:[%s218 + $0x5a8] sm:$0xff] %v10837
        %11451 = vst [vmem:[%s218 + $0x5b0] sm:$0xff] %v11221
        %11452 = vst [vmem:[%s218 + $0x5b8] sm:$0xff] %v11223
        %11453 = vst [vmem:[%s218 + $0x5c0] sm:$0xff] %v10067
        %11454 = vst [vmem:[%s218 + $0x5c8] sm:$0xff] %v10069
        %11455 = vst [vmem:[%s218 + $0x5d0] sm:$0xff] %v10453
        %11456 = vst [vmem:[%s218 + $0x5d8] sm:$0xff] %v10455
        %11457 = vst [vmem:[%s218 + $0x5e0] sm:$0xff] %v10839
        %11458 = vst [vmem:[%s218 + $0x5e8] sm:$0xff] %v10841
        %11459 = vst [vmem:[%s218 + $0x5f0] sm:$0xff] %v11225
        %11460 = vst [vmem:[%s218 + $0x5f8] sm:$0xff] %v11227
        %11461 = vst [vmem:[%s218 + $0x600] sm:$0xff] %v10073
        %11462 = vst [vmem:[%s218 + $0x608] sm:$0xff] %v10075
        %11463 = vst [vmem:[%s218 + $0x610] sm:$0xff] %v10459
        %11464 = vst [vmem:[%s218 + $0x618] sm:$0xff] %v10461
        %11465 = vst [vmem:[%s218 + $0x620] sm:$0xff] %v10845
        %11466 = vst [vmem:[%s218 + $0x628] sm:$0xff] %v10847
        %11467 = vst [vmem:[%s218 + $0x630] sm:$0xff] %v11231
        %11468 = vst [vmem:[%s218 + $0x638] sm:$0xff] %v11233
        %11469 = vst [vmem:[%s218 + $0x640] sm:$0xff] %v10077
        %11470 = vst [vmem:[%s218 + $0x648] sm:$0xff] %v10079
        %11471 = vst [vmem:[%s218 + $0x650] sm:$0xff] %v10463
        %11472 = vst [vmem:[%s218 + $0x658] sm:$0xff] %v10465
        %11473 = vst [vmem:[%s218 + $0x660] sm:$0xff] %v10849
        %11474 = vst [vmem:[%s218 + $0x668] sm:$0xff] %v10851
        %11475 = vst [vmem:[%s218 + $0x670] sm:$0xff] %v11235
        %11476 = vst [vmem:[%s218 + $0x678] sm:$0xff] %v11237
        %11477 = vst [vmem:[%s218 + $0x680] sm:$0xff] %v10083
        %11478 = vst [vmem:[%s218 + $0x688] sm:$0xff] %v10085
        %11479 = vst [vmem:[%s218 + $0x690] sm:$0xff] %v10469
        %11480 = vst [vmem:[%s218 + $0x698] sm:$0xff] %v10471
        %11481 = vst [vmem:[%s218 + $0x6a0] sm:$0xff] %v10855
        %11482 = vst [vmem:[%s218 + $0x6a8] sm:$0xff] %v10857
        %11483 = vst [vmem:[%s218 + $0x6b0] sm:$0xff] %v11241
        %11484 = vst [vmem:[%s218 + $0x6b8] sm:$0xff] %v11243
        %11485 = vst [vmem:[%s218 + $0x6c0] sm:$0xff] %v10087
        %11486 = vst [vmem:[%s218 + $0x6c8] sm:$0xff] %v10089
        %11487 = vst [vmem:[%s218 + $0x6d0] sm:$0xff] %v10473
        %11488 = vst [vmem:[%s218 + $0x6d8] sm:$0xff] %v10475
        %11489 = vst [vmem:[%s218 + $0x6e0] sm:$0xff] %v10859
        %11490 = vst [vmem:[%s218 + $0x6e8] sm:$0xff] %v10861
        %11491 = vst [vmem:[%s218 + $0x6f0] sm:$0xff] %v11245
        %11492 = vst [vmem:[%s218 + $0x6f8] sm:$0xff] %v11247
        %11493 = vst [vmem:[%s218 + $0x700] sm:$0xff] %v10093
        %11494 = vst [vmem:[%s218 + $0x708] sm:$0xff] %v10095
        %11495 = vst [vmem:[%s218 + $0x710] sm:$0xff] %v10479
        %11496 = vst [vmem:[%s218 + $0x718] sm:$0xff] %v10481
        %11497 = vst [vmem:[%s218 + $0x720] sm:$0xff] %v10865
        %11498 = vst [vmem:[%s218 + $0x728] sm:$0xff] %v10867
        %11499 = vst [vmem:[%s218 + $0x730] sm:$0xff] %v11251
        %11500 = vst [vmem:[%s218 + $0x738] sm:$0xff] %v11253
        %11501 = vst [vmem:[%s218 + $0x740] sm:$0xff] %v10097
        %11502 = vst [vmem:[%s218 + $0x748] sm:$0xff] %v10099
        %11503 = vst [vmem:[%s218 + $0x750] sm:$0xff] %v10483
        %11504 = vst [vmem:[%s218 + $0x758] sm:$0xff] %v10485
        %11505 = vst [vmem:[%s218 + $0x760] sm:$0xff] %v10869
        %11506 = vst [vmem:[%s218 + $0x768] sm:$0xff] %v10871
        %11507 = vst [vmem:[%s218 + $0x770] sm:$0xff] %v11255
        %11508 = vst [vmem:[%s218 + $0x778] sm:$0xff] %v11257
        %11509 = vst [vmem:[%s218 + $0x780] sm:$0xff] %v10103
        %11510 = vst [vmem:[%s218 + $0x788] sm:$0xff] %v10105
        %11511 = vst [vmem:[%s218 + $0x790] sm:$0xff] %v10489
        %11512 = vst [vmem:[%s218 + $0x798] sm:$0xff] %v10491
        %11513 = vst [vmem:[%s218 + $0x7a0] sm:$0xff] %v10875
        %11514 = vst [vmem:[%s218 + $0x7a8] sm:$0xff] %v10877
        %11515 = vst [vmem:[%s218 + $0x7b0] sm:$0xff] %v11261
        %11516 = vst [vmem:[%s218 + $0x7b8] sm:$0xff] %v11263
        %11517 = vst [vmem:[%s218 + $0x7c0] sm:$0xff] %v10107
        %11518 = vst [vmem:[%s218 + $0x7c8] sm:$0xff] %v10109
        %11519 = vst [vmem:[%s218 + $0x7d0] sm:$0xff] %v10493
        %11520 = vst [vmem:[%s218 + $0x7d8] sm:$0xff] %v10495
        %11521 = vst [vmem:[%s218 + $0x7e0] sm:$0xff] %v10879
        %11522 = vst [vmem:[%s218 + $0x7e8] sm:$0xff] %v10881
        %11523 = vst [vmem:[%s218 + $0x7f0] sm:$0xff] %v11265
        %11524 = vst [vmem:[%s218 + $0x7f8] sm:$0xff] %v11267
        %s11525 = sand.u32 %s115, 1
        %s11526 = scalar_lea.sflag [#allocation4], %s11525
        %s11527 = sand.u32 %s115, 1
        %s11528 = smul.addr %s11527, 2048
        %s11529 = scalar_lea.vmem [#allocation5], %s11528
        // Predicated region
        $region37: #{tpu_custom_call.1} parent=31 // pred_check
          %p11530 = pneg %p125
        $region38: #{tpu_custom_call.1} parent=31 // pred_check_branch
          %11532 = sbr.rel (%p11530) target = $region40
        $region39: #{tpu_custom_call.1} parent=31 // pred_region
          %s11533 = smul.u32 16, %s25
          %s11534 = smul.u32 8, %s24
          %s11536 = ssub.s32 32768, 32768
          %11537 = vsyncadd %s11526, %s11536
          %s11538 = smul.addr %s11533, 32
          %s11539 = sadd.s32 %s11534, %s11538
          %s11540 = smul.addr %s11539, 128
          %s11541 = scalar_lea.hbm %s3, %s11540
          %s11542 = sshll.u32 %s11529, 4
          %s11543 = int_to_ptr.vmem [resolvable:$true] %s11542
          %11548 = dma.vmem_to_hbm [thread:$0]  %s11543, 32768, %s11541, %s11526, 1024, 4096, 64
        $region40: #{tpu_custom_call.1} parent=31 // pred_fallthru
          _
      $region32: #{tpu_custom_call.1} parent=5 // pred_fallthru
        _
      %p11549 = scmp.le.s32.totalorder 2, %s15
      // Predicated region
      $region41: #{tpu_custom_call.1} parent=5 // pred_check
        %p11550 = pneg %p11549
      $region42: #{tpu_custom_call.1} parent=5 // pred_check_branch
        %11552 = sbr.rel (%p11550) target = $region44
      $region43: #{tpu_custom_call.1} parent=5 // pred_region
        %s11553 = ssub.s32 %s15, 2
        // Predicated region
        $region45: #{tpu_custom_call.1} parent=43 // pred_check
          %p11554 = pneg %p131
        $region46: #{tpu_custom_call.1} parent=43 // pred_check_branch
          %11556 = sbr.rel (%p11554) target = $region48
        $region47: #{tpu_custom_call.1} parent=43 // pred_region
          %s11557 = sand.u32 %s116, 1
          %s11558 = scalar_lea.sflag [#allocation4], %s11557
          %s11559 = sand.u32 %s116, 1
          %s11560 = smul.addr %s11559, 2048
          %s11561 = scalar_lea.vmem [#allocation5], %s11560
          %11562 = dma.done %s11558, 32768
        $region48: #{tpu_custom_call.1} parent=43 // pred_fallthru
          _
      $region44: #{tpu_custom_call.1} parent=5 // pred_fallthru
        _
    $region6: #{tpu_custom_call.1} parent=1 // loop_footer
      %s19 = sadd.s32 1, %s15
    $region7: #{tpu_custom_call.1} parent=1 // loop_footer_branch
      %14 = sbr.rel target = $region3
    $region8: #{tpu_custom_call.1} parent=1 // loop_exit
      _
    %11563 = vsyncpa [#allocation3], 1
    %s11564 = scalar_lea.sflag [#allocation3], 1
    %11565 = vsyncpa %s11564, 1
    %11566 = vsyncpa [#allocation4], 1
    %s11567 = scalar_lea.sflag [#allocation4], 1
    %11568 = vsyncpa %s11567, 1

</llo_original>
